<compile_context>
chip_gen: v7x
topology: tpu7x:2x2x1
jax: 0.10.0
libtpu: 0.0.40
codegen_flags: <defaults>
</compile_context>

<pallas_src>
import functools

import jax
import jax.numpy as jnp
from jax import lax
from jax.experimental import pallas as pl
from jax.experimental.pallas import tpu as pltpu

LN_EPS = 1e-5                      # PyTorch nn.LayerNorm default
# v7x has 64 MiB VMEM per TensorCore -> keep the scoped limit <= ~48 MiB so the
# same kernels run on v5e/v6e (128 MiB) and v7x.  v6e/v5e could raise this.
VMEM_LIMIT = 48 * 1024 * 1024


# ------------------------------ small helpers ------------------------------

def _round_up(x, m):
    return ((x + m - 1) // m) * m


def _pick_tile(m, cap=512):
    """Row-tile size: whole array if small, else a divisor (multiple of 8).
    cap=512 keeps double-buffered tiles inside the v7x budget; on v6e a cap of
    1024 would amortize per-grid-step overhead slightly better."""
    if m <= cap:
        return m
    for t in (1024, 512, 256, 128, 64, 32, 16, 8):
        if t <= cap and m % t == 0:
            return t
    return cap  # ragged tail: padded rows computed then discarded (no row-reduce)


def _const_spec(shape):
    """BlockSpec for an operand resident across a 1-D grid (constant index_map
    -> the block is DMA'd only once for the whole pallas_call)."""
    nd = len(shape)
    return pl.BlockSpec(shape, lambda i, _nd=nd: (0,) * _nd)


def _compiler_params():
    return pltpu.CompilerParams(dimension_semantics=("parallel",),
                                vmem_limit_bytes=VMEM_LIMIT)


def _ln(x, g, b):
    # LayerNorm over last dim, biased variance, eps=1e-5 (matches PyTorch).
    mu = jnp.mean(x, axis=-1, keepdims=True)
    var = jnp.mean((x - mu) ** 2, axis=-1, keepdims=True)
    return (x - mu) * lax.rsqrt(var + LN_EPS) * g + b


# ------------------------------ Pallas kernels ------------------------------

def _linear_kernel(x_ref, w_ref, b_ref, o_ref):
    # y = x @ w + b ; w pre-transposed + bf16 on host (no in-kernel transpose).
    o_ref[...] = jnp.dot(x_ref[...].astype(jnp.bfloat16), w_ref[...],
                         preferred_element_type=jnp.float32) + b_ref[...]


def _img_encoder_kernel(p_ref, wc_ref, bc_ref, w1_ref, b1_ref, w2_ref, b2_ref,
                        o_ref):
    # Fused per row-tile: patchify-conv stand-in -> res_l1 -> relu -> res_l2.
    # p_ref is already bf16 (cast host-side to halve HBM read bytes).
    h0 = jnp.dot(p_ref[...], wc_ref[...],
                 preferred_element_type=jnp.float32) + bc_ref[...]
    h1 = jnp.dot(h0.astype(jnp.bfloat16), w1_ref[...],
                 preferred_element_type=jnp.float32) + b1_ref[...]
    h1 = jnp.maximum(h1, 0.0)
    o_ref[...] = jnp.dot(h1.astype(jnp.bfloat16), w2_ref[...],
                         preferred_element_type=jnp.float32) + b2_ref[...]


def _decoder_kernel(mem_ref, qe_ref,
                    sa_lng_ref, sa_lnb_ref, sa_wqkv_ref, sa_bqkv_ref,
                    sa_wo_ref, sa_bo_ref,
                    ca_lng_ref, ca_lnb_ref, ca_wq_ref, ca_bq_ref,
                    ca_wkv_ref, ca_bkv_ref, ca_wo_ref, ca_bo_ref,
                    ff_lng_ref, ff_lnb_ref, ff_w1_ref, ff_b1_ref,
                    ff_w2_ref, ff_b2_ref,
                    fn_g_ref, fn_b_ref, cls_w_ref, cls_b_ref,
                    o_ref, *, num_heads, dh, dh_pad, n_layers):
    """Whole DETR decoder (normalize_before=True, pos/query_pos=None, eval) +
    final LayerNorm + cls_classifier + mean over queries, fused per batch
    element.  `tgt` lives entirely in VMEM values across all N layers.
    Per-head dims padded to dh_pad=128 lanes host-side (exact: padded q/k/v
    columns and padded W_o rows are zero)."""
    hp = num_heads * dh_pad
    scale = 1.0 / float(dh) ** 0.5                 # PyTorch scales by real dh

    mem_bf = mem_ref[0].astype(jnp.bfloat16)       # (Lk, E), cast once
    tgt = qe_ref[...]                              # (Q, E) f32

    def mha(q_f32, k_bf, v_bf, wo_bf, bo):
        # q_f32: (Lq, Hp) f32 ; k_bf/v_bf: (Lk, Hp) bf16 ; wo_bf: (Hp, E) bf16
        q_bf = q_f32.astype(jnp.bfloat16)
        acc = jnp.zeros((q_f32.shape[0], bo.shape[-1]), jnp.float32)
        for h in range(num_heads):                 # static unroll, H small
            lo = h * dh_pad                        # 128-lane aligned slices
            qh = q_bf[:, lo:lo + dh_pad]
            kh = k_bf[:, lo:lo + dh_pad]
            vh = v_bf[:, lo:lo + dh_pad]
            # scores = qh @ kh^T (contract last dims, no in-kernel transpose)
            s = lax.dot_general(qh, kh, (((1,), (1,)), ((), ())),
                                preferred_element_type=jnp.float32) * scale
            s = s - jnp.max(s, axis=-1, keepdims=True)
            p = jnp.exp(s)
            # approx reciprocal (EUP slot); rows sum to ~1 (inference-grade)
            p = p * pl.reciprocal(jnp.sum(p, axis=-1, keepdims=True),
                                  approx=True)
            oh = jnp.dot(p.astype(jnp.bfloat16), vh,
                         preferred_element_type=jnp.float32)   # (Lq, dh_pad)
            # head-merge + out-proj folded into a per-head row-slab of W_o
            acc = acc + jnp.dot(oh.astype(jnp.bfloat16),
                                wo_bf[lo:lo + dh_pad, :],
                                preferred_element_type=jnp.float32)
        return acc + bo

    for l in range(n_layers):                      # static unroll over layers
        # ---- self-attention: Q = K = V source = LN(tgt), fused QKV matmul
        t2 = _ln(tgt, sa_lng_ref[l], sa_lnb_ref[l])
        qkv = jnp.dot(t2.astype(jnp.bfloat16), sa_wqkv_ref[l],
                      preferred_element_type=jnp.float32) + sa_bqkv_ref[l]
        q = qkv[:, :hp]
        k = qkv[:, hp:2 * hp].astype(jnp.bfloat16)
        v = qkv[:, 2 * hp:].astype(jnp.bfloat16)
        tgt = tgt + mha(q, k, v, sa_wo_ref[l], sa_bo_ref[l])

        # ---- cross-attention: Q from LN(tgt), K = V = memory (un-normed)
        t2 = _ln(tgt, ca_lng_ref[l], ca_lnb_ref[l])
        q = jnp.dot(t2.astype(jnp.bfloat16), ca_wq_ref[l],
                    preferred_element_type=jnp.float32) + ca_bq_ref[l]
        kv = jnp.dot(mem_bf, ca_wkv_ref[l],
                     preferred_element_type=jnp.float32) + ca_bkv_ref[l]
        k = kv[:, :hp].astype(jnp.bfloat16)
        v = kv[:, hp:].astype(jnp.bfloat16)
        tgt = tgt + mha(q, k, v, ca_wo_ref[l], ca_bo_ref[l])

        # ---- FFN: LN -> lin1 -> relu -> lin2 -> residual
        t2 = _ln(tgt, ff_lng_ref[l], ff_lnb_ref[l])
        h1 = jnp.dot(t2.astype(jnp.bfloat16), ff_w1_ref[l],
                     preferred_element_type=jnp.float32) + ff_b1_ref[l]
        h1 = jnp.maximum(h1, 0.0)
        tgt = tgt + jnp.dot(h1.astype(jnp.bfloat16), ff_w2_ref[l],
                            preferred_element_type=jnp.float32) + ff_b2_ref[l]

    # ---- decoder-final LayerNorm -> classifier -> mean over queries ----
    # dropout_feas is identity in eval mode.
    t = _ln(tgt, fn_g_ref[...], fn_b_ref[...])
    logits = jnp.dot(t.astype(jnp.bfloat16), cls_w_ref[...],
                     preferred_element_type=jnp.float32) + cls_b_ref[...]
    o_ref[0] = jnp.mean(logits, axis=0, keepdims=True)        # (1, Cpad)


# ----------------------------- kernel wrappers ------------------------------

def linear(x, w, b):
    m, k = x.shape
    n = w.shape[1]
    tm = _pick_tile(m)
    return pl.pallas_call(
        _linear_kernel,
        out_shape=jax.ShapeDtypeStruct((m, n), jnp.float32),
        grid=(pl.cdiv(m, tm),),
        in_specs=[pl.BlockSpec((tm, k), lambda i: (i, 0)),
                  _const_spec((k, n)), _const_spec((1, n))],
        out_specs=pl.BlockSpec((tm, n), lambda i: (i, 0)),
        compiler_params=_compiler_params(),
    )(x, w, b)


def image_encoder(patches, ip):
    m, kp = patches.shape
    nf = ip["res_l1_w"].shape[0]
    d = ip["res_l2_w"].shape[1]
    tm = _pick_tile(m)
    flops = 2 * m * (kp * nf + nf * nf + nf * d)
    bytes_acc = (m * kp * 2 + m * d * 4
                 + (kp * nf + nf * nf + nf * d) * 2 + (2 * nf + d) * 4)
    return pl.pallas_call(
        _img_encoder_kernel,
        out_shape=jax.ShapeDtypeStruct((m, d), jnp.float32),
        grid=(pl.cdiv(m, tm),),
        in_specs=[pl.BlockSpec((tm, kp), lambda i: (i, 0)),
                  _const_spec(ip["conv_w"].shape), _const_spec(ip["conv_b"].shape),
                  _const_spec(ip["res_l1_w"].shape), _const_spec(ip["res_l1_b"].shape),
                  _const_spec(ip["res_l2_w"].shape), _const_spec(ip["res_l2_b"].shape)],
        out_specs=pl.BlockSpec((tm, d), lambda i: (i, 0)),
        compiler_params=_compiler_params(),
        cost_estimate=pl.CostEstimate(flops=int(flops), transcendentals=0,
                                      bytes_accessed=int(bytes_acc)),
    )(patches, ip["conv_w"], ip["conv_b"], ip["res_l1_w"], ip["res_l1_b"],
      ip["res_l2_w"], ip["res_l2_b"])


def decoder_forward(memory, qe, dec, cfg):
    """One fused pallas_call: N decoder layers + final LN + classifier + mean."""
    bsz, n_tok, e = memory.shape
    q = qe.shape[0]
    n_layers = cfg["N"]
    heads = cfg["H"]
    dh = e // heads
    hp = dec["ca_wq"].shape[2]          # H * dh_pad (static)
    dh_pad = hp // heads
    f = dec["ff_w1"].shape[2]
    cpad = dec["cls_w"].shape[1]

    # advisory cost estimate (lets XLA schedule small ops around this call)
    attn_self = 2 * q * e * 3 * hp + 4 * q * q * hp + 2 * q * hp * e
    attn_cross = 2 * q * e * hp + 4 * n_tok * e * hp + 4 * q * n_tok * hp + 2 * q * hp * e
    ffn = 4 * q * e * f
    flops = bsz * (n_layers * (attn_self + attn_cross + ffn) + 2 * q * e * cpad)
    transc = bsz * n_layers * heads * (q * q + q * n_tok)
    w_bytes = n_layers * (e * 3 * hp + 2 * hp * e + e * hp + e * 2 * hp
                          + 2 * e * f) * 2 + e * cpad * 2
    bytes_acc = bsz * n_tok * e * 4 + q * e * 4 + w_bytes + bsz * cpad * 4

    kern = functools.partial(_decoder_kernel, num_heads=heads, dh=dh,
                             dh_pad=dh_pad, n_layers=n_layers)

    in_specs = [
        pl.BlockSpec((1, n_tok, e), lambda i: (i, 0, 0)),     # memory (per batch)
        _const_spec((q, e)),                                   # query embeds
        _const_spec((n_layers, 1, e)), _const_spec((n_layers, 1, e)),
        _const_spec((n_layers, e, 3 * hp)), _const_spec((n_layers, 1, 3 * hp)),
        _const_spec((n_layers, hp, e)), _const_spec((n_layers, 1, e)),
        _const_spec((n_layers, 1, e)), _const_spec((n_layers, 1, e)),
        _const_spec((n_layers, e, hp)), _const_spec((n_layers, 1, hp)),
        _const_spec((n_layers, e, 2 * hp)), _const_spec((n_layers, 1, 2 * hp)),
        _const_spec((n_layers, hp, e)), _const_spec((n_layers, 1, e)),
        _const_spec((n_layers, 1, e)), _const_spec((n_layers, 1, e)),
        _const_spec((n_layers, e, f)), _const_spec((n_layers, 1, f)),
        _const_spec((n_layers, f, e)), _const_spec((n_layers, 1, e)),
        _const_spec((1, e)), _const_spec((1, e)),
        _const_spec((e, cpad)), _const_spec((1, cpad)),
    ]

    # TODO(synk): on v7x with bsz == 1 the batch-only grid feeds a single
    # TensorCore; a second parallel axis (e.g. head split) would be needed.
    out = pl.pallas_call(
        kern,
        out_shape=jax.ShapeDtypeStruct((bsz, 1, cpad), jnp.float32),
        grid=(bsz,),
        in_specs=in_specs,
        out_specs=pl.BlockSpec((1, 1, cpad), lambda i: (i, 0, 0)),
        compiler_params=_compiler_params(),
        cost_estimate=pl.CostEstimate(flops=int(flops),
                                      transcendentals=int(transc),
                                      bytes_accessed=int(bytes_acc)),
    )(memory, qe,
      dec["sa_lng"], dec["sa_lnb"], dec["sa_wqkv"], dec["sa_bqkv"],
      dec["sa_wo"], dec["sa_bo"],
      dec["ca_lng"], dec["ca_lnb"], dec["ca_wq"], dec["ca_bq"],
      dec["ca_wkv"], dec["ca_bkv"], dec["ca_wo"], dec["ca_bo"],
      dec["ff_lng"], dec["ff_lnb"], dec["ff_w1"], dec["ff_b1"],
      dec["ff_w2"], dec["ff_b2"],
      dec["fn_g"], dec["fn_b"], dec["cls_w"], dec["cls_b"])
    return out[:, 0, :]                                       # (B, Cpad)


# -------------------------------- full model --------------------------------

def medklip_forward(images, pp, cfg):
    """Reproduces MedKLIP.forward (deformable=False branch), eval mode."""
    bsz, cin, hh, ww = images.shape
    ps = cfg["patch"]
    nh, nw = hh // ps, ww // ps
    n_tok = nh * nw
    d = cfg["d_model"]

    # --- image_encoder ------------------------------------------------------
    # TODO(synk): the pretrained truncated ResNet (`self.res_features`) is
    # replaced by a deterministic non-overlapping-patch linear stand-in; the
    # stand-in + res_l1/relu/res_l2 run in one fused, row-tiled kernel.
    patches = images.reshape(bsz, cin, nh, ps, nw, ps)
    patches = jnp.transpose(patches, (0, 2, 4, 1, 3, 5)).reshape(
        bsz * n_tok, cin * ps * ps).astype(jnp.bfloat16)      # bf16 HBM stream
    out_emb = image_encoder(patches, pp["img"])               # (B*N_tok, d) f32
    memory = out_emb.reshape(bsz, n_tok, d)                   # (B, N_tok, d)

    # --- query embeddings ---------------------------------------------------
    # TODO(synk): `self.disease_book` (frozen BERT CLS embeddings computed in
    # __init__) is replaced by a deterministic constant of the same role.
    qe = linear(pp["disease_book"], pp["dis_emb_w"], pp["dis_emb_b"])  # (Q, d)

    # --- fused decoder + final LN + classifier + mean over queries ----------
    out = decoder_forward(memory, qe, pp["dec"], cfg)          # (B, Cpad)
    return out[:, :cfg["num_classes"]]                         # (B, num_classes)


# -------------------------------- parameters --------------------------------

def init_params(key, cfg):
    """Raw parameters in PyTorch layout (Linear weight = (out, in), f32)."""
    d = cfg["d_model"]
    keys = iter(jax.random.split(key, 128))

    def nrm(shape):
        return (0.02 * jax.random.normal(next(keys), shape)).astype(jnp.float32)

    zeros = lambda s: jnp.zeros(s, jnp.float32)
    ones = lambda s: jnp.ones(s, jnp.float32)

    def mha():
        return {"in_w": nrm((3 * d, d)), "in_b": zeros((3 * d,)),
                "out_w": nrm((d, d)), "out_b": zeros((d,))}

    def dec_layer():
        return {"self_attn": mha(), "cross_attn": mha(),
                "ln1_g": ones((d,)), "ln1_b": zeros((d,)),
                "ln2_g": ones((d,)), "ln2_b": zeros((d,)),
                "ln3_g": ones((d,)), "ln3_b": zeros((d,)),
                "lin1_w": nrm((cfg["dim_ff"], d)), "lin1_b": zeros((cfg["dim_ff"],)),
                "lin2_w": nrm((d, cfg["dim_ff"])), "lin2_b": zeros((d,))}

    return {
        "conv_w": nrm((cfg["num_ftrs"], cfg["in_ch"] * cfg["patch"] ** 2)),
        "conv_b": zeros((cfg["num_ftrs"],)),
        "res_l1_w": nrm((cfg["num_ftrs"], cfg["num_ftrs"])),
        "res_l1_b": zeros((cfg["num_ftrs"],)),
        "res_l2_w": nrm((d, cfg["num_ftrs"])),
        "res_l2_b": zeros((d,)),
        "disease_book": nrm((cfg["num_queries"], cfg["text_dim"])),
        "dis_emb_w": nrm((d, cfg["text_dim"])),
        "dis_emb_b": zeros((d,)),
        "decoder_layers": [dec_layer() for _ in range(cfg["N"])],
        "dec_norm_g": ones((d,)), "dec_norm_b": zeros((d,)),
        "cls_w": nrm((cfg["num_classes"], d)),
        "cls_b": zeros((cfg["num_classes"],)),
    }


def prepare_params(raw, cfg):
    """Host-side one-time prep: transpose weights to (K, N), cast matmul
    weights to bf16, split MHA in_proj into per-head 128-lane-padded Q/K/V,
    stack decoder layers along a leading axis, pad classifier lanes to 128."""
    d = cfg["d_model"]
    heads = cfg["H"]
    dh = d // heads
    dh_pad = _round_up(dh, 128)
    hp = heads * dh_pad

    def w_t(w):                       # PyTorch (out, in) -> (in, out)
        return jnp.asarray(w, jnp.float32).T

    def b_row(b):
        return jnp.asarray(b, jnp.float32).reshape(1, -1)

    def pad_cols(wt):                 # (d, H*dh) -> (d, H*dh_pad), zeros exact
        w3 = wt.reshape(d, heads, dh)
        out = jnp.zeros((d, heads, dh_pad), jnp.float32).at[:, :, :dh].set(w3)
        return out.reshape(d, hp)

    def pad_rows(wt):                 # (H*dh, d) -> (H*dh_pad, d)
        w3 = wt.reshape(heads, dh, d)
        out = jnp.zeros((heads, dh_pad, d), jnp.float32).at[:, :dh, :].set(w3)
        return out.reshape(hp, d)

    def pad_bias(b):                  # (H*dh,) -> (1, H*dh_pad)
        b2 = jnp.asarray(b, jnp.float32).reshape(heads, dh)
        out = jnp.zeros((heads, dh_pad), jnp.float32).at[:, :dh].set(b2)
        return out.reshape(1, hp)

    def split_mha(a):                 # PyTorch in_proj rows are [Wq; Wk; Wv]
        wq = pad_cols(w_t(a["in_w"][:d]))
        wk = pad_cols(w_t(a["in_w"][d:2 * d]))
        wv = pad_cols(w_t(a["in_w"][2 * d:]))
        bq = pad_bias(a["in_b"][:d])
        bk = pad_bias(a["in_b"][d:2 * d])
        bv = pad_bias(a["in_b"][2 * d:])
        wo = pad_rows(w_t(a["out_w"]))
        bo = b_row(a["out_b"])
        return wq, wk, wv, bq, bk, bv, wo, bo

    acc = {k: [] for k in
           ("sa_lng", "sa_lnb", "sa_wqkv", "sa_bqkv", "sa_wo", "sa_bo",
            "ca_lng", "ca_lnb", "ca_wq", "ca_bq", "ca_wkv", "ca_bkv",
            "ca_wo", "ca_bo",
            "ff_lng", "ff_lnb", "ff_w1", "ff_b1", "ff_w2", "ff_b2")}

    for lp in raw["decoder_layers"]:
        wq, wk, wv, bq, bk, bv, wo, bo = split_mha(lp["self_attn"])
        acc["sa_lng"].append(b_row(lp["ln1_g"]))
        acc["sa_lnb"].append(b_row(lp["ln1_b"]))
        acc["sa_wqkv"].append(jnp.concatenate([wq, wk, wv], axis=1))
        acc["sa_bqkv"].append(jnp.concatenate([bq, bk, bv], axis=1))
        acc["sa_wo"].append(wo)
        acc["sa_bo"].append(bo)

        wq, wk, wv, bq, bk, bv, wo, bo = split_mha(lp["cross_attn"])
        acc["ca_lng"].append(b_row(lp["ln2_g"]))
        acc["ca_lnb"].append(b_row(lp["ln2_b"]))
        acc["ca_wq"].append(wq)
        acc["ca_bq"].append(bq)
        acc["ca_wkv"].append(jnp.concatenate([wk, wv], axis=1))
        acc["ca_bkv"].append(jnp.concatenate([bk, bv], axis=1))
        acc["ca_wo"].append(wo)
        acc["ca_bo"].append(bo)

        acc["ff_lng"].append(b_row(lp["ln3_g"]))
        acc["ff_lnb"].append(b_row(lp["ln3_b"]))
        acc["ff_w1"].append(w_t(lp["lin1_w"]))
        acc["ff_b1"].append(b_row(lp["lin1_b"]))
        acc["ff_w2"].append(w_t(lp["lin2_w"]))
        acc["ff_b2"].append(b_row(lp["lin2_b"]))

    bf16_keys = {"sa_wqkv", "sa_wo", "ca_wq", "ca_wkv", "ca_wo", "ff_w1", "ff_w2"}
    dec = {k: (jnp.stack(v, 0).astype(jnp.bfloat16) if k in bf16_keys
               else jnp.stack(v, 0)) for k, v in acc.items()}

    c = cfg["num_classes"]
    cpad = _round_up(c, 128)
    dec["fn_g"] = b_row(raw["dec_norm_g"])
    dec["fn_b"] = b_row(raw["dec_norm_b"])
    dec["cls_w"] = jnp.zeros((d, cpad), jnp.float32).at[:, :c].set(
        w_t(raw["cls_w"])).astype(jnp.bfloat16)
    dec["cls_b"] = jnp.zeros((1, cpad), jnp.float32).at[:, :c].set(
        b_row(raw["cls_b"]))

    def w_bf(w):
        return w_t(w).astype(jnp.bfloat16)

    return {
        "img": {"conv_w": w_bf(raw["conv_w"]), "conv_b": b_row(raw["conv_b"]),
                "res_l1_w": w_bf(raw["res_l1_w"]), "res_l1_b": b_row(raw["res_l1_b"]),
                "res_l2_w": w_bf(raw["res_l2_w"]), "res_l2_b": b_row(raw["res_l2_b"])},
        "disease_book": raw["disease_book"],
        "dis_emb_w": w_bf(raw["dis_emb_w"]), "dis_emb_b": b_row(raw["dis_emb_b"]),
        "dec": dec,
    }


# ----------------------------------- main ------------------------------------

if __name__ == "__main__":
    cfg = dict(
        d_model=32,      # real: 256
        H=4,             # attention heads
        N=2,             # decoder layers
        num_classes=4,
        dim_ff=64,       # real: 1024
        num_ftrs=32,     # real: 1024 (resnet50 layer3 channels)
        text_dim=64,     # real: 768 (BERT hidden)
        num_queries=8,   # rows of disease_book
        patch=4,
        in_ch=3,
    )
    key = jax.random.PRNGKey(0)
    kp_, kx_ = jax.random.split(key)
    raw_params = init_params(kp_, cfg)
    params = prepare_params(raw_params, cfg)
    images = jax.random.normal(kx_, (2, 3, 16, 16), dtype=jnp.float32)  # NCHW

    fwd = jax.jit(functools.partial(medklip_forward, cfg=cfg))
    out = fwd(images, params)
    out = jax.block_until_ready(out)
    assert out.shape == (2, cfg["num_classes"]), out.shape
    assert out.dtype == jnp.float32
    assert bool(jnp.all(jnp.isfinite(out)))
    print("KERNEL_OK")
</pallas_src>

<mosaic_0001>
module attributes {stable_mosaic.version = 11 : i64} {
  func.func @_linear_kernel(%arg0: i32, %arg1: memref<8x64xf32, #tpu.memory_space<vmem>>, %arg2: memref<64x32xbf16, #tpu.memory_space<vmem>>, %arg3: memref<1x32xf32, #tpu.memory_space<vmem>>, %arg4: memref<8x32xf32, #tpu.memory_space<vmem>>) attributes {dimension_semantics = [#tpu.dimension_semantics<parallel>], iteration_bounds = array<i64: 1>, scalar_prefetch = 0 : i64, scratch_operands = 0 : i64, tpu.core_type = #tpu.core_type<tc>, window_params = [{transform_indices = @transform_0, window_bounds = array<i64: 8, 64>}, {pipeline_mode = #tpu.pipeline_mode<synchronous>, transform_indices = @transform_1, window_bounds = array<i64: 64, 32>}, {pipeline_mode = #tpu.pipeline_mode<synchronous>, transform_indices = @transform_2, window_bounds = array<i64: 1, 32>}, {transform_indices = @transform_3, window_bounds = array<i64: 8, 32>}]} {
    %c0 = arith.constant 0 : index
    %c0_0 = arith.constant 0 : index
    %0 = vector.load %arg1[%c0, %c0_0] : memref<8x64xf32, #tpu.memory_space<vmem>>, vector<8x64xf32>
    %1 = arith.truncf %0 : vector<8x64xf32> to vector<8x64xbf16>
    %c0_1 = arith.constant 0 : index
    %c0_2 = arith.constant 0 : index
    %2 = vector.load %arg2[%c0_1, %c0_2] : memref<64x32xbf16, #tpu.memory_space<vmem>>, vector<64x32xbf16>
    %cst = arith.constant dense<0.000000e+00> : vector<8x32xf32>
    %3 = tpu.matmul %1, %2, %cst {dimension_numbers = #tpu.dot_dimension_numbers<[1], [0], [0], [1], [0, 0, 1, 1], [], []>} : vector<8x64xbf16>, vector<64x32xbf16>, vector<8x32xf32> -> vector<8x32xf32>
    %c0_3 = arith.constant 0 : index
    %c0_4 = arith.constant 0 : index
    %4 = vector.load %arg3[%c0_3, %c0_4] : memref<1x32xf32, #tpu.memory_space<vmem>>, vector<1x32xf32>
    %5 = vector.broadcast %4 : vector<1x32xf32> to vector<8x32xf32>
    %6 = arith.addf %3, %5 : vector<8x32xf32>
    %c0_5 = arith.constant 0 : index
    %c0_6 = arith.constant 0 : index
    %7 = vector.load %arg4[%c0_5, %c0_6] : memref<8x32xf32, #tpu.memory_space<vmem>>, vector<8x32xf32>
    tpu.vector_store %arg4[%c0_5, %c0_6], %6 {strides = array<i32>} : memref<8x32xf32, #tpu.memory_space<vmem>>, vector<8x32xf32>,
    return
  }
  func.func @transform_0(%arg0: i32) -> (i32, i32) {
    %c0_i32 = arith.constant 0 : i32
    %c0_i32_0 = arith.constant 0 : i32
    return %arg0, %c0_i32 : i32, i32
  }
  func.func @transform_1(%arg0: i32) -> (i32, i32) {
    %c0_i32 = arith.constant 0 : i32
    %c0_i32_0 = arith.constant 0 : i32
    %c0_i32_1 = arith.constant 0 : i32
    return %c0_i32, %c0_i32_0 : i32, i32
  }
  func.func @transform_2(%arg0: i32) -> (i32, i32) {
    %c0_i32 = arith.constant 0 : i32
    %c0_i32_0 = arith.constant 0 : i32
    %c0_i32_1 = arith.constant 0 : i32
    return %c0_i32, %c0_i32_0 : i32, i32
  }
  func.func @transform_3(%arg0: i32) -> (i32, i32) {
    %c0_i32 = arith.constant 0 : i32
    %c0_i32_0 = arith.constant 0 : i32
    return %arg0, %c0_i32 : i32, i32
  }
}

module attributes {stable_mosaic.version = 11 : i64} {
  func.func @_img_encoder_kernel(%arg0: i32, %arg1: memref<32x48xbf16, #tpu.memory_space<vmem>>, %arg2: memref<48x32xbf16, #tpu.memory_space<vmem>>, %arg3: memref<1x32xf32, #tpu.memory_space<vmem>>, %arg4: memref<32x32xbf16, #tpu.memory_space<vmem>>, %arg5: memref<1x32xf32, #tpu.memory_space<vmem>>, %arg6: memref<32x32xbf16, #tpu.memory_space<vmem>>, %arg7: memref<1x32xf32, #tpu.memory_space<vmem>>, %arg8: memref<32x32xf32, #tpu.memory_space<vmem>>) attributes {dimension_semantics = [#tpu.dimension_semantics<parallel>], iteration_bounds = array<i64: 1>, scalar_prefetch = 0 : i64, scratch_operands = 0 : i64, tpu.core_type = #tpu.core_type<tc>, window_params = [{transform_indices = @transform_0, window_bounds = array<i64: 32, 48>}, {pipeline_mode = #tpu.pipeline_mode<synchronous>, transform_indices = @transform_1, window_bounds = array<i64: 48, 32>}, {pipeline_mode = #tpu.pipeline_mode<synchronous>, transform_indices = @transform_2, window_bounds = array<i64: 1, 32>}, {pipeline_mode = #tpu.pipeline_mode<synchronous>, transform_indices = @transform_3, window_bounds = array<i64: 32, 32>}, {pipeline_mode = #tpu.pipeline_mode<synchronous>, transform_indices = @transform_4, window_bounds = array<i64: 1, 32>}, {pipeline_mode = #tpu.pipeline_mode<synchronous>, transform_indices = @transform_5, window_bounds = array<i64: 32, 32>}, {pipeline_mode = #tpu.pipeline_mode<synchronous>, transform_indices = @transform_6, window_bounds = array<i64: 1, 32>}, {transform_indices = @transform_7, window_bounds = array<i64: 32, 32>}]} {
    %c0 = arith.constant 0 : index
    %c0_0 = arith.constant 0 : index
    %0 = vector.load %arg1[%c0, %c0_0] : memref<32x48xbf16, #tpu.memory_space<vmem>>, vector<32x48xbf16>
    %c0_1 = arith.constant 0 : index
    %c0_2 = arith.constant 0 : index
    %1 = vector.load %arg2[%c0_1, %c0_2] : memref<48x32xbf16, #tpu.memory_space<vmem>>, vector<48x32xbf16>
    %cst = arith.constant dense<0.000000e+00> : vector<32x32xf32>
    %2 = tpu.matmul %0, %1, %cst {dimension_numbers = #tpu.dot_dimension_numbers<[1], [0], [0], [1], [0, 0, 1, 1], [], []>} : vector<32x48xbf16>, vector<48x32xbf16>, vector<32x32xf32> -> vector<32x32xf32>
    %c0_3 = arith.constant 0 : index
    %c0_4 = arith.constant 0 : index
    %3 = vector.load %arg3[%c0_3, %c0_4] : memref<1x32xf32, #tpu.memory_space<vmem>>, vector<1x32xf32>
    %4 = vector.broadcast %3 : vector<1x32xf32> to vector<32x32xf32>
    %5 = arith.addf %2, %4 : vector<32x32xf32>
    %6 = arith.truncf %5 : vector<32x32xf32> to vector<32x32xbf16>
    %c0_5 = arith.constant 0 : index
    %c0_6 = arith.constant 0 : index
    %7 = vector.load %arg4[%c0_5, %c0_6] : memref<32x32xbf16, #tpu.memory_space<vmem>>, vector<32x32xbf16>
    %cst_7 = arith.constant dense<0.000000e+00> : vector<32x32xf32>
    %8 = tpu.matmul %6, %7, %cst_7 {dimension_numbers = #tpu.dot_dimension_numbers<[1], [0], [0], [1], [0, 0, 1, 1], [], []>} : vector<32x32xbf16>, vector<32x32xbf16>, vector<32x32xf32> -> vector<32x32xf32>
    %c0_8 = arith.constant 0 : index
    %c0_9 = arith.constant 0 : index
    %9 = vector.load %arg5[%c0_8, %c0_9] : memref<1x32xf32, #tpu.memory_space<vmem>>, vector<1x32xf32>
    %10 = vector.broadcast %9 : vector<1x32xf32> to vector<32x32xf32>
    %11 = arith.addf %8, %10 : vector<32x32xf32>
    %cst_10 = arith.constant 0.000000e+00 : f32
    %12 = vector.broadcast %cst_10 : f32 to vector<32x32xf32>
    %13 = arith.maximumf %11, %12 : vector<32x32xf32>
    %14 = arith.truncf %13 : vector<32x32xf32> to vector<32x32xbf16>
    %c0_11 = arith.constant 0 : index
    %c0_12 = arith.constant 0 : index
    %15 = vector.load %arg6[%c0_11, %c0_12] : memref<32x32xbf16, #tpu.memory_space<vmem>>, vector<32x32xbf16>
    %cst_13 = arith.constant dense<0.000000e+00> : vector<32x32xf32>
    %16 = tpu.matmul %14, %15, %cst_13 {dimension_numbers = #tpu.dot_dimension_numbers<[1], [0], [0], [1], [0, 0, 1, 1], [], []>} : vector<32x32xbf16>, vector<32x32xbf16>, vector<32x32xf32> -> vector<32x32xf32>
    %c0_14 = arith.constant 0 : index
    %c0_15 = arith.constant 0 : index
    %17 = vector.load %arg7[%c0_14, %c0_15] : memref<1x32xf32, #tpu.memory_space<vmem>>, vector<1x32xf32>
    %18 = vector.broadcast %17 : vector<1x32xf32> to vector<32x32xf32>
    %19 = arith.addf %16, %18 : vector<32x32xf32>
    %c0_16 = arith.constant 0 : index
    %c0_17 = arith.constant 0 : index
    %20 = vector.load %arg8[%c0_16, %c0_17] : memref<32x32xf32, #tpu.memory_space<vmem>>, vector<32x32xf32>
    tpu.vector_store %arg8[%c0_16, %c0_17], %19 {strides = array<i32>} : memref<32x32xf32, #tpu.memory_space<vmem>>, vector<32x32xf32>,
    return
  }
  func.func @transform_0(%arg0: i32) -> (i32, i32) {
    %c0_i32 = arith.constant 0 : i32
    %c0_i32_0 = arith.constant 0 : i32
    return %arg0, %c0_i32 : i32, i32
  }
  func.func @transform_1(%arg0: i32) -> (i32, i32) {
    %c0_i32 = arith.constant 0 : i32
    %c0_i32_0 = arith.constant 0 : i32
    %c0_i32_1 = arith.constant 0 : i32
    return %c0_i32, %c0_i32_0 : i32, i32
  }
  func.func @transform_2(%arg0: i32) -> (i32, i32) {
    %c0_i32 = arith.constant 0 : i32
    %c0_i32_0 = arith.constant 0 : i32
    %c0_i32_1 = arith.constant 0 : i32
    return %c0_i32, %c0_i32_0 : i32, i32
  }
  func.func @transform_3(%arg0: i32) -> (i32, i32) {
    %c0_i32 = arith.constant 0 : i32
    %c0_i32_0 = arith.constant 0 : i32
    %c0_i32_1 = arith.constant 0 : i32
    return %c0_i32, %c0_i32_0 : i32, i32
  }
  func.func @transform_4(%arg0: i32) -> (i32, i32) {
    %c0_i32 = arith.constant 0 : i32
    %c0_i32_0 = arith.constant 0 : i32
    %c0_i32_1 = arith.constant 0 : i32
    return %c0_i32, %c0_i32_0 : i32, i32
  }
  func.func @transform_5(%arg0: i32) -> (i32, i32) {
    %c0_i32 = arith.constant 0 : i32
    %c0_i32_0 = arith.constant 0 : i32
    %c0_i32_1 = arith.constant 0 : i32
    return %c0_i32, %c0_i32_0 : i32, i32
  }
  func.func @transform_6(%arg0: i32) -> (i32, i32) {
    %c0_i32 = arith.constant 0 : i32
    %c0_i32_0 = arith.constant 0 : i32
    %c0_i32_1 = arith.constant 0 : i32
    return %c0_i32, %c0_i32_0 : i32, i32
  }
  func.func @transform_7(%arg0: i32) -> (i32, i32) {
    %c0_i32 = arith.constant 0 : i32
    %c0_i32_0 = arith.constant 0 : i32
    return %arg0, %c0_i32 : i32, i32
  }
}

module attributes {stable_mosaic.version = 11 : i64} {
  func.func @_decoder_kernel(%arg0: i32, %arg1: memref<1x16x32xf32, #tpu.memory_space<vmem>>, %arg2: memref<8x32xf32, #tpu.memory_space<vmem>>, %arg3: memref<2x1x32xf32, #tpu.memory_space<vmem>>, %arg4: memref<2x1x32xf32, #tpu.memory_space<vmem>>, %arg5: memref<2x32x1536xbf16, #tpu.memory_space<vmem>>, %arg6: memref<2x1x1536xf32, #tpu.memory_space<vmem>>, %arg7: memref<2x512x32xbf16, #tpu.memory_space<vmem>>, %arg8: memref<2x1x32xf32, #tpu.memory_space<vmem>>, %arg9: memref<2x1x32xf32, #tpu.memory_space<vmem>>, %arg10: memref<2x1x32xf32, #tpu.memory_space<vmem>>, %arg11: memref<2x32x512xbf16, #tpu.memory_space<vmem>>, %arg12: memref<2x1x512xf32, #tpu.memory_space<vmem>>, %arg13: memref<2x32x1024xbf16, #tpu.memory_space<vmem>>, %arg14: memref<2x1x1024xf32, #tpu.memory_space<vmem>>, %arg15: memref<2x512x32xbf16, #tpu.memory_space<vmem>>, %arg16: memref<2x1x32xf32, #tpu.memory_space<vmem>>, %arg17: memref<2x1x32xf32, #tpu.memory_space<vmem>>, %arg18: memref<2x1x32xf32, #tpu.memory_space<vmem>>, %arg19: memref<2x32x64xbf16, #tpu.memory_space<vmem>>, %arg20: memref<2x1x64xf32, #tpu.memory_space<vmem>>, %arg21: memref<2x64x32xbf16, #tpu.memory_space<vmem>>, %arg22: memref<2x1x32xf32, #tpu.memory_space<vmem>>, %arg23: memref<1x32xf32, #tpu.memory_space<vmem>>, %arg24: memref<1x32xf32, #tpu.memory_space<vmem>>, %arg25: memref<32x128xbf16, #tpu.memory_space<vmem>>, %arg26: memref<1x128xf32, #tpu.memory_space<vmem>>, %arg27: memref<1x1x128xf32, #tpu.memory_space<vmem>>) attributes {dimension_semantics = [#tpu.dimension_semantics<parallel>], iteration_bounds = array<i64: 2>, scalar_prefetch = 0 : i64, scratch_operands = 0 : i64, tpu.core_type = #tpu.core_type<tc>, window_params = [{transform_indices = @transform_0, window_bounds = array<i64: 1, 16, 32>}, {pipeline_mode = #tpu.pipeline_mode<synchronous>, transform_indices = @transform_1, window_bounds = array<i64: 8, 32>}, {pipeline_mode = #tpu.pipeline_mode<synchronous>, transform_indices = @transform_2, window_bounds = array<i64: 2, 1, 32>}, {pipeline_mode = #tpu.pipeline_mode<synchronous>, transform_indices = @transform_3, window_bounds = array<i64: 2, 1, 32>}, {pipeline_mode = #tpu.pipeline_mode<synchronous>, transform_indices = @transform_4, window_bounds = array<i64: 2, 32, 1536>}, {pipeline_mode = #tpu.pipeline_mode<synchronous>, transform_indices = @transform_5, window_bounds = array<i64: 2, 1, 1536>}, {pipeline_mode = #tpu.pipeline_mode<synchronous>, transform_indices = @transform_6, window_bounds = array<i64: 2, 512, 32>}, {pipeline_mode = #tpu.pipeline_mode<synchronous>, transform_indices = @transform_7, window_bounds = array<i64: 2, 1, 32>}, {pipeline_mode = #tpu.pipeline_mode<synchronous>, transform_indices = @transform_8, window_bounds = array<i64: 2, 1, 32>}, {pipeline_mode = #tpu.pipeline_mode<synchronous>, transform_indices = @transform_9, window_bounds = array<i64: 2, 1, 32>}, {pipeline_mode = #tpu.pipeline_mode<synchronous>, transform_indices = @transform_10, window_bounds = array<i64: 2, 32, 512>}, {pipeline_mode = #tpu.pipeline_mode<synchronous>, transform_indices = @transform_11, window_bounds = array<i64: 2, 1, 512>}, {pipeline_mode = #tpu.pipeline_mode<synchronous>, transform_indices = @transform_12, window_bounds = array<i64: 2, 32, 1024>}, {pipeline_mode = #tpu.pipeline_mode<synchronous>, transform_indices = @transform_13, window_bounds = array<i64: 2, 1, 1024>}, {pipeline_mode = #tpu.pipeline_mode<synchronous>, transform_indices = @transform_14, window_bounds = array<i64: 2, 512, 32>}, {pipeline_mode = #tpu.pipeline_mode<synchronous>, transform_indices = @transform_15, window_bounds = array<i64: 2, 1, 32>}, {pipeline_mode = #tpu.pipeline_mode<synchronous>, transform_indices = @transform_16, window_bounds = array<i64: 2, 1, 32>}, {pipeline_mode = #tpu.pipeline_mode<synchronous>, transform_indices = @transform_17, window_bounds = array<i64: 2, 1, 32>}, {pipeline_mode = #tpu.pipeline_mode<synchronous>, transform_indices = @transform_18, window_bounds = array<i64: 2, 32, 64>}, {pipeline_mode = #tpu.pipeline_mode<synchronous>, transform_indices = @transform_19, window_bounds = array<i64: 2, 1, 64>}, {pipeline_mode = #tpu.pipeline_mode<synchronous>, transform_indices = @transform_20, window_bounds = array<i64: 2, 64, 32>}, {pipeline_mode = #tpu.pipeline_mode<synchronous>, transform_indices = @transform_21, window_bounds = array<i64: 2, 1, 32>}, {pipeline_mode = #tpu.pipeline_mode<synchronous>, transform_indices = @transform_22, window_bounds = array<i64: 1, 32>}, {pipeline_mode = #tpu.pipeline_mode<synchronous>, transform_indices = @transform_23, window_bounds = array<i64: 1, 32>}, {pipeline_mode = #tpu.pipeline_mode<synchronous>, transform_indices = @transform_24, window_bounds = array<i64: 32, 128>}, {pipeline_mode = #tpu.pipeline_mode<synchronous>, transform_indices = @transform_25, window_bounds = array<i64: 1, 128>}, {transform_indices = @transform_26, window_bounds = array<i64: 1, 1, 128>}]} {
    %c0 = arith.constant 0 : index
    %c0_0 = arith.constant 0 : index
    %c0_1 = arith.constant 0 : index
    %0 = vector.load %arg1[%c0, %c0_0, %c0_1] : memref<1x16x32xf32, #tpu.memory_space<vmem>>, vector<1x16x32xf32>
    %1 = vector.shape_cast %0 : vector<1x16x32xf32> to vector<16x32xf32>
    %2 = arith.truncf %1 : vector<16x32xf32> to vector<16x32xbf16>
    %c0_2 = arith.constant 0 : index
    %c0_3 = arith.constant 0 : index
    %3 = vector.load %arg2[%c0_2, %c0_3] : memref<8x32xf32, #tpu.memory_space<vmem>>, vector<8x32xf32>
    %c0_4 = arith.constant 0 : index
    %c0_5 = arith.constant 0 : index
    %c0_6 = arith.constant 0 : index
    %4 = vector.load %arg3[%c0_4, %c0_5, %c0_6] : memref<2x1x32xf32, #tpu.memory_space<vmem>>, vector<1x1x32xf32>
    %5 = vector.shape_cast %4 : vector<1x1x32xf32> to vector<1x32xf32>
    %c0_7 = arith.constant 0 : index
    %c0_8 = arith.constant 0 : index
    %c0_9 = arith.constant 0 : index
    %6 = vector.load %arg4[%c0_7, %c0_8, %c0_9] : memref<2x1x32xf32, #tpu.memory_space<vmem>>, vector<1x1x32xf32>
    %7 = vector.shape_cast %6 : vector<1x1x32xf32> to vector<1x32xf32>
    %cst = arith.constant dense<0.000000e+00> : vector<8xf32>
    %8 = vector.multi_reduction <add>, %3, %cst [1] : vector<8x32xf32> to vector<8xf32>
    %9 = vector.shape_cast %8 : vector<8xf32> to vector<8x1xf32>
    %cst_10 = arith.constant 3.200000e+01 : f32
    %10 = vector.broadcast %cst_10 : f32 to vector<8x1xf32>
    %11 = arith.divf %9, %10 : vector<8x1xf32>
    %12 = vector.broadcast %11 : vector<8x1xf32> to vector<8x32xf32>
    %13 = arith.subf %3, %12 : vector<8x32xf32>
    %14 = arith.mulf %13, %13 : vector<8x32xf32>
    %cst_11 = arith.constant dense<0.000000e+00> : vector<8xf32>
    %15 = vector.multi_reduction <add>, %14, %cst_11 [1] : vector<8x32xf32> to vector<8xf32>
    %16 = vector.shape_cast %15 : vector<8xf32> to vector<8x1xf32>
    %cst_12 = arith.constant 3.200000e+01 : f32
    %17 = vector.broadcast %cst_12 : f32 to vector<8x1xf32>
    %18 = arith.divf %16, %17 : vector<8x1xf32>
    %19 = vector.broadcast %11 : vector<8x1xf32> to vector<8x32xf32>
    %20 = arith.subf %3, %19 : vector<8x32xf32>
    %cst_13 = arith.constant 9.99999974E-6 : f32
    %21 = vector.broadcast %cst_13 : f32 to vector<8x1xf32>
    %22 = arith.addf %18, %21 : vector<8x1xf32>
    %23 = math.rsqrt %22 : vector<8x1xf32>
    %24 = vector.broadcast %23 : vector<8x1xf32> to vector<8x32xf32>
    %25 = arith.mulf %20, %24 : vector<8x32xf32>
    %26 = vector.broadcast %5 : vector<1x32xf32> to vector<8x32xf32>
    %27 = arith.mulf %25, %26 : vector<8x32xf32>
    %28 = vector.broadcast %7 : vector<1x32xf32> to vector<8x32xf32>
    %29 = arith.addf %27, %28 : vector<8x32xf32>
    %30 = arith.truncf %29 : vector<8x32xf32> to vector<8x32xbf16>
    %c0_14 = arith.constant 0 : index
    %c0_15 = arith.constant 0 : index
    %c0_16 = arith.constant 0 : index
    %31 = vector.load %arg5[%c0_14, %c0_15, %c0_16] : memref<2x32x1536xbf16, #tpu.memory_space<vmem>>, vector<1x32x1536xbf16>
    %32 = vector.shape_cast %31 : vector<1x32x1536xbf16> to vector<32x1536xbf16>
    %cst_17 = arith.constant dense<0.000000e+00> : vector<8x1536xf32>
    %33 = tpu.matmul %30, %32, %cst_17 {dimension_numbers = #tpu.dot_dimension_numbers<[1], [0], [0], [1], [0, 0, 1, 1], [], []>} : vector<8x32xbf16>, vector<32x1536xbf16>, vector<8x1536xf32> -> vector<8x1536xf32>
    %c0_18 = arith.constant 0 : index
    %c0_19 = arith.constant 0 : index
    %c0_20 = arith.constant 0 : index
    %34 = vector.load %arg6[%c0_18, %c0_19, %c0_20] : memref<2x1x1536xf32, #tpu.memory_space<vmem>>, vector<1x1x1536xf32>
    %35 = vector.shape_cast %34 : vector<1x1x1536xf32> to vector<1x1536xf32>
    %36 = vector.broadcast %35 : vector<1x1536xf32> to vector<8x1536xf32>
    %37 = arith.addf %33, %36 : vector<8x1536xf32>
    %38 = vector.extract_strided_slice %37 {offsets = [0, 0], sizes = [8, 512], strides = [1, 1]} : vector<8x1536xf32> to vector<8x512xf32>
    %39 = vector.extract_strided_slice %37 {offsets = [0, 512], sizes = [8, 512], strides = [1, 1]} : vector<8x1536xf32> to vector<8x512xf32>
    %40 = arith.truncf %39 : vector<8x512xf32> to vector<8x512xbf16>
    %41 = vector.extract_strided_slice %37 {offsets = [0, 1024], sizes = [8, 512], strides = [1, 1]} : vector<8x1536xf32> to vector<8x512xf32>
    %42 = arith.truncf %41 : vector<8x512xf32> to vector<8x512xbf16>
    %c0_21 = arith.constant 0 : index
    %c0_22 = arith.constant 0 : index
    %c0_23 = arith.constant 0 : index
    %43 = vector.load %arg7[%c0_21, %c0_22, %c0_23] : memref<2x512x32xbf16, #tpu.memory_space<vmem>>, vector<1x512x32xbf16>
    %44 = vector.shape_cast %43 : vector<1x512x32xbf16> to vector<512x32xbf16>
    %c0_24 = arith.constant 0 : index
    %c0_25 = arith.constant 0 : index
    %c0_26 = arith.constant 0 : index
    %45 = vector.load %arg8[%c0_24, %c0_25, %c0_26] : memref<2x1x32xf32, #tpu.memory_space<vmem>>, vector<1x1x32xf32>
    %46 = vector.shape_cast %45 : vector<1x1x32xf32> to vector<1x32xf32>
    %47 = arith.truncf %38 : vector<8x512xf32> to vector<8x512xbf16>
    %cst_27 = arith.constant 0.000000e+00 : f32
    %48 = vector.broadcast %cst_27 : f32 to vector<8x32xf32>
    %49 = vector.extract_strided_slice %47 {offsets = [0, 0], sizes = [8, 128], strides = [1, 1]} : vector<8x512xbf16> to vector<8x128xbf16>
    %50 = vector.extract_strided_slice %40 {offsets = [0, 0], sizes = [8, 128], strides = [1, 1]} : vector<8x512xbf16> to vector<8x128xbf16>
    %51 = vector.extract_strided_slice %42 {offsets = [0, 0], sizes = [8, 128], strides = [1, 1]} : vector<8x512xbf16> to vector<8x128xbf16>
    %cst_28 = arith.constant dense<0.000000e+00> : vector<8x8xf32>
    %52 = tpu.matmul %49, %50, %cst_28 {dimension_numbers = #tpu.dot_dimension_numbers<[1], [1], [0], [0], [0, 0, 1, 0], [], []>} : vector<8x128xbf16>, vector<8x128xbf16>, vector<8x8xf32> -> vector<8x8xf32>
    %cst_29 = arith.constant 0.353553385 : f32
    %53 = vector.broadcast %cst_29 : f32 to vector<8x8xf32>
    %54 = arith.mulf %52, %53 : vector<8x8xf32>
    %cst_30 = arith.constant dense<0xFF800000> : vector<8xf32>
    %55 = vector.multi_reduction <maximumf>, %54, %cst_30 [1] : vector<8x8xf32> to vector<8xf32>
    %56 = vector.shape_cast %55 : vector<8xf32> to vector<8x1xf32>
    %57 = vector.broadcast %56 : vector<8x1xf32> to vector<8x8xf32>
    %58 = arith.subf %54, %57 : vector<8x8xf32>
    %59 = math.exp %58 : vector<8x8xf32>
    %cst_31 = arith.constant dense<0.000000e+00> : vector<8xf32>
    %60 = vector.multi_reduction <add>, %59, %cst_31 [1] : vector<8x8xf32> to vector<8xf32>
    %61 = vector.shape_cast %60 : vector<8xf32> to vector<8x1xf32>
    %62 = tpu.reciprocal %61 {approx = true} : vector<8x1xf32> -> vector<8x1xf32>
    %63 = vector.broadcast %62 : vector<8x1xf32> to vector<8x8xf32>
    %64 = arith.mulf %59, %63 : vector<8x8xf32>
    %65 = arith.truncf %64 : vector<8x8xf32> to vector<8x8xbf16>
    %cst_32 = arith.constant dense<0.000000e+00> : vector<8x128xf32>
    %66 = tpu.matmul %65, %51, %cst_32 {dimension_numbers = #tpu.dot_dimension_numbers<[1], [0], [0], [1], [0, 0, 1, 1], [], []>} : vector<8x8xbf16>, vector<8x128xbf16>, vector<8x128xf32> -> vector<8x128xf32>
    %67 = arith.truncf %66 : vector<8x128xf32> to vector<8x128xbf16>
    %68 = vector.extract_strided_slice %44 {offsets = [0, 0], sizes = [128, 32], strides = [1, 1]} : vector<512x32xbf16> to vector<128x32xbf16>
    %cst_33 = arith.constant dense<0.000000e+00> : vector<8x32xf32>
    %69 = tpu.matmul %67, %68, %cst_33 {dimension_numbers = #tpu.dot_dimension_numbers<[1], [0], [0], [1], [0, 0, 1, 1], [], []>} : vector<8x128xbf16>, vector<128x32xbf16>, vector<8x32xf32> -> vector<8x32xf32>
    %70 = arith.addf %48, %69 : vector<8x32xf32>
    %71 = vector.extract_strided_slice %47 {offsets = [0, 128], sizes = [8, 128], strides = [1, 1]} : vector<8x512xbf16> to vector<8x128xbf16>
    %72 = vector.extract_strided_slice %40 {offsets = [0, 128], sizes = [8, 128], strides = [1, 1]} : vector<8x512xbf16> to vector<8x128xbf16>
    %73 = vector.extract_strided_slice %42 {offsets = [0, 128], sizes = [8, 128], strides = [1, 1]} : vector<8x512xbf16> to vector<8x128xbf16>
    %cst_34 = arith.constant dense<0.000000e+00> : vector<8x8xf32>
    %74 = tpu.matmul %71, %72, %cst_34 {dimension_numbers = #tpu.dot_dimension_numbers<[1], [1], [0], [0], [0, 0, 1, 0], [], []>} : vector<8x128xbf16>, vector<8x128xbf16>, vector<8x8xf32> -> vector<8x8xf32>
    %cst_35 = arith.constant 0.353553385 : f32
    %75 = vector.broadcast %cst_35 : f32 to vector<8x8xf32>
    %76 = arith.mulf %74, %75 : vector<8x8xf32>
    %cst_36 = arith.constant dense<0xFF800000> : vector<8xf32>
    %77 = vector.multi_reduction <maximumf>, %76, %cst_36 [1] : vector<8x8xf32> to vector<8xf32>
    %78 = vector.shape_cast %77 : vector<8xf32> to vector<8x1xf32>
    %79 = vector.broadcast %78 : vector<8x1xf32> to vector<8x8xf32>
    %80 = arith.subf %76, %79 : vector<8x8xf32>
    %81 = math.exp %80 : vector<8x8xf32>
    %cst_37 = arith.constant dense<0.000000e+00> : vector<8xf32>
    %82 = vector.multi_reduction <add>, %81, %cst_37 [1] : vector<8x8xf32> to vector<8xf32>
    %83 = vector.shape_cast %82 : vector<8xf32> to vector<8x1xf32>
    %84 = tpu.reciprocal %83 {approx = true} : vector<8x1xf32> -> vector<8x1xf32>
    %85 = vector.broadcast %84 : vector<8x1xf32> to vector<8x8xf32>
    %86 = arith.mulf %81, %85 : vector<8x8xf32>
    %87 = arith.truncf %86 : vector<8x8xf32> to vector<8x8xbf16>
    %cst_38 = arith.constant dense<0.000000e+00> : vector<8x128xf32>
    %88 = tpu.matmul %87, %73, %cst_38 {dimension_numbers = #tpu.dot_dimension_numbers<[1], [0], [0], [1], [0, 0, 1, 1], [], []>} : vector<8x8xbf16>, vector<8x128xbf16>, vector<8x128xf32> -> vector<8x128xf32>
    %89 = arith.truncf %88 : vector<8x128xf32> to vector<8x128xbf16>
    %90 = vector.extract_strided_slice %44 {offsets = [128, 0], sizes = [128, 32], strides = [1, 1]} : vector<512x32xbf16> to vector<128x32xbf16>
    %cst_39 = arith.constant dense<0.000000e+00> : vector<8x32xf32>
    %91 = tpu.matmul %89, %90, %cst_39 {dimension_numbers = #tpu.dot_dimension_numbers<[1], [0], [0], [1], [0, 0, 1, 1], [], []>} : vector<8x128xbf16>, vector<128x32xbf16>, vector<8x32xf32> -> vector<8x32xf32>
    %92 = arith.addf %70, %91 : vector<8x32xf32>
    %93 = vector.extract_strided_slice %47 {offsets = [0, 256], sizes = [8, 128], strides = [1, 1]} : vector<8x512xbf16> to vector<8x128xbf16>
    %94 = vector.extract_strided_slice %40 {offsets = [0, 256], sizes = [8, 128], strides = [1, 1]} : vector<8x512xbf16> to vector<8x128xbf16>
    %95 = vector.extract_strided_slice %42 {offsets = [0, 256], sizes = [8, 128], strides = [1, 1]} : vector<8x512xbf16> to vector<8x128xbf16>
    %cst_40 = arith.constant dense<0.000000e+00> : vector<8x8xf32>
    %96 = tpu.matmul %93, %94, %cst_40 {dimension_numbers = #tpu.dot_dimension_numbers<[1], [1], [0], [0], [0, 0, 1, 0], [], []>} : vector<8x128xbf16>, vector<8x128xbf16>, vector<8x8xf32> -> vector<8x8xf32>
    %cst_41 = arith.constant 0.353553385 : f32
    %97 = vector.broadcast %cst_41 : f32 to vector<8x8xf32>
    %98 = arith.mulf %96, %97 : vector<8x8xf32>
    %cst_42 = arith.constant dense<0xFF800000> : vector<8xf32>
    %99 = vector.multi_reduction <maximumf>, %98, %cst_42 [1] : vector<8x8xf32> to vector<8xf32>
    %100 = vector.shape_cast %99 : vector<8xf32> to vector<8x1xf32>
    %101 = vector.broadcast %100 : vector<8x1xf32> to vector<8x8xf32>
    %102 = arith.subf %98, %101 : vector<8x8xf32>
    %103 = math.exp %102 : vector<8x8xf32>
    %cst_43 = arith.constant dense<0.000000e+00> : vector<8xf32>
    %104 = vector.multi_reduction <add>, %103, %cst_43 [1] : vector<8x8xf32> to vector<8xf32>
    %105 = vector.shape_cast %104 : vector<8xf32> to vector<8x1xf32>
    %106 = tpu.reciprocal %105 {approx = true} : vector<8x1xf32> -> vector<8x1xf32>
    %107 = vector.broadcast %106 : vector<8x1xf32> to vector<8x8xf32>
    %108 = arith.mulf %103, %107 : vector<8x8xf32>
    %109 = arith.truncf %108 : vector<8x8xf32> to vector<8x8xbf16>
    %cst_44 = arith.constant dense<0.000000e+00> : vector<8x128xf32>
    %110 = tpu.matmul %109, %95, %cst_44 {dimension_numbers = #tpu.dot_dimension_numbers<[1], [0], [0], [1], [0, 0, 1, 1], [], []>} : vector<8x8xbf16>, vector<8x128xbf16>, vector<8x128xf32> -> vector<8x128xf32>
    %111 = arith.truncf %110 : vector<8x128xf32> to vector<8x128xbf16>
    %112 = vector.extract_strided_slice %44 {offsets = [256, 0], sizes = [128, 32], strides = [1, 1]} : vector<512x32xbf16> to vector<128x32xbf16>
    %cst_45 = arith.constant dense<0.000000e+00> : vector<8x32xf32>
    %113 = tpu.matmul %111, %112, %cst_45 {dimension_numbers = #tpu.dot_dimension_numbers<[1], [0], [0], [1], [0, 0, 1, 1], [], []>} : vector<8x128xbf16>, vector<128x32xbf16>, vector<8x32xf32> -> vector<8x32xf32>
    %114 = arith.addf %92, %113 : vector<8x32xf32>
    %115 = vector.extract_strided_slice %47 {offsets = [0, 384], sizes = [8, 128], strides = [1, 1]} : vector<8x512xbf16> to vector<8x128xbf16>
    %116 = vector.extract_strided_slice %40 {offsets = [0, 384], sizes = [8, 128], strides = [1, 1]} : vector<8x512xbf16> to vector<8x128xbf16>
    %117 = vector.extract_strided_slice %42 {offsets = [0, 384], sizes = [8, 128], strides = [1, 1]} : vector<8x512xbf16> to vector<8x128xbf16>
    %cst_46 = arith.constant dense<0.000000e+00> : vector<8x8xf32>
    %118 = tpu.matmul %115, %116, %cst_46 {dimension_numbers = #tpu.dot_dimension_numbers<[1], [1], [0], [0], [0, 0, 1, 0], [], []>} : vector<8x128xbf16>, vector<8x128xbf16>, vector<8x8xf32> -> vector<8x8xf32>
    %cst_47 = arith.constant 0.353553385 : f32
    %119 = vector.broadcast %cst_47 : f32 to vector<8x8xf32>
    %120 = arith.mulf %118, %119 : vector<8x8xf32>
    %cst_48 = arith.constant dense<0xFF800000> : vector<8xf32>
    %121 = vector.multi_reduction <maximumf>, %120, %cst_48 [1] : vector<8x8xf32> to vector<8xf32>
    %122 = vector.shape_cast %121 : vector<8xf32> to vector<8x1xf32>
    %123 = vector.broadcast %122 : vector<8x1xf32> to vector<8x8xf32>
    %124 = arith.subf %120, %123 : vector<8x8xf32>
    %125 = math.exp %124 : vector<8x8xf32>
    %cst_49 = arith.constant dense<0.000000e+00> : vector<8xf32>
    %126 = vector.multi_reduction <add>, %125, %cst_49 [1] : vector<8x8xf32> to vector<8xf32>
    %127 = vector.shape_cast %126 : vector<8xf32> to vector<8x1xf32>
    %128 = tpu.reciprocal %127 {approx = true} : vector<8x1xf32> -> vector<8x1xf32>
    %129 = vector.broadcast %128 : vector<8x1xf32> to vector<8x8xf32>
    %130 = arith.mulf %125, %129 : vector<8x8xf32>
    %131 = arith.truncf %130 : vector<8x8xf32> to vector<8x8xbf16>
    %cst_50 = arith.constant dense<0.000000e+00> : vector<8x128xf32>
    %132 = tpu.matmul %131, %117, %cst_50 {dimension_numbers = #tpu.dot_dimension_numbers<[1], [0], [0], [1], [0, 0, 1, 1], [], []>} : vector<8x8xbf16>, vector<8x128xbf16>, vector<8x128xf32> -> vector<8x128xf32>
    %133 = arith.truncf %132 : vector<8x128xf32> to vector<8x128xbf16>
    %134 = vector.extract_strided_slice %44 {offsets = [384, 0], sizes = [128, 32], strides = [1, 1]} : vector<512x32xbf16> to vector<128x32xbf16>
    %cst_51 = arith.constant dense<0.000000e+00> : vector<8x32xf32>
    %135 = tpu.matmul %133, %134, %cst_51 {dimension_numbers = #tpu.dot_dimension_numbers<[1], [0], [0], [1], [0, 0, 1, 1], [], []>} : vector<8x128xbf16>, vector<128x32xbf16>, vector<8x32xf32> -> vector<8x32xf32>
    %136 = arith.addf %114, %135 : vector<8x32xf32>
    %137 = vector.broadcast %46 : vector<1x32xf32> to vector<8x32xf32>
    %138 = arith.addf %136, %137 : vector<8x32xf32>
    %139 = arith.addf %3, %138 : vector<8x32xf32>
    %c0_52 = arith.constant 0 : index
    %c0_53 = arith.constant 0 : index
    %c0_54 = arith.constant 0 : index
    %140 = vector.load %arg9[%c0_52, %c0_53, %c0_54] : memref<2x1x32xf32, #tpu.memory_space<vmem>>, vector<1x1x32xf32>
    %141 = vector.shape_cast %140 : vector<1x1x32xf32> to vector<1x32xf32>
    %c0_55 = arith.constant 0 : index
    %c0_56 = arith.constant 0 : index
    %c0_57 = arith.constant 0 : index
    %142 = vector.load %arg10[%c0_55, %c0_56, %c0_57] : memref<2x1x32xf32, #tpu.memory_space<vmem>>, vector<1x1x32xf32>
    %143 = vector.shape_cast %142 : vector<1x1x32xf32> to vector<1x32xf32>
    %cst_58 = arith.constant dense<0.000000e+00> : vector<8xf32>
    %144 = vector.multi_reduction <add>, %139, %cst_58 [1] : vector<8x32xf32> to vector<8xf32>
    %145 = vector.shape_cast %144 : vector<8xf32> to vector<8x1xf32>
    %cst_59 = arith.constant 3.200000e+01 : f32
    %146 = vector.broadcast %cst_59 : f32 to vector<8x1xf32>
    %147 = arith.divf %145, %146 : vector<8x1xf32>
    %148 = vector.broadcast %147 : vector<8x1xf32> to vector<8x32xf32>
    %149 = arith.subf %139, %148 : vector<8x32xf32>
    %150 = arith.mulf %149, %149 : vector<8x32xf32>
    %cst_60 = arith.constant dense<0.000000e+00> : vector<8xf32>
    %151 = vector.multi_reduction <add>, %150, %cst_60 [1] : vector<8x32xf32> to vector<8xf32>
    %152 = vector.shape_cast %151 : vector<8xf32> to vector<8x1xf32>
    %cst_61 = arith.constant 3.200000e+01 : f32
    %153 = vector.broadcast %cst_61 : f32 to vector<8x1xf32>
    %154 = arith.divf %152, %153 : vector<8x1xf32>
    %155 = vector.broadcast %147 : vector<8x1xf32> to vector<8x32xf32>
    %156 = arith.subf %139, %155 : vector<8x32xf32>
    %cst_62 = arith.constant 9.99999974E-6 : f32
    %157 = vector.broadcast %cst_62 : f32 to vector<8x1xf32>
    %158 = arith.addf %154, %157 : vector<8x1xf32>
    %159 = math.rsqrt %158 : vector<8x1xf32>
    %160 = vector.broadcast %159 : vector<8x1xf32> to vector<8x32xf32>
    %161 = arith.mulf %156, %160 : vector<8x32xf32>
    %162 = vector.broadcast %141 : vector<1x32xf32> to vector<8x32xf32>
    %163 = arith.mulf %161, %162 : vector<8x32xf32>
    %164 = vector.broadcast %143 : vector<1x32xf32> to vector<8x32xf32>
    %165 = arith.addf %163, %164 : vector<8x32xf32>
    %166 = arith.truncf %165 : vector<8x32xf32> to vector<8x32xbf16>
    %c0_63 = arith.constant 0 : index
    %c0_64 = arith.constant 0 : index
    %c0_65 = arith.constant 0 : index
    %167 = vector.load %arg11[%c0_63, %c0_64, %c0_65] : memref<2x32x512xbf16, #tpu.memory_space<vmem>>, vector<1x32x512xbf16>
    %168 = vector.shape_cast %167 : vector<1x32x512xbf16> to vector<32x512xbf16>
    %cst_66 = arith.constant dense<0.000000e+00> : vector<8x512xf32>
    %169 = tpu.matmul %166, %168, %cst_66 {dimension_numbers = #tpu.dot_dimension_numbers<[1], [0], [0], [1], [0, 0, 1, 1], [], []>} : vector<8x32xbf16>, vector<32x512xbf16>, vector<8x512xf32> -> vector<8x512xf32>
    %c0_67 = arith.constant 0 : index
    %c0_68 = arith.constant 0 : index
    %c0_69 = arith.constant 0 : index
    %170 = vector.load %arg12[%c0_67, %c0_68, %c0_69] : memref<2x1x512xf32, #tpu.memory_space<vmem>>, vector<1x1x512xf32>
    %171 = vector.shape_cast %170 : vector<1x1x512xf32> to vector<1x512xf32>
    %172 = vector.broadcast %171 : vector<1x512xf32> to vector<8x512xf32>
    %173 = arith.addf %169, %172 : vector<8x512xf32>
    %c0_70 = arith.constant 0 : index
    %c0_71 = arith.constant 0 : index
    %c0_72 = arith.constant 0 : index
    %174 = vector.load %arg13[%c0_70, %c0_71, %c0_72] : memref<2x32x1024xbf16, #tpu.memory_space<vmem>>, vector<1x32x1024xbf16>
    %175 = vector.shape_cast %174 : vector<1x32x1024xbf16> to vector<32x1024xbf16>
    %cst_73 = arith.constant dense<0.000000e+00> : vector<16x1024xf32>
    %176 = tpu.matmul %2, %175, %cst_73 {dimension_numbers = #tpu.dot_dimension_numbers<[1], [0], [0], [1], [0, 0, 1, 1], [], []>} : vector<16x32xbf16>, vector<32x1024xbf16>, vector<16x1024xf32> -> vector<16x1024xf32>
    %c0_74 = arith.constant 0 : index
    %c0_75 = arith.constant 0 : index
    %c0_76 = arith.constant 0 : index
    %177 = vector.load %arg14[%c0_74, %c0_75, %c0_76] : memref<2x1x1024xf32, #tpu.memory_space<vmem>>, vector<1x1x1024xf32>
    %178 = vector.shape_cast %177 : vector<1x1x1024xf32> to vector<1x1024xf32>
    %179 = vector.broadcast %178 : vector<1x1024xf32> to vector<16x1024xf32>
    %180 = arith.addf %176, %179 : vector<16x1024xf32>
    %181 = vector.extract_strided_slice %180 {offsets = [0, 0], sizes = [16, 512], strides = [1, 1]} : vector<16x1024xf32> to vector<16x512xf32>
    %182 = arith.truncf %181 : vector<16x512xf32> to vector<16x512xbf16>
    %183 = vector.extract_strided_slice %180 {offsets = [0, 512], sizes = [16, 512], strides = [1, 1]} : vector<16x1024xf32> to vector<16x512xf32>
    %184 = arith.truncf %183 : vector<16x512xf32> to vector<16x512xbf16>
    %c0_77 = arith.constant 0 : index
    %c0_78 = arith.constant 0 : index
    %c0_79 = arith.constant 0 : index
    %185 = vector.load %arg15[%c0_77, %c0_78, %c0_79] : memref<2x512x32xbf16, #tpu.memory_space<vmem>>, vector<1x512x32xbf16>
    %186 = vector.shape_cast %185 : vector<1x512x32xbf16> to vector<512x32xbf16>
    %c0_80 = arith.constant 0 : index
    %c0_81 = arith.constant 0 : index
    %c0_82 = arith.constant 0 : index
    %187 = vector.load %arg16[%c0_80, %c0_81, %c0_82] : memref<2x1x32xf32, #tpu.memory_space<vmem>>, vector<1x1x32xf32>
    %188 = vector.shape_cast %187 : vector<1x1x32xf32> to vector<1x32xf32>
    %189 = arith.truncf %173 : vector<8x512xf32> to vector<8x512xbf16>
    %cst_83 = arith.constant 0.000000e+00 : f32
    %190 = vector.broadcast %cst_83 : f32 to vector<8x32xf32>
    %191 = vector.extract_strided_slice %189 {offsets = [0, 0], sizes = [8, 128], strides = [1, 1]} : vector<8x512xbf16> to vector<8x128xbf16>
    %192 = vector.extract_strided_slice %182 {offsets = [0, 0], sizes = [16, 128], strides = [1, 1]} : vector<16x512xbf16> to vector<16x128xbf16>
    %193 = vector.extract_strided_slice %184 {offsets = [0, 0], sizes = [16, 128], strides = [1, 1]} : vector<16x512xbf16> to vector<16x128xbf16>
    %cst_84 = arith.constant dense<0.000000e+00> : vector<8x16xf32>
    %194 = tpu.matmul %191, %192, %cst_84 {dimension_numbers = #tpu.dot_dimension_numbers<[1], [1], [0], [0], [0, 0, 1, 0], [], []>} : vector<8x128xbf16>, vector<16x128xbf16>, vector<8x16xf32> -> vector<8x16xf32>
    %cst_85 = arith.constant 0.353553385 : f32
    %195 = vector.broadcast %cst_85 : f32 to vector<8x16xf32>
    %196 = arith.mulf %194, %195 : vector<8x16xf32>
    %cst_86 = arith.constant dense<0xFF800000> : vector<8xf32>
    %197 = vector.multi_reduction <maximumf>, %196, %cst_86 [1] : vector<8x16xf32> to vector<8xf32>
    %198 = vector.shape_cast %197 : vector<8xf32> to vector<8x1xf32>
    %199 = vector.broadcast %198 : vector<8x1xf32> to vector<8x16xf32>
    %200 = arith.subf %196, %199 : vector<8x16xf32>
    %201 = math.exp %200 : vector<8x16xf32>
    %cst_87 = arith.constant dense<0.000000e+00> : vector<8xf32>
    %202 = vector.multi_reduction <add>, %201, %cst_87 [1] : vector<8x16xf32> to vector<8xf32>
    %203 = vector.shape_cast %202 : vector<8xf32> to vector<8x1xf32>
    %204 = tpu.reciprocal %203 {approx = true} : vector<8x1xf32> -> vector<8x1xf32>
    %205 = vector.broadcast %204 : vector<8x1xf32> to vector<8x16xf32>
    %206 = arith.mulf %201, %205 : vector<8x16xf32>
    %207 = arith.truncf %206 : vector<8x16xf32> to vector<8x16xbf16>
    %cst_88 = arith.constant dense<0.000000e+00> : vector<8x128xf32>
    %208 = tpu.matmul %207, %193, %cst_88 {dimension_numbers = #tpu.dot_dimension_numbers<[1], [0], [0], [1], [0, 0, 1, 1], [], []>} : vector<8x16xbf16>, vector<16x128xbf16>, vector<8x128xf32> -> vector<8x128xf32>
    %209 = arith.truncf %208 : vector<8x128xf32> to vector<8x128xbf16>
    %210 = vector.extract_strided_slice %186 {offsets = [0, 0], sizes = [128, 32], strides = [1, 1]} : vector<512x32xbf16> to vector<128x32xbf16>
    %cst_89 = arith.constant dense<0.000000e+00> : vector<8x32xf32>
    %211 = tpu.matmul %209, %210, %cst_89 {dimension_numbers = #tpu.dot_dimension_numbers<[1], [0], [0], [1], [0, 0, 1, 1], [], []>} : vector<8x128xbf16>, vector<128x32xbf16>, vector<8x32xf32> -> vector<8x32xf32>
    %212 = arith.addf %190, %211 : vector<8x32xf32>
    %213 = vector.extract_strided_slice %189 {offsets = [0, 128], sizes = [8, 128], strides = [1, 1]} : vector<8x512xbf16> to vector<8x128xbf16>
    %214 = vector.extract_strided_slice %182 {offsets = [0, 128], sizes = [16, 128], strides = [1, 1]} : vector<16x512xbf16> to vector<16x128xbf16>
    %215 = vector.extract_strided_slice %184 {offsets = [0, 128], sizes = [16, 128], strides = [1, 1]} : vector<16x512xbf16> to vector<16x128xbf16>
    %cst_90 = arith.constant dense<0.000000e+00> : vector<8x16xf32>
    %216 = tpu.matmul %213, %214, %cst_90 {dimension_numbers = #tpu.dot_dimension_numbers<[1], [1], [0], [0], [0, 0, 1, 0], [], []>} : vector<8x128xbf16>, vector<16x128xbf16>, vector<8x16xf32> -> vector<8x16xf32>
    %cst_91 = arith.constant 0.353553385 : f32
    %217 = vector.broadcast %cst_91 : f32 to vector<8x16xf32>
    %218 = arith.mulf %216, %217 : vector<8x16xf32>
    %cst_92 = arith.constant dense<0xFF800000> : vector<8xf32>
    %219 = vector.multi_reduction <maximumf>, %218, %cst_92 [1] : vector<8x16xf32> to vector<8xf32>
    %220 = vector.shape_cast %219 : vector<8xf32> to vector<8x1xf32>
    %221 = vector.broadcast %220 : vector<8x1xf32> to vector<8x16xf32>
    %222 = arith.subf %218, %221 : vector<8x16xf32>
    %223 = math.exp %222 : vector<8x16xf32>
    %cst_93 = arith.constant dense<0.000000e+00> : vector<8xf32>
    %224 = vector.multi_reduction <add>, %223, %cst_93 [1] : vector<8x16xf32> to vector<8xf32>
    %225 = vector.shape_cast %224 : vector<8xf32> to vector<8x1xf32>
    %226 = tpu.reciprocal %225 {approx = true} : vector<8x1xf32> -> vector<8x1xf32>
    %227 = vector.broadcast %226 : vector<8x1xf32> to vector<8x16xf32>
    %228 = arith.mulf %223, %227 : vector<8x16xf32>
    %229 = arith.truncf %228 : vector<8x16xf32> to vector<8x16xbf16>
    %cst_94 = arith.constant dense<0.000000e+00> : vector<8x128xf32>
    %230 = tpu.matmul %229, %215, %cst_94 {dimension_numbers = #tpu.dot_dimension_numbers<[1], [0], [0], [1], [0, 0, 1, 1], [], []>} : vector<8x16xbf16>, vector<16x128xbf16>, vector<8x128xf32> -> vector<8x128xf32>
    %231 = arith.truncf %230 : vector<8x128xf32> to vector<8x128xbf16>
    %232 = vector.extract_strided_slice %186 {offsets = [128, 0], sizes = [128, 32], strides = [1, 1]} : vector<512x32xbf16> to vector<128x32xbf16>
    %cst_95 = arith.constant dense<0.000000e+00> : vector<8x32xf32>
    %233 = tpu.matmul %231, %232, %cst_95 {dimension_numbers = #tpu.dot_dimension_numbers<[1], [0], [0], [1], [0, 0, 1, 1], [], []>} : vector<8x128xbf16>, vector<128x32xbf16>, vector<8x32xf32> -> vector<8x32xf32>
    %234 = arith.addf %212, %233 : vector<8x32xf32>
    %235 = vector.extract_strided_slice %189 {offsets = [0, 256], sizes = [8, 128], strides = [1, 1]} : vector<8x512xbf16> to vector<8x128xbf16>
    %236 = vector.extract_strided_slice %182 {offsets = [0, 256], sizes = [16, 128], strides = [1, 1]} : vector<16x512xbf16> to vector<16x128xbf16>
    %237 = vector.extract_strided_slice %184 {offsets = [0, 256], sizes = [16, 128], strides = [1, 1]} : vector<16x512xbf16> to vector<16x128xbf16>
    %cst_96 = arith.constant dense<0.000000e+00> : vector<8x16xf32>
    %238 = tpu.matmul %235, %236, %cst_96 {dimension_numbers = #tpu.dot_dimension_numbers<[1], [1], [0], [0], [0, 0, 1, 0], [], []>} : vector<8x128xbf16>, vector<16x128xbf16>, vector<8x16xf32> -> vector<8x16xf32>
    %cst_97 = arith.constant 0.353553385 : f32
    %239 = vector.broadcast %cst_97 : f32 to vector<8x16xf32>
    %240 = arith.mulf %238, %239 : vector<8x16xf32>
    %cst_98 = arith.constant dense<0xFF800000> : vector<8xf32>
    %241 = vector.multi_reduction <maximumf>, %240, %cst_98 [1] : vector<8x16xf32> to vector<8xf32>
    %242 = vector.shape_cast %241 : vector<8xf32> to vector<8x1xf32>
    %243 = vector.broadcast %242 : vector<8x1xf32> to vector<8x16xf32>
    %244 = arith.subf %240, %243 : vector<8x16xf32>
    %245 = math.exp %244 : vector<8x16xf32>
    %cst_99 = arith.constant dense<0.000000e+00> : vector<8xf32>
    %246 = vector.multi_reduction <add>, %245, %cst_99 [1] : vector<8x16xf32> to vector<8xf32>
    %247 = vector.shape_cast %246 : vector<8xf32> to vector<8x1xf32>
    %248 = tpu.reciprocal %247 {approx = true} : vector<8x1xf32> -> vector<8x1xf32>
    %249 = vector.broadcast %248 : vector<8x1xf32> to vector<8x16xf32>
    %250 = arith.mulf %245, %249 : vector<8x16xf32>
    %251 = arith.truncf %250 : vector<8x16xf32> to vector<8x16xbf16>
    %cst_100 = arith.constant dense<0.000000e+00> : vector<8x128xf32>
    %252 = tpu.matmul %251, %237, %cst_100 {dimension_numbers = #tpu.dot_dimension_numbers<[1], [0], [0], [1], [0, 0, 1, 1], [], []>} : vector<8x16xbf16>, vector<16x128xbf16>, vector<8x128xf32> -> vector<8x128xf32>
    %253 = arith.truncf %252 : vector<8x128xf32> to vector<8x128xbf16>
    %254 = vector.extract_strided_slice %186 {offsets = [256, 0], sizes = [128, 32], strides = [1, 1]} : vector<512x32xbf16> to vector<128x32xbf16>
    %cst_101 = arith.constant dense<0.000000e+00> : vector<8x32xf32>
    %255 = tpu.matmul %253, %254, %cst_101 {dimension_numbers = #tpu.dot_dimension_numbers<[1], [0], [0], [1], [0, 0, 1, 1], [], []>} : vector<8x128xbf16>, vector<128x32xbf16>, vector<8x32xf32> -> vector<8x32xf32>
    %256 = arith.addf %234, %255 : vector<8x32xf32>
    %257 = vector.extract_strided_slice %189 {offsets = [0, 384], sizes = [8, 128], strides = [1, 1]} : vector<8x512xbf16> to vector<8x128xbf16>
    %258 = vector.extract_strided_slice %182 {offsets = [0, 384], sizes = [16, 128], strides = [1, 1]} : vector<16x512xbf16> to vector<16x128xbf16>
    %259 = vector.extract_strided_slice %184 {offsets = [0, 384], sizes = [16, 128], strides = [1, 1]} : vector<16x512xbf16> to vector<16x128xbf16>
    %cst_102 = arith.constant dense<0.000000e+00> : vector<8x16xf32>
    %260 = tpu.matmul %257, %258, %cst_102 {dimension_numbers = #tpu.dot_dimension_numbers<[1], [1], [0], [0], [0, 0, 1, 0], [], []>} : vector<8x128xbf16>, vector<16x128xbf16>, vector<8x16xf32> -> vector<8x16xf32>
    %cst_103 = arith.constant 0.353553385 : f32
    %261 = vector.broadcast %cst_103 : f32 to vector<8x16xf32>
    %262 = arith.mulf %260, %261 : vector<8x16xf32>
    %cst_104 = arith.constant dense<0xFF800000> : vector<8xf32>
    %263 = vector.multi_reduction <maximumf>, %262, %cst_104 [1] : vector<8x16xf32> to vector<8xf32>
    %264 = vector.shape_cast %263 : vector<8xf32> to vector<8x1xf32>
    %265 = vector.broadcast %264 : vector<8x1xf32> to vector<8x16xf32>
    %266 = arith.subf %262, %265 : vector<8x16xf32>
    %267 = math.exp %266 : vector<8x16xf32>
    %cst_105 = arith.constant dense<0.000000e+00> : vector<8xf32>
    %268 = vector.multi_reduction <add>, %267, %cst_105 [1] : vector<8x16xf32> to vector<8xf32>
    %269 = vector.shape_cast %268 : vector<8xf32> to vector<8x1xf32>
    %270 = tpu.reciprocal %269 {approx = true} : vector<8x1xf32> -> vector<8x1xf32>
    %271 = vector.broadcast %270 : vector<8x1xf32> to vector<8x16xf32>
    %272 = arith.mulf %267, %271 : vector<8x16xf32>
    %273 = arith.truncf %272 : vector<8x16xf32> to vector<8x16xbf16>
    %cst_106 = arith.constant dense<0.000000e+00> : vector<8x128xf32>
    %274 = tpu.matmul %273, %259, %cst_106 {dimension_numbers = #tpu.dot_dimension_numbers<[1], [0], [0], [1], [0, 0, 1, 1], [], []>} : vector<8x16xbf16>, vector<16x128xbf16>, vector<8x128xf32> -> vector<8x128xf32>
    %275 = arith.truncf %274 : vector<8x128xf32> to vector<8x128xbf16>
    %276 = vector.extract_strided_slice %186 {offsets = [384, 0], sizes = [128, 32], strides = [1, 1]} : vector<512x32xbf16> to vector<128x32xbf16>
    %cst_107 = arith.constant dense<0.000000e+00> : vector<8x32xf32>
    %277 = tpu.matmul %275, %276, %cst_107 {dimension_numbers = #tpu.dot_dimension_numbers<[1], [0], [0], [1], [0, 0, 1, 1], [], []>} : vector<8x128xbf16>, vector<128x32xbf16>, vector<8x32xf32> -> vector<8x32xf32>
    %278 = arith.addf %256, %277 : vector<8x32xf32>
    %279 = vector.broadcast %188 : vector<1x32xf32> to vector<8x32xf32>
    %280 = arith.addf %278, %279 : vector<8x32xf32>
    %281 = arith.addf %139, %280 : vector<8x32xf32>
    %c0_108 = arith.constant 0 : index
    %c0_109 = arith.constant 0 : index
    %c0_110 = arith.constant 0 : index
    %282 = vector.load %arg17[%c0_108, %c0_109, %c0_110] : memref<2x1x32xf32, #tpu.memory_space<vmem>>, vector<1x1x32xf32>
    %283 = vector.shape_cast %282 : vector<1x1x32xf32> to vector<1x32xf32>
    %c0_111 = arith.constant 0 : index
    %c0_112 = arith.constant 0 : index
    %c0_113 = arith.constant 0 : index
    %284 = vector.load %arg18[%c0_111, %c0_112, %c0_113] : memref<2x1x32xf32, #tpu.memory_space<vmem>>, vector<1x1x32xf32>
    %285 = vector.shape_cast %284 : vector<1x1x32xf32> to vector<1x32xf32>
    %cst_114 = arith.constant dense<0.000000e+00> : vector<8xf32>
    %286 = vector.multi_reduction <add>, %281, %cst_114 [1] : vector<8x32xf32> to vector<8xf32>
    %287 = vector.shape_cast %286 : vector<8xf32> to vector<8x1xf32>
    %cst_115 = arith.constant 3.200000e+01 : f32
    %288 = vector.broadcast %cst_115 : f32 to vector<8x1xf32>
    %289 = arith.divf %287, %288 : vector<8x1xf32>
    %290 = vector.broadcast %289 : vector<8x1xf32> to vector<8x32xf32>
    %291 = arith.subf %281, %290 : vector<8x32xf32>
    %292 = arith.mulf %291, %291 : vector<8x32xf32>
    %cst_116 = arith.constant dense<0.000000e+00> : vector<8xf32>
    %293 = vector.multi_reduction <add>, %292, %cst_116 [1] : vector<8x32xf32> to vector<8xf32>
    %294 = vector.shape_cast %293 : vector<8xf32> to vector<8x1xf32>
    %cst_117 = arith.constant 3.200000e+01 : f32
    %295 = vector.broadcast %cst_117 : f32 to vector<8x1xf32>
    %296 = arith.divf %294, %295 : vector<8x1xf32>
    %297 = vector.broadcast %289 : vector<8x1xf32> to vector<8x32xf32>
    %298 = arith.subf %281, %297 : vector<8x32xf32>
    %cst_118 = arith.constant 9.99999974E-6 : f32
    %299 = vector.broadcast %cst_118 : f32 to vector<8x1xf32>
    %300 = arith.addf %296, %299 : vector<8x1xf32>
    %301 = math.rsqrt %300 : vector<8x1xf32>
    %302 = vector.broadcast %301 : vector<8x1xf32> to vector<8x32xf32>
    %303 = arith.mulf %298, %302 : vector<8x32xf32>
    %304 = vector.broadcast %283 : vector<1x32xf32> to vector<8x32xf32>
    %305 = arith.mulf %303, %304 : vector<8x32xf32>
    %306 = vector.broadcast %285 : vector<1x32xf32> to vector<8x32xf32>
    %307 = arith.addf %305, %306 : vector<8x32xf32>
    %308 = arith.truncf %307 : vector<8x32xf32> to vector<8x32xbf16>
    %c0_119 = arith.constant 0 : index
    %c0_120 = arith.constant 0 : index
    %c0_121 = arith.constant 0 : index
    %309 = vector.load %arg19[%c0_119, %c0_120, %c0_121] : memref<2x32x64xbf16, #tpu.memory_space<vmem>>, vector<1x32x64xbf16>
    %310 = vector.shape_cast %309 : vector<1x32x64xbf16> to vector<32x64xbf16>
    %cst_122 = arith.constant dense<0.000000e+00> : vector<8x64xf32>
    %311 = tpu.matmul %308, %310, %cst_122 {dimension_numbers = #tpu.dot_dimension_numbers<[1], [0], [0], [1], [0, 0, 1, 1], [], []>} : vector<8x32xbf16>, vector<32x64xbf16>, vector<8x64xf32> -> vector<8x64xf32>
    %c0_123 = arith.constant 0 : index
    %c0_124 = arith.constant 0 : index
    %c0_125 = arith.constant 0 : index
    %312 = vector.load %arg20[%c0_123, %c0_124, %c0_125] : memref<2x1x64xf32, #tpu.memory_space<vmem>>, vector<1x1x64xf32>
    %313 = vector.shape_cast %312 : vector<1x1x64xf32> to vector<1x64xf32>
    %314 = vector.broadcast %313 : vector<1x64xf32> to vector<8x64xf32>
    %315 = arith.addf %311, %314 : vector<8x64xf32>
    %cst_126 = arith.constant 0.000000e+00 : f32
    %316 = vector.broadcast %cst_126 : f32 to vector<8x64xf32>
    %317 = arith.maximumf %315, %316 : vector<8x64xf32>
    %318 = arith.truncf %317 : vector<8x64xf32> to vector<8x64xbf16>
    %c0_127 = arith.constant 0 : index
    %c0_128 = arith.constant 0 : index
    %c0_129 = arith.constant 0 : index
    %319 = vector.load %arg21[%c0_127, %c0_128, %c0_129] : memref<2x64x32xbf16, #tpu.memory_space<vmem>>, vector<1x64x32xbf16>
    %320 = vector.shape_cast %319 : vector<1x64x32xbf16> to vector<64x32xbf16>
    %cst_130 = arith.constant dense<0.000000e+00> : vector<8x32xf32>
    %321 = tpu.matmul %318, %320, %cst_130 {dimension_numbers = #tpu.dot_dimension_numbers<[1], [0], [0], [1], [0, 0, 1, 1], [], []>} : vector<8x64xbf16>, vector<64x32xbf16>, vector<8x32xf32> -> vector<8x32xf32>
    %322 = arith.addf %281, %321 : vector<8x32xf32>
    %c0_131 = arith.constant 0 : index
    %c0_132 = arith.constant 0 : index
    %c0_133 = arith.constant 0 : index
    %323 = vector.load %arg22[%c0_131, %c0_132, %c0_133] : memref<2x1x32xf32, #tpu.memory_space<vmem>>, vector<1x1x32xf32>
    %324 = vector.shape_cast %323 : vector<1x1x32xf32> to vector<1x32xf32>
    %325 = vector.broadcast %324 : vector<1x32xf32> to vector<8x32xf32>
    %326 = arith.addf %322, %325 : vector<8x32xf32>
    %c1 = arith.constant 1 : index
    %c0_134 = arith.constant 0 : index
    %c0_135 = arith.constant 0 : index
    %327 = vector.load %arg3[%c1, %c0_134, %c0_135] : memref<2x1x32xf32, #tpu.memory_space<vmem>>, vector<1x1x32xf32>
    %328 = vector.shape_cast %327 : vector<1x1x32xf32> to vector<1x32xf32>
    %c1_136 = arith.constant 1 : index
    %c0_137 = arith.constant 0 : index
    %c0_138 = arith.constant 0 : index
    %329 = vector.load %arg4[%c1_136, %c0_137, %c0_138] : memref<2x1x32xf32, #tpu.memory_space<vmem>>, vector<1x1x32xf32>
    %330 = vector.shape_cast %329 : vector<1x1x32xf32> to vector<1x32xf32>
    %cst_139 = arith.constant dense<0.000000e+00> : vector<8xf32>
    %331 = vector.multi_reduction <add>, %326, %cst_139 [1] : vector<8x32xf32> to vector<8xf32>
    %332 = vector.shape_cast %331 : vector<8xf32> to vector<8x1xf32>
    %cst_140 = arith.constant 3.200000e+01 : f32
    %333 = vector.broadcast %cst_140 : f32 to vector<8x1xf32>
    %334 = arith.divf %332, %333 : vector<8x1xf32>
    %335 = vector.broadcast %334 : vector<8x1xf32> to vector<8x32xf32>
    %336 = arith.subf %326, %335 : vector<8x32xf32>
    %337 = arith.mulf %336, %336 : vector<8x32xf32>
    %cst_141 = arith.constant dense<0.000000e+00> : vector<8xf32>
    %338 = vector.multi_reduction <add>, %337, %cst_141 [1] : vector<8x32xf32> to vector<8xf32>
    %339 = vector.shape_cast %338 : vector<8xf32> to vector<8x1xf32>
    %cst_142 = arith.constant 3.200000e+01 : f32
    %340 = vector.broadcast %cst_142 : f32 to vector<8x1xf32>
    %341 = arith.divf %339, %340 : vector<8x1xf32>
    %342 = vector.broadcast %334 : vector<8x1xf32> to vector<8x32xf32>
    %343 = arith.subf %326, %342 : vector<8x32xf32>
    %cst_143 = arith.constant 9.99999974E-6 : f32
    %344 = vector.broadcast %cst_143 : f32 to vector<8x1xf32>
    %345 = arith.addf %341, %344 : vector<8x1xf32>
    %346 = math.rsqrt %345 : vector<8x1xf32>
    %347 = vector.broadcast %346 : vector<8x1xf32> to vector<8x32xf32>
    %348 = arith.mulf %343, %347 : vector<8x32xf32>
    %349 = vector.broadcast %328 : vector<1x32xf32> to vector<8x32xf32>
    %350 = arith.mulf %348, %349 : vector<8x32xf32>
    %351 = vector.broadcast %330 : vector<1x32xf32> to vector<8x32xf32>
    %352 = arith.addf %350, %351 : vector<8x32xf32>
    %353 = arith.truncf %352 : vector<8x32xf32> to vector<8x32xbf16>
    %c1_144 = arith.constant 1 : index
    %c0_145 = arith.constant 0 : index
    %c0_146 = arith.constant 0 : index
    %354 = vector.load %arg5[%c1_144, %c0_145, %c0_146] : memref<2x32x1536xbf16, #tpu.memory_space<vmem>>, vector<1x32x1536xbf16>
    %355 = vector.shape_cast %354 : vector<1x32x1536xbf16> to vector<32x1536xbf16>
    %cst_147 = arith.constant dense<0.000000e+00> : vector<8x1536xf32>
    %356 = tpu.matmul %353, %355, %cst_147 {dimension_numbers = #tpu.dot_dimension_numbers<[1], [0], [0], [1], [0, 0, 1, 1], [], []>} : vector<8x32xbf16>, vector<32x1536xbf16>, vector<8x1536xf32> -> vector<8x1536xf32>
    %c1_148 = arith.constant 1 : index
    %c0_149 = arith.constant 0 : index
    %c0_150 = arith.constant 0 : index
    %357 = vector.load %arg6[%c1_148, %c0_149, %c0_150] : memref<2x1x1536xf32, #tpu.memory_space<vmem>>, vector<1x1x1536xf32>
    %358 = vector.shape_cast %357 : vector<1x1x1536xf32> to vector<1x1536xf32>
    %359 = vector.broadcast %358 : vector<1x1536xf32> to vector<8x1536xf32>
    %360 = arith.addf %356, %359 : vector<8x1536xf32>
    %361 = vector.extract_strided_slice %360 {offsets = [0, 0], sizes = [8, 512], strides = [1, 1]} : vector<8x1536xf32> to vector<8x512xf32>
    %362 = vector.extract_strided_slice %360 {offsets = [0, 512], sizes = [8, 512], strides = [1, 1]} : vector<8x1536xf32> to vector<8x512xf32>
    %363 = arith.truncf %362 : vector<8x512xf32> to vector<8x512xbf16>
    %364 = vector.extract_strided_slice %360 {offsets = [0, 1024], sizes = [8, 512], strides = [1, 1]} : vector<8x1536xf32> to vector<8x512xf32>
    %365 = arith.truncf %364 : vector<8x512xf32> to vector<8x512xbf16>
    %c1_151 = arith.constant 1 : index
    %c0_152 = arith.constant 0 : index
    %c0_153 = arith.constant 0 : index
    %366 = vector.load %arg7[%c1_151, %c0_152, %c0_153] : memref<2x512x32xbf16, #tpu.memory_space<vmem>>, vector<1x512x32xbf16>
    %367 = vector.shape_cast %366 : vector<1x512x32xbf16> to vector<512x32xbf16>
    %c1_154 = arith.constant 1 : index
    %c0_155 = arith.constant 0 : index
    %c0_156 = arith.constant 0 : index
    %368 = vector.load %arg8[%c1_154, %c0_155, %c0_156] : memref<2x1x32xf32, #tpu.memory_space<vmem>>, vector<1x1x32xf32>
    %369 = vector.shape_cast %368 : vector<1x1x32xf32> to vector<1x32xf32>
    %370 = arith.truncf %361 : vector<8x512xf32> to vector<8x512xbf16>
    %cst_157 = arith.constant 0.000000e+00 : f32
    %371 = vector.broadcast %cst_157 : f32 to vector<8x32xf32>
    %372 = vector.extract_strided_slice %370 {offsets = [0, 0], sizes = [8, 128], strides = [1, 1]} : vector<8x512xbf16> to vector<8x128xbf16>
    %373 = vector.extract_strided_slice %363 {offsets = [0, 0], sizes = [8, 128], strides = [1, 1]} : vector<8x512xbf16> to vector<8x128xbf16>
    %374 = vector.extract_strided_slice %365 {offsets = [0, 0], sizes = [8, 128], strides = [1, 1]} : vector<8x512xbf16> to vector<8x128xbf16>
    %cst_158 = arith.constant dense<0.000000e+00> : vector<8x8xf32>
    %375 = tpu.matmul %372, %373, %cst_158 {dimension_numbers = #tpu.dot_dimension_numbers<[1], [1], [0], [0], [0, 0, 1, 0], [], []>} : vector<8x128xbf16>, vector<8x128xbf16>, vector<8x8xf32> -> vector<8x8xf32>
    %cst_159 = arith.constant 0.353553385 : f32
    %376 = vector.broadcast %cst_159 : f32 to vector<8x8xf32>
    %377 = arith.mulf %375, %376 : vector<8x8xf32>
    %cst_160 = arith.constant dense<0xFF800000> : vector<8xf32>
    %378 = vector.multi_reduction <maximumf>, %377, %cst_160 [1] : vector<8x8xf32> to vector<8xf32>
    %379 = vector.shape_cast %378 : vector<8xf32> to vector<8x1xf32>
    %380 = vector.broadcast %379 : vector<8x1xf32> to vector<8x8xf32>
    %381 = arith.subf %377, %380 : vector<8x8xf32>
    %382 = math.exp %381 : vector<8x8xf32>
    %cst_161 = arith.constant dense<0.000000e+00> : vector<8xf32>
    %383 = vector.multi_reduction <add>, %382, %cst_161 [1] : vector<8x8xf32> to vector<8xf32>
    %384 = vector.shape_cast %383 : vector<8xf32> to vector<8x1xf32>
    %385 = tpu.reciprocal %384 {approx = true} : vector<8x1xf32> -> vector<8x1xf32>
    %386 = vector.broadcast %385 : vector<8x1xf32> to vector<8x8xf32>
    %387 = arith.mulf %382, %386 : vector<8x8xf32>
    %388 = arith.truncf %387 : vector<8x8xf32> to vector<8x8xbf16>
    %cst_162 = arith.constant dense<0.000000e+00> : vector<8x128xf32>
    %389 = tpu.matmul %388, %374, %cst_162 {dimension_numbers = #tpu.dot_dimension_numbers<[1], [0], [0], [1], [0, 0, 1, 1], [], []>} : vector<8x8xbf16>, vector<8x128xbf16>, vector<8x128xf32> -> vector<8x128xf32>
    %390 = arith.truncf %389 : vector<8x128xf32> to vector<8x128xbf16>
    %391 = vector.extract_strided_slice %367 {offsets = [0, 0], sizes = [128, 32], strides = [1, 1]} : vector<512x32xbf16> to vector<128x32xbf16>
    %cst_163 = arith.constant dense<0.000000e+00> : vector<8x32xf32>
    %392 = tpu.matmul %390, %391, %cst_163 {dimension_numbers = #tpu.dot_dimension_numbers<[1], [0], [0], [1], [0, 0, 1, 1], [], []>} : vector<8x128xbf16>, vector<128x32xbf16>, vector<8x32xf32> -> vector<8x32xf32>
    %393 = arith.addf %371, %392 : vector<8x32xf32>
    %394 = vector.extract_strided_slice %370 {offsets = [0, 128], sizes = [8, 128], strides = [1, 1]} : vector<8x512xbf16> to vector<8x128xbf16>
    %395 = vector.extract_strided_slice %363 {offsets = [0, 128], sizes = [8, 128], strides = [1, 1]} : vector<8x512xbf16> to vector<8x128xbf16>
    %396 = vector.extract_strided_slice %365 {offsets = [0, 128], sizes = [8, 128], strides = [1, 1]} : vector<8x512xbf16> to vector<8x128xbf16>
    %cst_164 = arith.constant dense<0.000000e+00> : vector<8x8xf32>
    %397 = tpu.matmul %394, %395, %cst_164 {dimension_numbers = #tpu.dot_dimension_numbers<[1], [1], [0], [0], [0, 0, 1, 0], [], []>} : vector<8x128xbf16>, vector<8x128xbf16>, vector<8x8xf32> -> vector<8x8xf32>
    %cst_165 = arith.constant 0.353553385 : f32
    %398 = vector.broadcast %cst_165 : f32 to vector<8x8xf32>
    %399 = arith.mulf %397, %398 : vector<8x8xf32>
    %cst_166 = arith.constant dense<0xFF800000> : vector<8xf32>
    %400 = vector.multi_reduction <maximumf>, %399, %cst_166 [1] : vector<8x8xf32> to vector<8xf32>
    %401 = vector.shape_cast %400 : vector<8xf32> to vector<8x1xf32>
    %402 = vector.broadcast %401 : vector<8x1xf32> to vector<8x8xf32>
    %403 = arith.subf %399, %402 : vector<8x8xf32>
    %404 = math.exp %403 : vector<8x8xf32>
    %cst_167 = arith.constant dense<0.000000e+00> : vector<8xf32>
    %405 = vector.multi_reduction <add>, %404, %cst_167 [1] : vector<8x8xf32> to vector<8xf32>
    %406 = vector.shape_cast %405 : vector<8xf32> to vector<8x1xf32>
    %407 = tpu.reciprocal %406 {approx = true} : vector<8x1xf32> -> vector<8x1xf32>
    %408 = vector.broadcast %407 : vector<8x1xf32> to vector<8x8xf32>
    %409 = arith.mulf %404, %408 : vector<8x8xf32>
    %410 = arith.truncf %409 : vector<8x8xf32> to vector<8x8xbf16>
    %cst_168 = arith.constant dense<0.000000e+00> : vector<8x128xf32>
    %411 = tpu.matmul %410, %396, %cst_168 {dimension_numbers = #tpu.dot_dimension_numbers<[1], [0], [0], [1], [0, 0, 1, 1], [], []>} : vector<8x8xbf16>, vector<8x128xbf16>, vector<8x128xf32> -> vector<8x128xf32>
    %412 = arith.truncf %411 : vector<8x128xf32> to vector<8x128xbf16>
    %413 = vector.extract_strided_slice %367 {offsets = [128, 0], sizes = [128, 32], strides = [1, 1]} : vector<512x32xbf16> to vector<128x32xbf16>
    %cst_169 = arith.constant dense<0.000000e+00> : vector<8x32xf32>
    %414 = tpu.matmul %412, %413, %cst_169 {dimension_numbers = #tpu.dot_dimension_numbers<[1], [0], [0], [1], [0, 0, 1, 1], [], []>} : vector<8x128xbf16>, vector<128x32xbf16>, vector<8x32xf32> -> vector<8x32xf32>
    %415 = arith.addf %393, %414 : vector<8x32xf32>
    %416 = vector.extract_strided_slice %370 {offsets = [0, 256], sizes = [8, 128], strides = [1, 1]} : vector<8x512xbf16> to vector<8x128xbf16>
    %417 = vector.extract_strided_slice %363 {offsets = [0, 256], sizes = [8, 128], strides = [1, 1]} : vector<8x512xbf16> to vector<8x128xbf16>
    %418 = vector.extract_strided_slice %365 {offsets = [0, 256], sizes = [8, 128], strides = [1, 1]} : vector<8x512xbf16> to vector<8x128xbf16>
    %cst_170 = arith.constant dense<0.000000e+00> : vector<8x8xf32>
    %419 = tpu.matmul %416, %417, %cst_170 {dimension_numbers = #tpu.dot_dimension_numbers<[1], [1], [0], [0], [0, 0, 1, 0], [], []>} : vector<8x128xbf16>, vector<8x128xbf16>, vector<8x8xf32> -> vector<8x8xf32>
    %cst_171 = arith.constant 0.353553385 : f32
    %420 = vector.broadcast %cst_171 : f32 to vector<8x8xf32>
    %421 = arith.mulf %419, %420 : vector<8x8xf32>
    %cst_172 = arith.constant dense<0xFF800000> : vector<8xf32>
    %422 = vector.multi_reduction <maximumf>, %421, %cst_172 [1] : vector<8x8xf32> to vector<8xf32>
    %423 = vector.shape_cast %422 : vector<8xf32> to vector<8x1xf32>
    %424 = vector.broadcast %423 : vector<8x1xf32> to vector<8x8xf32>
    %425 = arith.subf %421, %424 : vector<8x8xf32>
    %426 = math.exp %425 : vector<8x8xf32>
    %cst_173 = arith.constant dense<0.000000e+00> : vector<8xf32>
    %427 = vector.multi_reduction <add>, %426, %cst_173 [1] : vector<8x8xf32> to vector<8xf32>
    %428 = vector.shape_cast %427 : vector<8xf32> to vector<8x1xf32>
    %429 = tpu.reciprocal %428 {approx = true} : vector<8x1xf32> -> vector<8x1xf32>
    %430 = vector.broadcast %429 : vector<8x1xf32> to vector<8x8xf32>
    %431 = arith.mulf %426, %430 : vector<8x8xf32>
    %432 = arith.truncf %431 : vector<8x8xf32> to vector<8x8xbf16>
    %cst_174 = arith.constant dense<0.000000e+00> : vector<8x128xf32>
    %433 = tpu.matmul %432, %418, %cst_174 {dimension_numbers = #tpu.dot_dimension_numbers<[1], [0], [0], [1], [0, 0, 1, 1], [], []>} : vector<8x8xbf16>, vector<8x128xbf16>, vector<8x128xf32> -> vector<8x128xf32>
    %434 = arith.truncf %433 : vector<8x128xf32> to vector<8x128xbf16>
    %435 = vector.extract_strided_slice %367 {offsets = [256, 0], sizes = [128, 32], strides = [1, 1]} : vector<512x32xbf16> to vector<128x32xbf16>
    %cst_175 = arith.constant dense<0.000000e+00> : vector<8x32xf32>
    %436 = tpu.matmul %434, %435, %cst_175 {dimension_numbers = #tpu.dot_dimension_numbers<[1], [0], [0], [1], [0, 0, 1, 1], [], []>} : vector<8x128xbf16>, vector<128x32xbf16>, vector<8x32xf32> -> vector<8x32xf32>
    %437 = arith.addf %415, %436 : vector<8x32xf32>
    %438 = vector.extract_strided_slice %370 {offsets = [0, 384], sizes = [8, 128], strides = [1, 1]} : vector<8x512xbf16> to vector<8x128xbf16>
    %439 = vector.extract_strided_slice %363 {offsets = [0, 384], sizes = [8, 128], strides = [1, 1]} : vector<8x512xbf16> to vector<8x128xbf16>
    %440 = vector.extract_strided_slice %365 {offsets = [0, 384], sizes = [8, 128], strides = [1, 1]} : vector<8x512xbf16> to vector<8x128xbf16>
    %cst_176 = arith.constant dense<0.000000e+00> : vector<8x8xf32>
    %441 = tpu.matmul %438, %439, %cst_176 {dimension_numbers = #tpu.dot_dimension_numbers<[1], [1], [0], [0], [0, 0, 1, 0], [], []>} : vector<8x128xbf16>, vector<8x128xbf16>, vector<8x8xf32> -> vector<8x8xf32>
    %cst_177 = arith.constant 0.353553385 : f32
    %442 = vector.broadcast %cst_177 : f32 to vector<8x8xf32>
    %443 = arith.mulf %441, %442 : vector<8x8xf32>
    %cst_178 = arith.constant dense<0xFF800000> : vector<8xf32>
    %444 = vector.multi_reduction <maximumf>, %443, %cst_178 [1] : vector<8x8xf32> to vector<8xf32>
    %445 = vector.shape_cast %444 : vector<8xf32> to vector<8x1xf32>
    %446 = vector.broadcast %445 : vector<8x1xf32> to vector<8x8xf32>
    %447 = arith.subf %443, %446 : vector<8x8xf32>
    %448 = math.exp %447 : vector<8x8xf32>
    %cst_179 = arith.constant dense<0.000000e+00> : vector<8xf32>
    %449 = vector.multi_reduction <add>, %448, %cst_179 [1] : vector<8x8xf32> to vector<8xf32>
    %450 = vector.shape_cast %449 : vector<8xf32> to vector<8x1xf32>
    %451 = tpu.reciprocal %450 {approx = true} : vector<8x1xf32> -> vector<8x1xf32>
    %452 = vector.broadcast %451 : vector<8x1xf32> to vector<8x8xf32>
    %453 = arith.mulf %448, %452 : vector<8x8xf32>
    %454 = arith.truncf %453 : vector<8x8xf32> to vector<8x8xbf16>
    %cst_180 = arith.constant dense<0.000000e+00> : vector<8x128xf32>
    %455 = tpu.matmul %454, %440, %cst_180 {dimension_numbers = #tpu.dot_dimension_numbers<[1], [0], [0], [1], [0, 0, 1, 1], [], []>} : vector<8x8xbf16>, vector<8x128xbf16>, vector<8x128xf32> -> vector<8x128xf32>
    %456 = arith.truncf %455 : vector<8x128xf32> to vector<8x128xbf16>
    %457 = vector.extract_strided_slice %367 {offsets = [384, 0], sizes = [128, 32], strides = [1, 1]} : vector<512x32xbf16> to vector<128x32xbf16>
    %cst_181 = arith.constant dense<0.000000e+00> : vector<8x32xf32>
    %458 = tpu.matmul %456, %457, %cst_181 {dimension_numbers = #tpu.dot_dimension_numbers<[1], [0], [0], [1], [0, 0, 1, 1], [], []>} : vector<8x128xbf16>, vector<128x32xbf16>, vector<8x32xf32> -> vector<8x32xf32>
    %459 = arith.addf %437, %458 : vector<8x32xf32>
    %460 = vector.broadcast %369 : vector<1x32xf32> to vector<8x32xf32>
    %461 = arith.addf %459, %460 : vector<8x32xf32>
    %462 = arith.addf %326, %461 : vector<8x32xf32>
    %c1_182 = arith.constant 1 : index
    %c0_183 = arith.constant 0 : index
    %c0_184 = arith.constant 0 : index
    %463 = vector.load %arg9[%c1_182, %c0_183, %c0_184] : memref<2x1x32xf32, #tpu.memory_space<vmem>>, vector<1x1x32xf32>
    %464 = vector.shape_cast %463 : vector<1x1x32xf32> to vector<1x32xf32>
    %c1_185 = arith.constant 1 : index
    %c0_186 = arith.constant 0 : index
    %c0_187 = arith.constant 0 : index
    %465 = vector.load %arg10[%c1_185, %c0_186, %c0_187] : memref<2x1x32xf32, #tpu.memory_space<vmem>>, vector<1x1x32xf32>
    %466 = vector.shape_cast %465 : vector<1x1x32xf32> to vector<1x32xf32>
    %cst_188 = arith.constant dense<0.000000e+00> : vector<8xf32>
    %467 = vector.multi_reduction <add>, %462, %cst_188 [1] : vector<8x32xf32> to vector<8xf32>
    %468 = vector.shape_cast %467 : vector<8xf32> to vector<8x1xf32>
    %cst_189 = arith.constant 3.200000e+01 : f32
    %469 = vector.broadcast %cst_189 : f32 to vector<8x1xf32>
    %470 = arith.divf %468, %469 : vector<8x1xf32>
    %471 = vector.broadcast %470 : vector<8x1xf32> to vector<8x32xf32>
    %472 = arith.subf %462, %471 : vector<8x32xf32>
    %473 = arith.mulf %472, %472 : vector<8x32xf32>
    %cst_190 = arith.constant dense<0.000000e+00> : vector<8xf32>
    %474 = vector.multi_reduction <add>, %473, %cst_190 [1] : vector<8x32xf32> to vector<8xf32>
    %475 = vector.shape_cast %474 : vector<8xf32> to vector<8x1xf32>
    %cst_191 = arith.constant 3.200000e+01 : f32
    %476 = vector.broadcast %cst_191 : f32 to vector<8x1xf32>
    %477 = arith.divf %475, %476 : vector<8x1xf32>
    %478 = vector.broadcast %470 : vector<8x1xf32> to vector<8x32xf32>
    %479 = arith.subf %462, %478 : vector<8x32xf32>
    %cst_192 = arith.constant 9.99999974E-6 : f32
    %480 = vector.broadcast %cst_192 : f32 to vector<8x1xf32>
    %481 = arith.addf %477, %480 : vector<8x1xf32>
    %482 = math.rsqrt %481 : vector<8x1xf32>
    %483 = vector.broadcast %482 : vector<8x1xf32> to vector<8x32xf32>
    %484 = arith.mulf %479, %483 : vector<8x32xf32>
    %485 = vector.broadcast %464 : vector<1x32xf32> to vector<8x32xf32>
    %486 = arith.mulf %484, %485 : vector<8x32xf32>
    %487 = vector.broadcast %466 : vector<1x32xf32> to vector<8x32xf32>
    %488 = arith.addf %486, %487 : vector<8x32xf32>
    %489 = arith.truncf %488 : vector<8x32xf32> to vector<8x32xbf16>
    %c1_193 = arith.constant 1 : index
    %c0_194 = arith.constant 0 : index
    %c0_195 = arith.constant 0 : index
    %490 = vector.load %arg11[%c1_193, %c0_194, %c0_195] : memref<2x32x512xbf16, #tpu.memory_space<vmem>>, vector<1x32x512xbf16>
    %491 = vector.shape_cast %490 : vector<1x32x512xbf16> to vector<32x512xbf16>
    %cst_196 = arith.constant dense<0.000000e+00> : vector<8x512xf32>
    %492 = tpu.matmul %489, %491, %cst_196 {dimension_numbers = #tpu.dot_dimension_numbers<[1], [0], [0], [1], [0, 0, 1, 1], [], []>} : vector<8x32xbf16>, vector<32x512xbf16>, vector<8x512xf32> -> vector<8x512xf32>
    %c1_197 = arith.constant 1 : index
    %c0_198 = arith.constant 0 : index
    %c0_199 = arith.constant 0 : index
    %493 = vector.load %arg12[%c1_197, %c0_198, %c0_199] : memref<2x1x512xf32, #tpu.memory_space<vmem>>, vector<1x1x512xf32>
    %494 = vector.shape_cast %493 : vector<1x1x512xf32> to vector<1x512xf32>
    %495 = vector.broadcast %494 : vector<1x512xf32> to vector<8x512xf32>
    %496 = arith.addf %492, %495 : vector<8x512xf32>
    %c1_200 = arith.constant 1 : index
    %c0_201 = arith.constant 0 : index
    %c0_202 = arith.constant 0 : index
    %497 = vector.load %arg13[%c1_200, %c0_201, %c0_202] : memref<2x32x1024xbf16, #tpu.memory_space<vmem>>, vector<1x32x1024xbf16>
    %498 = vector.shape_cast %497 : vector<1x32x1024xbf16> to vector<32x1024xbf16>
    %cst_203 = arith.constant dense<0.000000e+00> : vector<16x1024xf32>
    %499 = tpu.matmul %2, %498, %cst_203 {dimension_numbers = #tpu.dot_dimension_numbers<[1], [0], [0], [1], [0, 0, 1, 1], [], []>} : vector<16x32xbf16>, vector<32x1024xbf16>, vector<16x1024xf32> -> vector<16x1024xf32>
    %c1_204 = arith.constant 1 : index
    %c0_205 = arith.constant 0 : index
    %c0_206 = arith.constant 0 : index
    %500 = vector.load %arg14[%c1_204, %c0_205, %c0_206] : memref<2x1x1024xf32, #tpu.memory_space<vmem>>, vector<1x1x1024xf32>
    %501 = vector.shape_cast %500 : vector<1x1x1024xf32> to vector<1x1024xf32>
    %502 = vector.broadcast %501 : vector<1x1024xf32> to vector<16x1024xf32>
    %503 = arith.addf %499, %502 : vector<16x1024xf32>
    %504 = vector.extract_strided_slice %503 {offsets = [0, 0], sizes = [16, 512], strides = [1, 1]} : vector<16x1024xf32> to vector<16x512xf32>
    %505 = arith.truncf %504 : vector<16x512xf32> to vector<16x512xbf16>
    %506 = vector.extract_strided_slice %503 {offsets = [0, 512], sizes = [16, 512], strides = [1, 1]} : vector<16x1024xf32> to vector<16x512xf32>
    %507 = arith.truncf %506 : vector<16x512xf32> to vector<16x512xbf16>
    %c1_207 = arith.constant 1 : index
    %c0_208 = arith.constant 0 : index
    %c0_209 = arith.constant 0 : index
    %508 = vector.load %arg15[%c1_207, %c0_208, %c0_209] : memref<2x512x32xbf16, #tpu.memory_space<vmem>>, vector<1x512x32xbf16>
    %509 = vector.shape_cast %508 : vector<1x512x32xbf16> to vector<512x32xbf16>
    %c1_210 = arith.constant 1 : index
    %c0_211 = arith.constant 0 : index
    %c0_212 = arith.constant 0 : index
    %510 = vector.load %arg16[%c1_210, %c0_211, %c0_212] : memref<2x1x32xf32, #tpu.memory_space<vmem>>, vector<1x1x32xf32>
    %511 = vector.shape_cast %510 : vector<1x1x32xf32> to vector<1x32xf32>
    %512 = arith.truncf %496 : vector<8x512xf32> to vector<8x512xbf16>
    %cst_213 = arith.constant 0.000000e+00 : f32
    %513 = vector.broadcast %cst_213 : f32 to vector<8x32xf32>
    %514 = vector.extract_strided_slice %512 {offsets = [0, 0], sizes = [8, 128], strides = [1, 1]} : vector<8x512xbf16> to vector<8x128xbf16>
    %515 = vector.extract_strided_slice %505 {offsets = [0, 0], sizes = [16, 128], strides = [1, 1]} : vector<16x512xbf16> to vector<16x128xbf16>
    %516 = vector.extract_strided_slice %507 {offsets = [0, 0], sizes = [16, 128], strides = [1, 1]} : vector<16x512xbf16> to vector<16x128xbf16>
    %cst_214 = arith.constant dense<0.000000e+00> : vector<8x16xf32>
    %517 = tpu.matmul %514, %515, %cst_214 {dimension_numbers = #tpu.dot_dimension_numbers<[1], [1], [0], [0], [0, 0, 1, 0], [], []>} : vector<8x128xbf16>, vector<16x128xbf16>, vector<8x16xf32> -> vector<8x16xf32>
    %cst_215 = arith.constant 0.353553385 : f32
    %518 = vector.broadcast %cst_215 : f32 to vector<8x16xf32>
    %519 = arith.mulf %517, %518 : vector<8x16xf32>
    %cst_216 = arith.constant dense<0xFF800000> : vector<8xf32>
    %520 = vector.multi_reduction <maximumf>, %519, %cst_216 [1] : vector<8x16xf32> to vector<8xf32>
    %521 = vector.shape_cast %520 : vector<8xf32> to vector<8x1xf32>
    %522 = vector.broadcast %521 : vector<8x1xf32> to vector<8x16xf32>
    %523 = arith.subf %519, %522 : vector<8x16xf32>
    %524 = math.exp %523 : vector<8x16xf32>
    %cst_217 = arith.constant dense<0.000000e+00> : vector<8xf32>
    %525 = vector.multi_reduction <add>, %524, %cst_217 [1] : vector<8x16xf32> to vector<8xf32>
    %526 = vector.shape_cast %525 : vector<8xf32> to vector<8x1xf32>
    %527 = tpu.reciprocal %526 {approx = true} : vector<8x1xf32> -> vector<8x1xf32>
    %528 = vector.broadcast %527 : vector<8x1xf32> to vector<8x16xf32>
    %529 = arith.mulf %524, %528 : vector<8x16xf32>
    %530 = arith.truncf %529 : vector<8x16xf32> to vector<8x16xbf16>
    %cst_218 = arith.constant dense<0.000000e+00> : vector<8x128xf32>
    %531 = tpu.matmul %530, %516, %cst_218 {dimension_numbers = #tpu.dot_dimension_numbers<[1], [0], [0], [1], [0, 0, 1, 1], [], []>} : vector<8x16xbf16>, vector<16x128xbf16>, vector<8x128xf32> -> vector<8x128xf32>
    %532 = arith.truncf %531 : vector<8x128xf32> to vector<8x128xbf16>
    %533 = vector.extract_strided_slice %509 {offsets = [0, 0], sizes = [128, 32], strides = [1, 1]} : vector<512x32xbf16> to vector<128x32xbf16>
    %cst_219 = arith.constant dense<0.000000e+00> : vector<8x32xf32>
    %534 = tpu.matmul %532, %533, %cst_219 {dimension_numbers = #tpu.dot_dimension_numbers<[1], [0], [0], [1], [0, 0, 1, 1], [], []>} : vector<8x128xbf16>, vector<128x32xbf16>, vector<8x32xf32> -> vector<8x32xf32>
    %535 = arith.addf %513, %534 : vector<8x32xf32>
    %536 = vector.extract_strided_slice %512 {offsets = [0, 128], sizes = [8, 128], strides = [1, 1]} : vector<8x512xbf16> to vector<8x128xbf16>
    %537 = vector.extract_strided_slice %505 {offsets = [0, 128], sizes = [16, 128], strides = [1, 1]} : vector<16x512xbf16> to vector<16x128xbf16>
    %538 = vector.extract_strided_slice %507 {offsets = [0, 128], sizes = [16, 128], strides = [1, 1]} : vector<16x512xbf16> to vector<16x128xbf16>
    %cst_220 = arith.constant dense<0.000000e+00> : vector<8x16xf32>
    %539 = tpu.matmul %536, %537, %cst_220 {dimension_numbers = #tpu.dot_dimension_numbers<[1], [1], [0], [0], [0, 0, 1, 0], [], []>} : vector<8x128xbf16>, vector<16x128xbf16>, vector<8x16xf32> -> vector<8x16xf32>
    %cst_221 = arith.constant 0.353553385 : f32
    %540 = vector.broadcast %cst_221 : f32 to vector<8x16xf32>
    %541 = arith.mulf %539, %540 : vector<8x16xf32>
    %cst_222 = arith.constant dense<0xFF800000> : vector<8xf32>
    %542 = vector.multi_reduction <maximumf>, %541, %cst_222 [1] : vector<8x16xf32> to vector<8xf32>
    %543 = vector.shape_cast %542 : vector<8xf32> to vector<8x1xf32>
    %544 = vector.broadcast %543 : vector<8x1xf32> to vector<8x16xf32>
    %545 = arith.subf %541, %544 : vector<8x16xf32>
    %546 = math.exp %545 : vector<8x16xf32>
    %cst_223 = arith.constant dense<0.000000e+00> : vector<8xf32>
    %547 = vector.multi_reduction <add>, %546, %cst_223 [1] : vector<8x16xf32> to vector<8xf32>
    %548 = vector.shape_cast %547 : vector<8xf32> to vector<8x1xf32>
    %549 = tpu.reciprocal %548 {approx = true} : vector<8x1xf32> -> vector<8x1xf32>
    %550 = vector.broadcast %549 : vector<8x1xf32> to vector<8x16xf32>
    %551 = arith.mulf %546, %550 : vector<8x16xf32>
    %552 = arith.truncf %551 : vector<8x16xf32> to vector<8x16xbf16>
    %cst_224 = arith.constant dense<0.000000e+00> : vector<8x128xf32>
    %553 = tpu.matmul %552, %538, %cst_224 {dimension_numbers = #tpu.dot_dimension_numbers<[1], [0], [0], [1], [0, 0, 1, 1], [], []>} : vector<8x16xbf16>, vector<16x128xbf16>, vector<8x128xf32> -> vector<8x128xf32>
    %554 = arith.truncf %553 : vector<8x128xf32> to vector<8x128xbf16>
    %555 = vector.extract_strided_slice %509 {offsets = [128, 0], sizes = [128, 32], strides = [1, 1]} : vector<512x32xbf16> to vector<128x32xbf16>
    %cst_225 = arith.constant dense<0.000000e+00> : vector<8x32xf32>
    %556 = tpu.matmul %554, %555, %cst_225 {dimension_numbers = #tpu.dot_dimension_numbers<[1], [0], [0], [1], [0, 0, 1, 1], [], []>} : vector<8x128xbf16>, vector<128x32xbf16>, vector<8x32xf32> -> vector<8x32xf32>
    %557 = arith.addf %535, %556 : vector<8x32xf32>
    %558 = vector.extract_strided_slice %512 {offsets = [0, 256], sizes = [8, 128], strides = [1, 1]} : vector<8x512xbf16> to vector<8x128xbf16>
    %559 = vector.extract_strided_slice %505 {offsets = [0, 256], sizes = [16, 128], strides = [1, 1]} : vector<16x512xbf16> to vector<16x128xbf16>
    %560 = vector.extract_strided_slice %507 {offsets = [0, 256], sizes = [16, 128], strides = [1, 1]} : vector<16x512xbf16> to vector<16x128xbf16>
    %cst_226 = arith.constant dense<0.000000e+00> : vector<8x16xf32>
    %561 = tpu.matmul %558, %559, %cst_226 {dimension_numbers = #tpu.dot_dimension_numbers<[1], [1], [0], [0], [0, 0, 1, 0], [], []>} : vector<8x128xbf16>, vector<16x128xbf16>, vector<8x16xf32> -> vector<8x16xf32>
    %cst_227 = arith.constant 0.353553385 : f32
    %562 = vector.broadcast %cst_227 : f32 to vector<8x16xf32>
    %563 = arith.mulf %561, %562 : vector<8x16xf32>
    %cst_228 = arith.constant dense<0xFF800000> : vector<8xf32>
    %564 = vector.multi_reduction <maximumf>, %563, %cst_228 [1] : vector<8x16xf32> to vector<8xf32>
    %565 = vector.shape_cast %564 : vector<8xf32> to vector<8x1xf32>
    %566 = vector.broadcast %565 : vector<8x1xf32> to vector<8x16xf32>
    %567 = arith.subf %563, %566 : vector<8x16xf32>
    %568 = math.exp %567 : vector<8x16xf32>
    %cst_229 = arith.constant dense<0.000000e+00> : vector<8xf32>
    %569 = vector.multi_reduction <add>, %568, %cst_229 [1] : vector<8x16xf32> to vector<8xf32>
    %570 = vector.shape_cast %569 : vector<8xf32> to vector<8x1xf32>
    %571 = tpu.reciprocal %570 {approx = true} : vector<8x1xf32> -> vector<8x1xf32>
    %572 = vector.broadcast %571 : vector<8x1xf32> to vector<8x16xf32>
    %573 = arith.mulf %568, %572 : vector<8x16xf32>
    %574 = arith.truncf %573 : vector<8x16xf32> to vector<8x16xbf16>
    %cst_230 = arith.constant dense<0.000000e+00> : vector<8x128xf32>
    %575 = tpu.matmul %574, %560, %cst_230 {dimension_numbers = #tpu.dot_dimension_numbers<[1], [0], [0], [1], [0, 0, 1, 1], [], []>} : vector<8x16xbf16>, vector<16x128xbf16>, vector<8x128xf32> -> vector<8x128xf32>
    %576 = arith.truncf %575 : vector<8x128xf32> to vector<8x128xbf16>
    %577 = vector.extract_strided_slice %509 {offsets = [256, 0], sizes = [128, 32], strides = [1, 1]} : vector<512x32xbf16> to vector<128x32xbf16>
    %cst_231 = arith.constant dense<0.000000e+00> : vector<8x32xf32>
    %578 = tpu.matmul %576, %577, %cst_231 {dimension_numbers = #tpu.dot_dimension_numbers<[1], [0], [0], [1], [0, 0, 1, 1], [], []>} : vector<8x128xbf16>, vector<128x32xbf16>, vector<8x32xf32> -> vector<8x32xf32>
    %579 = arith.addf %557, %578 : vector<8x32xf32>
    %580 = vector.extract_strided_slice %512 {offsets = [0, 384], sizes = [8, 128], strides = [1, 1]} : vector<8x512xbf16> to vector<8x128xbf16>
    %581 = vector.extract_strided_slice %505 {offsets = [0, 384], sizes = [16, 128], strides = [1, 1]} : vector<16x512xbf16> to vector<16x128xbf16>
    %582 = vector.extract_strided_slice %507 {offsets = [0, 384], sizes = [16, 128], strides = [1, 1]} : vector<16x512xbf16> to vector<16x128xbf16>
    %cst_232 = arith.constant dense<0.000000e+00> : vector<8x16xf32>
    %583 = tpu.matmul %580, %581, %cst_232 {dimension_numbers = #tpu.dot_dimension_numbers<[1], [1], [0], [0], [0, 0, 1, 0], [], []>} : vector<8x128xbf16>, vector<16x128xbf16>, vector<8x16xf32> -> vector<8x16xf32>
    %cst_233 = arith.constant 0.353553385 : f32
    %584 = vector.broadcast %cst_233 : f32 to vector<8x16xf32>
    %585 = arith.mulf %583, %584 : vector<8x16xf32>
    %cst_234 = arith.constant dense<0xFF800000> : vector<8xf32>
    %586 = vector.multi_reduction <maximumf>, %585, %cst_234 [1] : vector<8x16xf32> to vector<8xf32>
    %587 = vector.shape_cast %586 : vector<8xf32> to vector<8x1xf32>
    %588 = vector.broadcast %587 : vector<8x1xf32> to vector<8x16xf32>
    %589 = arith.subf %585, %588 : vector<8x16xf32>
    %590 = math.exp %589 : vector<8x16xf32>
    %cst_235 = arith.constant dense<0.000000e+00> : vector<8xf32>
    %591 = vector.multi_reduction <add>, %590, %cst_235 [1] : vector<8x16xf32> to vector<8xf32>
    %592 = vector.shape_cast %591 : vector<8xf32> to vector<8x1xf32>
    %593 = tpu.reciprocal %592 {approx = true} : vector<8x1xf32> -> vector<8x1xf32>
    %594 = vector.broadcast %593 : vector<8x1xf32> to vector<8x16xf32>
    %595 = arith.mulf %590, %594 : vector<8x16xf32>
    %596 = arith.truncf %595 : vector<8x16xf32> to vector<8x16xbf16>
    %cst_236 = arith.constant dense<0.000000e+00> : vector<8x128xf32>
    %597 = tpu.matmul %596, %582, %cst_236 {dimension_numbers = #tpu.dot_dimension_numbers<[1], [0], [0], [1], [0, 0, 1, 1], [], []>} : vector<8x16xbf16>, vector<16x128xbf16>, vector<8x128xf32> -> vector<8x128xf32>
    %598 = arith.truncf %597 : vector<8x128xf32> to vector<8x128xbf16>
    %599 = vector.extract_strided_slice %509 {offsets = [384, 0], sizes = [128, 32], strides = [1, 1]} : vector<512x32xbf16> to vector<128x32xbf16>
    %cst_237 = arith.constant dense<0.000000e+00> : vector<8x32xf32>
    %600 = tpu.matmul %598, %599, %cst_237 {dimension_numbers = #tpu.dot_dimension_numbers<[1], [0], [0], [1], [0, 0, 1, 1], [], []>} : vector<8x128xbf16>, vector<128x32xbf16>, vector<8x32xf32> -> vector<8x32xf32>
    %601 = arith.addf %579, %600 : vector<8x32xf32>
    %602 = vector.broadcast %511 : vector<1x32xf32> to vector<8x32xf32>
    %603 = arith.addf %601, %602 : vector<8x32xf32>
    %604 = arith.addf %462, %603 : vector<8x32xf32>
    %c1_238 = arith.constant 1 : index
    %c0_239 = arith.constant 0 : index
    %c0_240 = arith.constant 0 : index
    %605 = vector.load %arg17[%c1_238, %c0_239, %c0_240] : memref<2x1x32xf32, #tpu.memory_space<vmem>>, vector<1x1x32xf32>
    %606 = vector.shape_cast %605 : vector<1x1x32xf32> to vector<1x32xf32>
    %c1_241 = arith.constant 1 : index
    %c0_242 = arith.constant 0 : index
    %c0_243 = arith.constant 0 : index
    %607 = vector.load %arg18[%c1_241, %c0_242, %c0_243] : memref<2x1x32xf32, #tpu.memory_space<vmem>>, vector<1x1x32xf32>
    %608 = vector.shape_cast %607 : vector<1x1x32xf32> to vector<1x32xf32>
    %cst_244 = arith.constant dense<0.000000e+00> : vector<8xf32>
    %609 = vector.multi_reduction <add>, %604, %cst_244 [1] : vector<8x32xf32> to vector<8xf32>
    %610 = vector.shape_cast %609 : vector<8xf32> to vector<8x1xf32>
    %cst_245 = arith.constant 3.200000e+01 : f32
    %611 = vector.broadcast %cst_245 : f32 to vector<8x1xf32>
    %612 = arith.divf %610, %611 : vector<8x1xf32>
    %613 = vector.broadcast %612 : vector<8x1xf32> to vector<8x32xf32>
    %614 = arith.subf %604, %613 : vector<8x32xf32>
    %615 = arith.mulf %614, %614 : vector<8x32xf32>
    %cst_246 = arith.constant dense<0.000000e+00> : vector<8xf32>
    %616 = vector.multi_reduction <add>, %615, %cst_246 [1] : vector<8x32xf32> to vector<8xf32>
    %617 = vector.shape_cast %616 : vector<8xf32> to vector<8x1xf32>
    %cst_247 = arith.constant 3.200000e+01 : f32
    %618 = vector.broadcast %cst_247 : f32 to vector<8x1xf32>
    %619 = arith.divf %617, %618 : vector<8x1xf32>
    %620 = vector.broadcast %612 : vector<8x1xf32> to vector<8x32xf32>
    %621 = arith.subf %604, %620 : vector<8x32xf32>
    %cst_248 = arith.constant 9.99999974E-6 : f32
    %622 = vector.broadcast %cst_248 : f32 to vector<8x1xf32>
    %623 = arith.addf %619, %622 : vector<8x1xf32>
    %624 = math.rsqrt %623 : vector<8x1xf32>
    %625 = vector.broadcast %624 : vector<8x1xf32> to vector<8x32xf32>
    %626 = arith.mulf %621, %625 : vector<8x32xf32>
    %627 = vector.broadcast %606 : vector<1x32xf32> to vector<8x32xf32>
    %628 = arith.mulf %626, %627 : vector<8x32xf32>
    %629 = vector.broadcast %608 : vector<1x32xf32> to vector<8x32xf32>
    %630 = arith.addf %628, %629 : vector<8x32xf32>
    %631 = arith.truncf %630 : vector<8x32xf32> to vector<8x32xbf16>
    %c1_249 = arith.constant 1 : index
    %c0_250 = arith.constant 0 : index
    %c0_251 = arith.constant 0 : index
    %632 = vector.load %arg19[%c1_249, %c0_250, %c0_251] : memref<2x32x64xbf16, #tpu.memory_space<vmem>>, vector<1x32x64xbf16>
    %633 = vector.shape_cast %632 : vector<1x32x64xbf16> to vector<32x64xbf16>
    %cst_252 = arith.constant dense<0.000000e+00> : vector<8x64xf32>
    %634 = tpu.matmul %631, %633, %cst_252 {dimension_numbers = #tpu.dot_dimension_numbers<[1], [0], [0], [1], [0, 0, 1, 1], [], []>} : vector<8x32xbf16>, vector<32x64xbf16>, vector<8x64xf32> -> vector<8x64xf32>
    %c1_253 = arith.constant 1 : index
    %c0_254 = arith.constant 0 : index
    %c0_255 = arith.constant 0 : index
    %635 = vector.load %arg20[%c1_253, %c0_254, %c0_255] : memref<2x1x64xf32, #tpu.memory_space<vmem>>, vector<1x1x64xf32>
    %636 = vector.shape_cast %635 : vector<1x1x64xf32> to vector<1x64xf32>
    %637 = vector.broadcast %636 : vector<1x64xf32> to vector<8x64xf32>
    %638 = arith.addf %634, %637 : vector<8x64xf32>
    %cst_256 = arith.constant 0.000000e+00 : f32
    %639 = vector.broadcast %cst_256 : f32 to vector<8x64xf32>
    %640 = arith.maximumf %638, %639 : vector<8x64xf32>
    %641 = arith.truncf %640 : vector<8x64xf32> to vector<8x64xbf16>
    %c1_257 = arith.constant 1 : index
    %c0_258 = arith.constant 0 : index
    %c0_259 = arith.constant 0 : index
    %642 = vector.load %arg21[%c1_257, %c0_258, %c0_259] : memref<2x64x32xbf16, #tpu.memory_space<vmem>>, vector<1x64x32xbf16>
    %643 = vector.shape_cast %642 : vector<1x64x32xbf16> to vector<64x32xbf16>
    %cst_260 = arith.constant dense<0.000000e+00> : vector<8x32xf32>
    %644 = tpu.matmul %641, %643, %cst_260 {dimension_numbers = #tpu.dot_dimension_numbers<[1], [0], [0], [1], [0, 0, 1, 1], [], []>} : vector<8x64xbf16>, vector<64x32xbf16>, vector<8x32xf32> -> vector<8x32xf32>
    %645 = arith.addf %604, %644 : vector<8x32xf32>
    %c1_261 = arith.constant 1 : index
    %c0_262 = arith.constant 0 : index
    %c0_263 = arith.constant 0 : index
    %646 = vector.load %arg22[%c1_261, %c0_262, %c0_263] : memref<2x1x32xf32, #tpu.memory_space<vmem>>, vector<1x1x32xf32>
    %647 = vector.shape_cast %646 : vector<1x1x32xf32> to vector<1x32xf32>
    %648 = vector.broadcast %647 : vector<1x32xf32> to vector<8x32xf32>
    %649 = arith.addf %645, %648 : vector<8x32xf32>
    %c0_264 = arith.constant 0 : index
    %c0_265 = arith.constant 0 : index
    %650 = vector.load %arg23[%c0_264, %c0_265] : memref<1x32xf32, #tpu.memory_space<vmem>>, vector<1x32xf32>
    %c0_266 = arith.constant 0 : index
    %c0_267 = arith.constant 0 : index
    %651 = vector.load %arg24[%c0_266, %c0_267] : memref<1x32xf32, #tpu.memory_space<vmem>>, vector<1x32xf32>
    %cst_268 = arith.constant dense<0.000000e+00> : vector<8xf32>
    %652 = vector.multi_reduction <add>, %649, %cst_268 [1] : vector<8x32xf32> to vector<8xf32>
    %653 = vector.shape_cast %652 : vector<8xf32> to vector<8x1xf32>
    %cst_269 = arith.constant 3.200000e+01 : f32
    %654 = vector.broadcast %cst_269 : f32 to vector<8x1xf32>
    %655 = arith.divf %653, %654 : vector<8x1xf32>
    %656 = vector.broadcast %655 : vector<8x1xf32> to vector<8x32xf32>
    %657 = arith.subf %649, %656 : vector<8x32xf32>
    %658 = arith.mulf %657, %657 : vector<8x32xf32>
    %cst_270 = arith.constant dense<0.000000e+00> : vector<8xf32>
    %659 = vector.multi_reduction <add>, %658, %cst_270 [1] : vector<8x32xf32> to vector<8xf32>
    %660 = vector.shape_cast %659 : vector<8xf32> to vector<8x1xf32>
    %cst_271 = arith.constant 3.200000e+01 : f32
    %661 = vector.broadcast %cst_271 : f32 to vector<8x1xf32>
    %662 = arith.divf %660, %661 : vector<8x1xf32>
    %663 = vector.broadcast %655 : vector<8x1xf32> to vector<8x32xf32>
    %664 = arith.subf %649, %663 : vector<8x32xf32>
    %cst_272 = arith.constant 9.99999974E-6 : f32
    %665 = vector.broadcast %cst_272 : f32 to vector<8x1xf32>
    %666 = arith.addf %662, %665 : vector<8x1xf32>
    %667 = math.rsqrt %666 : vector<8x1xf32>
    %668 = vector.broadcast %667 : vector<8x1xf32> to vector<8x32xf32>
    %669 = arith.mulf %664, %668 : vector<8x32xf32>
    %670 = vector.broadcast %650 : vector<1x32xf32> to vector<8x32xf32>
    %671 = arith.mulf %669, %670 : vector<8x32xf32>
    %672 = vector.broadcast %651 : vector<1x32xf32> to vector<8x32xf32>
    %673 = arith.addf %671, %672 : vector<8x32xf32>
    %674 = arith.truncf %673 : vector<8x32xf32> to vector<8x32xbf16>
    %c0_273 = arith.constant 0 : index
    %c0_274 = arith.constant 0 : index
    %675 = vector.load %arg25[%c0_273, %c0_274] : memref<32x128xbf16, #tpu.memory_space<vmem>>, vector<32x128xbf16>
    %cst_275 = arith.constant dense<0.000000e+00> : vector<8x128xf32>
    %676 = tpu.matmul %674, %675, %cst_275 {dimension_numbers = #tpu.dot_dimension_numbers<[1], [0], [0], [1], [0, 0, 1, 1], [], []>} : vector<8x32xbf16>, vector<32x128xbf16>, vector<8x128xf32> -> vector<8x128xf32>
    %c0_276 = arith.constant 0 : index
    %c0_277 = arith.constant 0 : index
    %677 = vector.load %arg26[%c0_276, %c0_277] : memref<1x128xf32, #tpu.memory_space<vmem>>, vector<1x128xf32>
    %678 = vector.broadcast %677 : vector<1x128xf32> to vector<8x128xf32>
    %679 = arith.addf %676, %678 : vector<8x128xf32>
    %cst_278 = arith.constant dense<0.000000e+00> : vector<128xf32>
    %680 = vector.multi_reduction <add>, %679, %cst_278 [0] : vector<8x128xf32> to vector<128xf32>
    %681 = vector.shape_cast %680 : vector<128xf32> to vector<1x128xf32>
    %cst_279 = arith.constant 8.000000e+00 : f32
    %682 = vector.broadcast %cst_279 : f32 to vector<1x128xf32>
    %683 = arith.divf %681, %682 : vector<1x128xf32>
    %c0_280 = arith.constant 0 : index
    %c0_281 = arith.constant 0 : index
    %c0_282 = arith.constant 0 : index
    %684 = vector.load %arg27[%c0_280, %c0_281, %c0_282] : memref<1x1x128xf32, #tpu.memory_space<vmem>>, vector<1x1x128xf32>
    %685 = vector.shape_cast %684 : vector<1x1x128xf32> to vector<1x128xf32>
    %686 = vector.shape_cast %683 : vector<1x128xf32> to vector<1x1x128xf32>
    tpu.vector_store %arg27[%c0_280, %c0_281, %c0_282], %686 {strides = array<i32>} : memref<1x1x128xf32, #tpu.memory_space<vmem>>, vector<1x1x128xf32>,
    return
  }
  func.func @transform_0(%arg0: i32) -> (i32, i32, i32) {
    %c0_i32 = arith.constant 0 : i32
    %c0_i32_0 = arith.constant 0 : i32
    %c0_i32_1 = arith.constant 0 : i32
    return %arg0, %c0_i32, %c0_i32_0 : i32, i32, i32
  }
  func.func @transform_1(%arg0: i32) -> (i32, i32) {
    %c0_i32 = arith.constant 0 : i32
    %c0_i32_0 = arith.constant 0 : i32
    %c0_i32_1 = arith.constant 0 : i32
    return %c0_i32, %c0_i32_0 : i32, i32
  }
  func.func @transform_2(%arg0: i32) -> (i32, i32, i32) {
    %c0_i32 = arith.constant 0 : i32
    %c0_i32_0 = arith.constant 0 : i32
    %c0_i32_1 = arith.constant 0 : i32
    %c0_i32_2 = arith.constant 0 : i32
    return %c0_i32, %c0_i32_0, %c0_i32_1 : i32, i32, i32
  }
  func.func @transform_3(%arg0: i32) -> (i32, i32, i32) {
    %c0_i32 = arith.constant 0 : i32
    %c0_i32_0 = arith.constant 0 : i32
    %c0_i32_1 = arith.constant 0 : i32
    %c0_i32_2 = arith.constant 0 : i32
    return %c0_i32, %c0_i32_0, %c0_i32_1 : i32, i32, i32
  }
  func.func @transform_4(%arg0: i32) -> (i32, i32, i32) {
    %c0_i32 = arith.constant 0 : i32
    %c0_i32_0 = arith.constant 0 : i32
    %c0_i32_1 = arith.constant 0 : i32
    %c0_i32_2 = arith.constant 0 : i32
    return %c0_i32, %c0_i32_0, %c0_i32_1 : i32, i32, i32
  }
  func.func @transform_5(%arg0: i32) -> (i32, i32, i32) {
    %c0_i32 = arith.constant 0 : i32
    %c0_i32_0 = arith.constant 0 : i32
    %c0_i32_1 = arith.constant 0 : i32
    %c0_i32_2 = arith.constant 0 : i32
    return %c0_i32, %c0_i32_0, %c0_i32_1 : i32, i32, i32
  }
  func.func @transform_6(%arg0: i32) -> (i32, i32, i32) {
    %c0_i32 = arith.constant 0 : i32
    %c0_i32_0 = arith.constant 0 : i32
    %c0_i32_1 = arith.constant 0 : i32
    %c0_i32_2 = arith.constant 0 : i32
    return %c0_i32, %c0_i32_0, %c0_i32_1 : i32, i32, i32
  }
  func.func @transform_7(%arg0: i32) -> (i32, i32, i32) {
    %c0_i32 = arith.constant 0 : i32
    %c0_i32_0 = arith.constant 0 : i32
    %c0_i32_1 = arith.constant 0 : i32
    %c0_i32_2 = arith.constant 0 : i32
    return %c0_i32, %c0_i32_0, %c0_i32_1 : i32, i32, i32
  }
  func.func @transform_8(%arg0: i32) -> (i32, i32, i32) {
    %c0_i32 = arith.constant 0 : i32
    %c0_i32_0 = arith.constant 0 : i32
    %c0_i32_1 = arith.constant 0 : i32
    %c0_i32_2 = arith.constant 0 : i32
    return %c0_i32, %c0_i32_0, %c0_i32_1 : i32, i32, i32
  }
  func.func @transform_9(%arg0: i32) -> (i32, i32, i32) {
    %c0_i32 = arith.constant 0 : i32
    %c0_i32_0 = arith.constant 0 : i32
    %c0_i32_1 = arith.constant 0 : i32
    %c0_i32_2 = arith.constant 0 : i32
    return %c0_i32, %c0_i32_0, %c0_i32_1 : i32, i32, i32
  }
  func.func @transform_10(%arg0: i32) -> (i32, i32, i32) {
    %c0_i32 = arith.constant 0 : i32
    %c0_i32_0 = arith.constant 0 : i32
    %c0_i32_1 = arith.constant 0 : i32
    %c0_i32_2 = arith.constant 0 : i32
    return %c0_i32, %c0_i32_0, %c0_i32_1 : i32, i32, i32
  }
  func.func @transform_11(%arg0: i32) -> (i32, i32, i32) {
    %c0_i32 = arith.constant 0 : i32
    %c0_i32_0 = arith.constant 0 : i32
    %c0_i32_1 = arith.constant 0 : i32
    %c0_i32_2 = arith.constant 0 : i32
    return %c0_i32, %c0_i32_0, %c0_i32_1 : i32, i32, i32
  }
  func.func @transform_12(%arg0: i32) -> (i32, i32, i32) {
    %c0_i32 = arith.constant 0 : i32
    %c0_i32_0 = arith.constant 0 : i32
    %c0_i32_1 = arith.constant 0 : i32
    %c0_i32_2 = arith.constant 0 : i32
    return %c0_i32, %c0_i32_0, %c0_i32_1 : i32, i32, i32
  }
  func.func @transform_13(%arg0: i32) -> (i32, i32, i32) {
    %c0_i32 = arith.constant 0 : i32
    %c0_i32_0 = arith.constant 0 : i32
    %c0_i32_1 = arith.constant 0 : i32
    %c0_i32_2 = arith.constant 0 : i32
    return %c0_i32, %c0_i32_0, %c0_i32_1 : i32, i32, i32
  }
  func.func @transform_14(%arg0: i32) -> (i32, i32, i32) {
    %c0_i32 = arith.constant 0 : i32
    %c0_i32_0 = arith.constant 0 : i32
    %c0_i32_1 = arith.constant 0 : i32
    %c0_i32_2 = arith.constant 0 : i32
    return %c0_i32, %c0_i32_0, %c0_i32_1 : i32, i32, i32
  }
  func.func @transform_15(%arg0: i32) -> (i32, i32, i32) {
    %c0_i32 = arith.constant 0 : i32
    %c0_i32_0 = arith.constant 0 : i32
    %c0_i32_1 = arith.constant 0 : i32
    %c0_i32_2 = arith.constant 0 : i32
    return %c0_i32, %c0_i32_0, %c0_i32_1 : i32, i32, i32
  }
  func.func @transform_16(%arg0: i32) -> (i32, i32, i32) {
    %c0_i32 = arith.constant 0 : i32
    %c0_i32_0 = arith.constant 0 : i32
    %c0_i32_1 = arith.constant 0 : i32
    %c0_i32_2 = arith.constant 0 : i32
    return %c0_i32, %c0_i32_0, %c0_i32_1 : i32, i32, i32
  }
  func.func @transform_17(%arg0: i32) -> (i32, i32, i32) {
    %c0_i32 = arith.constant 0 : i32
    %c0_i32_0 = arith.constant 0 : i32
    %c0_i32_1 = arith.constant 0 : i32
    %c0_i32_2 = arith.constant 0 : i32
    return %c0_i32, %c0_i32_0, %c0_i32_1 : i32, i32, i32
  }
  func.func @transform_18(%arg0: i32) -> (i32, i32, i32) {
    %c0_i32 = arith.constant 0 : i32
    %c0_i32_0 = arith.constant 0 : i32
    %c0_i32_1 = arith.constant 0 : i32
    %c0_i32_2 = arith.constant 0 : i32
    return %c0_i32, %c0_i32_0, %c0_i32_1 : i32, i32, i32
  }
  func.func @transform_19(%arg0: i32) -> (i32, i32, i32) {
    %c0_i32 = arith.constant 0 : i32
    %c0_i32_0 = arith.constant 0 : i32
    %c0_i32_1 = arith.constant 0 : i32
    %c0_i32_2 = arith.constant 0 : i32
    return %c0_i32, %c0_i32_0, %c0_i32_1 : i32, i32, i32
  }
  func.func @transform_20(%arg0: i32) -> (i32, i32, i32) {
    %c0_i32 = arith.constant 0 : i32
    %c0_i32_0 = arith.constant 0 : i32
    %c0_i32_1 = arith.constant 0 : i32
    %c0_i32_2 = arith.constant 0 : i32
    return %c0_i32, %c0_i32_0, %c0_i32_1 : i32, i32, i32
  }
  func.func @transform_21(%arg0: i32) -> (i32, i32, i32) {
    %c0_i32 = arith.constant 0 : i32
    %c0_i32_0 = arith.constant 0 : i32
    %c0_i32_1 = arith.constant 0 : i32
    %c0_i32_2 = arith.constant 0 : i32
    return %c0_i32, %c0_i32_0, %c0_i32_1 : i32, i32, i32
  }
  func.func @transform_22(%arg0: i32) -> (i32, i32) {
    %c0_i32 = arith.constant 0 : i32
    %c0_i32_0 = arith.constant 0 : i32
    %c0_i32_1 = arith.constant 0 : i32
    return %c0_i32, %c0_i32_0 : i32, i32
  }
  func.func @transform_23(%arg0: i32) -> (i32, i32) {
    %c0_i32 = arith.constant 0 : i32
    %c0_i32_0 = arith.constant 0 : i32
    %c0_i32_1 = arith.constant 0 : i32
    return %c0_i32, %c0_i32_0 : i32, i32
  }
  func.func @transform_24(%arg0: i32) -> (i32, i32) {
    %c0_i32 = arith.constant 0 : i32
    %c0_i32_0 = arith.constant 0 : i32
    %c0_i32_1 = arith.constant 0 : i32
    return %c0_i32, %c0_i32_0 : i32, i32
  }
  func.func @transform_25(%arg0: i32) -> (i32, i32) {
    %c0_i32 = arith.constant 0 : i32
    %c0_i32_0 = arith.constant 0 : i32
    %c0_i32_1 = arith.constant 0 : i32
    return %c0_i32, %c0_i32_0 : i32, i32
  }
  func.func @transform_26(%arg0: i32) -> (i32, i32, i32) {
    %c0_i32 = arith.constant 0 : i32
    %c0_i32_0 = arith.constant 0 : i32
    %c0_i32_1 = arith.constant 0 : i32
    return %arg0, %c0_i32, %c0_i32_0 : i32, i32, i32
  }
}

</mosaic_0001>

<llo_original>
// kernel: medklip_forward.4
$region0: #{medklip_forward.4}
  #allocation0 [shape = 'u32[]', space=smem, size = 0x4, offset = 0x4, fixed_abs, tag = 'smem constant byte address 0x4 - core index']
  #allocation1 [shape = 'u32[144,128]{1,0:T(1,128)}', space=vmem, size = 0x12000, scoped, tag = 'internal scratch']
  %s0 = inlined_call_operand.vmem [shape: f32[8,64], index: 0, kind: input, shape index: {}]
  %s1 = inlined_call_operand.vmem [shape: bf16[64,32], index: 1, kind: input, shape index: {}]
  %s2 = inlined_call_operand.vmem [shape: f32[1,32], index: 2, kind: input, shape index: {}]
  %s3 = inlined_call_operand.vmem [shape: f32[8,32], index: 3, kind: output, shape index: {}]
  %s4 = sld [smem:[#allocation0]]
  $region22: #{medklip_forward.4} parent=0
    _
  %s6 = ssub.s32 1, %s4
  %s7 = scalar_select 0, %s6, %s4
  // Predicated region
  $region2: #{medklip_forward.4} parent=0 // pred_check
    _
  $region3: #{medklip_forward.4} parent=0 // pred_check_branch
    %9 = sbr.rel (0) target = $region5
  $region4: #{medklip_forward.4} parent=0 // pred_region
    _
  $region5: #{medklip_forward.4} parent=0 // pred_fallthru
    _
  // Predicated region
  $region6: #{medklip_forward.4} parent=0 // pred_check
    _
  $region7: #{medklip_forward.4} parent=0 // pred_check_branch
    %11 = sbr.rel (0) target = $region9
  $region8: #{medklip_forward.4} parent=0 // pred_region
    _
  $region9: #{medklip_forward.4} parent=0 // pred_fallthru
    _
  // Predicated region
  $region10: #{medklip_forward.4} parent=0 // pred_check
    _
  $region11: #{medklip_forward.4} parent=0 // pred_check_branch
    %13 = sbr.rel (0) target = $region13
  $region12: #{medklip_forward.4} parent=0 // pred_region
    _
  $region13: #{medklip_forward.4} parent=0 // pred_fallthru
    _
  %v15 = vld [vmem:[%s0] sm:$0xff]
  %v16 = vpack.c.bf16 %v15, %v15
  %v17 = vld [vmem:[%s1] sm:$0xf]
  %v18 = vld [vmem:[%s1 + $0x4] sm:$0xf]
  %v19 = vld [vmem:[%s1 + $0x8] sm:$0xf]
  %v20 = vld [vmem:[%s1 + $0xc] sm:$0xf]
  %v21 = vld [vmem:[%s1 + $0x10] sm:$0xf]
  %v22 = vld [vmem:[%s1 + $0x14] sm:$0xf]
  %v23 = vld [vmem:[%s1 + $0x18] sm:$0xf]
  %v24 = vld [vmem:[%s1 + $0x1c] sm:$0xf]
  %v25 = vld [vmem:[%s2] sm:$0x1]
  %v27 = vlaneseq
  %v28 = vshrl.u32 %v27, 7
  %v29 = vsub.s32 0, %v28
  %v30 = vrot.slane %v25, %v29
  %v40 = vunpack.c.l.b16 %v17
  %v41 = vunpack.c.l.b16 %v18
  %v42 = vunpack.c.l.b16 %v19
  %v43 = vunpack.c.l.b16 %v20
  %v44 = vunpack.c.l.b16 %v21
  %v45 = vunpack.c.l.b16 %v22
  %v46 = vunpack.c.l.b16 %v23
  %v47 = vunpack.c.l.b16 %v24
  %v48 = vpack.c.b16 %v41, %v40
  %v49 = vpack.c.b16 %v43, %v42
  %v50 = vpack.c.b16 %v45, %v44
  %v51 = vpack.c.b16 %v47, %v46
  %vm56 = vcmask 523264
  %v58 = vsel %vm56, %v16, 0
  %60 = vmatprep.subr.bf16.mxu0 0
  %61 = vmatpush1.bf16.msra.mxu0 %v48
  %62 = vmatprep.subr.bf16.mxu0 0
  %63 = vmatpush1.bf16.msra.mxu0 %v49
  %64 = vmatprep.subr.bf16.mxu0 0
  %65 = vmatpush1.bf16.msra.mxu0 %v50
  %66 = vmatprep.subr.bf16.mxu0 0
  %67 = vmatpush1.bf16.msra.mxu0 %v51
  %68 = vmatprep.subr.bf16.mxu0 0
  %69 = vmatpush1.bf16.msra.mxu0 0
  %70 = vmatprep.subr.bf16.mxu0 0
  %71 = vmatpush1.bf16.msra.mxu0 0
  %72 = vmatprep.subr.bf16.mxu0 0
  %73 = vmatpush1.bf16.msra.mxu0 0
  %74 = vmatprep.subr.bf16.mxu0 0
  %75 = vmatpush1.bf16.msra.mxu0 0
  %76 = vmatprep.subr.bf16.mxu0 0
  %77 = vmatpush1.bf16.msra.mxu0 0
  %78 = vmatprep.subr.bf16.mxu0 0
  %79 = vmatpush1.bf16.msra.mxu0 0
  %80 = vmatprep.subr.bf16.mxu0 0
  %81 = vmatpush1.bf16.msra.mxu0 0
  %82 = vmatprep.subr.bf16.mxu0 0
  %83 = vmatpush1.bf16.msra.mxu0 0
  %84 = vmatprep.subr.bf16.mxu0 0
  %85 = vmatpush1.bf16.msra.mxu0 0
  %86 = vmatprep.subr.bf16.mxu0 0
  %87 = vmatpush1.bf16.msra.mxu0 0
  %88 = vmatprep.subr.bf16.mxu0 0
  %89 = vmatpush1.bf16.msra.mxu0 0
  %90 = vmatprep.subr.bf16.mxu0 0
  %91 = vmatpush1.bf16.msra.mxu0 0
  %92 = vmatprep.mubr.bf16.mxu0 0
  %93 = vmatmul.mubr.bf16.gmra.mrb[0].mxu0 %v58
  %v94 = vpop.f32.mrb[0].mxu0
  %v95 = vadd.f32 %v30, %v94
  %v96 = vpop.f32.mrb[0].mxu0
  %v97 = vpop.f32.mrb[0].mxu0
  %v98 = vpop.f32.mrb[0].mxu0
  %99 = vdwg.mxu0
  %vm100 = vcmask 261120
  %101 = vst.msk [vmem:[%s3] sm:$0xff] %vm100, %v95
  // Predicated region
  $region14: #{medklip_forward.4} parent=0 // pred_check
    _
  $region15: #{medklip_forward.4} parent=0 // pred_check_branch
    %103 = sbr.rel (0) target = $region17
  $region16: #{medklip_forward.4} parent=0 // pred_region
    _
  $region17: #{medklip_forward.4} parent=0 // pred_fallthru
    _
  // Predicated region
  $region18: #{medklip_forward.4} parent=0 // pred_check
    _
  $region19: #{medklip_forward.4} parent=0 // pred_check_branch
    %105 = sbr.rel (0) target = $region21
  $region20: #{medklip_forward.4} parent=0 // pred_region
    _
  $region21: #{medklip_forward.4} parent=0 // pred_fallthru
    _

// kernel: medklip_forward.3
$region0: #{medklip_forward.3}
  #allocation0 [shape = 'u32[]', space=smem, size = 0x4, offset = 0x4, fixed_abs, tag = 'smem constant byte address 0x4 - core index']
  #allocation1 [shape = 'u32[144,128]{1,0:T(1,128)}', space=vmem, size = 0x12000, scoped, tag = 'internal scratch']
  %s0 = inlined_call_operand.vmem [shape: bf16[32,48], index: 0, kind: input, shape index: {}]
  %s1 = inlined_call_operand.vmem [shape: bf16[48,32], index: 1, kind: input, shape index: {}]
  %s2 = inlined_call_operand.vmem [shape: f32[1,32], index: 2, kind: input, shape index: {}]
  %s3 = inlined_call_operand.vmem [shape: bf16[32,32], index: 3, kind: input, shape index: {}]
  %s4 = inlined_call_operand.vmem [shape: f32[1,32], index: 4, kind: input, shape index: {}]
  %s5 = inlined_call_operand.vmem [shape: bf16[32,32], index: 5, kind: input, shape index: {}]
  %s6 = inlined_call_operand.vmem [shape: f32[1,32], index: 6, kind: input, shape index: {}]
  %s7 = inlined_call_operand.vmem [shape: f32[32,32], index: 7, kind: output, shape index: {}]
  %s8 = sld [smem:[#allocation0]]
  $region38: #{medklip_forward.3} parent=0
    _
  %s10 = ssub.s32 1, %s8
  %s11 = scalar_select 0, %s10, %s8
  // Predicated region
  $region2: #{medklip_forward.3} parent=0 // pred_check
    _
  $region3: #{medklip_forward.3} parent=0 // pred_check_branch
    %13 = sbr.rel (0) target = $region5
  $region4: #{medklip_forward.3} parent=0 // pred_region
    _
  $region5: #{medklip_forward.3} parent=0 // pred_fallthru
    _
  // Predicated region
  $region6: #{medklip_forward.3} parent=0 // pred_check
    _
  $region7: #{medklip_forward.3} parent=0 // pred_check_branch
    %15 = sbr.rel (0) target = $region9
  $region8: #{medklip_forward.3} parent=0 // pred_region
    _
  $region9: #{medklip_forward.3} parent=0 // pred_fallthru
    _
  // Predicated region
  $region10: #{medklip_forward.3} parent=0 // pred_check
    _
  $region11: #{medklip_forward.3} parent=0 // pred_check_branch
    %17 = sbr.rel (0) target = $region13
  $region12: #{medklip_forward.3} parent=0 // pred_region
    _
  $region13: #{medklip_forward.3} parent=0 // pred_fallthru
    _
  // Predicated region
  $region14: #{medklip_forward.3} parent=0 // pred_check
    _
  $region15: #{medklip_forward.3} parent=0 // pred_check_branch
    %19 = sbr.rel (0) target = $region17
  $region16: #{medklip_forward.3} parent=0 // pred_region
    _
  $region17: #{medklip_forward.3} parent=0 // pred_fallthru
    _
  // Predicated region
  $region18: #{medklip_forward.3} parent=0 // pred_check
    _
  $region19: #{medklip_forward.3} parent=0 // pred_check_branch
    %21 = sbr.rel (0) target = $region21
  $region20: #{medklip_forward.3} parent=0 // pred_region
    _
  $region21: #{medklip_forward.3} parent=0 // pred_fallthru
    _
  // Predicated region
  $region22: #{medklip_forward.3} parent=0 // pred_check
    _
  $region23: #{medklip_forward.3} parent=0 // pred_check_branch
    %23 = sbr.rel (0) target = $region25
  $region24: #{medklip_forward.3} parent=0 // pred_region
    _
  $region25: #{medklip_forward.3} parent=0 // pred_fallthru
    _
  // Predicated region
  $region26: #{medklip_forward.3} parent=0 // pred_check
    _
  $region27: #{medklip_forward.3} parent=0 // pred_check_branch
    %25 = sbr.rel (0) target = $region29
  $region28: #{medklip_forward.3} parent=0 // pred_region
    _
  $region29: #{medklip_forward.3} parent=0 // pred_fallthru
    _
  %v27 = vld [vmem:[%s0] sm:$0xf]
  %v28 = vld [vmem:[%s0 + $0x4] sm:$0xf]
  %v29 = vld [vmem:[%s0 + $0x8] sm:$0xf]
  %v30 = vld [vmem:[%s0 + $0xc] sm:$0xf]
  %v31 = vld [vmem:[%s1] sm:$0xf]
  %v32 = vld [vmem:[%s1 + $0x4] sm:$0xf]
  %v33 = vld [vmem:[%s1 + $0x8] sm:$0xf]
  %v34 = vld [vmem:[%s1 + $0xc] sm:$0xf]
  %v35 = vld [vmem:[%s1 + $0x10] sm:$0xf]
  %v36 = vld [vmem:[%s1 + $0x14] sm:$0xf]
  %v37 = vld [vmem:[%s2] sm:$0x1]
  %v39 = vlaneseq
  %v40 = vshrl.u32 %v39, 7
  %v41 = vsub.s32 0, %v40
  %v42 = vrot.slane %v37, %v41
  %v48 = vunpack.c.l.b16 %v27
  %v49 = vunpack.c.l.b16 %v28
  %v50 = vunpack.c.l.b16 %v29
  %v51 = vunpack.c.l.b16 %v30
  %v52 = vpack.c.b16 %v49, %v48
  %v53 = vpack.c.b16 %v51, %v50
  %v60 = vunpack.c.l.b16 %v31
  %v61 = vunpack.c.l.b16 %v32
  %v62 = vunpack.c.l.b16 %v33
  %v63 = vunpack.c.l.b16 %v34
  %v64 = vunpack.c.l.b16 %v35
  %v65 = vunpack.c.l.b16 %v36
  %v66 = vpack.c.b16 %v61, %v60
  %v67 = vpack.c.b16 %v63, %v62
  %v68 = vpack.c.b16 %v65, %v64
  %vm72 = vcmask 392192
  %v74 = vsel %vm72, %v52, 0
  %v77 = vsel %vm72, %v53, 0
  %79 = vmatprep.subr.bf16.mxu0 0
  %80 = vmatpush1.bf16.msra.mxu0 %v66
  %81 = vmatprep.subr.bf16.mxu0 0
  %82 = vmatpush1.bf16.msra.mxu0 %v67
  %83 = vmatprep.subr.bf16.mxu0 0
  %84 = vmatpush1.bf16.msra.mxu0 %v68
  %85 = vmatprep.subr.bf16.mxu0 0
  %86 = vmatpush1.bf16.msra.mxu0 0
  %87 = vmatprep.subr.bf16.mxu0 0
  %88 = vmatpush1.bf16.msra.mxu0 0
  %89 = vmatprep.subr.bf16.mxu0 0
  %90 = vmatpush1.bf16.msra.mxu0 0
  %91 = vmatprep.subr.bf16.mxu0 0
  %92 = vmatpush1.bf16.msra.mxu0 0
  %93 = vmatprep.subr.bf16.mxu0 0
  %94 = vmatpush1.bf16.msra.mxu0 0
  %95 = vmatprep.subr.bf16.mxu0 0
  %96 = vmatpush1.bf16.msra.mxu0 0
  %97 = vmatprep.subr.bf16.mxu0 0
  %98 = vmatpush1.bf16.msra.mxu0 0
  %99 = vmatprep.subr.bf16.mxu0 0
  %100 = vmatpush1.bf16.msra.mxu0 0
  %101 = vmatprep.subr.bf16.mxu0 0
  %102 = vmatpush1.bf16.msra.mxu0 0
  %103 = vmatprep.subr.bf16.mxu0 0
  %104 = vmatpush1.bf16.msra.mxu0 0
  %105 = vmatprep.subr.bf16.mxu0 0
  %106 = vmatpush1.bf16.msra.mxu0 0
  %107 = vmatprep.subr.bf16.mxu0 0
  %108 = vmatpush1.bf16.msra.mxu0 0
  %109 = vmatprep.subr.bf16.mxu0 0
  %110 = vmatpush1.bf16.msra.mxu0 0
  %111 = vmatprep.mubr.bf16.mxu0 0
  %112 = vmatmul.mubr.bf16.gmra.mrb[0].mxu0 %v74
  %v113 = vpop.f32.mrb[0].mxu0
  %v114 = vadd.f32 %v42, %v113
  %v115 = vpop.f32.mrb[0].mxu0
  %v116 = vpop.f32.mrb[0].mxu0
  %v117 = vadd.f32 %v42, %v116
  %v118 = vpop.f32.mrb[0].mxu0
  %119 = vmatprep.mubr.bf16.mxu0 0
  %120 = vmatmul.mubr.bf16.gmra.mrb[0].mxu0 %v77
  %v121 = vpop.f32.mrb[0].mxu0
  %v122 = vadd.f32 %v42, %v121
  %v123 = vpop.f32.mrb[0].mxu0
  %v124 = vpop.f32.mrb[0].mxu0
  %v125 = vadd.f32 %v42, %v124
  %v126 = vpop.f32.mrb[0].mxu0
  %127 = vdwg.mxu0
  %v128 = vpack.c.bf16 %v117, %v114
  %v129 = vpack.c.bf16 %v125, %v122
  %v130 = vld [vmem:[%s3] sm:$0xf]
  %v131 = vld [vmem:[%s3 + $0x4] sm:$0xf]
  %v132 = vld [vmem:[%s3 + $0x8] sm:$0xf]
  %v133 = vld [vmem:[%s3 + $0xc] sm:$0xf]
  %v134 = vld [vmem:[%s4] sm:$0x1]
  %v136 = vlaneseq
  %v137 = vshrl.u32 %v136, 7
  %v138 = vsub.s32 0, %v137
  %v139 = vrot.slane %v134, %v138
  %v145 = vunpack.c.l.b16 %v130
  %v146 = vunpack.c.l.b16 %v131
  %v147 = vunpack.c.l.b16 %v132
  %v148 = vunpack.c.l.b16 %v133
  %v149 = vpack.c.b16 %v146, %v145
  %v150 = vpack.c.b16 %v148, %v147
  %vm153 = vcmask 261120
  %v155 = vsel %vm153, %v128, 0
  %v158 = vsel %vm153, %v129, 0
  %160 = vmatprep.subr.bf16.mxu0 0
  %161 = vmatpush1.bf16.msra.mxu0 %v149
  %162 = vmatprep.subr.bf16.mxu0 0
  %163 = vmatpush1.bf16.msra.mxu0 %v150
  %164 = vmatprep.subr.bf16.mxu0 0
  %165 = vmatpush1.bf16.msra.mxu0 0
  %166 = vmatprep.subr.bf16.mxu0 0
  %167 = vmatpush1.bf16.msra.mxu0 0
  %168 = vmatprep.subr.bf16.mxu0 0
  %169 = vmatpush1.bf16.msra.mxu0 0
  %170 = vmatprep.subr.bf16.mxu0 0
  %171 = vmatpush1.bf16.msra.mxu0 0
  %172 = vmatprep.subr.bf16.mxu0 0
  %173 = vmatpush1.bf16.msra.mxu0 0
  %174 = vmatprep.subr.bf16.mxu0 0
  %175 = vmatpush1.bf16.msra.mxu0 0
  %176 = vmatprep.subr.bf16.mxu0 0
  %177 = vmatpush1.bf16.msra.mxu0 0
  %178 = vmatprep.subr.bf16.mxu0 0
  %179 = vmatpush1.bf16.msra.mxu0 0
  %180 = vmatprep.subr.bf16.mxu0 0
  %181 = vmatpush1.bf16.msra.mxu0 0
  %182 = vmatprep.subr.bf16.mxu0 0
  %183 = vmatpush1.bf16.msra.mxu0 0
  %184 = vmatprep.subr.bf16.mxu0 0
  %185 = vmatpush1.bf16.msra.mxu0 0
  %186 = vmatprep.subr.bf16.mxu0 0
  %187 = vmatpush1.bf16.msra.mxu0 0
  %188 = vmatprep.subr.bf16.mxu0 0
  %189 = vmatpush1.bf16.msra.mxu0 0
  %190 = vmatprep.subr.bf16.mxu0 0
  %191 = vmatpush1.bf16.msra.mxu0 0
  %192 = vmatprep.mubr.bf16.mxu0 0
  %193 = vmatmul.mubr.bf16.gmra.mrb[0].mxu0 %v155
  %v194 = vpop.f32.mrb[0].mxu0
  %v195 = vadd.f32 %v139, %v194
  %v196 = vpop.f32.mrb[0].mxu0
  %v197 = vpop.f32.mrb[0].mxu0
  %v198 = vadd.f32 %v139, %v197
  %v199 = vpop.f32.mrb[0].mxu0
  %200 = vmatprep.mubr.bf16.mxu0 0
  %201 = vmatmul.mubr.bf16.gmra.mrb[0].mxu0 %v158
  %v202 = vpop.f32.mrb[0].mxu0
  %v203 = vadd.f32 %v139, %v202
  %v204 = vpop.f32.mrb[0].mxu0
  %v205 = vpop.f32.mrb[0].mxu0
  %v206 = vadd.f32 %v139, %v205
  %v207 = vpop.f32.mrb[0].mxu0
  %208 = vdwg.mxu0
  %v209 = vmax.f32 %v195, 0.0
  %v210 = vmax.f32 %v198, 0.0
  %v211 = vmax.f32 %v203, 0.0
  %v212 = vmax.f32 %v206, 0.0
  %v213 = vpack.c.bf16 %v210, %v209
  %v214 = vpack.c.bf16 %v212, %v211
  %v215 = vld [vmem:[%s5] sm:$0xf]
  %v216 = vld [vmem:[%s5 + $0x4] sm:$0xf]
  %v217 = vld [vmem:[%s5 + $0x8] sm:$0xf]
  %v218 = vld [vmem:[%s5 + $0xc] sm:$0xf]
  %v219 = vld [vmem:[%s6] sm:$0x1]
  %v221 = vlaneseq
  %v222 = vshrl.u32 %v221, 7
  %v223 = vsub.s32 0, %v222
  %v224 = vrot.slane %v219, %v223
  %v230 = vunpack.c.l.b16 %v215
  %v231 = vunpack.c.l.b16 %v216
  %v232 = vunpack.c.l.b16 %v217
  %v233 = vunpack.c.l.b16 %v218
  %v234 = vpack.c.b16 %v231, %v230
  %v235 = vpack.c.b16 %v233, %v232
  %v239 = vsel %vm153, %v213, 0
  %v242 = vsel %vm153, %v214, 0
  %244 = vmatprep.subr.bf16.mxu0 0
  %245 = vmatpush1.bf16.msra.mxu0 %v234
  %246 = vmatprep.subr.bf16.mxu0 0
  %247 = vmatpush1.bf16.msra.mxu0 %v235
  %248 = vmatprep.subr.bf16.mxu0 0
  %249 = vmatpush1.bf16.msra.mxu0 0
  %250 = vmatprep.subr.bf16.mxu0 0
  %251 = vmatpush1.bf16.msra.mxu0 0
  %252 = vmatprep.subr.bf16.mxu0 0
  %253 = vmatpush1.bf16.msra.mxu0 0
  %254 = vmatprep.subr.bf16.mxu0 0
  %255 = vmatpush1.bf16.msra.mxu0 0
  %256 = vmatprep.subr.bf16.mxu0 0
  %257 = vmatpush1.bf16.msra.mxu0 0
  %258 = vmatprep.subr.bf16.mxu0 0
  %259 = vmatpush1.bf16.msra.mxu0 0
  %260 = vmatprep.subr.bf16.mxu0 0
  %261 = vmatpush1.bf16.msra.mxu0 0
  %262 = vmatprep.subr.bf16.mxu0 0
  %263 = vmatpush1.bf16.msra.mxu0 0
  %264 = vmatprep.subr.bf16.mxu0 0
  %265 = vmatpush1.bf16.msra.mxu0 0
  %266 = vmatprep.subr.bf16.mxu0 0
  %267 = vmatpush1.bf16.msra.mxu0 0
  %268 = vmatprep.subr.bf16.mxu0 0
  %269 = vmatpush1.bf16.msra.mxu0 0
  %270 = vmatprep.subr.bf16.mxu0 0
  %271 = vmatpush1.bf16.msra.mxu0 0
  %272 = vmatprep.subr.bf16.mxu0 0
  %273 = vmatpush1.bf16.msra.mxu0 0
  %274 = vmatprep.subr.bf16.mxu0 0
  %275 = vmatpush1.bf16.msra.mxu0 0
  %276 = vmatprep.mubr.bf16.mxu0 0
  %277 = vmatmul.mubr.bf16.gmra.mrb[0].mxu0 %v239
  %v278 = vpop.f32.mrb[0].mxu0
  %v279 = vadd.f32 %v224, %v278
  %v280 = vpop.f32.mrb[0].mxu0
  %v281 = vpop.f32.mrb[0].mxu0
  %v282 = vadd.f32 %v224, %v281
  %v283 = vpop.f32.mrb[0].mxu0
  %284 = vmatprep.mubr.bf16.mxu0 0
  %285 = vmatmul.mubr.bf16.gmra.mrb[0].mxu0 %v242
  %v286 = vpop.f32.mrb[0].mxu0
  %v287 = vadd.f32 %v224, %v286
  %v288 = vpop.f32.mrb[0].mxu0
  %v289 = vpop.f32.mrb[0].mxu0
  %v290 = vadd.f32 %v224, %v289
  %v291 = vpop.f32.mrb[0].mxu0
  %292 = vdwg.mxu0
  %293 = vst.msk [vmem:[%s7] sm:$0xff] %vm153, %v279
  %294 = vst.msk [vmem:[%s7 + $0x8] sm:$0xff] %vm153, %v282
  %295 = vst.msk [vmem:[%s7 + $0x10] sm:$0xff] %vm153, %v287
  %296 = vst.msk [vmem:[%s7 + $0x18] sm:$0xff] %vm153, %v290
  // Predicated region
  $region30: #{medklip_forward.3} parent=0 // pred_check
    _
  $region31: #{medklip_forward.3} parent=0 // pred_check_branch
    %298 = sbr.rel (0) target = $region33
  $region32: #{medklip_forward.3} parent=0 // pred_region
    _
  $region33: #{medklip_forward.3} parent=0 // pred_fallthru
    _
  // Predicated region
  $region34: #{medklip_forward.3} parent=0 // pred_check
    _
  $region35: #{medklip_forward.3} parent=0 // pred_check_branch
    %300 = sbr.rel (0) target = $region37
  $region36: #{medklip_forward.3} parent=0 // pred_region
    _
  $region37: #{medklip_forward.3} parent=0 // pred_fallthru
    _

// kernel: medklip_forward.5
$region0: #{medklip_forward.5}
  #allocation0 [shape = 'u32[]', space=smem, size = 0x4, offset = 0x4, fixed_abs, tag = 'smem constant byte address 0x4 - core index']
  #allocation1 [shape = 'u32[144,128]{1,0:T(1,128)}', space=vmem, size = 0x12000, scoped, tag = 'internal scratch']
  %s0 = inlined_call_operand.vmem [shape: f32[2,16,32], index: 0, kind: input, shape index: {}]
  %s1 = inlined_call_operand.vmem [shape: f32[8,32], index: 1, kind: input, shape index: {}]
  %s2 = inlined_call_operand.vmem [shape: f32[2,1,32], index: 2, kind: input, shape index: {}]
  %s3 = inlined_call_operand.vmem [shape: f32[2,1,32], index: 3, kind: input, shape index: {}]
  %s4 = inlined_call_operand.vmem [shape: bf16[2,32,1536], index: 4, kind: input, shape index: {}]
  %s5 = inlined_call_operand.vmem [shape: f32[2,1,1536], index: 5, kind: input, shape index: {}]
  %s6 = inlined_call_operand.vmem [shape: bf16[2,512,32], index: 6, kind: input, shape index: {}]
  %s7 = inlined_call_operand.vmem [shape: f32[2,1,32], index: 7, kind: input, shape index: {}]
  %s8 = inlined_call_operand.vmem [shape: f32[2,1,32], index: 8, kind: input, shape index: {}]
  %s9 = inlined_call_operand.vmem [shape: f32[2,1,32], index: 9, kind: input, shape index: {}]
  %s10 = inlined_call_operand.vmem [shape: bf16[2,32,512], index: 10, kind: input, shape index: {}]
  %s11 = inlined_call_operand.vmem [shape: f32[2,1,512], index: 11, kind: input, shape index: {}]
  %s12 = inlined_call_operand.vmem [shape: bf16[2,32,1024], index: 12, kind: input, shape index: {}]
  %s13 = inlined_call_operand.vmem [shape: f32[2,1,1024], index: 13, kind: input, shape index: {}]
  %s14 = inlined_call_operand.vmem [shape: bf16[2,512,32], index: 14, kind: input, shape index: {}]
  %s15 = inlined_call_operand.vmem [shape: f32[2,1,32], index: 15, kind: input, shape index: {}]
  %s16 = inlined_call_operand.vmem [shape: f32[2,1,32], index: 16, kind: input, shape index: {}]
  %s17 = inlined_call_operand.vmem [shape: f32[2,1,32], index: 17, kind: input, shape index: {}]
  %s18 = inlined_call_operand.vmem [shape: bf16[2,32,64], index: 18, kind: input, shape index: {}]
  %s19 = inlined_call_operand.vmem [shape: f32[2,1,64], index: 19, kind: input, shape index: {}]
  %s20 = inlined_call_operand.vmem [shape: bf16[2,64,32], index: 20, kind: input, shape index: {}]
  %s21 = inlined_call_operand.vmem [shape: f32[2,1,32], index: 21, kind: input, shape index: {}]
  %s22 = inlined_call_operand.vmem [shape: f32[1,32], index: 22, kind: input, shape index: {}]
  %s23 = inlined_call_operand.vmem [shape: f32[1,32], index: 23, kind: input, shape index: {}]
  %s24 = inlined_call_operand.vmem [shape: bf16[32,128], index: 24, kind: input, shape index: {}]
  %s25 = inlined_call_operand.vmem [shape: f32[1,128], index: 25, kind: input, shape index: {}]
  %s26 = inlined_call_operand.hbm [shape: f32[2,1,128], index: 26, kind: output, shape index: {}]
  %s27 = sld [smem:[#allocation0]]
  $region137: #{medklip_forward.5} parent=0
    _
  %s29 = ssub.s32 1, %s27
  %s30 = scalar_select 0, %s29, %s27
  $region1: #{medklip_forward.5} parent=0
    #allocation2 [shape = 'u8[1024]{0}', space=vmem, size = 0x400, scoped, tag = 'output window, operand 0']
    #allocation3 [shape = 's32[2]{0}', space=sflag, size = 0x8, scoped, tag = 'scoped memory for medklip_forward.5']
    %31 = vsyncpa [#allocation3], 0
    %s32 = scalar_lea.sflag [#allocation3], 1
    %33 = vsyncpa %s32, 0
    loop: start=0, step=1, limit=4
    $region2: #{medklip_forward.5} parent=1 // loop_pre_header
      _
    $region3: #{medklip_forward.5} parent=1 // loop_header
      %s35 = sphi 0, %s39
      %p36 = scmp.ge.s32.totalorder %s35, 4
      %s45 = sphi 0, %s47
      %s48 = sphi 0, %s45
      %s49 = sphi 0, %s48
      %s65 = sphi 0, %s49
      %s69 = sphi 0, %s69
      %s71 = sphi 0, %s69
      %s72 = sphi 0, %s71
      %s86 = sphi 0, %s72
      %s90 = sphi 0, %s90
      %s92 = sphi 0, %s90
      %s93 = sphi 0, %s92
      %s107 = sphi 0, %s93
      %s111 = sphi 0, %s111
      %s113 = sphi 0, %s111
      %s114 = sphi 0, %s113
      %s128 = sphi 0, %s114
      %s132 = sphi 0, %s132
      %s134 = sphi 0, %s132
      %s135 = sphi 0, %s134
      %s149 = sphi 0, %s135
      %s153 = sphi 0, %s153
      %s155 = sphi 0, %s153
      %s156 = sphi 0, %s155
      %s170 = sphi 0, %s156
      %s174 = sphi 0, %s174
      %s176 = sphi 0, %s174
      %s177 = sphi 0, %s176
      %s191 = sphi 0, %s177
      %s195 = sphi 0, %s195
      %s197 = sphi 0, %s195
      %s198 = sphi 0, %s197
      %s212 = sphi 0, %s198
      %s216 = sphi 0, %s216
      %s218 = sphi 0, %s216
      %s219 = sphi 0, %s218
      %s233 = sphi 0, %s219
      %s237 = sphi 0, %s237
      %s239 = sphi 0, %s237
      %s240 = sphi 0, %s239
      %s254 = sphi 0, %s240
      %s258 = sphi 0, %s258
      %s260 = sphi 0, %s258
      %s261 = sphi 0, %s260
      %s275 = sphi 0, %s261
      %s279 = sphi 0, %s279
      %s281 = sphi 0, %s279
      %s282 = sphi 0, %s281
      %s296 = sphi 0, %s282
      %s300 = sphi 0, %s300
      %s302 = sphi 0, %s300
      %s303 = sphi 0, %s302
      %s317 = sphi 0, %s303
      %s321 = sphi 0, %s321
      %s323 = sphi 0, %s321
      %s324 = sphi 0, %s323
      %s338 = sphi 0, %s324
      %s342 = sphi 0, %s342
      %s344 = sphi 0, %s342
      %s345 = sphi 0, %s344
      %s359 = sphi 0, %s345
      %s363 = sphi 0, %s363
      %s365 = sphi 0, %s363
      %s366 = sphi 0, %s365
      %s380 = sphi 0, %s366
      %s384 = sphi 0, %s384
      %s386 = sphi 0, %s384
      %s387 = sphi 0, %s386
      %s401 = sphi 0, %s387
      %s405 = sphi 0, %s405
      %s407 = sphi 0, %s405
      %s408 = sphi 0, %s407
      %s422 = sphi 0, %s408
      %s426 = sphi 0, %s426
      %s428 = sphi 0, %s426
      %s429 = sphi 0, %s428
      %s443 = sphi 0, %s429
      %s447 = sphi 0, %s447
      %s449 = sphi 0, %s447
      %s450 = sphi 0, %s449
      %s464 = sphi 0, %s450
      %s468 = sphi 0, %s468
      %s470 = sphi 0, %s468
      %s471 = sphi 0, %s470
      %s485 = sphi 0, %s471
      %s489 = sphi 0, %s489
      %s491 = sphi 0, %s489
      %s492 = sphi 0, %s491
      %s506 = sphi 0, %s492
      %s510 = sphi 0, %s510
      %s512 = sphi 0, %s510
      %s513 = sphi 0, %s512
      %s527 = sphi 0, %s513
      %s531 = sphi 0, %s531
      %s533 = sphi 0, %s531
      %s534 = sphi 0, %s533
      %s548 = sphi 0, %s534
      %s552 = sphi 0, %s552
      %s554 = sphi 0, %s552
      %s555 = sphi 0, %s554
      %s569 = sphi 0, %s555
      %s573 = sphi 0, %s573
      %s575 = sphi 0, %s573
      %s576 = sphi 0, %s575
      %s590 = sphi 0, %s576
      %s596 = sphi 0, %s598
      %s599 = sphi 0, %s596
      %s600 = sphi 0, %s599
      %s616 = sphi 0, %s600
    $region4: #{medklip_forward.5} parent=1 // loop_header_branch
      %38 = sbr.rel (%p36) target = $region8
    $region5: #{medklip_forward.5} parent=1 // loop_body
      %s40 = ssub.s32 %s35, 1
      %s41 = ssub.s32 %s35, 2
      %s42 = sadd.s32 %s35, 1
      %s43 = ssub.s32 %s35, %s42
      %p44 = scmp.eq.s32.totalorder %s43, 0
      %s46 = sadd.s32 %s45, 1
      %s47 = scalar_select %p44, %s45, %s46
      %p50 = pneg %p44
      %p51 = scmp.eq.s32.totalorder %s35, 1
      %p52 = por %p50, %p51
      %p53 = scmp.ne.s32.totalorder %s45, %s48
      %p54 = scmp.eq.s32.totalorder %s35, 0
      %p55 = por %p53, %p54
      %p56 = scmp.ne.s32.totalorder %s45, %s48
      %p57 = scmp.eq.s32.totalorder %s40, 1
      %p58 = por %p56, %p57
      %p59 = scmp.ne.s32.totalorder %s48, %s49
      %p60 = scmp.eq.s32.totalorder %s40, 0
      %p61 = por %p59, %p60
      %p62 = scmp.ne.s32.totalorder %s48, %s49
      %p63 = scmp.eq.s32.totalorder %s41, 1
      %p64 = por %p62, %p63
      %p66 = scmp.ne.s32.totalorder %s49, %s65
      %p67 = scmp.eq.s32.totalorder %s41, 0
      %p68 = por %p66, %p67
      %s70 = sadd.s32 %s69, 1
      %p73 = scmp.eq.s32.totalorder %s35, 1
      %p74 = scmp.ne.s32.totalorder %s69, %s71
      %p75 = scmp.eq.s32.totalorder %s35, 0
      %p76 = por %p74, %p75
      %p77 = scmp.ne.s32.totalorder %s69, %s71
      %p78 = scmp.eq.s32.totalorder %s40, 1
      %p79 = por %p77, %p78
      %p80 = scmp.ne.s32.totalorder %s71, %s72
      %p81 = scmp.eq.s32.totalorder %s40, 0
      %p82 = por %p80, %p81
      %p83 = scmp.ne.s32.totalorder %s71, %s72
      %p84 = scmp.eq.s32.totalorder %s41, 1
      %p85 = por %p83, %p84
      %p87 = scmp.ne.s32.totalorder %s72, %s86
      %p88 = scmp.eq.s32.totalorder %s41, 0
      %p89 = por %p87, %p88
      %s91 = sadd.s32 %s90, 1
      %p94 = scmp.eq.s32.totalorder %s35, 1
      %p95 = scmp.ne.s32.totalorder %s90, %s92
      %p96 = scmp.eq.s32.totalorder %s35, 0
      %p97 = por %p95, %p96
      %p98 = scmp.ne.s32.totalorder %s90, %s92
      %p99 = scmp.eq.s32.totalorder %s40, 1
      %p100 = por %p98, %p99
      %p101 = scmp.ne.s32.totalorder %s92, %s93
      %p102 = scmp.eq.s32.totalorder %s40, 0
      %p103 = por %p101, %p102
      %p104 = scmp.ne.s32.totalorder %s92, %s93
      %p105 = scmp.eq.s32.totalorder %s41, 1
      %p106 = por %p104, %p105
      %p108 = scmp.ne.s32.totalorder %s93, %s107
      %p109 = scmp.eq.s32.totalorder %s41, 0
      %p110 = por %p108, %p109
      %s112 = sadd.s32 %s111, 1
      %p115 = scmp.eq.s32.totalorder %s35, 1
      %p116 = scmp.ne.s32.totalorder %s111, %s113
      %p117 = scmp.eq.s32.totalorder %s35, 0
      %p118 = por %p116, %p117
      %p119 = scmp.ne.s32.totalorder %s111, %s113
      %p120 = scmp.eq.s32.totalorder %s40, 1
      %p121 = por %p119, %p120
      %p122 = scmp.ne.s32.totalorder %s113, %s114
      %p123 = scmp.eq.s32.totalorder %s40, 0
      %p124 = por %p122, %p123
      %p125 = scmp.ne.s32.totalorder %s113, %s114
      %p126 = scmp.eq.s32.totalorder %s41, 1
      %p127 = por %p125, %p126
      %p129 = scmp.ne.s32.totalorder %s114, %s128
      %p130 = scmp.eq.s32.totalorder %s41, 0
      %p131 = por %p129, %p130
      %s133 = sadd.s32 %s132, 1
      %p136 = scmp.eq.s32.totalorder %s35, 1
      %p137 = scmp.ne.s32.totalorder %s132, %s134
      %p138 = scmp.eq.s32.totalorder %s35, 0
      %p139 = por %p137, %p138
      %p140 = scmp.ne.s32.totalorder %s132, %s134
      %p141 = scmp.eq.s32.totalorder %s40, 1
      %p142 = por %p140, %p141
      %p143 = scmp.ne.s32.totalorder %s134, %s135
      %p144 = scmp.eq.s32.totalorder %s40, 0
      %p145 = por %p143, %p144
      %p146 = scmp.ne.s32.totalorder %s134, %s135
      %p147 = scmp.eq.s32.totalorder %s41, 1
      %p148 = por %p146, %p147
      %p150 = scmp.ne.s32.totalorder %s135, %s149
      %p151 = scmp.eq.s32.totalorder %s41, 0
      %p152 = por %p150, %p151
      %s154 = sadd.s32 %s153, 1
      %p157 = scmp.eq.s32.totalorder %s35, 1
      %p158 = scmp.ne.s32.totalorder %s153, %s155
      %p159 = scmp.eq.s32.totalorder %s35, 0
      %p160 = por %p158, %p159
      %p161 = scmp.ne.s32.totalorder %s153, %s155
      %p162 = scmp.eq.s32.totalorder %s40, 1
      %p163 = por %p161, %p162
      %p164 = scmp.ne.s32.totalorder %s155, %s156
      %p165 = scmp.eq.s32.totalorder %s40, 0
      %p166 = por %p164, %p165
      %p167 = scmp.ne.s32.totalorder %s155, %s156
      %p168 = scmp.eq.s32.totalorder %s41, 1
      %p169 = por %p167, %p168
      %p171 = scmp.ne.s32.totalorder %s156, %s170
      %p172 = scmp.eq.s32.totalorder %s41, 0
      %p173 = por %p171, %p172
      %s175 = sadd.s32 %s174, 1
      %p178 = scmp.eq.s32.totalorder %s35, 1
      %p179 = scmp.ne.s32.totalorder %s174, %s176
      %p180 = scmp.eq.s32.totalorder %s35, 0
      %p181 = por %p179, %p180
      %p182 = scmp.ne.s32.totalorder %s174, %s176
      %p183 = scmp.eq.s32.totalorder %s40, 1
      %p184 = por %p182, %p183
      %p185 = scmp.ne.s32.totalorder %s176, %s177
      %p186 = scmp.eq.s32.totalorder %s40, 0
      %p187 = por %p185, %p186
      %p188 = scmp.ne.s32.totalorder %s176, %s177
      %p189 = scmp.eq.s32.totalorder %s41, 1
      %p190 = por %p188, %p189
      %p192 = scmp.ne.s32.totalorder %s177, %s191
      %p193 = scmp.eq.s32.totalorder %s41, 0
      %p194 = por %p192, %p193
      %s196 = sadd.s32 %s195, 1
      %p199 = scmp.eq.s32.totalorder %s35, 1
      %p200 = scmp.ne.s32.totalorder %s195, %s197
      %p201 = scmp.eq.s32.totalorder %s35, 0
      %p202 = por %p200, %p201
      %p203 = scmp.ne.s32.totalorder %s195, %s197
      %p204 = scmp.eq.s32.totalorder %s40, 1
      %p205 = por %p203, %p204
      %p206 = scmp.ne.s32.totalorder %s197, %s198
      %p207 = scmp.eq.s32.totalorder %s40, 0
      %p208 = por %p206, %p207
      %p209 = scmp.ne.s32.totalorder %s197, %s198
      %p210 = scmp.eq.s32.totalorder %s41, 1
      %p211 = por %p209, %p210
      %p213 = scmp.ne.s32.totalorder %s198, %s212
      %p214 = scmp.eq.s32.totalorder %s41, 0
      %p215 = por %p213, %p214
      %s217 = sadd.s32 %s216, 1
      %p220 = scmp.eq.s32.totalorder %s35, 1
      %p221 = scmp.ne.s32.totalorder %s216, %s218
      %p222 = scmp.eq.s32.totalorder %s35, 0
      %p223 = por %p221, %p222
      %p224 = scmp.ne.s32.totalorder %s216, %s218
      %p225 = scmp.eq.s32.totalorder %s40, 1
      %p226 = por %p224, %p225
      %p227 = scmp.ne.s32.totalorder %s218, %s219
      %p228 = scmp.eq.s32.totalorder %s40, 0
      %p229 = por %p227, %p228
      %p230 = scmp.ne.s32.totalorder %s218, %s219
      %p231 = scmp.eq.s32.totalorder %s41, 1
      %p232 = por %p230, %p231
      %p234 = scmp.ne.s32.totalorder %s219, %s233
      %p235 = scmp.eq.s32.totalorder %s41, 0
      %p236 = por %p234, %p235
      %s238 = sadd.s32 %s237, 1
      %p241 = scmp.eq.s32.totalorder %s35, 1
      %p242 = scmp.ne.s32.totalorder %s237, %s239
      %p243 = scmp.eq.s32.totalorder %s35, 0
      %p244 = por %p242, %p243
      %p245 = scmp.ne.s32.totalorder %s237, %s239
      %p246 = scmp.eq.s32.totalorder %s40, 1
      %p247 = por %p245, %p246
      %p248 = scmp.ne.s32.totalorder %s239, %s240
      %p249 = scmp.eq.s32.totalorder %s40, 0
      %p250 = por %p248, %p249
      %p251 = scmp.ne.s32.totalorder %s239, %s240
      %p252 = scmp.eq.s32.totalorder %s41, 1
      %p253 = por %p251, %p252
      %p255 = scmp.ne.s32.totalorder %s240, %s254
      %p256 = scmp.eq.s32.totalorder %s41, 0
      %p257 = por %p255, %p256
      %s259 = sadd.s32 %s258, 1
      %p262 = scmp.eq.s32.totalorder %s35, 1
      %p263 = scmp.ne.s32.totalorder %s258, %s260
      %p264 = scmp.eq.s32.totalorder %s35, 0
      %p265 = por %p263, %p264
      %p266 = scmp.ne.s32.totalorder %s258, %s260
      %p267 = scmp.eq.s32.totalorder %s40, 1
      %p268 = por %p266, %p267
      %p269 = scmp.ne.s32.totalorder %s260, %s261
      %p270 = scmp.eq.s32.totalorder %s40, 0
      %p271 = por %p269, %p270
      %p272 = scmp.ne.s32.totalorder %s260, %s261
      %p273 = scmp.eq.s32.totalorder %s41, 1
      %p274 = por %p272, %p273
      %p276 = scmp.ne.s32.totalorder %s261, %s275
      %p277 = scmp.eq.s32.totalorder %s41, 0
      %p278 = por %p276, %p277
      %s280 = sadd.s32 %s279, 1
      %p283 = scmp.eq.s32.totalorder %s35, 1
      %p284 = scmp.ne.s32.totalorder %s279, %s281
      %p285 = scmp.eq.s32.totalorder %s35, 0
      %p286 = por %p284, %p285
      %p287 = scmp.ne.s32.totalorder %s279, %s281
      %p288 = scmp.eq.s32.totalorder %s40, 1
      %p289 = por %p287, %p288
      %p290 = scmp.ne.s32.totalorder %s281, %s282
      %p291 = scmp.eq.s32.totalorder %s40, 0
      %p292 = por %p290, %p291
      %p293 = scmp.ne.s32.totalorder %s281, %s282
      %p294 = scmp.eq.s32.totalorder %s41, 1
      %p295 = por %p293, %p294
      %p297 = scmp.ne.s32.totalorder %s282, %s296
      %p298 = scmp.eq.s32.totalorder %s41, 0
      %p299 = por %p297, %p298
      %s301 = sadd.s32 %s300, 1
      %p304 = scmp.eq.s32.totalorder %s35, 1
      %p305 = scmp.ne.s32.totalorder %s300, %s302
      %p306 = scmp.eq.s32.totalorder %s35, 0
      %p307 = por %p305, %p306
      %p308 = scmp.ne.s32.totalorder %s300, %s302
      %p309 = scmp.eq.s32.totalorder %s40, 1
      %p310 = por %p308, %p309
      %p311 = scmp.ne.s32.totalorder %s302, %s303
      %p312 = scmp.eq.s32.totalorder %s40, 0
      %p313 = por %p311, %p312
      %p314 = scmp.ne.s32.totalorder %s302, %s303
      %p315 = scmp.eq.s32.totalorder %s41, 1
      %p316 = por %p314, %p315
      %p318 = scmp.ne.s32.totalorder %s303, %s317
      %p319 = scmp.eq.s32.totalorder %s41, 0
      %p320 = por %p318, %p319
      %s322 = sadd.s32 %s321, 1
      %p325 = scmp.eq.s32.totalorder %s35, 1
      %p326 = scmp.ne.s32.totalorder %s321, %s323
      %p327 = scmp.eq.s32.totalorder %s35, 0
      %p328 = por %p326, %p327
      %p329 = scmp.ne.s32.totalorder %s321, %s323
      %p330 = scmp.eq.s32.totalorder %s40, 1
      %p331 = por %p329, %p330
      %p332 = scmp.ne.s32.totalorder %s323, %s324
      %p333 = scmp.eq.s32.totalorder %s40, 0
      %p334 = por %p332, %p333
      %p335 = scmp.ne.s32.totalorder %s323, %s324
      %p336 = scmp.eq.s32.totalorder %s41, 1
      %p337 = por %p335, %p336
      %p339 = scmp.ne.s32.totalorder %s324, %s338
      %p340 = scmp.eq.s32.totalorder %s41, 0
      %p341 = por %p339, %p340
      %s343 = sadd.s32 %s342, 1
      %p346 = scmp.eq.s32.totalorder %s35, 1
      %p347 = scmp.ne.s32.totalorder %s342, %s344
      %p348 = scmp.eq.s32.totalorder %s35, 0
      %p349 = por %p347, %p348
      %p350 = scmp.ne.s32.totalorder %s342, %s344
      %p351 = scmp.eq.s32.totalorder %s40, 1
      %p352 = por %p350, %p351
      %p353 = scmp.ne.s32.totalorder %s344, %s345
      %p354 = scmp.eq.s32.totalorder %s40, 0
      %p355 = por %p353, %p354
      %p356 = scmp.ne.s32.totalorder %s344, %s345
      %p357 = scmp.eq.s32.totalorder %s41, 1
      %p358 = por %p356, %p357
      %p360 = scmp.ne.s32.totalorder %s345, %s359
      %p361 = scmp.eq.s32.totalorder %s41, 0
      %p362 = por %p360, %p361
      %s364 = sadd.s32 %s363, 1
      %p367 = scmp.eq.s32.totalorder %s35, 1
      %p368 = scmp.ne.s32.totalorder %s363, %s365
      %p369 = scmp.eq.s32.totalorder %s35, 0
      %p370 = por %p368, %p369
      %p371 = scmp.ne.s32.totalorder %s363, %s365
      %p372 = scmp.eq.s32.totalorder %s40, 1
      %p373 = por %p371, %p372
      %p374 = scmp.ne.s32.totalorder %s365, %s366
      %p375 = scmp.eq.s32.totalorder %s40, 0
      %p376 = por %p374, %p375
      %p377 = scmp.ne.s32.totalorder %s365, %s366
      %p378 = scmp.eq.s32.totalorder %s41, 1
      %p379 = por %p377, %p378
      %p381 = scmp.ne.s32.totalorder %s366, %s380
      %p382 = scmp.eq.s32.totalorder %s41, 0
      %p383 = por %p381, %p382
      %s385 = sadd.s32 %s384, 1
      %p388 = scmp.eq.s32.totalorder %s35, 1
      %p389 = scmp.ne.s32.totalorder %s384, %s386
      %p390 = scmp.eq.s32.totalorder %s35, 0
      %p391 = por %p389, %p390
      %p392 = scmp.ne.s32.totalorder %s384, %s386
      %p393 = scmp.eq.s32.totalorder %s40, 1
      %p394 = por %p392, %p393
      %p395 = scmp.ne.s32.totalorder %s386, %s387
      %p396 = scmp.eq.s32.totalorder %s40, 0
      %p397 = por %p395, %p396
      %p398 = scmp.ne.s32.totalorder %s386, %s387
      %p399 = scmp.eq.s32.totalorder %s41, 1
      %p400 = por %p398, %p399
      %p402 = scmp.ne.s32.totalorder %s387, %s401
      %p403 = scmp.eq.s32.totalorder %s41, 0
      %p404 = por %p402, %p403
      %s406 = sadd.s32 %s405, 1
      %p409 = scmp.eq.s32.totalorder %s35, 1
      %p410 = scmp.ne.s32.totalorder %s405, %s407
      %p411 = scmp.eq.s32.totalorder %s35, 0
      %p412 = por %p410, %p411
      %p413 = scmp.ne.s32.totalorder %s405, %s407
      %p414 = scmp.eq.s32.totalorder %s40, 1
      %p415 = por %p413, %p414
      %p416 = scmp.ne.s32.totalorder %s407, %s408
      %p417 = scmp.eq.s32.totalorder %s40, 0
      %p418 = por %p416, %p417
      %p419 = scmp.ne.s32.totalorder %s407, %s408
      %p420 = scmp.eq.s32.totalorder %s41, 1
      %p421 = por %p419, %p420
      %p423 = scmp.ne.s32.totalorder %s408, %s422
      %p424 = scmp.eq.s32.totalorder %s41, 0
      %p425 = por %p423, %p424
      %s427 = sadd.s32 %s426, 1
      %p430 = scmp.eq.s32.totalorder %s35, 1
      %p431 = scmp.ne.s32.totalorder %s426, %s428
      %p432 = scmp.eq.s32.totalorder %s35, 0
      %p433 = por %p431, %p432
      %p434 = scmp.ne.s32.totalorder %s426, %s428
      %p435 = scmp.eq.s32.totalorder %s40, 1
      %p436 = por %p434, %p435
      %p437 = scmp.ne.s32.totalorder %s428, %s429
      %p438 = scmp.eq.s32.totalorder %s40, 0
      %p439 = por %p437, %p438
      %p440 = scmp.ne.s32.totalorder %s428, %s429
      %p441 = scmp.eq.s32.totalorder %s41, 1
      %p442 = por %p440, %p441
      %p444 = scmp.ne.s32.totalorder %s429, %s443
      %p445 = scmp.eq.s32.totalorder %s41, 0
      %p446 = por %p444, %p445
      %s448 = sadd.s32 %s447, 1
      %p451 = scmp.eq.s32.totalorder %s35, 1
      %p452 = scmp.ne.s32.totalorder %s447, %s449
      %p453 = scmp.eq.s32.totalorder %s35, 0
      %p454 = por %p452, %p453
      %p455 = scmp.ne.s32.totalorder %s447, %s449
      %p456 = scmp.eq.s32.totalorder %s40, 1
      %p457 = por %p455, %p456
      %p458 = scmp.ne.s32.totalorder %s449, %s450
      %p459 = scmp.eq.s32.totalorder %s40, 0
      %p460 = por %p458, %p459
      %p461 = scmp.ne.s32.totalorder %s449, %s450
      %p462 = scmp.eq.s32.totalorder %s41, 1
      %p463 = por %p461, %p462
      %p465 = scmp.ne.s32.totalorder %s450, %s464
      %p466 = scmp.eq.s32.totalorder %s41, 0
      %p467 = por %p465, %p466
      %s469 = sadd.s32 %s468, 1
      %p472 = scmp.eq.s32.totalorder %s35, 1
      %p473 = scmp.ne.s32.totalorder %s468, %s470
      %p474 = scmp.eq.s32.totalorder %s35, 0
      %p475 = por %p473, %p474
      %p476 = scmp.ne.s32.totalorder %s468, %s470
      %p477 = scmp.eq.s32.totalorder %s40, 1
      %p478 = por %p476, %p477
      %p479 = scmp.ne.s32.totalorder %s470, %s471
      %p480 = scmp.eq.s32.totalorder %s40, 0
      %p481 = por %p479, %p480
      %p482 = scmp.ne.s32.totalorder %s470, %s471
      %p483 = scmp.eq.s32.totalorder %s41, 1
      %p484 = por %p482, %p483
      %p486 = scmp.ne.s32.totalorder %s471, %s485
      %p487 = scmp.eq.s32.totalorder %s41, 0
      %p488 = por %p486, %p487
      %s490 = sadd.s32 %s489, 1
      %p493 = scmp.eq.s32.totalorder %s35, 1
      %p494 = scmp.ne.s32.totalorder %s489, %s491
      %p495 = scmp.eq.s32.totalorder %s35, 0
      %p496 = por %p494, %p495
      %p497 = scmp.ne.s32.totalorder %s489, %s491
      %p498 = scmp.eq.s32.totalorder %s40, 1
      %p499 = por %p497, %p498
      %p500 = scmp.ne.s32.totalorder %s491, %s492
      %p501 = scmp.eq.s32.totalorder %s40, 0
      %p502 = por %p500, %p501
      %p503 = scmp.ne.s32.totalorder %s491, %s492
      %p504 = scmp.eq.s32.totalorder %s41, 1
      %p505 = por %p503, %p504
      %p507 = scmp.ne.s32.totalorder %s492, %s506
      %p508 = scmp.eq.s32.totalorder %s41, 0
      %p509 = por %p507, %p508
      %s511 = sadd.s32 %s510, 1
      %p514 = scmp.eq.s32.totalorder %s35, 1
      %p515 = scmp.ne.s32.totalorder %s510, %s512
      %p516 = scmp.eq.s32.totalorder %s35, 0
      %p517 = por %p515, %p516
      %p518 = scmp.ne.s32.totalorder %s510, %s512
      %p519 = scmp.eq.s32.totalorder %s40, 1
      %p520 = por %p518, %p519
      %p521 = scmp.ne.s32.totalorder %s512, %s513
      %p522 = scmp.eq.s32.totalorder %s40, 0
      %p523 = por %p521, %p522
      %p524 = scmp.ne.s32.totalorder %s512, %s513
      %p525 = scmp.eq.s32.totalorder %s41, 1
      %p526 = por %p524, %p525
      %p528 = scmp.ne.s32.totalorder %s513, %s527
      %p529 = scmp.eq.s32.totalorder %s41, 0
      %p530 = por %p528, %p529
      %s532 = sadd.s32 %s531, 1
      %p535 = scmp.eq.s32.totalorder %s35, 1
      %p536 = scmp.ne.s32.totalorder %s531, %s533
      %p537 = scmp.eq.s32.totalorder %s35, 0
      %p538 = por %p536, %p537
      %p539 = scmp.ne.s32.totalorder %s531, %s533
      %p540 = scmp.eq.s32.totalorder %s40, 1
      %p541 = por %p539, %p540
      %p542 = scmp.ne.s32.totalorder %s533, %s534
      %p543 = scmp.eq.s32.totalorder %s40, 0
      %p544 = por %p542, %p543
      %p545 = scmp.ne.s32.totalorder %s533, %s534
      %p546 = scmp.eq.s32.totalorder %s41, 1
      %p547 = por %p545, %p546
      %p549 = scmp.ne.s32.totalorder %s534, %s548
      %p550 = scmp.eq.s32.totalorder %s41, 0
      %p551 = por %p549, %p550
      %s553 = sadd.s32 %s552, 1
      %p556 = scmp.eq.s32.totalorder %s35, 1
      %p557 = scmp.ne.s32.totalorder %s552, %s554
      %p558 = scmp.eq.s32.totalorder %s35, 0
      %p559 = por %p557, %p558
      %p560 = scmp.ne.s32.totalorder %s552, %s554
      %p561 = scmp.eq.s32.totalorder %s40, 1
      %p562 = por %p560, %p561
      %p563 = scmp.ne.s32.totalorder %s554, %s555
      %p564 = scmp.eq.s32.totalorder %s40, 0
      %p565 = por %p563, %p564
      %p566 = scmp.ne.s32.totalorder %s554, %s555
      %p567 = scmp.eq.s32.totalorder %s41, 1
      %p568 = por %p566, %p567
      %p570 = scmp.ne.s32.totalorder %s555, %s569
      %p571 = scmp.eq.s32.totalorder %s41, 0
      %p572 = por %p570, %p571
      %s574 = sadd.s32 %s573, 1
      %p577 = scmp.eq.s32.totalorder %s35, 1
      %p578 = scmp.ne.s32.totalorder %s573, %s575
      %p579 = scmp.eq.s32.totalorder %s35, 0
      %p580 = por %p578, %p579
      %p581 = scmp.ne.s32.totalorder %s573, %s575
      %p582 = scmp.eq.s32.totalorder %s40, 1
      %p583 = por %p581, %p582
      %p584 = scmp.ne.s32.totalorder %s575, %s576
      %p585 = scmp.eq.s32.totalorder %s40, 0
      %p586 = por %p584, %p585
      %p587 = scmp.ne.s32.totalorder %s575, %s576
      %p588 = scmp.eq.s32.totalorder %s41, 1
      %p589 = por %p587, %p588
      %p591 = scmp.ne.s32.totalorder %s576, %s590
      %p592 = scmp.eq.s32.totalorder %s41, 0
      %p593 = por %p591, %p592
      %s594 = ssub.s32 %s35, %s42
      %p595 = scmp.eq.s32.totalorder %s594, 0
      %s597 = sadd.s32 %s596, 1
      %s598 = scalar_select %p595, %s596, %s597
      %p601 = pneg %p595
      %p602 = scmp.eq.s32.totalorder %s35, 1
      %p603 = por %p601, %p602
      %p604 = scmp.ne.s32.totalorder %s596, %s599
      %p605 = scmp.eq.s32.totalorder %s35, 0
      %p606 = por %p604, %p605
      %p607 = scmp.ne.s32.totalorder %s596, %s599
      %p608 = scmp.eq.s32.totalorder %s40, 1
      %p609 = por %p607, %p608
      %p610 = scmp.ne.s32.totalorder %s599, %s600
      %p611 = scmp.eq.s32.totalorder %s40, 0
      %p612 = por %p610, %p611
      %p613 = scmp.ne.s32.totalorder %s599, %s600
      %p614 = scmp.eq.s32.totalorder %s41, 1
      %p615 = por %p613, %p614
      %p617 = scmp.ne.s32.totalorder %s600, %s616
      %p618 = scmp.eq.s32.totalorder %s41, 0
      %p619 = por %p617, %p618
      %p620 = scmp.le.s32.totalorder 1, %s35
      %p621 = scmp.lt.s32.totalorder %s35, 3
      %p622 = pnand %p620, %p621
      %p623 = pneg %p622
      // Predicated region
      $region9: #{medklip_forward.5} parent=5 // pred_check
        _
      $region10: #{medklip_forward.5} parent=5 // pred_check_branch
        %625 = sbr.rel (%p622) target = $region12
      $region11: #{medklip_forward.5} parent=5 // pred_region
        %s626 = ssub.s32 %s35, 1
        // Predicated region
        $region13: #{medklip_forward.5} parent=11 // pred_check
          %p627 = pneg %p82
        $region14: #{medklip_forward.5} parent=11 // pred_check_branch
          %629 = sbr.rel (%p627) target = $region16
        $region15: #{medklip_forward.5} parent=11 // pred_region
          _
        $region16: #{medklip_forward.5} parent=11 // pred_fallthru
          _
        // Predicated region
        $region17: #{medklip_forward.5} parent=11 // pred_check
          %p630 = pneg %p103
        $region18: #{medklip_forward.5} parent=11 // pred_check_branch
          %632 = sbr.rel (%p630) target = $region20
        $region19: #{medklip_forward.5} parent=11 // pred_region
          _
        $region20: #{medklip_forward.5} parent=11 // pred_fallthru
          _
        // Predicated region
        $region21: #{medklip_forward.5} parent=11 // pred_check
          %p633 = pneg %p124
        $region22: #{medklip_forward.5} parent=11 // pred_check_branch
          %635 = sbr.rel (%p633) target = $region24
        $region23: #{medklip_forward.5} parent=11 // pred_region
          _
        $region24: #{medklip_forward.5} parent=11 // pred_fallthru
          _
        // Predicated region
        $region25: #{medklip_forward.5} parent=11 // pred_check
          %p636 = pneg %p145
        $region26: #{medklip_forward.5} parent=11 // pred_check_branch
          %638 = sbr.rel (%p636) target = $region28
        $region27: #{medklip_forward.5} parent=11 // pred_region
          _
        $region28: #{medklip_forward.5} parent=11 // pred_fallthru
          _
        // Predicated region
        $region29: #{medklip_forward.5} parent=11 // pred_check
          %p639 = pneg %p166
        $region30: #{medklip_forward.5} parent=11 // pred_check_branch
          %641 = sbr.rel (%p639) target = $region32
        $region31: #{medklip_forward.5} parent=11 // pred_region
          _
        $region32: #{medklip_forward.5} parent=11 // pred_fallthru
          _
        // Predicated region
        $region33: #{medklip_forward.5} parent=11 // pred_check
          %p642 = pneg %p187
        $region34: #{medklip_forward.5} parent=11 // pred_check_branch
          %644 = sbr.rel (%p642) target = $region36
        $region35: #{medklip_forward.5} parent=11 // pred_region
          _
        $region36: #{medklip_forward.5} parent=11 // pred_fallthru
          _
        // Predicated region
        $region37: #{medklip_forward.5} parent=11 // pred_check
          %p645 = pneg %p208
        $region38: #{medklip_forward.5} parent=11 // pred_check_branch
          %647 = sbr.rel (%p645) target = $region40
        $region39: #{medklip_forward.5} parent=11 // pred_region
          _
        $region40: #{medklip_forward.5} parent=11 // pred_fallthru
          _
        // Predicated region
        $region41: #{medklip_forward.5} parent=11 // pred_check
          %p648 = pneg %p229
        $region42: #{medklip_forward.5} parent=11 // pred_check_branch
          %650 = sbr.rel (%p648) target = $region44
        $region43: #{medklip_forward.5} parent=11 // pred_region
          _
        $region44: #{medklip_forward.5} parent=11 // pred_fallthru
          _
        // Predicated region
        $region45: #{medklip_forward.5} parent=11 // pred_check
          %p651 = pneg %p250
        $region46: #{medklip_forward.5} parent=11 // pred_check_branch
          %653 = sbr.rel (%p651) target = $region48
        $region47: #{medklip_forward.5} parent=11 // pred_region
          _
        $region48: #{medklip_forward.5} parent=11 // pred_fallthru
          _
        // Predicated region
        $region49: #{medklip_forward.5} parent=11 // pred_check
          %p654 = pneg %p271
        $region50: #{medklip_forward.5} parent=11 // pred_check_branch
          %656 = sbr.rel (%p654) target = $region52
        $region51: #{medklip_forward.5} parent=11 // pred_region
          _
        $region52: #{medklip_forward.5} parent=11 // pred_fallthru
          _
        // Predicated region
        $region53: #{medklip_forward.5} parent=11 // pred_check
          %p657 = pneg %p292
        $region54: #{medklip_forward.5} parent=11 // pred_check_branch
          %659 = sbr.rel (%p657) target = $region56
        $region55: #{medklip_forward.5} parent=11 // pred_region
          _
        $region56: #{medklip_forward.5} parent=11 // pred_fallthru
          _
        // Predicated region
        $region57: #{medklip_forward.5} parent=11 // pred_check
          %p660 = pneg %p313
        $region58: #{medklip_forward.5} parent=11 // pred_check_branch
          %662 = sbr.rel (%p660) target = $region60
        $region59: #{medklip_forward.5} parent=11 // pred_region
          _
        $region60: #{medklip_forward.5} parent=11 // pred_fallthru
          _
        // Predicated region
        $region61: #{medklip_forward.5} parent=11 // pred_check
          %p663 = pneg %p334
        $region62: #{medklip_forward.5} parent=11 // pred_check_branch
          %665 = sbr.rel (%p663) target = $region64
        $region63: #{medklip_forward.5} parent=11 // pred_region
          _
        $region64: #{medklip_forward.5} parent=11 // pred_fallthru
          _
        // Predicated region
        $region65: #{medklip_forward.5} parent=11 // pred_check
          %p666 = pneg %p355
        $region66: #{medklip_forward.5} parent=11 // pred_check_branch
          %668 = sbr.rel (%p666) target = $region68
        $region67: #{medklip_forward.5} parent=11 // pred_region
          _
        $region68: #{medklip_forward.5} parent=11 // pred_fallthru
          _
        // Predicated region
        $region69: #{medklip_forward.5} parent=11 // pred_check
          %p669 = pneg %p376
        $region70: #{medklip_forward.5} parent=11 // pred_check_branch
          %671 = sbr.rel (%p669) target = $region72
        $region71: #{medklip_forward.5} parent=11 // pred_region
          _
        $region72: #{medklip_forward.5} parent=11 // pred_fallthru
          _
        // Predicated region
        $region73: #{medklip_forward.5} parent=11 // pred_check
          %p672 = pneg %p397
        $region74: #{medklip_forward.5} parent=11 // pred_check_branch
          %674 = sbr.rel (%p672) target = $region76
        $region75: #{medklip_forward.5} parent=11 // pred_region
          _
        $region76: #{medklip_forward.5} parent=11 // pred_fallthru
          _
        // Predicated region
        $region77: #{medklip_forward.5} parent=11 // pred_check
          %p675 = pneg %p418
        $region78: #{medklip_forward.5} parent=11 // pred_check_branch
          %677 = sbr.rel (%p675) target = $region80
        $region79: #{medklip_forward.5} parent=11 // pred_region
          _
        $region80: #{medklip_forward.5} parent=11 // pred_fallthru
          _
        // Predicated region
        $region81: #{medklip_forward.5} parent=11 // pred_check
          %p678 = pneg %p439
        $region82: #{medklip_forward.5} parent=11 // pred_check_branch
          %680 = sbr.rel (%p678) target = $region84
        $region83: #{medklip_forward.5} parent=11 // pred_region
          _
        $region84: #{medklip_forward.5} parent=11 // pred_fallthru
          _
        // Predicated region
        $region85: #{medklip_forward.5} parent=11 // pred_check
          %p681 = pneg %p460
        $region86: #{medklip_forward.5} parent=11 // pred_check_branch
          %683 = sbr.rel (%p681) target = $region88
        $region87: #{medklip_forward.5} parent=11 // pred_region
          _
        $region88: #{medklip_forward.5} parent=11 // pred_fallthru
          _
        // Predicated region
        $region89: #{medklip_forward.5} parent=11 // pred_check
          %p684 = pneg %p481
        $region90: #{medklip_forward.5} parent=11 // pred_check_branch
          %686 = sbr.rel (%p684) target = $region92
        $region91: #{medklip_forward.5} parent=11 // pred_region
          _
        $region92: #{medklip_forward.5} parent=11 // pred_fallthru
          _
        // Predicated region
        $region93: #{medklip_forward.5} parent=11 // pred_check
          %p687 = pneg %p502
        $region94: #{medklip_forward.5} parent=11 // pred_check_branch
          %689 = sbr.rel (%p687) target = $region96
        $region95: #{medklip_forward.5} parent=11 // pred_region
          _
        $region96: #{medklip_forward.5} parent=11 // pred_fallthru
          _
        // Predicated region
        $region97: #{medklip_forward.5} parent=11 // pred_check
          %p690 = pneg %p523
        $region98: #{medklip_forward.5} parent=11 // pred_check_branch
          %692 = sbr.rel (%p690) target = $region100
        $region99: #{medklip_forward.5} parent=11 // pred_region
          _
        $region100: #{medklip_forward.5} parent=11 // pred_fallthru
          _
        // Predicated region
        $region101: #{medklip_forward.5} parent=11 // pred_check
          %p693 = pneg %p544
        $region102: #{medklip_forward.5} parent=11 // pred_check_branch
          %695 = sbr.rel (%p693) target = $region104
        $region103: #{medklip_forward.5} parent=11 // pred_region
          _
        $region104: #{medklip_forward.5} parent=11 // pred_fallthru
          _
        // Predicated region
        $region105: #{medklip_forward.5} parent=11 // pred_check
          %p696 = pneg %p565
        $region106: #{medklip_forward.5} parent=11 // pred_check_branch
          %698 = sbr.rel (%p696) target = $region108
        $region107: #{medklip_forward.5} parent=11 // pred_region
          _
        $region108: #{medklip_forward.5} parent=11 // pred_fallthru
          _
        // Predicated region
        $region109: #{medklip_forward.5} parent=11 // pred_check
          %p699 = pneg %p586
        $region110: #{medklip_forward.5} parent=11 // pred_check_branch
          %701 = sbr.rel (%p699) target = $region112
        $region111: #{medklip_forward.5} parent=11 // pred_region
          _
        $region112: #{medklip_forward.5} parent=11 // pred_fallthru
          _
      $region12: #{medklip_forward.5} parent=5 // pred_fallthru
        _
      %p702 = scmp.lt.s32.totalorder %s35, 2
      // Predicated region
      $region113: #{medklip_forward.5} parent=5 // pred_check
        %p703 = pneg %p702
      $region114: #{medklip_forward.5} parent=5 // pred_check_branch
        %705 = sbr.rel (%p703) target = $region116
      $region115: #{medklip_forward.5} parent=5 // pred_region
        // Predicated region
        $region117: #{medklip_forward.5} parent=115 // pred_check
          %p706 = pneg %p55
        $region118: #{medklip_forward.5} parent=115 // pred_check_branch
          %708 = sbr.rel (%p706) target = $region120
        $region119: #{medklip_forward.5} parent=115 // pred_region
          %p709 = scmp.lt.s32.totalorder %s35, 1
          %s710 = scalar_select %p709, %s35, 1
          %s711 = smul.addr %s710, 2
          %s712 = smul.addr %s711, 8
          %s713 = scalar_lea.vmem %s0, %s712
        $region120: #{medklip_forward.5} parent=115 // pred_fallthru
          _
      $region116: #{medklip_forward.5} parent=5 // pred_fallthru
        _
      %p714 = scmp.le.s32.totalorder 1, %s35
      %p715 = scmp.lt.s32.totalorder %s35, 3
      %p716 = pnand %p714, %p715
      %p717 = pneg %p716
      // Predicated region
      $region121: #{medklip_forward.5} parent=5 // pred_check
        _
      $region122: #{medklip_forward.5} parent=5 // pred_check_branch
        %719 = sbr.rel (%p716) target = $region124
      $region123: #{medklip_forward.5} parent=5 // pred_region
        %s720 = ssub.s32 %s35, 1
        %p721 = scmp.lt.s32.totalorder %s40, 1
        %s722 = scalar_select %p721, %s40, 1
        %s723 = smul.addr %s722, 2
        %s724 = smul.addr %s723, 8
        %s725 = scalar_lea.vmem %s0, %s724
        %p726 = pneg %p61
        %p727 = pneg %p58
        %p728 = pneg %p82
        %p729 = pneg %p79
        %p730 = pneg %p103
        %p731 = pneg %p100
        %p732 = pneg %p124
        %p733 = pneg %p121
        %p734 = pneg %p145
        %p735 = pneg %p142
        %p736 = pneg %p166
        %p737 = pneg %p163
        %p738 = pneg %p187
        %p739 = pneg %p184
        %p740 = pneg %p208
        %p741 = pneg %p205
        %p742 = pneg %p229
        %p743 = pneg %p226
        %p744 = pneg %p250
        %p745 = pneg %p247
        %p746 = pneg %p271
        %p747 = pneg %p268
        %p748 = pneg %p292
        %p749 = pneg %p289
        %p750 = pneg %p313
        %p751 = pneg %p310
        %p752 = pneg %p334
        %p753 = pneg %p331
        %p754 = pneg %p355
        %p755 = pneg %p352
        %p756 = pneg %p376
        %p757 = pneg %p373
        %p758 = pneg %p397
        %p759 = pneg %p394
        %p760 = pneg %p418
        %p761 = pneg %p415
        %p762 = pneg %p439
        %p763 = pneg %p436
        %p764 = pneg %p460
        %p765 = pneg %p457
        %p766 = pneg %p481
        %p767 = pneg %p478
        %p768 = pneg %p502
        %p769 = pneg %p499
        %p770 = pneg %p523
        %p771 = pneg %p520
        %p772 = pneg %p544
        %p773 = pneg %p541
        %p774 = pneg %p565
        %p775 = pneg %p562
        %p776 = pneg %p586
        %p777 = pneg %p583
        %p778 = pneg %p612
        %p779 = pneg %p609
        %s780 = sand.u32 %s599, 1
        %s781 = scalar_lea.sflag [#allocation3], %s780
        %s782 = sand.u32 %s599, 1
        %s783 = scalar_lea.vmem [#allocation2], %s782
        %p784 = scmp.lt.s32.totalorder %s40, 1
        %s785 = scalar_select %p784, %s40, 1
        %s786 = smul.addr %s785, 2
        %s787 = smul.addr %s786, 8
        %s788 = scalar_lea.vmem %s0, %s787
        %v790 = vld [vmem:[%s788] sm:$0xff]
        %v791 = vld [vmem:[%s788 + $0x8] sm:$0xff]
        %v792 = vpack.c.bf16 %v791, %v790
        %v793 = vld [vmem:[%s1] sm:$0xff]
        %v794 = vld [vmem:[%s2] sm:$0x1]
        %v795 = vld [vmem:[%s3] sm:$0x1]
        %vm796 = vcmask 261120
        %v797 = vsel %vm796, %v793, 0.0
        %798 = vadd.xlane.f32.xlu0 %v797
        %v799 = vpop.xlane.xlu0 %798
        %v800 = vrcp.pop 32.0
        %v801 = vmul.f32 %v799, %v800
        %v802 = vsub.f32 %v793, %v801
        %v803 = vmul.f32 %v802, %v802
        %v804 = vsel %vm796, %v803, 0.0
        %805 = vadd.xlane.f32.xlu0 %v804
        %v806 = vpop.xlane.xlu0 %805
        %v807 = vmul.f32 %v806, %v800
        %v808 = vadd.f32 %v807, 1e-05
        %v809 = vrsqrt.pop %v808
        %v810 = vmul.f32 %v802, %v809
        %v812 = vlaneseq
        %v813 = vshrl.u32 %v812, 7
        %v814 = vsub.s32 0, %v813
        %v815 = vrot.slane %v794, %v814
        %v817 = vmul.f32 %v810, %v815
        %v819 = vlaneseq
        %v820 = vshrl.u32 %v819, 7
        %v821 = vsub.s32 0, %v820
        %v822 = vrot.slane %v795, %v821
        %v824 = vadd.f32 %v817, %v822
        %v825 = vpack.c.bf16 %v824, %v824
        %v826 = vld [vmem:[%s4] sm:$0xff]
        %v827 = vld [vmem:[%s4 + $0x8] sm:$0xff]
        %v828 = vld [vmem:[%s4 + $0x10] sm:$0xff]
        %v829 = vld [vmem:[%s4 + $0x18] sm:$0xff]
        %v830 = vld [vmem:[%s4 + $0x20] sm:$0xff]
        %v831 = vld [vmem:[%s4 + $0x28] sm:$0xff]
        %v832 = vld [vmem:[%s4 + $0x30] sm:$0xff]
        %v833 = vld [vmem:[%s4 + $0x38] sm:$0xff]
        %v834 = vld [vmem:[%s4 + $0x40] sm:$0xff]
        %v835 = vld [vmem:[%s4 + $0x48] sm:$0xff]
        %v836 = vld [vmem:[%s4 + $0x50] sm:$0xff]
        %v837 = vld [vmem:[%s4 + $0x58] sm:$0xff]
        %v838 = vld [vmem:[%s4 + $0x60] sm:$0xff]
        %v839 = vld [vmem:[%s4 + $0x68] sm:$0xff]
        %v840 = vld [vmem:[%s4 + $0x70] sm:$0xff]
        %v841 = vld [vmem:[%s4 + $0x78] sm:$0xff]
        %v842 = vld [vmem:[%s4 + $0x80] sm:$0xff]
        %v843 = vld [vmem:[%s4 + $0x88] sm:$0xff]
        %v844 = vld [vmem:[%s4 + $0x90] sm:$0xff]
        %v845 = vld [vmem:[%s4 + $0x98] sm:$0xff]
        %v846 = vld [vmem:[%s4 + $0xa0] sm:$0xff]
        %v847 = vld [vmem:[%s4 + $0xa8] sm:$0xff]
        %v848 = vld [vmem:[%s4 + $0xb0] sm:$0xff]
        %v849 = vld [vmem:[%s4 + $0xb8] sm:$0xff]
        %v850 = vld [vmem:[%s5] sm:$0xff]
        %v851 = vld [vmem:[%s5 + $0x8] sm:$0xf]
        %v854 = vlaneseq
        %v855 = vshrl.u32 %v854, 7
        %v856 = vsub.s32 0, %v855
        %v857 = vrot.slane %v850, %v856
        %v858 = vlaneseq
        %v859 = vshrl.u32 %v858, 7
        %v860 = vsub.s32 1, %v859
        %v861 = vrot.slane %v850, %v860
        %v862 = vlaneseq
        %v863 = vshrl.u32 %v862, 7
        %v864 = vsub.s32 2, %v863
        %v865 = vrot.slane %v850, %v864
        %v866 = vlaneseq
        %v867 = vshrl.u32 %v866, 7
        %v868 = vsub.s32 3, %v867
        %v869 = vrot.slane %v850, %v868
        %v870 = vlaneseq
        %v871 = vshrl.u32 %v870, 7
        %v872 = vsub.s32 4, %v871
        %v873 = vrot.slane %v850, %v872
        %v874 = vlaneseq
        %v875 = vshrl.u32 %v874, 7
        %v876 = vsub.s32 5, %v875
        %v877 = vrot.slane %v850, %v876
        %v878 = vlaneseq
        %v879 = vshrl.u32 %v878, 7
        %v880 = vsub.s32 6, %v879
        %v881 = vrot.slane %v850, %v880
        %v882 = vlaneseq
        %v883 = vshrl.u32 %v882, 7
        %v884 = vsub.s32 7, %v883
        %v885 = vrot.slane %v850, %v884
        %v886 = vlaneseq
        %v887 = vshrl.u32 %v886, 7
        %v888 = vsub.s32 0, %v887
        %v889 = vrot.slane %v851, %v888
        %v890 = vlaneseq
        %v891 = vshrl.u32 %v890, 7
        %v892 = vsub.s32 1, %v891
        %v893 = vrot.slane %v851, %v892
        %v894 = vlaneseq
        %v895 = vshrl.u32 %v894, 7
        %v896 = vsub.s32 2, %v895
        %v897 = vrot.slane %v851, %v896
        %v898 = vlaneseq
        %v899 = vshrl.u32 %v898, 7
        %v900 = vsub.s32 3, %v899
        %v901 = vrot.slane %v851, %v900
        %v938 = vunpack.c.l.b16 %v826
        %v939 = vunpack.c.h.b16 %v826
        %v940 = vunpack.c.l.b16 %v827
        %v941 = vunpack.c.h.b16 %v827
        %v942 = vunpack.c.l.b16 %v828
        %v943 = vunpack.c.h.b16 %v828
        %v944 = vunpack.c.l.b16 %v829
        %v945 = vunpack.c.h.b16 %v829
        %v946 = vunpack.c.l.b16 %v830
        %v947 = vunpack.c.h.b16 %v830
        %v948 = vunpack.c.l.b16 %v831
        %v949 = vunpack.c.h.b16 %v831
        %v950 = vunpack.c.l.b16 %v832
        %v951 = vunpack.c.h.b16 %v832
        %v952 = vunpack.c.l.b16 %v833
        %v953 = vunpack.c.h.b16 %v833
        %v954 = vunpack.c.l.b16 %v834
        %v955 = vunpack.c.h.b16 %v834
        %v956 = vunpack.c.l.b16 %v835
        %v957 = vunpack.c.h.b16 %v835
        %v958 = vunpack.c.l.b16 %v836
        %v959 = vunpack.c.h.b16 %v836
        %v960 = vunpack.c.l.b16 %v837
        %v961 = vunpack.c.h.b16 %v837
        %v962 = vunpack.c.l.b16 %v838
        %v963 = vunpack.c.h.b16 %v838
        %v964 = vunpack.c.l.b16 %v839
        %v965 = vunpack.c.h.b16 %v839
        %v966 = vunpack.c.l.b16 %v840
        %v967 = vunpack.c.h.b16 %v840
        %v968 = vunpack.c.l.b16 %v841
        %v969 = vunpack.c.h.b16 %v841
        %v970 = vunpack.c.l.b16 %v842
        %v971 = vunpack.c.h.b16 %v842
        %v972 = vunpack.c.l.b16 %v843
        %v973 = vunpack.c.h.b16 %v843
        %v974 = vunpack.c.l.b16 %v844
        %v975 = vunpack.c.h.b16 %v844
        %v976 = vunpack.c.l.b16 %v845
        %v977 = vunpack.c.h.b16 %v845
        %v978 = vunpack.c.l.b16 %v846
        %v979 = vunpack.c.h.b16 %v846
        %v980 = vunpack.c.l.b16 %v847
        %v981 = vunpack.c.h.b16 %v847
        %v982 = vunpack.c.l.b16 %v848
        %v983 = vunpack.c.h.b16 %v848
        %v984 = vunpack.c.l.b16 %v849
        %v985 = vunpack.c.h.b16 %v849
        %v986 = vpack.c.b16 %v950, %v938
        %v987 = vpack.c.b16 %v951, %v939
        %v988 = vpack.c.b16 %v952, %v940
        %v989 = vpack.c.b16 %v953, %v941
        %v990 = vpack.c.b16 %v954, %v942
        %v991 = vpack.c.b16 %v955, %v943
        %v992 = vpack.c.b16 %v956, %v944
        %v993 = vpack.c.b16 %v957, %v945
        %v994 = vpack.c.b16 %v958, %v946
        %v995 = vpack.c.b16 %v959, %v947
        %v996 = vpack.c.b16 %v960, %v948
        %v997 = vpack.c.b16 %v961, %v949
        %v998 = vpack.c.b16 %v974, %v962
        %v999 = vpack.c.b16 %v975, %v963
        %v1000 = vpack.c.b16 %v976, %v964
        %v1001 = vpack.c.b16 %v977, %v965
        %v1002 = vpack.c.b16 %v978, %v966
        %v1003 = vpack.c.b16 %v979, %v967
        %v1004 = vpack.c.b16 %v980, %v968
        %v1005 = vpack.c.b16 %v981, %v969
        %v1006 = vpack.c.b16 %v982, %v970
        %v1007 = vpack.c.b16 %v983, %v971
        %v1008 = vpack.c.b16 %v984, %v972
        %v1009 = vpack.c.b16 %v985, %v973
        %v1035 = vsel %vm796, %v825, 0
        %1037 = vmatprep.subr.bf16.mxu0 %v987
        %1038 = vmatpush1.bf16.msra.mxu0 %v986
        %1039 = vmatprep.subr.bf16.mxu0 %v999
        %1040 = vmatpush1.bf16.msra.mxu0 %v998
        %1041 = vmatprep.subr.bf16.mxu0 0
        %1042 = vmatpush1.bf16.msra.mxu0 0
        %1043 = vmatprep.subr.bf16.mxu0 0
        %1044 = vmatpush1.bf16.msra.mxu0 0
        %1045 = vmatprep.subr.bf16.mxu0 0
        %1046 = vmatpush1.bf16.msra.mxu0 0
        %1047 = vmatprep.subr.bf16.mxu0 0
        %1048 = vmatpush1.bf16.msra.mxu0 0
        %1049 = vmatprep.subr.bf16.mxu0 0
        %1050 = vmatpush1.bf16.msra.mxu0 0
        %1051 = vmatprep.subr.bf16.mxu0 0
        %1052 = vmatpush1.bf16.msra.mxu0 0
        %1053 = vmatprep.subr.bf16.mxu0 0
        %1054 = vmatpush1.bf16.msra.mxu0 0
        %1055 = vmatprep.subr.bf16.mxu0 0
        %1056 = vmatpush1.bf16.msra.mxu0 0
        %1057 = vmatprep.subr.bf16.mxu0 0
        %1058 = vmatpush1.bf16.msra.mxu0 0
        %1059 = vmatprep.subr.bf16.mxu0 0
        %1060 = vmatpush1.bf16.msra.mxu0 0
        %1061 = vmatprep.subr.bf16.mxu0 0
        %1062 = vmatpush1.bf16.msra.mxu0 0
        %1063 = vmatprep.subr.bf16.mxu0 0
        %1064 = vmatpush1.bf16.msra.mxu0 0
        %1065 = vmatprep.subr.bf16.mxu0 0
        %1066 = vmatpush1.bf16.msra.mxu0 0
        %1067 = vmatprep.subr.bf16.mxu0 0
        %1068 = vmatpush1.bf16.msra.mxu0 0
        %1069 = vmatprep.mubr.bf16.mxu0 0
        %1070 = vmatmul.mubr.bf16.gmra.mrb[0].mxu0 %v1035
        %v1071 = vpop.f32.mrb[0].mxu0
        %v1072 = vadd.f32 %v857, %v1071
        %v1073 = vpop.f32.mrb[0].mxu0
        %v1074 = vadd.f32 %v861, %v1073
        %v1075 = vpop.f32.mrb[0].mxu0
        %v1076 = vpop.f32.mrb[0].mxu0
        %1077 = vdwg.mxu0
        %1078 = vmatprep.subr.bf16.mxu0 %v989
        %1079 = vmatpush1.bf16.msra.mxu0 %v988
        %1080 = vmatprep.subr.bf16.mxu0 %v1001
        %1081 = vmatpush1.bf16.msra.mxu0 %v1000
        %1082 = vmatprep.subr.bf16.mxu0 0
        %1083 = vmatpush1.bf16.msra.mxu0 0
        %1084 = vmatprep.subr.bf16.mxu0 0
        %1085 = vmatpush1.bf16.msra.mxu0 0
        %1086 = vmatprep.subr.bf16.mxu0 0
        %1087 = vmatpush1.bf16.msra.mxu0 0
        %1088 = vmatprep.subr.bf16.mxu0 0
        %1089 = vmatpush1.bf16.msra.mxu0 0
        %1090 = vmatprep.subr.bf16.mxu0 0
        %1091 = vmatpush1.bf16.msra.mxu0 0
        %1092 = vmatprep.subr.bf16.mxu0 0
        %1093 = vmatpush1.bf16.msra.mxu0 0
        %1094 = vmatprep.subr.bf16.mxu0 0
        %1095 = vmatpush1.bf16.msra.mxu0 0
        %1096 = vmatprep.subr.bf16.mxu0 0
        %1097 = vmatpush1.bf16.msra.mxu0 0
        %1098 = vmatprep.subr.bf16.mxu0 0
        %1099 = vmatpush1.bf16.msra.mxu0 0
        %1100 = vmatprep.subr.bf16.mxu0 0
        %1101 = vmatpush1.bf16.msra.mxu0 0
        %1102 = vmatprep.subr.bf16.mxu0 0
        %1103 = vmatpush1.bf16.msra.mxu0 0
        %1104 = vmatprep.subr.bf16.mxu0 0
        %1105 = vmatpush1.bf16.msra.mxu0 0
        %1106 = vmatprep.subr.bf16.mxu0 0
        %1107 = vmatpush1.bf16.msra.mxu0 0
        %1108 = vmatprep.subr.bf16.mxu0 0
        %1109 = vmatpush1.bf16.msra.mxu0 0
        %1110 = vmatprep.mubr.bf16.mxu0 0
        %1111 = vmatmul.mubr.bf16.gmra.mrb[0].mxu0 %v1035
        %v1112 = vpop.f32.mrb[0].mxu0
        %v1113 = vadd.f32 %v865, %v1112
        %v1114 = vpop.f32.mrb[0].mxu0
        %v1115 = vadd.f32 %v869, %v1114
        %v1116 = vpop.f32.mrb[0].mxu0
        %v1117 = vpop.f32.mrb[0].mxu0
        %1118 = vdwg.mxu0
        %1119 = vmatprep.subr.bf16.mxu0 %v991
        %1120 = vmatpush1.bf16.msra.mxu0 %v990
        %1121 = vmatprep.subr.bf16.mxu0 %v1003
        %1122 = vmatpush1.bf16.msra.mxu0 %v1002
        %1123 = vmatprep.subr.bf16.mxu0 0
        %1124 = vmatpush1.bf16.msra.mxu0 0
        %1125 = vmatprep.subr.bf16.mxu0 0
        %1126 = vmatpush1.bf16.msra.mxu0 0
        %1127 = vmatprep.subr.bf16.mxu0 0
        %1128 = vmatpush1.bf16.msra.mxu0 0
        %1129 = vmatprep.subr.bf16.mxu0 0
        %1130 = vmatpush1.bf16.msra.mxu0 0
        %1131 = vmatprep.subr.bf16.mxu0 0
        %1132 = vmatpush1.bf16.msra.mxu0 0
        %1133 = vmatprep.subr.bf16.mxu0 0
        %1134 = vmatpush1.bf16.msra.mxu0 0
        %1135 = vmatprep.subr.bf16.mxu0 0
        %1136 = vmatpush1.bf16.msra.mxu0 0
        %1137 = vmatprep.subr.bf16.mxu0 0
        %1138 = vmatpush1.bf16.msra.mxu0 0
        %1139 = vmatprep.subr.bf16.mxu0 0
        %1140 = vmatpush1.bf16.msra.mxu0 0
        %1141 = vmatprep.subr.bf16.mxu0 0
        %1142 = vmatpush1.bf16.msra.mxu0 0
        %1143 = vmatprep.subr.bf16.mxu0 0
        %1144 = vmatpush1.bf16.msra.mxu0 0
        %1145 = vmatprep.subr.bf16.mxu0 0
        %1146 = vmatpush1.bf16.msra.mxu0 0
        %1147 = vmatprep.subr.bf16.mxu0 0
        %1148 = vmatpush1.bf16.msra.mxu0 0
        %1149 = vmatprep.subr.bf16.mxu0 0
        %1150 = vmatpush1.bf16.msra.mxu0 0
        %1151 = vmatprep.mubr.bf16.mxu0 0
        %1152 = vmatmul.mubr.bf16.gmra.mrb[0].mxu0 %v1035
        %v1153 = vpop.f32.mrb[0].mxu0
        %v1154 = vadd.f32 %v873, %v1153
        %v1155 = vpop.f32.mrb[0].mxu0
        %v1156 = vadd.f32 %v877, %v1155
        %v1157 = vpop.f32.mrb[0].mxu0
        %v1158 = vpop.f32.mrb[0].mxu0
        %1159 = vdwg.mxu0
        %1160 = vmatprep.subr.bf16.mxu0 %v993
        %1161 = vmatpush1.bf16.msra.mxu0 %v992
        %1162 = vmatprep.subr.bf16.mxu0 %v1005
        %1163 = vmatpush1.bf16.msra.mxu0 %v1004
        %1164 = vmatprep.subr.bf16.mxu0 0
        %1165 = vmatpush1.bf16.msra.mxu0 0
        %1166 = vmatprep.subr.bf16.mxu0 0
        %1167 = vmatpush1.bf16.msra.mxu0 0
        %1168 = vmatprep.subr.bf16.mxu0 0
        %1169 = vmatpush1.bf16.msra.mxu0 0
        %1170 = vmatprep.subr.bf16.mxu0 0
        %1171 = vmatpush1.bf16.msra.mxu0 0
        %1172 = vmatprep.subr.bf16.mxu0 0
        %1173 = vmatpush1.bf16.msra.mxu0 0
        %1174 = vmatprep.subr.bf16.mxu0 0
        %1175 = vmatpush1.bf16.msra.mxu0 0
        %1176 = vmatprep.subr.bf16.mxu0 0
        %1177 = vmatpush1.bf16.msra.mxu0 0
        %1178 = vmatprep.subr.bf16.mxu0 0
        %1179 = vmatpush1.bf16.msra.mxu0 0
        %1180 = vmatprep.subr.bf16.mxu0 0
        %1181 = vmatpush1.bf16.msra.mxu0 0
        %1182 = vmatprep.subr.bf16.mxu0 0
        %1183 = vmatpush1.bf16.msra.mxu0 0
        %1184 = vmatprep.subr.bf16.mxu0 0
        %1185 = vmatpush1.bf16.msra.mxu0 0
        %1186 = vmatprep.subr.bf16.mxu0 0
        %1187 = vmatpush1.bf16.msra.mxu0 0
        %1188 = vmatprep.subr.bf16.mxu0 0
        %1189 = vmatpush1.bf16.msra.mxu0 0
        %1190 = vmatprep.subr.bf16.mxu0 0
        %1191 = vmatpush1.bf16.msra.mxu0 0
        %1192 = vmatprep.mubr.bf16.mxu0 0
        %1193 = vmatmul.mubr.bf16.gmra.mrb[0].mxu0 %v1035
        %v1194 = vpop.f32.mrb[0].mxu0
        %v1195 = vadd.f32 %v881, %v1194
        %v1196 = vpop.f32.mrb[0].mxu0
        %v1197 = vadd.f32 %v885, %v1196
        %v1198 = vpop.f32.mrb[0].mxu0
        %v1199 = vpop.f32.mrb[0].mxu0
        %1200 = vdwg.mxu0
        %1201 = vmatprep.subr.bf16.mxu0 %v995
        %1202 = vmatpush1.bf16.msra.mxu0 %v994
        %1203 = vmatprep.subr.bf16.mxu0 %v1007
        %1204 = vmatpush1.bf16.msra.mxu0 %v1006
        %1205 = vmatprep.subr.bf16.mxu0 0
        %1206 = vmatpush1.bf16.msra.mxu0 0
        %1207 = vmatprep.subr.bf16.mxu0 0
        %1208 = vmatpush1.bf16.msra.mxu0 0
        %1209 = vmatprep.subr.bf16.mxu0 0
        %1210 = vmatpush1.bf16.msra.mxu0 0
        %1211 = vmatprep.subr.bf16.mxu0 0
        %1212 = vmatpush1.bf16.msra.mxu0 0
        %1213 = vmatprep.subr.bf16.mxu0 0
        %1214 = vmatpush1.bf16.msra.mxu0 0
        %1215 = vmatprep.subr.bf16.mxu0 0
        %1216 = vmatpush1.bf16.msra.mxu0 0
        %1217 = vmatprep.subr.bf16.mxu0 0
        %1218 = vmatpush1.bf16.msra.mxu0 0
        %1219 = vmatprep.subr.bf16.mxu0 0
        %1220 = vmatpush1.bf16.msra.mxu0 0
        %1221 = vmatprep.subr.bf16.mxu0 0
        %1222 = vmatpush1.bf16.msra.mxu0 0
        %1223 = vmatprep.subr.bf16.mxu0 0
        %1224 = vmatpush1.bf16.msra.mxu0 0
        %1225 = vmatprep.subr.bf16.mxu0 0
        %1226 = vmatpush1.bf16.msra.mxu0 0
        %1227 = vmatprep.subr.bf16.mxu0 0
        %1228 = vmatpush1.bf16.msra.mxu0 0
        %1229 = vmatprep.subr.bf16.mxu0 0
        %1230 = vmatpush1.bf16.msra.mxu0 0
        %1231 = vmatprep.subr.bf16.mxu0 0
        %1232 = vmatpush1.bf16.msra.mxu0 0
        %1233 = vmatprep.mubr.bf16.mxu0 0
        %1234 = vmatmul.mubr.bf16.gmra.mrb[0].mxu0 %v1035
        %v1235 = vpop.f32.mrb[0].mxu0
        %v1236 = vadd.f32 %v889, %v1235
        %v1237 = vpop.f32.mrb[0].mxu0
        %v1238 = vadd.f32 %v893, %v1237
        %v1239 = vpop.f32.mrb[0].mxu0
        %v1240 = vpop.f32.mrb[0].mxu0
        %1241 = vdwg.mxu0
        %1242 = vmatprep.subr.bf16.mxu0 %v997
        %1243 = vmatpush1.bf16.msra.mxu0 %v996
        %1244 = vmatprep.subr.bf16.mxu0 %v1009
        %1245 = vmatpush1.bf16.msra.mxu0 %v1008
        %1246 = vmatprep.subr.bf16.mxu0 0
        %1247 = vmatpush1.bf16.msra.mxu0 0
        %1248 = vmatprep.subr.bf16.mxu0 0
        %1249 = vmatpush1.bf16.msra.mxu0 0
        %1250 = vmatprep.subr.bf16.mxu0 0
        %1251 = vmatpush1.bf16.msra.mxu0 0
        %1252 = vmatprep.subr.bf16.mxu0 0
        %1253 = vmatpush1.bf16.msra.mxu0 0
        %1254 = vmatprep.subr.bf16.mxu0 0
        %1255 = vmatpush1.bf16.msra.mxu0 0
        %1256 = vmatprep.subr.bf16.mxu0 0
        %1257 = vmatpush1.bf16.msra.mxu0 0
        %1258 = vmatprep.subr.bf16.mxu0 0
        %1259 = vmatpush1.bf16.msra.mxu0 0
        %1260 = vmatprep.subr.bf16.mxu0 0
        %1261 = vmatpush1.bf16.msra.mxu0 0
        %1262 = vmatprep.subr.bf16.mxu0 0
        %1263 = vmatpush1.bf16.msra.mxu0 0
        %1264 = vmatprep.subr.bf16.mxu0 0
        %1265 = vmatpush1.bf16.msra.mxu0 0
        %1266 = vmatprep.subr.bf16.mxu0 0
        %1267 = vmatpush1.bf16.msra.mxu0 0
        %1268 = vmatprep.subr.bf16.mxu0 0
        %1269 = vmatpush1.bf16.msra.mxu0 0
        %1270 = vmatprep.subr.bf16.mxu0 0
        %1271 = vmatpush1.bf16.msra.mxu0 0
        %1272 = vmatprep.subr.bf16.mxu0 0
        %1273 = vmatpush1.bf16.msra.mxu0 0
        %1274 = vmatprep.mubr.bf16.mxu0 0
        %1275 = vmatmul.mubr.bf16.gmra.mrb[0].mxu0 %v1035
        %v1276 = vpop.f32.mrb[0].mxu0
        %v1277 = vadd.f32 %v897, %v1276
        %v1278 = vpop.f32.mrb[0].mxu0
        %v1279 = vadd.f32 %v901, %v1278
        %v1280 = vpop.f32.mrb[0].mxu0
        %v1281 = vpop.f32.mrb[0].mxu0
        %1282 = vdwg.mxu0
        %v1283 = vpack.c.bf16 %v1154, %v1154
        %v1284 = vpack.c.bf16 %v1156, %v1156
        %v1285 = vpack.c.bf16 %v1195, %v1195
        %v1286 = vpack.c.bf16 %v1197, %v1197
        %v1287 = vpack.c.bf16 %v1236, %v1236
        %v1288 = vpack.c.bf16 %v1238, %v1238
        %v1289 = vpack.c.bf16 %v1277, %v1277
        %v1290 = vpack.c.bf16 %v1279, %v1279
        %v1291 = vld [vmem:[%s6] sm:$0xf]
        %v1292 = vld [vmem:[%s6 + $0x4] sm:$0xf]
        %v1293 = vld [vmem:[%s6 + $0x8] sm:$0xf]
        %v1294 = vld [vmem:[%s6 + $0xc] sm:$0xf]
        %v1295 = vld [vmem:[%s6 + $0x10] sm:$0xf]
        %v1296 = vld [vmem:[%s6 + $0x14] sm:$0xf]
        %v1297 = vld [vmem:[%s6 + $0x18] sm:$0xf]
        %v1298 = vld [vmem:[%s6 + $0x1c] sm:$0xf]
        %v1299 = vld [vmem:[%s6 + $0x20] sm:$0xf]
        %v1300 = vld [vmem:[%s6 + $0x24] sm:$0xf]
        %v1301 = vld [vmem:[%s6 + $0x28] sm:$0xf]
        %v1302 = vld [vmem:[%s6 + $0x2c] sm:$0xf]
        %v1303 = vld [vmem:[%s6 + $0x30] sm:$0xf]
        %v1304 = vld [vmem:[%s6 + $0x34] sm:$0xf]
        %v1305 = vld [vmem:[%s6 + $0x38] sm:$0xf]
        %v1306 = vld [vmem:[%s6 + $0x3c] sm:$0xf]
        %v1307 = vld [vmem:[%s6 + $0x40] sm:$0xf]
        %v1308 = vld [vmem:[%s6 + $0x44] sm:$0xf]
        %v1309 = vld [vmem:[%s6 + $0x48] sm:$0xf]
        %v1310 = vld [vmem:[%s6 + $0x4c] sm:$0xf]
        %v1311 = vld [vmem:[%s6 + $0x50] sm:$0xf]
        %v1312 = vld [vmem:[%s6 + $0x54] sm:$0xf]
        %v1313 = vld [vmem:[%s6 + $0x58] sm:$0xf]
        %v1314 = vld [vmem:[%s6 + $0x5c] sm:$0xf]
        %v1315 = vld [vmem:[%s6 + $0x60] sm:$0xf]
        %v1316 = vld [vmem:[%s6 + $0x64] sm:$0xf]
        %v1317 = vld [vmem:[%s6 + $0x68] sm:$0xf]
        %v1318 = vld [vmem:[%s6 + $0x6c] sm:$0xf]
        %v1319 = vld [vmem:[%s6 + $0x70] sm:$0xf]
        %v1320 = vld [vmem:[%s6 + $0x74] sm:$0xf]
        %v1321 = vld [vmem:[%s6 + $0x78] sm:$0xf]
        %v1322 = vld [vmem:[%s6 + $0x7c] sm:$0xf]
        %v1323 = vld [vmem:[%s6 + $0x80] sm:$0xf]
        %v1324 = vld [vmem:[%s6 + $0x84] sm:$0xf]
        %v1325 = vld [vmem:[%s6 + $0x88] sm:$0xf]
        %v1326 = vld [vmem:[%s6 + $0x8c] sm:$0xf]
        %v1327 = vld [vmem:[%s6 + $0x90] sm:$0xf]
        %v1328 = vld [vmem:[%s6 + $0x94] sm:$0xf]
        %v1329 = vld [vmem:[%s6 + $0x98] sm:$0xf]
        %v1330 = vld [vmem:[%s6 + $0x9c] sm:$0xf]
        %v1331 = vld [vmem:[%s6 + $0xa0] sm:$0xf]
        %v1332 = vld [vmem:[%s6 + $0xa4] sm:$0xf]
        %v1333 = vld [vmem:[%s6 + $0xa8] sm:$0xf]
        %v1334 = vld [vmem:[%s6 + $0xac] sm:$0xf]
        %v1335 = vld [vmem:[%s6 + $0xb0] sm:$0xf]
        %v1336 = vld [vmem:[%s6 + $0xb4] sm:$0xf]
        %v1337 = vld [vmem:[%s6 + $0xb8] sm:$0xf]
        %v1338 = vld [vmem:[%s6 + $0xbc] sm:$0xf]
        %v1339 = vld [vmem:[%s6 + $0xc0] sm:$0xf]
        %v1340 = vld [vmem:[%s6 + $0xc4] sm:$0xf]
        %v1341 = vld [vmem:[%s6 + $0xc8] sm:$0xf]
        %v1342 = vld [vmem:[%s6 + $0xcc] sm:$0xf]
        %v1343 = vld [vmem:[%s6 + $0xd0] sm:$0xf]
        %v1344 = vld [vmem:[%s6 + $0xd4] sm:$0xf]
        %v1345 = vld [vmem:[%s6 + $0xd8] sm:$0xf]
        %v1346 = vld [vmem:[%s6 + $0xdc] sm:$0xf]
        %v1347 = vld [vmem:[%s6 + $0xe0] sm:$0xf]
        %v1348 = vld [vmem:[%s6 + $0xe4] sm:$0xf]
        %v1349 = vld [vmem:[%s6 + $0xe8] sm:$0xf]
        %v1350 = vld [vmem:[%s6 + $0xec] sm:$0xf]
        %v1351 = vld [vmem:[%s6 + $0xf0] sm:$0xf]
        %v1352 = vld [vmem:[%s6 + $0xf4] sm:$0xf]
        %v1353 = vld [vmem:[%s6 + $0xf8] sm:$0xf]
        %v1354 = vld [vmem:[%s6 + $0xfc] sm:$0xf]
        %v1355 = vld [vmem:[%s7] sm:$0x1]
        %v1356 = vpack.c.bf16 %v1072, %v1072
        %v1357 = vpack.c.bf16 %v1074, %v1074
        %v1358 = vpack.c.bf16 %v1113, %v1113
        %v1359 = vpack.c.bf16 %v1115, %v1115
        %1360 = vmatprep.subr.bf16.mxu0 0
        %1361 = vmatpush1.bf16.xpose.msra.mxu0 %v1283
        %1362 = vmatprep.subr.bf16.mxu0 0
        %1363 = vmatpush1.bf16.xpose.msra.mxu0 0
        %1364 = vmatprep.subr.bf16.mxu0 0
        %1365 = vmatpush1.bf16.xpose.msra.mxu0 0
        %1366 = vmatprep.subr.bf16.mxu0 0
        %1367 = vmatpush1.bf16.xpose.msra.mxu0 0
        %1368 = vmatprep.subr.bf16.mxu0 0
        %1369 = vmatpush1.bf16.xpose.msra.mxu0 0
        %1370 = vmatprep.subr.bf16.mxu0 0
        %1371 = vmatpush1.bf16.xpose.msra.mxu0 0
        %1372 = vmatprep.subr.bf16.mxu0 0
        %1373 = vmatpush1.bf16.xpose.msra.mxu0 0
        %1374 = vmatprep.subr.bf16.mxu0 0
        %1375 = vmatpush1.bf16.xpose.msra.mxu0 0
        %1376 = vmatprep.subr.bf16.mxu0 0
        %1377 = vmatpush1.bf16.xpose.msra.mxu0 0
        %1378 = vmatprep.subr.bf16.mxu0 0
        %1379 = vmatpush1.bf16.xpose.msra.mxu0 0
        %1380 = vmatprep.subr.bf16.mxu0 0
        %1381 = vmatpush1.bf16.xpose.msra.mxu0 0
        %1382 = vmatprep.subr.bf16.mxu0 0
        %1383 = vmatpush1.bf16.xpose.msra.mxu0 0
        %1384 = vmatprep.subr.bf16.mxu0 0
        %1385 = vmatpush1.bf16.xpose.msra.mxu0 0
        %1386 = vmatprep.subr.bf16.mxu0 0
        %1387 = vmatpush1.bf16.xpose.msra.mxu0 0
        %1388 = vmatprep.subr.bf16.mxu0 0
        %1389 = vmatpush1.bf16.xpose.msra.mxu0 0
        %1390 = vmatprep.subr.bf16.mxu0 0
        %1391 = vmatpush1.bf16.xpose.msra.mxu0 0
        %1392 = vmatprep.mubr.bf16.mxu0 0
        %1393 = vmatmul.mubr.bf16.gmra.mrb[0].mxu0 %v1356
        %v1394 = vpop.f32.mrb[0].mxu0
        %v1395 = vadd.f32 0.0, %v1394
        %v1396 = vpop.f32.mrb[0].mxu0
        %v1397 = vpop.f32.mrb[0].mxu0
        %v1398 = vpop.f32.mrb[0].mxu0
        %1399 = vdwg.mxu0
        %v1400 = vmul.f32 %v1395, 0.35355338
        %vm1401 = vcmask 64512
        %v1402 = vsel %vm1401, %v1400, -inf
        %1403 = vmax.xlane.f32.xlu0 %v1402
        %v1404 = vpop.xlane.xlu0 %1403
        %v1405 = vsub.f32 %v1400, %v1404
        %v1406 = vmul.f32 %v1405, 1.442695
        %v1407 = vpow.pop %v1406
        %v1408 = vsel %vm1401, %v1407, 0.0
        %1409 = vadd.xlane.f32.xlu0 %v1408
        %v1410 = vpop.xlane.xlu0 %1409
        %v1411 = vrcp.pop %v1410
        %v1412 = vmul.f32 %v1407, %v1411
        %v1413 = vpack.c.bf16 %v1412, %v1412
        %v1415 = vsel %vm1401, %v1413, 0
        %vm1417 = vcmask 1043456
        %v1419 = vsel %vm1417, %v1287, 0
        %1421 = vmatprep.subr.bf16.mxu0 0
        %1422 = vmatpush1.bf16.msra.mxu0 %v1419
        %1423 = vmatprep.subr.bf16.mxu0 0
        %1424 = vmatpush1.bf16.msra.mxu0 0
        %1425 = vmatprep.subr.bf16.mxu0 0
        %1426 = vmatpush1.bf16.msra.mxu0 0
        %1427 = vmatprep.subr.bf16.mxu0 0
        %1428 = vmatpush1.bf16.msra.mxu0 0
        %1429 = vmatprep.subr.bf16.mxu0 0
        %1430 = vmatpush1.bf16.msra.mxu0 0
        %1431 = vmatprep.subr.bf16.mxu0 0
        %1432 = vmatpush1.bf16.msra.mxu0 0
        %1433 = vmatprep.subr.bf16.mxu0 0
        %1434 = vmatpush1.bf16.msra.mxu0 0
        %1435 = vmatprep.subr.bf16.mxu0 0
        %1436 = vmatpush1.bf16.msra.mxu0 0
        %1437 = vmatprep.subr.bf16.mxu0 0
        %1438 = vmatpush1.bf16.msra.mxu0 0
        %1439 = vmatprep.subr.bf16.mxu0 0
        %1440 = vmatpush1.bf16.msra.mxu0 0
        %1441 = vmatprep.subr.bf16.mxu0 0
        %1442 = vmatpush1.bf16.msra.mxu0 0
        %1443 = vmatprep.subr.bf16.mxu0 0
        %1444 = vmatpush1.bf16.msra.mxu0 0
        %1445 = vmatprep.subr.bf16.mxu0 0
        %1446 = vmatpush1.bf16.msra.mxu0 0
        %1447 = vmatprep.subr.bf16.mxu0 0
        %1448 = vmatpush1.bf16.msra.mxu0 0
        %1449 = vmatprep.subr.bf16.mxu0 0
        %1450 = vmatpush1.bf16.msra.mxu0 0
        %1451 = vmatprep.subr.bf16.mxu0 0
        %1452 = vmatpush1.bf16.msra.mxu0 0
        %1453 = vmatprep.mubr.bf16.mxu0 0
        %1454 = vmatmul.mubr.bf16.gmra.mrb[0].mxu0 %v1415
        %v1455 = vpop.f32.mrb[0].mxu0
        %v1456 = vadd.f32 0.0, %v1455
        %v1457 = vpop.f32.mrb[0].mxu0
        %v1458 = vpop.f32.mrb[0].mxu0
        %v1459 = vpop.f32.mrb[0].mxu0
        %1460 = vdwg.mxu0
        %v1461 = vpack.c.bf16 %v1456, %v1456
        %1462 = vmatprep.subr.bf16.mxu0 0
        %1463 = vmatpush1.bf16.xpose.msra.mxu0 %v1284
        %1464 = vmatprep.subr.bf16.mxu0 0
        %1465 = vmatpush1.bf16.xpose.msra.mxu0 0
        %1466 = vmatprep.subr.bf16.mxu0 0
        %1467 = vmatpush1.bf16.xpose.msra.mxu0 0
        %1468 = vmatprep.subr.bf16.mxu0 0
        %1469 = vmatpush1.bf16.xpose.msra.mxu0 0
        %1470 = vmatprep.subr.bf16.mxu0 0
        %1471 = vmatpush1.bf16.xpose.msra.mxu0 0
        %1472 = vmatprep.subr.bf16.mxu0 0
        %1473 = vmatpush1.bf16.xpose.msra.mxu0 0
        %1474 = vmatprep.subr.bf16.mxu0 0
        %1475 = vmatpush1.bf16.xpose.msra.mxu0 0
        %1476 = vmatprep.subr.bf16.mxu0 0
        %1477 = vmatpush1.bf16.xpose.msra.mxu0 0
        %1478 = vmatprep.subr.bf16.mxu0 0
        %1479 = vmatpush1.bf16.xpose.msra.mxu0 0
        %1480 = vmatprep.subr.bf16.mxu0 0
        %1481 = vmatpush1.bf16.xpose.msra.mxu0 0
        %1482 = vmatprep.subr.bf16.mxu0 0
        %1483 = vmatpush1.bf16.xpose.msra.mxu0 0
        %1484 = vmatprep.subr.bf16.mxu0 0
        %1485 = vmatpush1.bf16.xpose.msra.mxu0 0
        %1486 = vmatprep.subr.bf16.mxu0 0
        %1487 = vmatpush1.bf16.xpose.msra.mxu0 0
        %1488 = vmatprep.subr.bf16.mxu0 0
        %1489 = vmatpush1.bf16.xpose.msra.mxu0 0
        %1490 = vmatprep.subr.bf16.mxu0 0
        %1491 = vmatpush1.bf16.xpose.msra.mxu0 0
        %1492 = vmatprep.subr.bf16.mxu0 0
        %1493 = vmatpush1.bf16.xpose.msra.mxu0 0
        %1494 = vmatprep.mubr.bf16.mxu0 0
        %1495 = vmatmul.mubr.bf16.gmra.mrb[0].mxu0 %v1357
        %v1496 = vpop.f32.mrb[0].mxu0
        %v1497 = vadd.f32 0.0, %v1496
        %v1498 = vpop.f32.mrb[0].mxu0
        %v1499 = vpop.f32.mrb[0].mxu0
        %v1500 = vpop.f32.mrb[0].mxu0
        %1501 = vdwg.mxu0
        %v1502 = vmul.f32 %v1497, 0.35355338
        %v1503 = vsel %vm1401, %v1502, -inf
        %1504 = vmax.xlane.f32.xlu0 %v1503
        %v1505 = vpop.xlane.xlu0 %1504
        %v1506 = vsub.f32 %v1502, %v1505
        %v1507 = vmul.f32 %v1506, 1.442695
        %v1508 = vpow.pop %v1507
        %v1509 = vsel %vm1401, %v1508, 0.0
        %1510 = vadd.xlane.f32.xlu0 %v1509
        %v1511 = vpop.xlane.xlu0 %1510
        %v1512 = vrcp.pop %v1511
        %v1513 = vmul.f32 %v1508, %v1512
        %v1514 = vpack.c.bf16 %v1513, %v1513
        %v1516 = vsel %vm1401, %v1514, 0
        %v1519 = vsel %vm1417, %v1288, 0
        %1521 = vmatprep.subr.bf16.mxu0 0
        %1522 = vmatpush1.bf16.msra.mxu0 %v1519
        %1523 = vmatprep.subr.bf16.mxu0 0
        %1524 = vmatpush1.bf16.msra.mxu0 0
        %1525 = vmatprep.subr.bf16.mxu0 0
        %1526 = vmatpush1.bf16.msra.mxu0 0
        %1527 = vmatprep.subr.bf16.mxu0 0
        %1528 = vmatpush1.bf16.msra.mxu0 0
        %1529 = vmatprep.subr.bf16.mxu0 0
        %1530 = vmatpush1.bf16.msra.mxu0 0
        %1531 = vmatprep.subr.bf16.mxu0 0
        %1532 = vmatpush1.bf16.msra.mxu0 0
        %1533 = vmatprep.subr.bf16.mxu0 0
        %1534 = vmatpush1.bf16.msra.mxu0 0
        %1535 = vmatprep.subr.bf16.mxu0 0
        %1536 = vmatpush1.bf16.msra.mxu0 0
        %1537 = vmatprep.subr.bf16.mxu0 0
        %1538 = vmatpush1.bf16.msra.mxu0 0
        %1539 = vmatprep.subr.bf16.mxu0 0
        %1540 = vmatpush1.bf16.msra.mxu0 0
        %1541 = vmatprep.subr.bf16.mxu0 0
        %1542 = vmatpush1.bf16.msra.mxu0 0
        %1543 = vmatprep.subr.bf16.mxu0 0
        %1544 = vmatpush1.bf16.msra.mxu0 0
        %1545 = vmatprep.subr.bf16.mxu0 0
        %1546 = vmatpush1.bf16.msra.mxu0 0
        %1547 = vmatprep.subr.bf16.mxu0 0
        %1548 = vmatpush1.bf16.msra.mxu0 0
        %1549 = vmatprep.subr.bf16.mxu0 0
        %1550 = vmatpush1.bf16.msra.mxu0 0
        %1551 = vmatprep.subr.bf16.mxu0 0
        %1552 = vmatpush1.bf16.msra.mxu0 0
        %1553 = vmatprep.mubr.bf16.mxu0 0
        %1554 = vmatmul.mubr.bf16.gmra.mrb[0].mxu0 %v1516
        %v1555 = vpop.f32.mrb[0].mxu0
        %v1556 = vadd.f32 0.0, %v1555
        %v1557 = vpop.f32.mrb[0].mxu0
        %v1558 = vpop.f32.mrb[0].mxu0
        %v1559 = vpop.f32.mrb[0].mxu0
        %1560 = vdwg.mxu0
        %v1561 = vpack.c.bf16 %v1556, %v1556
        %v1578 = vunpack.c.l.b16 %v1307
        %v1579 = vunpack.c.l.b16 %v1308
        %v1580 = vunpack.c.l.b16 %v1309
        %v1581 = vunpack.c.l.b16 %v1310
        %v1582 = vunpack.c.l.b16 %v1311
        %v1583 = vunpack.c.l.b16 %v1312
        %v1584 = vunpack.c.l.b16 %v1313
        %v1585 = vunpack.c.l.b16 %v1314
        %v1586 = vunpack.c.l.b16 %v1315
        %v1587 = vunpack.c.l.b16 %v1316
        %v1588 = vunpack.c.l.b16 %v1317
        %v1589 = vunpack.c.l.b16 %v1318
        %v1590 = vunpack.c.l.b16 %v1319
        %v1591 = vunpack.c.l.b16 %v1320
        %v1592 = vunpack.c.l.b16 %v1321
        %v1593 = vunpack.c.l.b16 %v1322
        %v1594 = vpack.c.b16 %v1579, %v1578
        %v1595 = vpack.c.b16 %v1581, %v1580
        %v1596 = vpack.c.b16 %v1583, %v1582
        %v1597 = vpack.c.b16 %v1585, %v1584
        %v1598 = vpack.c.b16 %v1587, %v1586
        %v1599 = vpack.c.b16 %v1589, %v1588
        %v1600 = vpack.c.b16 %v1591, %v1590
        %v1601 = vpack.c.b16 %v1593, %v1592
        %1610 = vmatprep.subr.bf16.mxu0 0
        %1611 = vmatpush1.bf16.msra.mxu0 %v1594
        %1612 = vmatprep.subr.bf16.mxu0 0
        %1613 = vmatpush1.bf16.msra.mxu0 %v1595
        %1614 = vmatprep.subr.bf16.mxu0 0
        %1615 = vmatpush1.bf16.msra.mxu0 %v1596
        %1616 = vmatprep.subr.bf16.mxu0 0
        %1617 = vmatpush1.bf16.msra.mxu0 %v1597
        %1618 = vmatprep.subr.bf16.mxu0 0
        %1619 = vmatpush1.bf16.msra.mxu0 %v1598
        %1620 = vmatprep.subr.bf16.mxu0 0
        %1621 = vmatpush1.bf16.msra.mxu0 %v1599
        %1622 = vmatprep.subr.bf16.mxu0 0
        %1623 = vmatpush1.bf16.msra.mxu0 %v1600
        %1624 = vmatprep.subr.bf16.mxu0 0
        %1625 = vmatpush1.bf16.msra.mxu0 %v1601
        %1626 = vmatprep.subr.bf16.mxu0 0
        %1627 = vmatpush1.bf16.msra.mxu0 0
        %1628 = vmatprep.subr.bf16.mxu0 0
        %1629 = vmatpush1.bf16.msra.mxu0 0
        %1630 = vmatprep.subr.bf16.mxu0 0
        %1631 = vmatpush1.bf16.msra.mxu0 0
        %1632 = vmatprep.subr.bf16.mxu0 0
        %1633 = vmatpush1.bf16.msra.mxu0 0
        %1634 = vmatprep.subr.bf16.mxu0 0
        %1635 = vmatpush1.bf16.msra.mxu0 0
        %1636 = vmatprep.subr.bf16.mxu0 0
        %1637 = vmatpush1.bf16.msra.mxu0 0
        %1638 = vmatprep.subr.bf16.mxu0 0
        %1639 = vmatpush1.bf16.msra.mxu0 0
        %1640 = vmatprep.subr.bf16.mxu0 0
        %1641 = vmatpush1.bf16.msra.mxu0 0
        %1642 = vmatprep.mubr.bf16.mxu0 0
        %1643 = vmatmul.mubr.bf16.gmra.mrb[0].mxu0 %v1561
        %v1644 = vpop.f32.mrb[0].mxu0
        %v1645 = vadd.f32 0.0, %v1644
        %v1646 = vpop.f32.mrb[0].mxu0
        %v1647 = vpop.f32.mrb[0].mxu0
        %v1648 = vpop.f32.mrb[0].mxu0
        %1649 = vdwg.mxu0
        %v1666 = vunpack.c.l.b16 %v1291
        %v1667 = vunpack.c.l.b16 %v1292
        %v1668 = vunpack.c.l.b16 %v1293
        %v1669 = vunpack.c.l.b16 %v1294
        %v1670 = vunpack.c.l.b16 %v1295
        %v1671 = vunpack.c.l.b16 %v1296
        %v1672 = vunpack.c.l.b16 %v1297
        %v1673 = vunpack.c.l.b16 %v1298
        %v1674 = vunpack.c.l.b16 %v1299
        %v1675 = vunpack.c.l.b16 %v1300
        %v1676 = vunpack.c.l.b16 %v1301
        %v1677 = vunpack.c.l.b16 %v1302
        %v1678 = vunpack.c.l.b16 %v1303
        %v1679 = vunpack.c.l.b16 %v1304
        %v1680 = vunpack.c.l.b16 %v1305
        %v1681 = vunpack.c.l.b16 %v1306
        %v1682 = vpack.c.b16 %v1667, %v1666
        %v1683 = vpack.c.b16 %v1669, %v1668
        %v1684 = vpack.c.b16 %v1671, %v1670
        %v1685 = vpack.c.b16 %v1673, %v1672
        %v1686 = vpack.c.b16 %v1675, %v1674
        %v1687 = vpack.c.b16 %v1677, %v1676
        %v1688 = vpack.c.b16 %v1679, %v1678
        %v1689 = vpack.c.b16 %v1681, %v1680
        %1698 = vmatprep.subr.bf16.mxu0 0
        %1699 = vmatpush1.bf16.msra.mxu0 %v1682
        %1700 = vmatprep.subr.bf16.mxu0 0
        %1701 = vmatpush1.bf16.msra.mxu0 %v1683
        %1702 = vmatprep.subr.bf16.mxu0 0
        %1703 = vmatpush1.bf16.msra.mxu0 %v1684
        %1704 = vmatprep.subr.bf16.mxu0 0
        %1705 = vmatpush1.bf16.msra.mxu0 %v1685
        %1706 = vmatprep.subr.bf16.mxu0 0
        %1707 = vmatpush1.bf16.msra.mxu0 %v1686
        %1708 = vmatprep.subr.bf16.mxu0 0
        %1709 = vmatpush1.bf16.msra.mxu0 %v1687
        %1710 = vmatprep.subr.bf16.mxu0 0
        %1711 = vmatpush1.bf16.msra.mxu0 %v1688
        %1712 = vmatprep.subr.bf16.mxu0 0
        %1713 = vmatpush1.bf16.msra.mxu0 %v1689
        %1714 = vmatprep.subr.bf16.mxu0 0
        %1715 = vmatpush1.bf16.msra.mxu0 0
        %1716 = vmatprep.subr.bf16.mxu0 0
        %1717 = vmatpush1.bf16.msra.mxu0 0
        %1718 = vmatprep.subr.bf16.mxu0 0
        %1719 = vmatpush1.bf16.msra.mxu0 0
        %1720 = vmatprep.subr.bf16.mxu0 0
        %1721 = vmatpush1.bf16.msra.mxu0 0
        %1722 = vmatprep.subr.bf16.mxu0 0
        %1723 = vmatpush1.bf16.msra.mxu0 0
        %1724 = vmatprep.subr.bf16.mxu0 0
        %1725 = vmatpush1.bf16.msra.mxu0 0
        %1726 = vmatprep.subr.bf16.mxu0 0
        %1727 = vmatpush1.bf16.msra.mxu0 0
        %1728 = vmatprep.subr.bf16.mxu0 0
        %1729 = vmatpush1.bf16.msra.mxu0 0
        %1730 = vmatprep.mubr.bf16.mxu0 0
        %1731 = vmatmul.mubr.bf16.gmra.mrb[0].mxu0 %v1461
        %v1732 = vpop.f32.mrb[0].mxu0
        %v1733 = vadd.f32 %v1645, %v1732
        %v1734 = vpop.f32.mrb[0].mxu0
        %v1735 = vpop.f32.mrb[0].mxu0
        %v1736 = vpop.f32.mrb[0].mxu0
        %1737 = vdwg.mxu0
        %1738 = vmatprep.subr.bf16.mxu0 0
        %1739 = vmatpush1.bf16.xpose.msra.mxu0 %v1285
        %1740 = vmatprep.subr.bf16.mxu0 0
        %1741 = vmatpush1.bf16.xpose.msra.mxu0 0
        %1742 = vmatprep.subr.bf16.mxu0 0
        %1743 = vmatpush1.bf16.xpose.msra.mxu0 0
        %1744 = vmatprep.subr.bf16.mxu0 0
        %1745 = vmatpush1.bf16.xpose.msra.mxu0 0
        %1746 = vmatprep.subr.bf16.mxu0 0
        %1747 = vmatpush1.bf16.xpose.msra.mxu0 0
        %1748 = vmatprep.subr.bf16.mxu0 0
        %1749 = vmatpush1.bf16.xpose.msra.mxu0 0
        %1750 = vmatprep.subr.bf16.mxu0 0
        %1751 = vmatpush1.bf16.xpose.msra.mxu0 0
        %1752 = vmatprep.subr.bf16.mxu0 0
        %1753 = vmatpush1.bf16.xpose.msra.mxu0 0
        %1754 = vmatprep.subr.bf16.mxu0 0
        %1755 = vmatpush1.bf16.xpose.msra.mxu0 0
        %1756 = vmatprep.subr.bf16.mxu0 0
        %1757 = vmatpush1.bf16.xpose.msra.mxu0 0
        %1758 = vmatprep.subr.bf16.mxu0 0
        %1759 = vmatpush1.bf16.xpose.msra.mxu0 0
        %1760 = vmatprep.subr.bf16.mxu0 0
        %1761 = vmatpush1.bf16.xpose.msra.mxu0 0
        %1762 = vmatprep.subr.bf16.mxu0 0
        %1763 = vmatpush1.bf16.xpose.msra.mxu0 0
        %1764 = vmatprep.subr.bf16.mxu0 0
        %1765 = vmatpush1.bf16.xpose.msra.mxu0 0
        %1766 = vmatprep.subr.bf16.mxu0 0
        %1767 = vmatpush1.bf16.xpose.msra.mxu0 0
        %1768 = vmatprep.subr.bf16.mxu0 0
        %1769 = vmatpush1.bf16.xpose.msra.mxu0 0
        %1770 = vmatprep.mubr.bf16.mxu0 0
        %1771 = vmatmul.mubr.bf16.gmra.mrb[0].mxu0 %v1358
        %v1772 = vpop.f32.mrb[0].mxu0
        %v1773 = vadd.f32 0.0, %v1772
        %v1774 = vpop.f32.mrb[0].mxu0
        %v1775 = vpop.f32.mrb[0].mxu0
        %v1776 = vpop.f32.mrb[0].mxu0
        %1777 = vdwg.mxu0
        %v1778 = vmul.f32 %v1773, 0.35355338
        %v1779 = vsel %vm1401, %v1778, -inf
        %1780 = vmax.xlane.f32.xlu0 %v1779
        %v1781 = vpop.xlane.xlu0 %1780
        %v1782 = vsub.f32 %v1778, %v1781
        %v1783 = vmul.f32 %v1782, 1.442695
        %v1784 = vpow.pop %v1783
        %v1785 = vsel %vm1401, %v1784, 0.0
        %1786 = vadd.xlane.f32.xlu0 %v1785
        %v1787 = vpop.xlane.xlu0 %1786
        %v1788 = vrcp.pop %v1787
        %v1789 = vmul.f32 %v1784, %v1788
        %v1790 = vpack.c.bf16 %v1789, %v1789
        %v1792 = vsel %vm1401, %v1790, 0
        %v1795 = vsel %vm1417, %v1289, 0
        %1797 = vmatprep.subr.bf16.mxu0 0
        %1798 = vmatpush1.bf16.msra.mxu0 %v1795
        %1799 = vmatprep.subr.bf16.mxu0 0
        %1800 = vmatpush1.bf16.msra.mxu0 0
        %1801 = vmatprep.subr.bf16.mxu0 0
        %1802 = vmatpush1.bf16.msra.mxu0 0
        %1803 = vmatprep.subr.bf16.mxu0 0
        %1804 = vmatpush1.bf16.msra.mxu0 0
        %1805 = vmatprep.subr.bf16.mxu0 0
        %1806 = vmatpush1.bf16.msra.mxu0 0
        %1807 = vmatprep.subr.bf16.mxu0 0
        %1808 = vmatpush1.bf16.msra.mxu0 0
        %1809 = vmatprep.subr.bf16.mxu0 0
        %1810 = vmatpush1.bf16.msra.mxu0 0
        %1811 = vmatprep.subr.bf16.mxu0 0
        %1812 = vmatpush1.bf16.msra.mxu0 0
        %1813 = vmatprep.subr.bf16.mxu0 0
        %1814 = vmatpush1.bf16.msra.mxu0 0
        %1815 = vmatprep.subr.bf16.mxu0 0
        %1816 = vmatpush1.bf16.msra.mxu0 0
        %1817 = vmatprep.subr.bf16.mxu0 0
        %1818 = vmatpush1.bf16.msra.mxu0 0
        %1819 = vmatprep.subr.bf16.mxu0 0
        %1820 = vmatpush1.bf16.msra.mxu0 0
        %1821 = vmatprep.subr.bf16.mxu0 0
        %1822 = vmatpush1.bf16.msra.mxu0 0
        %1823 = vmatprep.subr.bf16.mxu0 0
        %1824 = vmatpush1.bf16.msra.mxu0 0
        %1825 = vmatprep.subr.bf16.mxu0 0
        %1826 = vmatpush1.bf16.msra.mxu0 0
        %1827 = vmatprep.subr.bf16.mxu0 0
        %1828 = vmatpush1.bf16.msra.mxu0 0
        %1829 = vmatprep.mubr.bf16.mxu0 0
        %1830 = vmatmul.mubr.bf16.gmra.mrb[0].mxu0 %v1792
        %v1831 = vpop.f32.mrb[0].mxu0
        %v1832 = vadd.f32 0.0, %v1831
        %v1833 = vpop.f32.mrb[0].mxu0
        %v1834 = vpop.f32.mrb[0].mxu0
        %v1835 = vpop.f32.mrb[0].mxu0
        %1836 = vdwg.mxu0
        %v1837 = vpack.c.bf16 %v1832, %v1832
        %v1854 = vunpack.c.l.b16 %v1323
        %v1855 = vunpack.c.l.b16 %v1324
        %v1856 = vunpack.c.l.b16 %v1325
        %v1857 = vunpack.c.l.b16 %v1326
        %v1858 = vunpack.c.l.b16 %v1327
        %v1859 = vunpack.c.l.b16 %v1328
        %v1860 = vunpack.c.l.b16 %v1329
        %v1861 = vunpack.c.l.b16 %v1330
        %v1862 = vunpack.c.l.b16 %v1331
        %v1863 = vunpack.c.l.b16 %v1332
        %v1864 = vunpack.c.l.b16 %v1333
        %v1865 = vunpack.c.l.b16 %v1334
        %v1866 = vunpack.c.l.b16 %v1335
        %v1867 = vunpack.c.l.b16 %v1336
        %v1868 = vunpack.c.l.b16 %v1337
        %v1869 = vunpack.c.l.b16 %v1338
        %v1870 = vpack.c.b16 %v1855, %v1854
        %v1871 = vpack.c.b16 %v1857, %v1856
        %v1872 = vpack.c.b16 %v1859, %v1858
        %v1873 = vpack.c.b16 %v1861, %v1860
        %v1874 = vpack.c.b16 %v1863, %v1862
        %v1875 = vpack.c.b16 %v1865, %v1864
        %v1876 = vpack.c.b16 %v1867, %v1866
        %v1877 = vpack.c.b16 %v1869, %v1868
        %1886 = vmatprep.subr.bf16.mxu0 0
        %1887 = vmatpush1.bf16.msra.mxu0 %v1870
        %1888 = vmatprep.subr.bf16.mxu0 0
        %1889 = vmatpush1.bf16.msra.mxu0 %v1871
        %1890 = vmatprep.subr.bf16.mxu0 0
        %1891 = vmatpush1.bf16.msra.mxu0 %v1872
        %1892 = vmatprep.subr.bf16.mxu0 0
        %1893 = vmatpush1.bf16.msra.mxu0 %v1873
        %1894 = vmatprep.subr.bf16.mxu0 0
        %1895 = vmatpush1.bf16.msra.mxu0 %v1874
        %1896 = vmatprep.subr.bf16.mxu0 0
        %1897 = vmatpush1.bf16.msra.mxu0 %v1875
        %1898 = vmatprep.subr.bf16.mxu0 0
        %1899 = vmatpush1.bf16.msra.mxu0 %v1876
        %1900 = vmatprep.subr.bf16.mxu0 0
        %1901 = vmatpush1.bf16.msra.mxu0 %v1877
        %1902 = vmatprep.subr.bf16.mxu0 0
        %1903 = vmatpush1.bf16.msra.mxu0 0
        %1904 = vmatprep.subr.bf16.mxu0 0
        %1905 = vmatpush1.bf16.msra.mxu0 0
        %1906 = vmatprep.subr.bf16.mxu0 0
        %1907 = vmatpush1.bf16.msra.mxu0 0
        %1908 = vmatprep.subr.bf16.mxu0 0
        %1909 = vmatpush1.bf16.msra.mxu0 0
        %1910 = vmatprep.subr.bf16.mxu0 0
        %1911 = vmatpush1.bf16.msra.mxu0 0
        %1912 = vmatprep.subr.bf16.mxu0 0
        %1913 = vmatpush1.bf16.msra.mxu0 0
        %1914 = vmatprep.subr.bf16.mxu0 0
        %1915 = vmatpush1.bf16.msra.mxu0 0
        %1916 = vmatprep.subr.bf16.mxu0 0
        %1917 = vmatpush1.bf16.msra.mxu0 0
        %1918 = vmatprep.mubr.bf16.mxu0 0
        %1919 = vmatmul.mubr.bf16.gmra.mrb[0].mxu0 %v1837
        %v1920 = vpop.f32.mrb[0].mxu0
        %v1921 = vadd.f32 0.0, %v1920
        %v1922 = vpop.f32.mrb[0].mxu0
        %v1923 = vpop.f32.mrb[0].mxu0
        %v1924 = vpop.f32.mrb[0].mxu0
        %1925 = vdwg.mxu0
        %v1926 = vadd.f32 %v1733, %v1921
        %1927 = vmatprep.subr.bf16.mxu0 0
        %1928 = vmatpush1.bf16.xpose.msra.mxu0 %v1286
        %1929 = vmatprep.subr.bf16.mxu0 0
        %1930 = vmatpush1.bf16.xpose.msra.mxu0 0
        %1931 = vmatprep.subr.bf16.mxu0 0
        %1932 = vmatpush1.bf16.xpose.msra.mxu0 0
        %1933 = vmatprep.subr.bf16.mxu0 0
        %1934 = vmatpush1.bf16.xpose.msra.mxu0 0
        %1935 = vmatprep.subr.bf16.mxu0 0
        %1936 = vmatpush1.bf16.xpose.msra.mxu0 0
        %1937 = vmatprep.subr.bf16.mxu0 0
        %1938 = vmatpush1.bf16.xpose.msra.mxu0 0
        %1939 = vmatprep.subr.bf16.mxu0 0
        %1940 = vmatpush1.bf16.xpose.msra.mxu0 0
        %1941 = vmatprep.subr.bf16.mxu0 0
        %1942 = vmatpush1.bf16.xpose.msra.mxu0 0
        %1943 = vmatprep.subr.bf16.mxu0 0
        %1944 = vmatpush1.bf16.xpose.msra.mxu0 0
        %1945 = vmatprep.subr.bf16.mxu0 0
        %1946 = vmatpush1.bf16.xpose.msra.mxu0 0
        %1947 = vmatprep.subr.bf16.mxu0 0
        %1948 = vmatpush1.bf16.xpose.msra.mxu0 0
        %1949 = vmatprep.subr.bf16.mxu0 0
        %1950 = vmatpush1.bf16.xpose.msra.mxu0 0
        %1951 = vmatprep.subr.bf16.mxu0 0
        %1952 = vmatpush1.bf16.xpose.msra.mxu0 0
        %1953 = vmatprep.subr.bf16.mxu0 0
        %1954 = vmatpush1.bf16.xpose.msra.mxu0 0
        %1955 = vmatprep.subr.bf16.mxu0 0
        %1956 = vmatpush1.bf16.xpose.msra.mxu0 0
        %1957 = vmatprep.subr.bf16.mxu0 0
        %1958 = vmatpush1.bf16.xpose.msra.mxu0 0
        %1959 = vmatprep.mubr.bf16.mxu0 0
        %1960 = vmatmul.mubr.bf16.gmra.mrb[0].mxu0 %v1359
        %v1961 = vpop.f32.mrb[0].mxu0
        %v1962 = vadd.f32 0.0, %v1961
        %v1963 = vpop.f32.mrb[0].mxu0
        %v1964 = vpop.f32.mrb[0].mxu0
        %v1965 = vpop.f32.mrb[0].mxu0
        %1966 = vdwg.mxu0
        %v1967 = vmul.f32 %v1962, 0.35355338
        %v1968 = vsel %vm1401, %v1967, -inf
        %1969 = vmax.xlane.f32.xlu0 %v1968
        %v1970 = vpop.xlane.xlu0 %1969
        %v1971 = vsub.f32 %v1967, %v1970
        %v1972 = vmul.f32 %v1971, 1.442695
        %v1973 = vpow.pop %v1972
        %v1974 = vsel %vm1401, %v1973, 0.0
        %1975 = vadd.xlane.f32.xlu0 %v1974
        %v1976 = vpop.xlane.xlu0 %1975
        %v1977 = vrcp.pop %v1976
        %v1978 = vmul.f32 %v1973, %v1977
        %v1979 = vpack.c.bf16 %v1978, %v1978
        %v1981 = vsel %vm1401, %v1979, 0
        %v1984 = vsel %vm1417, %v1290, 0
        %1986 = vmatprep.subr.bf16.mxu0 0
        %1987 = vmatpush1.bf16.msra.mxu0 %v1984
        %1988 = vmatprep.subr.bf16.mxu0 0
        %1989 = vmatpush1.bf16.msra.mxu0 0
        %1990 = vmatprep.subr.bf16.mxu0 0
        %1991 = vmatpush1.bf16.msra.mxu0 0
        %1992 = vmatprep.subr.bf16.mxu0 0
        %1993 = vmatpush1.bf16.msra.mxu0 0
        %1994 = vmatprep.subr.bf16.mxu0 0
        %1995 = vmatpush1.bf16.msra.mxu0 0
        %1996 = vmatprep.subr.bf16.mxu0 0
        %1997 = vmatpush1.bf16.msra.mxu0 0
        %1998 = vmatprep.subr.bf16.mxu0 0
        %1999 = vmatpush1.bf16.msra.mxu0 0
        %2000 = vmatprep.subr.bf16.mxu0 0
        %2001 = vmatpush1.bf16.msra.mxu0 0
        %2002 = vmatprep.subr.bf16.mxu0 0
        %2003 = vmatpush1.bf16.msra.mxu0 0
        %2004 = vmatprep.subr.bf16.mxu0 0
        %2005 = vmatpush1.bf16.msra.mxu0 0
        %2006 = vmatprep.subr.bf16.mxu0 0
        %2007 = vmatpush1.bf16.msra.mxu0 0
        %2008 = vmatprep.subr.bf16.mxu0 0
        %2009 = vmatpush1.bf16.msra.mxu0 0
        %2010 = vmatprep.subr.bf16.mxu0 0
        %2011 = vmatpush1.bf16.msra.mxu0 0
        %2012 = vmatprep.subr.bf16.mxu0 0
        %2013 = vmatpush1.bf16.msra.mxu0 0
        %2014 = vmatprep.subr.bf16.mxu0 0
        %2015 = vmatpush1.bf16.msra.mxu0 0
        %2016 = vmatprep.subr.bf16.mxu0 0
        %2017 = vmatpush1.bf16.msra.mxu0 0
        %2018 = vmatprep.mubr.bf16.mxu0 0
        %2019 = vmatmul.mubr.bf16.gmra.mrb[0].mxu0 %v1981
        %v2020 = vpop.f32.mrb[0].mxu0
        %v2021 = vadd.f32 0.0, %v2020
        %v2022 = vpop.f32.mrb[0].mxu0
        %v2023 = vpop.f32.mrb[0].mxu0
        %v2024 = vpop.f32.mrb[0].mxu0
        %2025 = vdwg.mxu0
        %v2026 = vpack.c.bf16 %v2021, %v2021
        %v2043 = vunpack.c.l.b16 %v1339
        %v2044 = vunpack.c.l.b16 %v1340
        %v2045 = vunpack.c.l.b16 %v1341
        %v2046 = vunpack.c.l.b16 %v1342
        %v2047 = vunpack.c.l.b16 %v1343
        %v2048 = vunpack.c.l.b16 %v1344
        %v2049 = vunpack.c.l.b16 %v1345
        %v2050 = vunpack.c.l.b16 %v1346
        %v2051 = vunpack.c.l.b16 %v1347
        %v2052 = vunpack.c.l.b16 %v1348
        %v2053 = vunpack.c.l.b16 %v1349
        %v2054 = vunpack.c.l.b16 %v1350
        %v2055 = vunpack.c.l.b16 %v1351
        %v2056 = vunpack.c.l.b16 %v1352
        %v2057 = vunpack.c.l.b16 %v1353
        %v2058 = vunpack.c.l.b16 %v1354
        %v2059 = vpack.c.b16 %v2044, %v2043
        %v2060 = vpack.c.b16 %v2046, %v2045
        %v2061 = vpack.c.b16 %v2048, %v2047
        %v2062 = vpack.c.b16 %v2050, %v2049
        %v2063 = vpack.c.b16 %v2052, %v2051
        %v2064 = vpack.c.b16 %v2054, %v2053
        %v2065 = vpack.c.b16 %v2056, %v2055
        %v2066 = vpack.c.b16 %v2058, %v2057
        %2075 = vmatprep.subr.bf16.mxu0 0
        %2076 = vmatpush1.bf16.msra.mxu0 %v2059
        %2077 = vmatprep.subr.bf16.mxu0 0
        %2078 = vmatpush1.bf16.msra.mxu0 %v2060
        %2079 = vmatprep.subr.bf16.mxu0 0
        %2080 = vmatpush1.bf16.msra.mxu0 %v2061
        %2081 = vmatprep.subr.bf16.mxu0 0
        %2082 = vmatpush1.bf16.msra.mxu0 %v2062
        %2083 = vmatprep.subr.bf16.mxu0 0
        %2084 = vmatpush1.bf16.msra.mxu0 %v2063
        %2085 = vmatprep.subr.bf16.mxu0 0
        %2086 = vmatpush1.bf16.msra.mxu0 %v2064
        %2087 = vmatprep.subr.bf16.mxu0 0
        %2088 = vmatpush1.bf16.msra.mxu0 %v2065
        %2089 = vmatprep.subr.bf16.mxu0 0
        %2090 = vmatpush1.bf16.msra.mxu0 %v2066
        %2091 = vmatprep.subr.bf16.mxu0 0
        %2092 = vmatpush1.bf16.msra.mxu0 0
        %2093 = vmatprep.subr.bf16.mxu0 0
        %2094 = vmatpush1.bf16.msra.mxu0 0
        %2095 = vmatprep.subr.bf16.mxu0 0
        %2096 = vmatpush1.bf16.msra.mxu0 0
        %2097 = vmatprep.subr.bf16.mxu0 0
        %2098 = vmatpush1.bf16.msra.mxu0 0
        %2099 = vmatprep.subr.bf16.mxu0 0
        %2100 = vmatpush1.bf16.msra.mxu0 0
        %2101 = vmatprep.subr.bf16.mxu0 0
        %2102 = vmatpush1.bf16.msra.mxu0 0
        %2103 = vmatprep.subr.bf16.mxu0 0
        %2104 = vmatpush1.bf16.msra.mxu0 0
        %2105 = vmatprep.subr.bf16.mxu0 0
        %2106 = vmatpush1.bf16.msra.mxu0 0
        %2107 = vmatprep.mubr.bf16.mxu0 0
        %2108 = vmatmul.mubr.bf16.gmra.mrb[0].mxu0 %v2026
        %v2109 = vpop.f32.mrb[0].mxu0
        %v2110 = vadd.f32 0.0, %v2109
        %v2111 = vpop.f32.mrb[0].mxu0
        %v2112 = vpop.f32.mrb[0].mxu0
        %v2113 = vpop.f32.mrb[0].mxu0
        %2114 = vdwg.mxu0
        %v2115 = vadd.f32 %v1926, %v2110
        %v2117 = vlaneseq
        %v2118 = vshrl.u32 %v2117, 7
        %v2119 = vsub.s32 0, %v2118
        %v2120 = vrot.slane %v1355, %v2119
        %v2122 = vadd.f32 %v2115, %v2120
        %v2123 = vadd.f32 %v793, %v2122
        %v2124 = vld [vmem:[%s8] sm:$0x1]
        %v2125 = vld [vmem:[%s9] sm:$0x1]
        %v2126 = vsel %vm796, %v2123, 0.0
        %2127 = vadd.xlane.f32.xlu0 %v2126
        %v2128 = vpop.xlane.xlu0 %2127
        %v2129 = vmul.f32 %v2128, %v800
        %v2130 = vsub.f32 %v2123, %v2129
        %v2131 = vmul.f32 %v2130, %v2130
        %v2132 = vsel %vm796, %v2131, 0.0
        %2133 = vadd.xlane.f32.xlu0 %v2132
        %v2134 = vpop.xlane.xlu0 %2133
        %v2135 = vmul.f32 %v2134, %v800
        %v2136 = vadd.f32 %v2135, 1e-05
        %v2137 = vrsqrt.pop %v2136
        %v2138 = vmul.f32 %v2130, %v2137
        %v2140 = vlaneseq
        %v2141 = vshrl.u32 %v2140, 7
        %v2142 = vsub.s32 0, %v2141
        %v2143 = vrot.slane %v2124, %v2142
        %v2145 = vmul.f32 %v2138, %v2143
        %v2147 = vlaneseq
        %v2148 = vshrl.u32 %v2147, 7
        %v2149 = vsub.s32 0, %v2148
        %v2150 = vrot.slane %v2125, %v2149
        %v2152 = vadd.f32 %v2145, %v2150
        %v2153 = vpack.c.bf16 %v2152, %v2152
        %v2154 = vld [vmem:[%s10] sm:$0xff]
        %v2155 = vld [vmem:[%s10 + $0x8] sm:$0xff]
        %v2156 = vld [vmem:[%s10 + $0x10] sm:$0xff]
        %v2157 = vld [vmem:[%s10 + $0x18] sm:$0xff]
        %v2158 = vld [vmem:[%s10 + $0x20] sm:$0xff]
        %v2159 = vld [vmem:[%s10 + $0x28] sm:$0xff]
        %v2160 = vld [vmem:[%s10 + $0x30] sm:$0xff]
        %v2161 = vld [vmem:[%s10 + $0x38] sm:$0xff]
        %v2162 = vld [vmem:[%s11] sm:$0xf]
        %v2164 = vlaneseq
        %v2165 = vshrl.u32 %v2164, 7
        %v2166 = vsub.s32 0, %v2165
        %v2167 = vrot.slane %v2162, %v2166
        %v2168 = vlaneseq
        %v2169 = vshrl.u32 %v2168, 7
        %v2170 = vsub.s32 1, %v2169
        %v2171 = vrot.slane %v2162, %v2170
        %v2172 = vlaneseq
        %v2173 = vshrl.u32 %v2172, 7
        %v2174 = vsub.s32 2, %v2173
        %v2175 = vrot.slane %v2162, %v2174
        %v2176 = vlaneseq
        %v2177 = vshrl.u32 %v2176, 7
        %v2178 = vsub.s32 3, %v2177
        %v2179 = vrot.slane %v2162, %v2178
        %v2192 = vunpack.c.l.b16 %v2154
        %v2193 = vunpack.c.h.b16 %v2154
        %v2194 = vunpack.c.l.b16 %v2155
        %v2195 = vunpack.c.h.b16 %v2155
        %v2196 = vunpack.c.l.b16 %v2156
        %v2197 = vunpack.c.h.b16 %v2156
        %v2198 = vunpack.c.l.b16 %v2157
        %v2199 = vunpack.c.h.b16 %v2157
        %v2200 = vunpack.c.l.b16 %v2158
        %v2201 = vunpack.c.h.b16 %v2158
        %v2202 = vunpack.c.l.b16 %v2159
        %v2203 = vunpack.c.h.b16 %v2159
        %v2204 = vunpack.c.l.b16 %v2160
        %v2205 = vunpack.c.h.b16 %v2160
        %v2206 = vunpack.c.l.b16 %v2161
        %v2207 = vunpack.c.h.b16 %v2161
        %v2208 = vpack.c.b16 %v2196, %v2192
        %v2209 = vpack.c.b16 %v2197, %v2193
        %v2210 = vpack.c.b16 %v2198, %v2194
        %v2211 = vpack.c.b16 %v2199, %v2195
        %v2212 = vpack.c.b16 %v2204, %v2200
        %v2213 = vpack.c.b16 %v2205, %v2201
        %v2214 = vpack.c.b16 %v2206, %v2202
        %v2215 = vpack.c.b16 %v2207, %v2203
        %v2225 = vsel %vm796, %v2153, 0
        %2227 = vmatprep.subr.bf16.mxu0 %v2209
        %2228 = vmatpush1.bf16.msra.mxu0 %v2208
        %2229 = vmatprep.subr.bf16.mxu0 %v2213
        %2230 = vmatpush1.bf16.msra.mxu0 %v2212
        %2231 = vmatprep.subr.bf16.mxu0 0
        %2232 = vmatpush1.bf16.msra.mxu0 0
        %2233 = vmatprep.subr.bf16.mxu0 0
        %2234 = vmatpush1.bf16.msra.mxu0 0
        %2235 = vmatprep.subr.bf16.mxu0 0
        %2236 = vmatpush1.bf16.msra.mxu0 0
        %2237 = vmatprep.subr.bf16.mxu0 0
        %2238 = vmatpush1.bf16.msra.mxu0 0
        %2239 = vmatprep.subr.bf16.mxu0 0
        %2240 = vmatpush1.bf16.msra.mxu0 0
        %2241 = vmatprep.subr.bf16.mxu0 0
        %2242 = vmatpush1.bf16.msra.mxu0 0
        %2243 = vmatprep.subr.bf16.mxu0 0
        %2244 = vmatpush1.bf16.msra.mxu0 0
        %2245 = vmatprep.subr.bf16.mxu0 0
        %2246 = vmatpush1.bf16.msra.mxu0 0
        %2247 = vmatprep.subr.bf16.mxu0 0
        %2248 = vmatpush1.bf16.msra.mxu0 0
        %2249 = vmatprep.subr.bf16.mxu0 0
        %2250 = vmatpush1.bf16.msra.mxu0 0
        %2251 = vmatprep.subr.bf16.mxu0 0
        %2252 = vmatpush1.bf16.msra.mxu0 0
        %2253 = vmatprep.subr.bf16.mxu0 0
        %2254 = vmatpush1.bf16.msra.mxu0 0
        %2255 = vmatprep.subr.bf16.mxu0 0
        %2256 = vmatpush1.bf16.msra.mxu0 0
        %2257 = vmatprep.subr.bf16.mxu0 0
        %2258 = vmatpush1.bf16.msra.mxu0 0
        %2259 = vmatprep.mubr.bf16.mxu0 0
        %2260 = vmatmul.mubr.bf16.gmra.mrb[0].mxu0 %v2225
        %v2261 = vpop.f32.mrb[0].mxu0
        %v2262 = vadd.f32 %v2167, %v2261
        %v2263 = vpop.f32.mrb[0].mxu0
        %v2264 = vadd.f32 %v2171, %v2263
        %v2265 = vpop.f32.mrb[0].mxu0
        %v2266 = vpop.f32.mrb[0].mxu0
        %2267 = vdwg.mxu0
        %2268 = vmatprep.subr.bf16.mxu0 %v2211
        %2269 = vmatpush1.bf16.msra.mxu0 %v2210
        %2270 = vmatprep.subr.bf16.mxu0 %v2215
        %2271 = vmatpush1.bf16.msra.mxu0 %v2214
        %2272 = vmatprep.subr.bf16.mxu0 0
        %2273 = vmatpush1.bf16.msra.mxu0 0
        %2274 = vmatprep.subr.bf16.mxu0 0
        %2275 = vmatpush1.bf16.msra.mxu0 0
        %2276 = vmatprep.subr.bf16.mxu0 0
        %2277 = vmatpush1.bf16.msra.mxu0 0
        %2278 = vmatprep.subr.bf16.mxu0 0
        %2279 = vmatpush1.bf16.msra.mxu0 0
        %2280 = vmatprep.subr.bf16.mxu0 0
        %2281 = vmatpush1.bf16.msra.mxu0 0
        %2282 = vmatprep.subr.bf16.mxu0 0
        %2283 = vmatpush1.bf16.msra.mxu0 0
        %2284 = vmatprep.subr.bf16.mxu0 0
        %2285 = vmatpush1.bf16.msra.mxu0 0
        %2286 = vmatprep.subr.bf16.mxu0 0
        %2287 = vmatpush1.bf16.msra.mxu0 0
        %2288 = vmatprep.subr.bf16.mxu0 0
        %2289 = vmatpush1.bf16.msra.mxu0 0
        %2290 = vmatprep.subr.bf16.mxu0 0
        %2291 = vmatpush1.bf16.msra.mxu0 0
        %2292 = vmatprep.subr.bf16.mxu0 0
        %2293 = vmatpush1.bf16.msra.mxu0 0
        %2294 = vmatprep.subr.bf16.mxu0 0
        %2295 = vmatpush1.bf16.msra.mxu0 0
        %2296 = vmatprep.subr.bf16.mxu0 0
        %2297 = vmatpush1.bf16.msra.mxu0 0
        %2298 = vmatprep.subr.bf16.mxu0 0
        %2299 = vmatpush1.bf16.msra.mxu0 0
        %2300 = vmatprep.mubr.bf16.mxu0 0
        %2301 = vmatmul.mubr.bf16.gmra.mrb[0].mxu0 %v2225
        %v2302 = vpop.f32.mrb[0].mxu0
        %v2303 = vadd.f32 %v2175, %v2302
        %v2304 = vpop.f32.mrb[0].mxu0
        %v2305 = vadd.f32 %v2179, %v2304
        %v2306 = vpop.f32.mrb[0].mxu0
        %v2307 = vpop.f32.mrb[0].mxu0
        %2308 = vdwg.mxu0
        %v2309 = vld [vmem:[%s12] sm:$0xff]
        %v2310 = vld [vmem:[%s12 + $0x8] sm:$0xff]
        %v2311 = vld [vmem:[%s12 + $0x10] sm:$0xff]
        %v2312 = vld [vmem:[%s12 + $0x18] sm:$0xff]
        %v2313 = vld [vmem:[%s12 + $0x20] sm:$0xff]
        %v2314 = vld [vmem:[%s12 + $0x28] sm:$0xff]
        %v2315 = vld [vmem:[%s12 + $0x30] sm:$0xff]
        %v2316 = vld [vmem:[%s12 + $0x38] sm:$0xff]
        %v2317 = vld [vmem:[%s12 + $0x40] sm:$0xff]
        %v2318 = vld [vmem:[%s12 + $0x48] sm:$0xff]
        %v2319 = vld [vmem:[%s12 + $0x50] sm:$0xff]
        %v2320 = vld [vmem:[%s12 + $0x58] sm:$0xff]
        %v2321 = vld [vmem:[%s12 + $0x60] sm:$0xff]
        %v2322 = vld [vmem:[%s12 + $0x68] sm:$0xff]
        %v2323 = vld [vmem:[%s12 + $0x70] sm:$0xff]
        %v2324 = vld [vmem:[%s12 + $0x78] sm:$0xff]
        %v2325 = vld [vmem:[%s13] sm:$0xff]
        %v2327 = vlaneseq
        %v2328 = vshrl.u32 %v2327, 7
        %v2329 = vsub.s32 0, %v2328
        %v2330 = vrot.slane %v2325, %v2329
        %v2331 = vlaneseq
        %v2332 = vshrl.u32 %v2331, 7
        %v2333 = vsub.s32 1, %v2332
        %v2334 = vrot.slane %v2325, %v2333
        %v2335 = vlaneseq
        %v2336 = vshrl.u32 %v2335, 7
        %v2337 = vsub.s32 2, %v2336
        %v2338 = vrot.slane %v2325, %v2337
        %v2339 = vlaneseq
        %v2340 = vshrl.u32 %v2339, 7
        %v2341 = vsub.s32 3, %v2340
        %v2342 = vrot.slane %v2325, %v2341
        %v2343 = vlaneseq
        %v2344 = vshrl.u32 %v2343, 7
        %v2345 = vsub.s32 4, %v2344
        %v2346 = vrot.slane %v2325, %v2345
        %v2347 = vlaneseq
        %v2348 = vshrl.u32 %v2347, 7
        %v2349 = vsub.s32 5, %v2348
        %v2350 = vrot.slane %v2325, %v2349
        %v2351 = vlaneseq
        %v2352 = vshrl.u32 %v2351, 7
        %v2353 = vsub.s32 6, %v2352
        %v2354 = vrot.slane %v2325, %v2353
        %v2355 = vlaneseq
        %v2356 = vshrl.u32 %v2355, 7
        %v2357 = vsub.s32 7, %v2356
        %v2358 = vrot.slane %v2325, %v2357
        %v2383 = vunpack.c.l.b16 %v2309
        %v2384 = vunpack.c.h.b16 %v2309
        %v2385 = vunpack.c.l.b16 %v2310
        %v2386 = vunpack.c.h.b16 %v2310
        %v2387 = vunpack.c.l.b16 %v2311
        %v2388 = vunpack.c.h.b16 %v2311
        %v2389 = vunpack.c.l.b16 %v2312
        %v2390 = vunpack.c.h.b16 %v2312
        %v2391 = vunpack.c.l.b16 %v2313
        %v2392 = vunpack.c.h.b16 %v2313
        %v2393 = vunpack.c.l.b16 %v2314
        %v2394 = vunpack.c.h.b16 %v2314
        %v2395 = vunpack.c.l.b16 %v2315
        %v2396 = vunpack.c.h.b16 %v2315
        %v2397 = vunpack.c.l.b16 %v2316
        %v2398 = vunpack.c.h.b16 %v2316
        %v2399 = vunpack.c.l.b16 %v2317
        %v2400 = vunpack.c.h.b16 %v2317
        %v2401 = vunpack.c.l.b16 %v2318
        %v2402 = vunpack.c.h.b16 %v2318
        %v2403 = vunpack.c.l.b16 %v2319
        %v2404 = vunpack.c.h.b16 %v2319
        %v2405 = vunpack.c.l.b16 %v2320
        %v2406 = vunpack.c.h.b16 %v2320
        %v2407 = vunpack.c.l.b16 %v2321
        %v2408 = vunpack.c.h.b16 %v2321
        %v2409 = vunpack.c.l.b16 %v2322
        %v2410 = vunpack.c.h.b16 %v2322
        %v2411 = vunpack.c.l.b16 %v2323
        %v2412 = vunpack.c.h.b16 %v2323
        %v2413 = vunpack.c.l.b16 %v2324
        %v2414 = vunpack.c.h.b16 %v2324
        %v2415 = vpack.c.b16 %v2391, %v2383
        %v2416 = vpack.c.b16 %v2392, %v2384
        %v2417 = vpack.c.b16 %v2393, %v2385
        %v2418 = vpack.c.b16 %v2394, %v2386
        %v2419 = vpack.c.b16 %v2395, %v2387
        %v2420 = vpack.c.b16 %v2396, %v2388
        %v2421 = vpack.c.b16 %v2397, %v2389
        %v2422 = vpack.c.b16 %v2398, %v2390
        %v2423 = vpack.c.b16 %v2407, %v2399
        %v2424 = vpack.c.b16 %v2408, %v2400
        %v2425 = vpack.c.b16 %v2409, %v2401
        %v2426 = vpack.c.b16 %v2410, %v2402
        %v2427 = vpack.c.b16 %v2411, %v2403
        %v2428 = vpack.c.b16 %v2412, %v2404
        %v2429 = vpack.c.b16 %v2413, %v2405
        %v2430 = vpack.c.b16 %v2414, %v2406
        %v2448 = vsel %vm796, %v792, 0
        %2450 = vmatprep.subr.bf16.mxu0 %v2416
        %2451 = vmatpush1.bf16.msra.mxu0 %v2415
        %2452 = vmatprep.subr.bf16.mxu0 %v2424
        %2453 = vmatpush1.bf16.msra.mxu0 %v2423
        %2454 = vmatprep.subr.bf16.mxu0 0
        %2455 = vmatpush1.bf16.msra.mxu0 0
        %2456 = vmatprep.subr.bf16.mxu0 0
        %2457 = vmatpush1.bf16.msra.mxu0 0
        %2458 = vmatprep.subr.bf16.mxu0 0
        %2459 = vmatpush1.bf16.msra.mxu0 0
        %2460 = vmatprep.subr.bf16.mxu0 0
        %2461 = vmatpush1.bf16.msra.mxu0 0
        %2462 = vmatprep.subr.bf16.mxu0 0
        %2463 = vmatpush1.bf16.msra.mxu0 0
        %2464 = vmatprep.subr.bf16.mxu0 0
        %2465 = vmatpush1.bf16.msra.mxu0 0
        %2466 = vmatprep.subr.bf16.mxu0 0
        %2467 = vmatpush1.bf16.msra.mxu0 0
        %2468 = vmatprep.subr.bf16.mxu0 0
        %2469 = vmatpush1.bf16.msra.mxu0 0
        %2470 = vmatprep.subr.bf16.mxu0 0
        %2471 = vmatpush1.bf16.msra.mxu0 0
        %2472 = vmatprep.subr.bf16.mxu0 0
        %2473 = vmatpush1.bf16.msra.mxu0 0
        %2474 = vmatprep.subr.bf16.mxu0 0
        %2475 = vmatpush1.bf16.msra.mxu0 0
        %2476 = vmatprep.subr.bf16.mxu0 0
        %2477 = vmatpush1.bf16.msra.mxu0 0
        %2478 = vmatprep.subr.bf16.mxu0 0
        %2479 = vmatpush1.bf16.msra.mxu0 0
        %2480 = vmatprep.subr.bf16.mxu0 0
        %2481 = vmatpush1.bf16.msra.mxu0 0
        %2482 = vmatprep.mubr.bf16.mxu0 0
        %2483 = vmatmul.mubr.bf16.gmra.mrb[0].mxu0 %v2448
        %v2484 = vpop.f32.mrb[0].mxu0
        %v2485 = vadd.f32 %v2330, %v2484
        %v2486 = vpop.f32.mrb[0].mxu0
        %v2487 = vadd.f32 %v2334, %v2486
        %v2488 = vpop.f32.mrb[0].mxu0
        %v2489 = vadd.f32 %v2330, %v2488
        %v2490 = vpop.f32.mrb[0].mxu0
        %v2491 = vadd.f32 %v2334, %v2490
        %2492 = vdwg.mxu0
        %2493 = vmatprep.subr.bf16.mxu0 %v2418
        %2494 = vmatpush1.bf16.msra.mxu0 %v2417
        %2495 = vmatprep.subr.bf16.mxu0 %v2426
        %2496 = vmatpush1.bf16.msra.mxu0 %v2425
        %2497 = vmatprep.subr.bf16.mxu0 0
        %2498 = vmatpush1.bf16.msra.mxu0 0
        %2499 = vmatprep.subr.bf16.mxu0 0
        %2500 = vmatpush1.bf16.msra.mxu0 0
        %2501 = vmatprep.subr.bf16.mxu0 0
        %2502 = vmatpush1.bf16.msra.mxu0 0
        %2503 = vmatprep.subr.bf16.mxu0 0
        %2504 = vmatpush1.bf16.msra.mxu0 0
        %2505 = vmatprep.subr.bf16.mxu0 0
        %2506 = vmatpush1.bf16.msra.mxu0 0
        %2507 = vmatprep.subr.bf16.mxu0 0
        %2508 = vmatpush1.bf16.msra.mxu0 0
        %2509 = vmatprep.subr.bf16.mxu0 0
        %2510 = vmatpush1.bf16.msra.mxu0 0
        %2511 = vmatprep.subr.bf16.mxu0 0
        %2512 = vmatpush1.bf16.msra.mxu0 0
        %2513 = vmatprep.subr.bf16.mxu0 0
        %2514 = vmatpush1.bf16.msra.mxu0 0
        %2515 = vmatprep.subr.bf16.mxu0 0
        %2516 = vmatpush1.bf16.msra.mxu0 0
        %2517 = vmatprep.subr.bf16.mxu0 0
        %2518 = vmatpush1.bf16.msra.mxu0 0
        %2519 = vmatprep.subr.bf16.mxu0 0
        %2520 = vmatpush1.bf16.msra.mxu0 0
        %2521 = vmatprep.subr.bf16.mxu0 0
        %2522 = vmatpush1.bf16.msra.mxu0 0
        %2523 = vmatprep.subr.bf16.mxu0 0
        %2524 = vmatpush1.bf16.msra.mxu0 0
        %2525 = vmatprep.mubr.bf16.mxu0 0
        %2526 = vmatmul.mubr.bf16.gmra.mrb[0].mxu0 %v2448
        %v2527 = vpop.f32.mrb[0].mxu0
        %v2528 = vadd.f32 %v2338, %v2527
        %v2529 = vpop.f32.mrb[0].mxu0
        %v2530 = vadd.f32 %v2342, %v2529
        %v2531 = vpop.f32.mrb[0].mxu0
        %v2532 = vadd.f32 %v2338, %v2531
        %v2533 = vpop.f32.mrb[0].mxu0
        %v2534 = vadd.f32 %v2342, %v2533
        %2535 = vdwg.mxu0
        %2536 = vmatprep.subr.bf16.mxu0 %v2420
        %2537 = vmatpush1.bf16.msra.mxu0 %v2419
        %2538 = vmatprep.subr.bf16.mxu0 %v2428
        %2539 = vmatpush1.bf16.msra.mxu0 %v2427
        %2540 = vmatprep.subr.bf16.mxu0 0
        %2541 = vmatpush1.bf16.msra.mxu0 0
        %2542 = vmatprep.subr.bf16.mxu0 0
        %2543 = vmatpush1.bf16.msra.mxu0 0
        %2544 = vmatprep.subr.bf16.mxu0 0
        %2545 = vmatpush1.bf16.msra.mxu0 0
        %2546 = vmatprep.subr.bf16.mxu0 0
        %2547 = vmatpush1.bf16.msra.mxu0 0
        %2548 = vmatprep.subr.bf16.mxu0 0
        %2549 = vmatpush1.bf16.msra.mxu0 0
        %2550 = vmatprep.subr.bf16.mxu0 0
        %2551 = vmatpush1.bf16.msra.mxu0 0
        %2552 = vmatprep.subr.bf16.mxu0 0
        %2553 = vmatpush1.bf16.msra.mxu0 0
        %2554 = vmatprep.subr.bf16.mxu0 0
        %2555 = vmatpush1.bf16.msra.mxu0 0
        %2556 = vmatprep.subr.bf16.mxu0 0
        %2557 = vmatpush1.bf16.msra.mxu0 0
        %2558 = vmatprep.subr.bf16.mxu0 0
        %2559 = vmatpush1.bf16.msra.mxu0 0
        %2560 = vmatprep.subr.bf16.mxu0 0
        %2561 = vmatpush1.bf16.msra.mxu0 0
        %2562 = vmatprep.subr.bf16.mxu0 0
        %2563 = vmatpush1.bf16.msra.mxu0 0
        %2564 = vmatprep.subr.bf16.mxu0 0
        %2565 = vmatpush1.bf16.msra.mxu0 0
        %2566 = vmatprep.subr.bf16.mxu0 0
        %2567 = vmatpush1.bf16.msra.mxu0 0
        %2568 = vmatprep.mubr.bf16.mxu0 0
        %2569 = vmatmul.mubr.bf16.gmra.mrb[0].mxu0 %v2448
        %v2570 = vpop.f32.mrb[0].mxu0
        %v2571 = vadd.f32 %v2346, %v2570
        %v2572 = vpop.f32.mrb[0].mxu0
        %v2573 = vadd.f32 %v2350, %v2572
        %v2574 = vpop.f32.mrb[0].mxu0
        %v2575 = vadd.f32 %v2346, %v2574
        %v2576 = vpop.f32.mrb[0].mxu0
        %v2577 = vadd.f32 %v2350, %v2576
        %2578 = vdwg.mxu0
        %2579 = vmatprep.subr.bf16.mxu0 %v2422
        %2580 = vmatpush1.bf16.msra.mxu0 %v2421
        %2581 = vmatprep.subr.bf16.mxu0 %v2430
        %2582 = vmatpush1.bf16.msra.mxu0 %v2429
        %2583 = vmatprep.subr.bf16.mxu0 0
        %2584 = vmatpush1.bf16.msra.mxu0 0
        %2585 = vmatprep.subr.bf16.mxu0 0
        %2586 = vmatpush1.bf16.msra.mxu0 0
        %2587 = vmatprep.subr.bf16.mxu0 0
        %2588 = vmatpush1.bf16.msra.mxu0 0
        %2589 = vmatprep.subr.bf16.mxu0 0
        %2590 = vmatpush1.bf16.msra.mxu0 0
        %2591 = vmatprep.subr.bf16.mxu0 0
        %2592 = vmatpush1.bf16.msra.mxu0 0
        %2593 = vmatprep.subr.bf16.mxu0 0
        %2594 = vmatpush1.bf16.msra.mxu0 0
        %2595 = vmatprep.subr.bf16.mxu0 0
        %2596 = vmatpush1.bf16.msra.mxu0 0
        %2597 = vmatprep.subr.bf16.mxu0 0
        %2598 = vmatpush1.bf16.msra.mxu0 0
        %2599 = vmatprep.subr.bf16.mxu0 0
        %2600 = vmatpush1.bf16.msra.mxu0 0
        %2601 = vmatprep.subr.bf16.mxu0 0
        %2602 = vmatpush1.bf16.msra.mxu0 0
        %2603 = vmatprep.subr.bf16.mxu0 0
        %2604 = vmatpush1.bf16.msra.mxu0 0
        %2605 = vmatprep.subr.bf16.mxu0 0
        %2606 = vmatpush1.bf16.msra.mxu0 0
        %2607 = vmatprep.subr.bf16.mxu0 0
        %2608 = vmatpush1.bf16.msra.mxu0 0
        %2609 = vmatprep.subr.bf16.mxu0 0
        %2610 = vmatpush1.bf16.msra.mxu0 0
        %2611 = vmatprep.mubr.bf16.mxu0 0
        %2612 = vmatmul.mubr.bf16.gmra.mrb[0].mxu0 %v2448
        %v2613 = vpop.f32.mrb[0].mxu0
        %v2614 = vadd.f32 %v2354, %v2613
        %v2615 = vpop.f32.mrb[0].mxu0
        %v2616 = vadd.f32 %v2358, %v2615
        %v2617 = vpop.f32.mrb[0].mxu0
        %v2618 = vadd.f32 %v2354, %v2617
        %v2619 = vpop.f32.mrb[0].mxu0
        %v2620 = vadd.f32 %v2358, %v2619
        %2621 = vdwg.mxu0
        %v2622 = vpack.c.bf16 %v2489, %v2485
        %v2623 = vpack.c.bf16 %v2491, %v2487
        %v2624 = vpack.c.bf16 %v2532, %v2528
        %v2625 = vpack.c.bf16 %v2534, %v2530
        %v2626 = vpack.c.bf16 %v2575, %v2571
        %v2627 = vpack.c.bf16 %v2577, %v2573
        %v2628 = vpack.c.bf16 %v2618, %v2614
        %v2629 = vpack.c.bf16 %v2620, %v2616
        %v2630 = vld [vmem:[%s14] sm:$0xf]
        %v2631 = vld [vmem:[%s14 + $0x4] sm:$0xf]
        %v2632 = vld [vmem:[%s14 + $0x8] sm:$0xf]
        %v2633 = vld [vmem:[%s14 + $0xc] sm:$0xf]
        %v2634 = vld [vmem:[%s14 + $0x10] sm:$0xf]
        %v2635 = vld [vmem:[%s14 + $0x14] sm:$0xf]
        %v2636 = vld [vmem:[%s14 + $0x18] sm:$0xf]
        %v2637 = vld [vmem:[%s14 + $0x1c] sm:$0xf]
        %v2638 = vld [vmem:[%s14 + $0x20] sm:$0xf]
        %v2639 = vld [vmem:[%s14 + $0x24] sm:$0xf]
        %v2640 = vld [vmem:[%s14 + $0x28] sm:$0xf]
        %v2641 = vld [vmem:[%s14 + $0x2c] sm:$0xf]
        %v2642 = vld [vmem:[%s14 + $0x30] sm:$0xf]
        %v2643 = vld [vmem:[%s14 + $0x34] sm:$0xf]
        %v2644 = vld [vmem:[%s14 + $0x38] sm:$0xf]
        %v2645 = vld [vmem:[%s14 + $0x3c] sm:$0xf]
        %v2646 = vld [vmem:[%s14 + $0x40] sm:$0xf]
        %v2647 = vld [vmem:[%s14 + $0x44] sm:$0xf]
        %v2648 = vld [vmem:[%s14 + $0x48] sm:$0xf]
        %v2649 = vld [vmem:[%s14 + $0x4c] sm:$0xf]
        %v2650 = vld [vmem:[%s14 + $0x50] sm:$0xf]
        %v2651 = vld [vmem:[%s14 + $0x54] sm:$0xf]
        %v2652 = vld [vmem:[%s14 + $0x58] sm:$0xf]
        %v2653 = vld [vmem:[%s14 + $0x5c] sm:$0xf]
        %v2654 = vld [vmem:[%s14 + $0x60] sm:$0xf]
        %v2655 = vld [vmem:[%s14 + $0x64] sm:$0xf]
        %v2656 = vld [vmem:[%s14 + $0x68] sm:$0xf]
        %v2657 = vld [vmem:[%s14 + $0x6c] sm:$0xf]
        %v2658 = vld [vmem:[%s14 + $0x70] sm:$0xf]
        %v2659 = vld [vmem:[%s14 + $0x74] sm:$0xf]
        %v2660 = vld [vmem:[%s14 + $0x78] sm:$0xf]
        %v2661 = vld [vmem:[%s14 + $0x7c] sm:$0xf]
        %v2662 = vld [vmem:[%s14 + $0x80] sm:$0xf]
        %v2663 = vld [vmem:[%s14 + $0x84] sm:$0xf]
        %v2664 = vld [vmem:[%s14 + $0x88] sm:$0xf]
        %v2665 = vld [vmem:[%s14 + $0x8c] sm:$0xf]
        %v2666 = vld [vmem:[%s14 + $0x90] sm:$0xf]
        %v2667 = vld [vmem:[%s14 + $0x94] sm:$0xf]
        %v2668 = vld [vmem:[%s14 + $0x98] sm:$0xf]
        %v2669 = vld [vmem:[%s14 + $0x9c] sm:$0xf]
        %v2670 = vld [vmem:[%s14 + $0xa0] sm:$0xf]
        %v2671 = vld [vmem:[%s14 + $0xa4] sm:$0xf]
        %v2672 = vld [vmem:[%s14 + $0xa8] sm:$0xf]
        %v2673 = vld [vmem:[%s14 + $0xac] sm:$0xf]
        %v2674 = vld [vmem:[%s14 + $0xb0] sm:$0xf]
        %v2675 = vld [vmem:[%s14 + $0xb4] sm:$0xf]
        %v2676 = vld [vmem:[%s14 + $0xb8] sm:$0xf]
        %v2677 = vld [vmem:[%s14 + $0xbc] sm:$0xf]
        %v2678 = vld [vmem:[%s14 + $0xc0] sm:$0xf]
        %v2679 = vld [vmem:[%s14 + $0xc4] sm:$0xf]
        %v2680 = vld [vmem:[%s14 + $0xc8] sm:$0xf]
        %v2681 = vld [vmem:[%s14 + $0xcc] sm:$0xf]
        %v2682 = vld [vmem:[%s14 + $0xd0] sm:$0xf]
        %v2683 = vld [vmem:[%s14 + $0xd4] sm:$0xf]
        %v2684 = vld [vmem:[%s14 + $0xd8] sm:$0xf]
        %v2685 = vld [vmem:[%s14 + $0xdc] sm:$0xf]
        %v2686 = vld [vmem:[%s14 + $0xe0] sm:$0xf]
        %v2687 = vld [vmem:[%s14 + $0xe4] sm:$0xf]
        %v2688 = vld [vmem:[%s14 + $0xe8] sm:$0xf]
        %v2689 = vld [vmem:[%s14 + $0xec] sm:$0xf]
        %v2690 = vld [vmem:[%s14 + $0xf0] sm:$0xf]
        %v2691 = vld [vmem:[%s14 + $0xf4] sm:$0xf]
        %v2692 = vld [vmem:[%s14 + $0xf8] sm:$0xf]
        %v2693 = vld [vmem:[%s14 + $0xfc] sm:$0xf]
        %v2694 = vld [vmem:[%s15] sm:$0x1]
        %v2695 = vpack.c.bf16 %v2262, %v2262
        %v2696 = vpack.c.bf16 %v2264, %v2264
        %v2697 = vpack.c.bf16 %v2303, %v2303
        %v2698 = vpack.c.bf16 %v2305, %v2305
        %2699 = vmatprep.subr.bf16.mxu0 0
        %2700 = vmatpush1.bf16.xpose.msra.mxu0 %v2622
        %2701 = vmatprep.subr.bf16.mxu0 0
        %2702 = vmatpush1.bf16.xpose.msra.mxu0 0
        %2703 = vmatprep.subr.bf16.mxu0 0
        %2704 = vmatpush1.bf16.xpose.msra.mxu0 0
        %2705 = vmatprep.subr.bf16.mxu0 0
        %2706 = vmatpush1.bf16.xpose.msra.mxu0 0
        %2707 = vmatprep.subr.bf16.mxu0 0
        %2708 = vmatpush1.bf16.xpose.msra.mxu0 0
        %2709 = vmatprep.subr.bf16.mxu0 0
        %2710 = vmatpush1.bf16.xpose.msra.mxu0 0
        %2711 = vmatprep.subr.bf16.mxu0 0
        %2712 = vmatpush1.bf16.xpose.msra.mxu0 0
        %2713 = vmatprep.subr.bf16.mxu0 0
        %2714 = vmatpush1.bf16.xpose.msra.mxu0 0
        %2715 = vmatprep.subr.bf16.mxu0 0
        %2716 = vmatpush1.bf16.xpose.msra.mxu0 0
        %2717 = vmatprep.subr.bf16.mxu0 0
        %2718 = vmatpush1.bf16.xpose.msra.mxu0 0
        %2719 = vmatprep.subr.bf16.mxu0 0
        %2720 = vmatpush1.bf16.xpose.msra.mxu0 0
        %2721 = vmatprep.subr.bf16.mxu0 0
        %2722 = vmatpush1.bf16.xpose.msra.mxu0 0
        %2723 = vmatprep.subr.bf16.mxu0 0
        %2724 = vmatpush1.bf16.xpose.msra.mxu0 0
        %2725 = vmatprep.subr.bf16.mxu0 0
        %2726 = vmatpush1.bf16.xpose.msra.mxu0 0
        %2727 = vmatprep.subr.bf16.mxu0 0
        %2728 = vmatpush1.bf16.xpose.msra.mxu0 0
        %2729 = vmatprep.subr.bf16.mxu0 0
        %2730 = vmatpush1.bf16.xpose.msra.mxu0 0
        %2731 = vmatprep.mubr.bf16.mxu0 0
        %2732 = vmatmul.mubr.bf16.gmra.mrb[0].mxu0 %v2695
        %v2733 = vpop.f32.mrb[0].mxu0
        %v2734 = vadd.f32 0.0, %v2733
        %v2735 = vpop.f32.mrb[0].mxu0
        %v2736 = vpop.f32.mrb[0].mxu0
        %v2737 = vpop.f32.mrb[0].mxu0
        %2738 = vdwg.mxu0
        %v2739 = vmul.f32 %v2734, 0.35355338
        %vm2740 = vcmask 130048
        %v2741 = vsel %vm2740, %v2739, -inf
        %2742 = vmax.xlane.f32.xlu0 %v2741
        %v2743 = vpop.xlane.xlu0 %2742
        %v2744 = vsub.f32 %v2739, %v2743
        %v2745 = vmul.f32 %v2744, 1.442695
        %v2746 = vpow.pop %v2745
        %v2747 = vsel %vm2740, %v2746, 0.0
        %2748 = vadd.xlane.f32.xlu0 %v2747
        %v2749 = vpop.xlane.xlu0 %2748
        %v2750 = vrcp.pop %v2749
        %v2751 = vmul.f32 %v2746, %v2750
        %v2752 = vpack.c.bf16 %v2751, %v2751
        %v2754 = vsel %vm2740, %v2752, 0
        %2756 = vmatprep.subr.bf16.mxu0 0
        %2757 = vmatpush1.bf16.msra.mxu0 %v2626
        %2758 = vmatprep.subr.bf16.mxu0 0
        %2759 = vmatpush1.bf16.msra.mxu0 0
        %2760 = vmatprep.subr.bf16.mxu0 0
        %2761 = vmatpush1.bf16.msra.mxu0 0
        %2762 = vmatprep.subr.bf16.mxu0 0
        %2763 = vmatpush1.bf16.msra.mxu0 0
        %2764 = vmatprep.subr.bf16.mxu0 0
        %2765 = vmatpush1.bf16.msra.mxu0 0
        %2766 = vmatprep.subr.bf16.mxu0 0
        %2767 = vmatpush1.bf16.msra.mxu0 0
        %2768 = vmatprep.subr.bf16.mxu0 0
        %2769 = vmatpush1.bf16.msra.mxu0 0
        %2770 = vmatprep.subr.bf16.mxu0 0
        %2771 = vmatpush1.bf16.msra.mxu0 0
        %2772 = vmatprep.subr.bf16.mxu0 0
        %2773 = vmatpush1.bf16.msra.mxu0 0
        %2774 = vmatprep.subr.bf16.mxu0 0
        %2775 = vmatpush1.bf16.msra.mxu0 0
        %2776 = vmatprep.subr.bf16.mxu0 0
        %2777 = vmatpush1.bf16.msra.mxu0 0
        %2778 = vmatprep.subr.bf16.mxu0 0
        %2779 = vmatpush1.bf16.msra.mxu0 0
        %2780 = vmatprep.subr.bf16.mxu0 0
        %2781 = vmatpush1.bf16.msra.mxu0 0
        %2782 = vmatprep.subr.bf16.mxu0 0
        %2783 = vmatpush1.bf16.msra.mxu0 0
        %2784 = vmatprep.subr.bf16.mxu0 0
        %2785 = vmatpush1.bf16.msra.mxu0 0
        %2786 = vmatprep.subr.bf16.mxu0 0
        %2787 = vmatpush1.bf16.msra.mxu0 0
        %2788 = vmatprep.mubr.bf16.mxu0 0
        %2789 = vmatmul.mubr.bf16.gmra.mrb[0].mxu0 %v2754
        %v2790 = vpop.f32.mrb[0].mxu0
        %v2791 = vadd.f32 0.0, %v2790
        %v2792 = vpop.f32.mrb[0].mxu0
        %v2793 = vpop.f32.mrb[0].mxu0
        %v2794 = vpop.f32.mrb[0].mxu0
        %2795 = vdwg.mxu0
        %v2796 = vpack.c.bf16 %v2791, %v2791
        %2797 = vmatprep.subr.bf16.mxu0 0
        %2798 = vmatpush1.bf16.xpose.msra.mxu0 %v2623
        %2799 = vmatprep.subr.bf16.mxu0 0
        %2800 = vmatpush1.bf16.xpose.msra.mxu0 0
        %2801 = vmatprep.subr.bf16.mxu0 0
        %2802 = vmatpush1.bf16.xpose.msra.mxu0 0
        %2803 = vmatprep.subr.bf16.mxu0 0
        %2804 = vmatpush1.bf16.xpose.msra.mxu0 0
        %2805 = vmatprep.subr.bf16.mxu0 0
        %2806 = vmatpush1.bf16.xpose.msra.mxu0 0
        %2807 = vmatprep.subr.bf16.mxu0 0
        %2808 = vmatpush1.bf16.xpose.msra.mxu0 0
        %2809 = vmatprep.subr.bf16.mxu0 0
        %2810 = vmatpush1.bf16.xpose.msra.mxu0 0
        %2811 = vmatprep.subr.bf16.mxu0 0
        %2812 = vmatpush1.bf16.xpose.msra.mxu0 0
        %2813 = vmatprep.subr.bf16.mxu0 0
        %2814 = vmatpush1.bf16.xpose.msra.mxu0 0
        %2815 = vmatprep.subr.bf16.mxu0 0
        %2816 = vmatpush1.bf16.xpose.msra.mxu0 0
        %2817 = vmatprep.subr.bf16.mxu0 0
        %2818 = vmatpush1.bf16.xpose.msra.mxu0 0
        %2819 = vmatprep.subr.bf16.mxu0 0
        %2820 = vmatpush1.bf16.xpose.msra.mxu0 0
        %2821 = vmatprep.subr.bf16.mxu0 0
        %2822 = vmatpush1.bf16.xpose.msra.mxu0 0
        %2823 = vmatprep.subr.bf16.mxu0 0
        %2824 = vmatpush1.bf16.xpose.msra.mxu0 0
        %2825 = vmatprep.subr.bf16.mxu0 0
        %2826 = vmatpush1.bf16.xpose.msra.mxu0 0
        %2827 = vmatprep.subr.bf16.mxu0 0
        %2828 = vmatpush1.bf16.xpose.msra.mxu0 0
        %2829 = vmatprep.mubr.bf16.mxu0 0
        %2830 = vmatmul.mubr.bf16.gmra.mrb[0].mxu0 %v2696
        %v2831 = vpop.f32.mrb[0].mxu0
        %v2832 = vadd.f32 0.0, %v2831
        %v2833 = vpop.f32.mrb[0].mxu0
        %v2834 = vpop.f32.mrb[0].mxu0
        %v2835 = vpop.f32.mrb[0].mxu0
        %2836 = vdwg.mxu0
        %v2837 = vmul.f32 %v2832, 0.35355338
        %v2838 = vsel %vm2740, %v2837, -inf
        %2839 = vmax.xlane.f32.xlu0 %v2838
        %v2840 = vpop.xlane.xlu0 %2839
        %v2841 = vsub.f32 %v2837, %v2840
        %v2842 = vmul.f32 %v2841, 1.442695
        %v2843 = vpow.pop %v2842
        %v2844 = vsel %vm2740, %v2843, 0.0
        %2845 = vadd.xlane.f32.xlu0 %v2844
        %v2846 = vpop.xlane.xlu0 %2845
        %v2847 = vrcp.pop %v2846
        %v2848 = vmul.f32 %v2843, %v2847
        %v2849 = vpack.c.bf16 %v2848, %v2848
        %v2851 = vsel %vm2740, %v2849, 0
        %2853 = vmatprep.subr.bf16.mxu0 0
        %2854 = vmatpush1.bf16.msra.mxu0 %v2627
        %2855 = vmatprep.subr.bf16.mxu0 0
        %2856 = vmatpush1.bf16.msra.mxu0 0
        %2857 = vmatprep.subr.bf16.mxu0 0
        %2858 = vmatpush1.bf16.msra.mxu0 0
        %2859 = vmatprep.subr.bf16.mxu0 0
        %2860 = vmatpush1.bf16.msra.mxu0 0
        %2861 = vmatprep.subr.bf16.mxu0 0
        %2862 = vmatpush1.bf16.msra.mxu0 0
        %2863 = vmatprep.subr.bf16.mxu0 0
        %2864 = vmatpush1.bf16.msra.mxu0 0
        %2865 = vmatprep.subr.bf16.mxu0 0
        %2866 = vmatpush1.bf16.msra.mxu0 0
        %2867 = vmatprep.subr.bf16.mxu0 0
        %2868 = vmatpush1.bf16.msra.mxu0 0
        %2869 = vmatprep.subr.bf16.mxu0 0
        %2870 = vmatpush1.bf16.msra.mxu0 0
        %2871 = vmatprep.subr.bf16.mxu0 0
        %2872 = vmatpush1.bf16.msra.mxu0 0
        %2873 = vmatprep.subr.bf16.mxu0 0
        %2874 = vmatpush1.bf16.msra.mxu0 0
        %2875 = vmatprep.subr.bf16.mxu0 0
        %2876 = vmatpush1.bf16.msra.mxu0 0
        %2877 = vmatprep.subr.bf16.mxu0 0
        %2878 = vmatpush1.bf16.msra.mxu0 0
        %2879 = vmatprep.subr.bf16.mxu0 0
        %2880 = vmatpush1.bf16.msra.mxu0 0
        %2881 = vmatprep.subr.bf16.mxu0 0
        %2882 = vmatpush1.bf16.msra.mxu0 0
        %2883 = vmatprep.subr.bf16.mxu0 0
        %2884 = vmatpush1.bf16.msra.mxu0 0
        %2885 = vmatprep.mubr.bf16.mxu0 0
        %2886 = vmatmul.mubr.bf16.gmra.mrb[0].mxu0 %v2851
        %v2887 = vpop.f32.mrb[0].mxu0
        %v2888 = vadd.f32 0.0, %v2887
        %v2889 = vpop.f32.mrb[0].mxu0
        %v2890 = vpop.f32.mrb[0].mxu0
        %v2891 = vpop.f32.mrb[0].mxu0
        %2892 = vdwg.mxu0
        %v2893 = vpack.c.bf16 %v2888, %v2888
        %v2910 = vunpack.c.l.b16 %v2646
        %v2911 = vunpack.c.l.b16 %v2647
        %v2912 = vunpack.c.l.b16 %v2648
        %v2913 = vunpack.c.l.b16 %v2649
        %v2914 = vunpack.c.l.b16 %v2650
        %v2915 = vunpack.c.l.b16 %v2651
        %v2916 = vunpack.c.l.b16 %v2652
        %v2917 = vunpack.c.l.b16 %v2653
        %v2918 = vunpack.c.l.b16 %v2654
        %v2919 = vunpack.c.l.b16 %v2655
        %v2920 = vunpack.c.l.b16 %v2656
        %v2921 = vunpack.c.l.b16 %v2657
        %v2922 = vunpack.c.l.b16 %v2658
        %v2923 = vunpack.c.l.b16 %v2659
        %v2924 = vunpack.c.l.b16 %v2660
        %v2925 = vunpack.c.l.b16 %v2661
        %v2926 = vpack.c.b16 %v2911, %v2910
        %v2927 = vpack.c.b16 %v2913, %v2912
        %v2928 = vpack.c.b16 %v2915, %v2914
        %v2929 = vpack.c.b16 %v2917, %v2916
        %v2930 = vpack.c.b16 %v2919, %v2918
        %v2931 = vpack.c.b16 %v2921, %v2920
        %v2932 = vpack.c.b16 %v2923, %v2922
        %v2933 = vpack.c.b16 %v2925, %v2924
        %2942 = vmatprep.subr.bf16.mxu0 0
        %2943 = vmatpush1.bf16.msra.mxu0 %v2926
        %2944 = vmatprep.subr.bf16.mxu0 0
        %2945 = vmatpush1.bf16.msra.mxu0 %v2927
        %2946 = vmatprep.subr.bf16.mxu0 0
        %2947 = vmatpush1.bf16.msra.mxu0 %v2928
        %2948 = vmatprep.subr.bf16.mxu0 0
        %2949 = vmatpush1.bf16.msra.mxu0 %v2929
        %2950 = vmatprep.subr.bf16.mxu0 0
        %2951 = vmatpush1.bf16.msra.mxu0 %v2930
        %2952 = vmatprep.subr.bf16.mxu0 0
        %2953 = vmatpush1.bf16.msra.mxu0 %v2931
        %2954 = vmatprep.subr.bf16.mxu0 0
        %2955 = vmatpush1.bf16.msra.mxu0 %v2932
        %2956 = vmatprep.subr.bf16.mxu0 0
        %2957 = vmatpush1.bf16.msra.mxu0 %v2933
        %2958 = vmatprep.subr.bf16.mxu0 0
        %2959 = vmatpush1.bf16.msra.mxu0 0
        %2960 = vmatprep.subr.bf16.mxu0 0
        %2961 = vmatpush1.bf16.msra.mxu0 0
        %2962 = vmatprep.subr.bf16.mxu0 0
        %2963 = vmatpush1.bf16.msra.mxu0 0
        %2964 = vmatprep.subr.bf16.mxu0 0
        %2965 = vmatpush1.bf16.msra.mxu0 0
        %2966 = vmatprep.subr.bf16.mxu0 0
        %2967 = vmatpush1.bf16.msra.mxu0 0
        %2968 = vmatprep.subr.bf16.mxu0 0
        %2969 = vmatpush1.bf16.msra.mxu0 0
        %2970 = vmatprep.subr.bf16.mxu0 0
        %2971 = vmatpush1.bf16.msra.mxu0 0
        %2972 = vmatprep.subr.bf16.mxu0 0
        %2973 = vmatpush1.bf16.msra.mxu0 0
        %2974 = vmatprep.mubr.bf16.mxu0 0
        %2975 = vmatmul.mubr.bf16.gmra.mrb[0].mxu0 %v2893
        %v2976 = vpop.f32.mrb[0].mxu0
        %v2977 = vadd.f32 0.0, %v2976
        %v2978 = vpop.f32.mrb[0].mxu0
        %v2979 = vpop.f32.mrb[0].mxu0
        %v2980 = vpop.f32.mrb[0].mxu0
        %2981 = vdwg.mxu0
        %v2998 = vunpack.c.l.b16 %v2630
        %v2999 = vunpack.c.l.b16 %v2631
        %v3000 = vunpack.c.l.b16 %v2632
        %v3001 = vunpack.c.l.b16 %v2633
        %v3002 = vunpack.c.l.b16 %v2634
        %v3003 = vunpack.c.l.b16 %v2635
        %v3004 = vunpack.c.l.b16 %v2636
        %v3005 = vunpack.c.l.b16 %v2637
        %v3006 = vunpack.c.l.b16 %v2638
        %v3007 = vunpack.c.l.b16 %v2639
        %v3008 = vunpack.c.l.b16 %v2640
        %v3009 = vunpack.c.l.b16 %v2641
        %v3010 = vunpack.c.l.b16 %v2642
        %v3011 = vunpack.c.l.b16 %v2643
        %v3012 = vunpack.c.l.b16 %v2644
        %v3013 = vunpack.c.l.b16 %v2645
        %v3014 = vpack.c.b16 %v2999, %v2998
        %v3015 = vpack.c.b16 %v3001, %v3000
        %v3016 = vpack.c.b16 %v3003, %v3002
        %v3017 = vpack.c.b16 %v3005, %v3004
        %v3018 = vpack.c.b16 %v3007, %v3006
        %v3019 = vpack.c.b16 %v3009, %v3008
        %v3020 = vpack.c.b16 %v3011, %v3010
        %v3021 = vpack.c.b16 %v3013, %v3012
        %3030 = vmatprep.subr.bf16.mxu0 0
        %3031 = vmatpush1.bf16.msra.mxu0 %v3014
        %3032 = vmatprep.subr.bf16.mxu0 0
        %3033 = vmatpush1.bf16.msra.mxu0 %v3015
        %3034 = vmatprep.subr.bf16.mxu0 0
        %3035 = vmatpush1.bf16.msra.mxu0 %v3016
        %3036 = vmatprep.subr.bf16.mxu0 0
        %3037 = vmatpush1.bf16.msra.mxu0 %v3017
        %3038 = vmatprep.subr.bf16.mxu0 0
        %3039 = vmatpush1.bf16.msra.mxu0 %v3018
        %3040 = vmatprep.subr.bf16.mxu0 0
        %3041 = vmatpush1.bf16.msra.mxu0 %v3019
        %3042 = vmatprep.subr.bf16.mxu0 0
        %3043 = vmatpush1.bf16.msra.mxu0 %v3020
        %3044 = vmatprep.subr.bf16.mxu0 0
        %3045 = vmatpush1.bf16.msra.mxu0 %v3021
        %3046 = vmatprep.subr.bf16.mxu0 0
        %3047 = vmatpush1.bf16.msra.mxu0 0
        %3048 = vmatprep.subr.bf16.mxu0 0
        %3049 = vmatpush1.bf16.msra.mxu0 0
        %3050 = vmatprep.subr.bf16.mxu0 0
        %3051 = vmatpush1.bf16.msra.mxu0 0
        %3052 = vmatprep.subr.bf16.mxu0 0
        %3053 = vmatpush1.bf16.msra.mxu0 0
        %3054 = vmatprep.subr.bf16.mxu0 0
        %3055 = vmatpush1.bf16.msra.mxu0 0
        %3056 = vmatprep.subr.bf16.mxu0 0
        %3057 = vmatpush1.bf16.msra.mxu0 0
        %3058 = vmatprep.subr.bf16.mxu0 0
        %3059 = vmatpush1.bf16.msra.mxu0 0
        %3060 = vmatprep.subr.bf16.mxu0 0
        %3061 = vmatpush1.bf16.msra.mxu0 0
        %3062 = vmatprep.mubr.bf16.mxu0 0
        %3063 = vmatmul.mubr.bf16.gmra.mrb[0].mxu0 %v2796
        %v3064 = vpop.f32.mrb[0].mxu0
        %v3065 = vadd.f32 %v2977, %v3064
        %v3066 = vpop.f32.mrb[0].mxu0
        %v3067 = vpop.f32.mrb[0].mxu0
        %v3068 = vpop.f32.mrb[0].mxu0
        %3069 = vdwg.mxu0
        %3070 = vmatprep.subr.bf16.mxu0 0
        %3071 = vmatpush1.bf16.xpose.msra.mxu0 %v2624
        %3072 = vmatprep.subr.bf16.mxu0 0
        %3073 = vmatpush1.bf16.xpose.msra.mxu0 0
        %3074 = vmatprep.subr.bf16.mxu0 0
        %3075 = vmatpush1.bf16.xpose.msra.mxu0 0
        %3076 = vmatprep.subr.bf16.mxu0 0
        %3077 = vmatpush1.bf16.xpose.msra.mxu0 0
        %3078 = vmatprep.subr.bf16.mxu0 0
        %3079 = vmatpush1.bf16.xpose.msra.mxu0 0
        %3080 = vmatprep.subr.bf16.mxu0 0
        %3081 = vmatpush1.bf16.xpose.msra.mxu0 0
        %3082 = vmatprep.subr.bf16.mxu0 0
        %3083 = vmatpush1.bf16.xpose.msra.mxu0 0
        %3084 = vmatprep.subr.bf16.mxu0 0
        %3085 = vmatpush1.bf16.xpose.msra.mxu0 0
        %3086 = vmatprep.subr.bf16.mxu0 0
        %3087 = vmatpush1.bf16.xpose.msra.mxu0 0
        %3088 = vmatprep.subr.bf16.mxu0 0
        %3089 = vmatpush1.bf16.xpose.msra.mxu0 0
        %3090 = vmatprep.subr.bf16.mxu0 0
        %3091 = vmatpush1.bf16.xpose.msra.mxu0 0
        %3092 = vmatprep.subr.bf16.mxu0 0
        %3093 = vmatpush1.bf16.xpose.msra.mxu0 0
        %3094 = vmatprep.subr.bf16.mxu0 0
        %3095 = vmatpush1.bf16.xpose.msra.mxu0 0
        %3096 = vmatprep.subr.bf16.mxu0 0
        %3097 = vmatpush1.bf16.xpose.msra.mxu0 0
        %3098 = vmatprep.subr.bf16.mxu0 0
        %3099 = vmatpush1.bf16.xpose.msra.mxu0 0
        %3100 = vmatprep.subr.bf16.mxu0 0
        %3101 = vmatpush1.bf16.xpose.msra.mxu0 0
        %3102 = vmatprep.mubr.bf16.mxu0 0
        %3103 = vmatmul.mubr.bf16.gmra.mrb[0].mxu0 %v2697
        %v3104 = vpop.f32.mrb[0].mxu0
        %v3105 = vadd.f32 0.0, %v3104
        %v3106 = vpop.f32.mrb[0].mxu0
        %v3107 = vpop.f32.mrb[0].mxu0
        %v3108 = vpop.f32.mrb[0].mxu0
        %3109 = vdwg.mxu0
        %v3110 = vmul.f32 %v3105, 0.35355338
        %v3111 = vsel %vm2740, %v3110, -inf
        %3112 = vmax.xlane.f32.xlu0 %v3111
        %v3113 = vpop.xlane.xlu0 %3112
        %v3114 = vsub.f32 %v3110, %v3113
        %v3115 = vmul.f32 %v3114, 1.442695
        %v3116 = vpow.pop %v3115
        %v3117 = vsel %vm2740, %v3116, 0.0
        %3118 = vadd.xlane.f32.xlu0 %v3117
        %v3119 = vpop.xlane.xlu0 %3118
        %v3120 = vrcp.pop %v3119
        %v3121 = vmul.f32 %v3116, %v3120
        %v3122 = vpack.c.bf16 %v3121, %v3121
        %v3124 = vsel %vm2740, %v3122, 0
        %3126 = vmatprep.subr.bf16.mxu0 0
        %3127 = vmatpush1.bf16.msra.mxu0 %v2628
        %3128 = vmatprep.subr.bf16.mxu0 0
        %3129 = vmatpush1.bf16.msra.mxu0 0
        %3130 = vmatprep.subr.bf16.mxu0 0
        %3131 = vmatpush1.bf16.msra.mxu0 0
        %3132 = vmatprep.subr.bf16.mxu0 0
        %3133 = vmatpush1.bf16.msra.mxu0 0
        %3134 = vmatprep.subr.bf16.mxu0 0
        %3135 = vmatpush1.bf16.msra.mxu0 0
        %3136 = vmatprep.subr.bf16.mxu0 0
        %3137 = vmatpush1.bf16.msra.mxu0 0
        %3138 = vmatprep.subr.bf16.mxu0 0
        %3139 = vmatpush1.bf16.msra.mxu0 0
        %3140 = vmatprep.subr.bf16.mxu0 0
        %3141 = vmatpush1.bf16.msra.mxu0 0
        %3142 = vmatprep.subr.bf16.mxu0 0
        %3143 = vmatpush1.bf16.msra.mxu0 0
        %3144 = vmatprep.subr.bf16.mxu0 0
        %3145 = vmatpush1.bf16.msra.mxu0 0
        %3146 = vmatprep.subr.bf16.mxu0 0
        %3147 = vmatpush1.bf16.msra.mxu0 0
        %3148 = vmatprep.subr.bf16.mxu0 0
        %3149 = vmatpush1.bf16.msra.mxu0 0
        %3150 = vmatprep.subr.bf16.mxu0 0
        %3151 = vmatpush1.bf16.msra.mxu0 0
        %3152 = vmatprep.subr.bf16.mxu0 0
        %3153 = vmatpush1.bf16.msra.mxu0 0
        %3154 = vmatprep.subr.bf16.mxu0 0
        %3155 = vmatpush1.bf16.msra.mxu0 0
        %3156 = vmatprep.subr.bf16.mxu0 0
        %3157 = vmatpush1.bf16.msra.mxu0 0
        %3158 = vmatprep.mubr.bf16.mxu0 0
        %3159 = vmatmul.mubr.bf16.gmra.mrb[0].mxu0 %v3124
        %v3160 = vpop.f32.mrb[0].mxu0
        %v3161 = vadd.f32 0.0, %v3160
        %v3162 = vpop.f32.mrb[0].mxu0
        %v3163 = vpop.f32.mrb[0].mxu0
        %v3164 = vpop.f32.mrb[0].mxu0
        %3165 = vdwg.mxu0
        %v3166 = vpack.c.bf16 %v3161, %v3161
        %v3183 = vunpack.c.l.b16 %v2662
        %v3184 = vunpack.c.l.b16 %v2663
        %v3185 = vunpack.c.l.b16 %v2664
        %v3186 = vunpack.c.l.b16 %v2665
        %v3187 = vunpack.c.l.b16 %v2666
        %v3188 = vunpack.c.l.b16 %v2667
        %v3189 = vunpack.c.l.b16 %v2668
        %v3190 = vunpack.c.l.b16 %v2669
        %v3191 = vunpack.c.l.b16 %v2670
        %v3192 = vunpack.c.l.b16 %v2671
        %v3193 = vunpack.c.l.b16 %v2672
        %v3194 = vunpack.c.l.b16 %v2673
        %v3195 = vunpack.c.l.b16 %v2674
        %v3196 = vunpack.c.l.b16 %v2675
        %v3197 = vunpack.c.l.b16 %v2676
        %v3198 = vunpack.c.l.b16 %v2677
        %v3199 = vpack.c.b16 %v3184, %v3183
        %v3200 = vpack.c.b16 %v3186, %v3185
        %v3201 = vpack.c.b16 %v3188, %v3187
        %v3202 = vpack.c.b16 %v3190, %v3189
        %v3203 = vpack.c.b16 %v3192, %v3191
        %v3204 = vpack.c.b16 %v3194, %v3193
        %v3205 = vpack.c.b16 %v3196, %v3195
        %v3206 = vpack.c.b16 %v3198, %v3197
        %3215 = vmatprep.subr.bf16.mxu0 0
        %3216 = vmatpush1.bf16.msra.mxu0 %v3199
        %3217 = vmatprep.subr.bf16.mxu0 0
        %3218 = vmatpush1.bf16.msra.mxu0 %v3200
        %3219 = vmatprep.subr.bf16.mxu0 0
        %3220 = vmatpush1.bf16.msra.mxu0 %v3201
        %3221 = vmatprep.subr.bf16.mxu0 0
        %3222 = vmatpush1.bf16.msra.mxu0 %v3202
        %3223 = vmatprep.subr.bf16.mxu0 0
        %3224 = vmatpush1.bf16.msra.mxu0 %v3203
        %3225 = vmatprep.subr.bf16.mxu0 0
        %3226 = vmatpush1.bf16.msra.mxu0 %v3204
        %3227 = vmatprep.subr.bf16.mxu0 0
        %3228 = vmatpush1.bf16.msra.mxu0 %v3205
        %3229 = vmatprep.subr.bf16.mxu0 0
        %3230 = vmatpush1.bf16.msra.mxu0 %v3206
        %3231 = vmatprep.subr.bf16.mxu0 0
        %3232 = vmatpush1.bf16.msra.mxu0 0
        %3233 = vmatprep.subr.bf16.mxu0 0
        %3234 = vmatpush1.bf16.msra.mxu0 0
        %3235 = vmatprep.subr.bf16.mxu0 0
        %3236 = vmatpush1.bf16.msra.mxu0 0
        %3237 = vmatprep.subr.bf16.mxu0 0
        %3238 = vmatpush1.bf16.msra.mxu0 0
        %3239 = vmatprep.subr.bf16.mxu0 0
        %3240 = vmatpush1.bf16.msra.mxu0 0
        %3241 = vmatprep.subr.bf16.mxu0 0
        %3242 = vmatpush1.bf16.msra.mxu0 0
        %3243 = vmatprep.subr.bf16.mxu0 0
        %3244 = vmatpush1.bf16.msra.mxu0 0
        %3245 = vmatprep.subr.bf16.mxu0 0
        %3246 = vmatpush1.bf16.msra.mxu0 0
        %3247 = vmatprep.mubr.bf16.mxu0 0
        %3248 = vmatmul.mubr.bf16.gmra.mrb[0].mxu0 %v3166
        %v3249 = vpop.f32.mrb[0].mxu0
        %v3250 = vadd.f32 0.0, %v3249
        %v3251 = vpop.f32.mrb[0].mxu0
        %v3252 = vpop.f32.mrb[0].mxu0
        %v3253 = vpop.f32.mrb[0].mxu0
        %3254 = vdwg.mxu0
        %v3255 = vadd.f32 %v3065, %v3250
        %3256 = vmatprep.subr.bf16.mxu0 0
        %3257 = vmatpush1.bf16.xpose.msra.mxu0 %v2625
        %3258 = vmatprep.subr.bf16.mxu0 0
        %3259 = vmatpush1.bf16.xpose.msra.mxu0 0
        %3260 = vmatprep.subr.bf16.mxu0 0
        %3261 = vmatpush1.bf16.xpose.msra.mxu0 0
        %3262 = vmatprep.subr.bf16.mxu0 0
        %3263 = vmatpush1.bf16.xpose.msra.mxu0 0
        %3264 = vmatprep.subr.bf16.mxu0 0
        %3265 = vmatpush1.bf16.xpose.msra.mxu0 0
        %3266 = vmatprep.subr.bf16.mxu0 0
        %3267 = vmatpush1.bf16.xpose.msra.mxu0 0
        %3268 = vmatprep.subr.bf16.mxu0 0
        %3269 = vmatpush1.bf16.xpose.msra.mxu0 0
        %3270 = vmatprep.subr.bf16.mxu0 0
        %3271 = vmatpush1.bf16.xpose.msra.mxu0 0
        %3272 = vmatprep.subr.bf16.mxu0 0
        %3273 = vmatpush1.bf16.xpose.msra.mxu0 0
        %3274 = vmatprep.subr.bf16.mxu0 0
        %3275 = vmatpush1.bf16.xpose.msra.mxu0 0
        %3276 = vmatprep.subr.bf16.mxu0 0
        %3277 = vmatpush1.bf16.xpose.msra.mxu0 0
        %3278 = vmatprep.subr.bf16.mxu0 0
        %3279 = vmatpush1.bf16.xpose.msra.mxu0 0
        %3280 = vmatprep.subr.bf16.mxu0 0
        %3281 = vmatpush1.bf16.xpose.msra.mxu0 0
        %3282 = vmatprep.subr.bf16.mxu0 0
        %3283 = vmatpush1.bf16.xpose.msra.mxu0 0
        %3284 = vmatprep.subr.bf16.mxu0 0
        %3285 = vmatpush1.bf16.xpose.msra.mxu0 0
        %3286 = vmatprep.subr.bf16.mxu0 0
        %3287 = vmatpush1.bf16.xpose.msra.mxu0 0
        %3288 = vmatprep.mubr.bf16.mxu0 0
        %3289 = vmatmul.mubr.bf16.gmra.mrb[0].mxu0 %v2698
        %v3290 = vpop.f32.mrb[0].mxu0
        %v3291 = vadd.f32 0.0, %v3290
        %v3292 = vpop.f32.mrb[0].mxu0
        %v3293 = vpop.f32.mrb[0].mxu0
        %v3294 = vpop.f32.mrb[0].mxu0
        %3295 = vdwg.mxu0
        %v3296 = vmul.f32 %v3291, 0.35355338
        %v3297 = vsel %vm2740, %v3296, -inf
        %3298 = vmax.xlane.f32.xlu0 %v3297
        %v3299 = vpop.xlane.xlu0 %3298
        %v3300 = vsub.f32 %v3296, %v3299
        %v3301 = vmul.f32 %v3300, 1.442695
        %v3302 = vpow.pop %v3301
        %v3303 = vsel %vm2740, %v3302, 0.0
        %3304 = vadd.xlane.f32.xlu0 %v3303
        %v3305 = vpop.xlane.xlu0 %3304
        %v3306 = vrcp.pop %v3305
        %v3307 = vmul.f32 %v3302, %v3306
        %v3308 = vpack.c.bf16 %v3307, %v3307
        %v3310 = vsel %vm2740, %v3308, 0
        %3312 = vmatprep.subr.bf16.mxu0 0
        %3313 = vmatpush1.bf16.msra.mxu0 %v2629
        %3314 = vmatprep.subr.bf16.mxu0 0
        %3315 = vmatpush1.bf16.msra.mxu0 0
        %3316 = vmatprep.subr.bf16.mxu0 0
        %3317 = vmatpush1.bf16.msra.mxu0 0
        %3318 = vmatprep.subr.bf16.mxu0 0
        %3319 = vmatpush1.bf16.msra.mxu0 0
        %3320 = vmatprep.subr.bf16.mxu0 0
        %3321 = vmatpush1.bf16.msra.mxu0 0
        %3322 = vmatprep.subr.bf16.mxu0 0
        %3323 = vmatpush1.bf16.msra.mxu0 0
        %3324 = vmatprep.subr.bf16.mxu0 0
        %3325 = vmatpush1.bf16.msra.mxu0 0
        %3326 = vmatprep.subr.bf16.mxu0 0
        %3327 = vmatpush1.bf16.msra.mxu0 0
        %3328 = vmatprep.subr.bf16.mxu0 0
        %3329 = vmatpush1.bf16.msra.mxu0 0
        %3330 = vmatprep.subr.bf16.mxu0 0
        %3331 = vmatpush1.bf16.msra.mxu0 0
        %3332 = vmatprep.subr.bf16.mxu0 0
        %3333 = vmatpush1.bf16.msra.mxu0 0
        %3334 = vmatprep.subr.bf16.mxu0 0
        %3335 = vmatpush1.bf16.msra.mxu0 0
        %3336 = vmatprep.subr.bf16.mxu0 0
        %3337 = vmatpush1.bf16.msra.mxu0 0
        %3338 = vmatprep.subr.bf16.mxu0 0
        %3339 = vmatpush1.bf16.msra.mxu0 0
        %3340 = vmatprep.subr.bf16.mxu0 0
        %3341 = vmatpush1.bf16.msra.mxu0 0
        %3342 = vmatprep.subr.bf16.mxu0 0
        %3343 = vmatpush1.bf16.msra.mxu0 0
        %3344 = vmatprep.mubr.bf16.mxu0 0
        %3345 = vmatmul.mubr.bf16.gmra.mrb[0].mxu0 %v3310
        %v3346 = vpop.f32.mrb[0].mxu0
        %v3347 = vadd.f32 0.0, %v3346
        %v3348 = vpop.f32.mrb[0].mxu0
        %v3349 = vpop.f32.mrb[0].mxu0
        %v3350 = vpop.f32.mrb[0].mxu0
        %3351 = vdwg.mxu0
        %v3352 = vpack.c.bf16 %v3347, %v3347
        %v3369 = vunpack.c.l.b16 %v2678
        %v3370 = vunpack.c.l.b16 %v2679
        %v3371 = vunpack.c.l.b16 %v2680
        %v3372 = vunpack.c.l.b16 %v2681
        %v3373 = vunpack.c.l.b16 %v2682
        %v3374 = vunpack.c.l.b16 %v2683
        %v3375 = vunpack.c.l.b16 %v2684
        %v3376 = vunpack.c.l.b16 %v2685
        %v3377 = vunpack.c.l.b16 %v2686
        %v3378 = vunpack.c.l.b16 %v2687
        %v3379 = vunpack.c.l.b16 %v2688
        %v3380 = vunpack.c.l.b16 %v2689
        %v3381 = vunpack.c.l.b16 %v2690
        %v3382 = vunpack.c.l.b16 %v2691
        %v3383 = vunpack.c.l.b16 %v2692
        %v3384 = vunpack.c.l.b16 %v2693
        %v3385 = vpack.c.b16 %v3370, %v3369
        %v3386 = vpack.c.b16 %v3372, %v3371
        %v3387 = vpack.c.b16 %v3374, %v3373
        %v3388 = vpack.c.b16 %v3376, %v3375
        %v3389 = vpack.c.b16 %v3378, %v3377
        %v3390 = vpack.c.b16 %v3380, %v3379
        %v3391 = vpack.c.b16 %v3382, %v3381
        %v3392 = vpack.c.b16 %v3384, %v3383
        %3401 = vmatprep.subr.bf16.mxu0 0
        %3402 = vmatpush1.bf16.msra.mxu0 %v3385
        %3403 = vmatprep.subr.bf16.mxu0 0
        %3404 = vmatpush1.bf16.msra.mxu0 %v3386
        %3405 = vmatprep.subr.bf16.mxu0 0
        %3406 = vmatpush1.bf16.msra.mxu0 %v3387
        %3407 = vmatprep.subr.bf16.mxu0 0
        %3408 = vmatpush1.bf16.msra.mxu0 %v3388
        %3409 = vmatprep.subr.bf16.mxu0 0
        %3410 = vmatpush1.bf16.msra.mxu0 %v3389
        %3411 = vmatprep.subr.bf16.mxu0 0
        %3412 = vmatpush1.bf16.msra.mxu0 %v3390
        %3413 = vmatprep.subr.bf16.mxu0 0
        %3414 = vmatpush1.bf16.msra.mxu0 %v3391
        %3415 = vmatprep.subr.bf16.mxu0 0
        %3416 = vmatpush1.bf16.msra.mxu0 %v3392
        %3417 = vmatprep.subr.bf16.mxu0 0
        %3418 = vmatpush1.bf16.msra.mxu0 0
        %3419 = vmatprep.subr.bf16.mxu0 0
        %3420 = vmatpush1.bf16.msra.mxu0 0
        %3421 = vmatprep.subr.bf16.mxu0 0
        %3422 = vmatpush1.bf16.msra.mxu0 0
        %3423 = vmatprep.subr.bf16.mxu0 0
        %3424 = vmatpush1.bf16.msra.mxu0 0
        %3425 = vmatprep.subr.bf16.mxu0 0
        %3426 = vmatpush1.bf16.msra.mxu0 0
        %3427 = vmatprep.subr.bf16.mxu0 0
        %3428 = vmatpush1.bf16.msra.mxu0 0
        %3429 = vmatprep.subr.bf16.mxu0 0
        %3430 = vmatpush1.bf16.msra.mxu0 0
        %3431 = vmatprep.subr.bf16.mxu0 0
        %3432 = vmatpush1.bf16.msra.mxu0 0
        %3433 = vmatprep.mubr.bf16.mxu0 0
        %3434 = vmatmul.mubr.bf16.gmra.mrb[0].mxu0 %v3352
        %v3435 = vpop.f32.mrb[0].mxu0
        %v3436 = vadd.f32 0.0, %v3435
        %v3437 = vpop.f32.mrb[0].mxu0
        %v3438 = vpop.f32.mrb[0].mxu0
        %v3439 = vpop.f32.mrb[0].mxu0
        %3440 = vdwg.mxu0
        %v3441 = vadd.f32 %v3255, %v3436
        %v3443 = vlaneseq
        %v3444 = vshrl.u32 %v3443, 7
        %v3445 = vsub.s32 0, %v3444
        %v3446 = vrot.slane %v2694, %v3445
        %v3448 = vadd.f32 %v3441, %v3446
        %v3449 = vadd.f32 %v2123, %v3448
        %v3450 = vld [vmem:[%s16] sm:$0x1]
        %v3451 = vld [vmem:[%s17] sm:$0x1]
        %v3452 = vsel %vm796, %v3449, 0.0
        %3453 = vadd.xlane.f32.xlu0 %v3452
        %v3454 = vpop.xlane.xlu0 %3453
        %v3455 = vmul.f32 %v3454, %v800
        %v3456 = vsub.f32 %v3449, %v3455
        %v3457 = vmul.f32 %v3456, %v3456
        %v3458 = vsel %vm796, %v3457, 0.0
        %3459 = vadd.xlane.f32.xlu0 %v3458
        %v3460 = vpop.xlane.xlu0 %3459
        %v3461 = vmul.f32 %v3460, %v800
        %v3462 = vadd.f32 %v3461, 1e-05
        %v3463 = vrsqrt.pop %v3462
        %v3464 = vmul.f32 %v3456, %v3463
        %v3466 = vlaneseq
        %v3467 = vshrl.u32 %v3466, 7
        %v3468 = vsub.s32 0, %v3467
        %v3469 = vrot.slane %v3450, %v3468
        %v3471 = vmul.f32 %v3464, %v3469
        %v3473 = vlaneseq
        %v3474 = vshrl.u32 %v3473, 7
        %v3475 = vsub.s32 0, %v3474
        %v3476 = vrot.slane %v3451, %v3475
        %v3478 = vadd.f32 %v3471, %v3476
        %v3479 = vpack.c.bf16 %v3478, %v3478
        %v3480 = vld [vmem:[%s18] sm:$0xf]
        %v3481 = vld [vmem:[%s18 + $0x4] sm:$0xf]
        %v3482 = vld [vmem:[%s18 + $0x8] sm:$0xf]
        %v3483 = vld [vmem:[%s18 + $0xc] sm:$0xf]
        %v3484 = vld [vmem:[%s19] sm:$0x1]
        %v3486 = vlaneseq
        %v3487 = vshrl.u32 %v3486, 7
        %v3488 = vsub.s32 0, %v3487
        %v3489 = vrot.slane %v3484, %v3488
        %v3495 = vunpack.c.l.b16 %v3480
        %v3496 = vunpack.c.l.b16 %v3481
        %v3497 = vunpack.c.l.b16 %v3482
        %v3498 = vunpack.c.l.b16 %v3483
        %v3499 = vpack.c.b16 %v3496, %v3495
        %v3500 = vpack.c.b16 %v3498, %v3497
        %v3504 = vsel %vm796, %v3479, 0
        %3506 = vmatprep.subr.bf16.mxu0 0
        %3507 = vmatpush1.bf16.msra.mxu0 %v3499
        %3508 = vmatprep.subr.bf16.mxu0 0
        %3509 = vmatpush1.bf16.msra.mxu0 %v3500
        %3510 = vmatprep.subr.bf16.mxu0 0
        %3511 = vmatpush1.bf16.msra.mxu0 0
        %3512 = vmatprep.subr.bf16.mxu0 0
        %3513 = vmatpush1.bf16.msra.mxu0 0
        %3514 = vmatprep.subr.bf16.mxu0 0
        %3515 = vmatpush1.bf16.msra.mxu0 0
        %3516 = vmatprep.subr.bf16.mxu0 0
        %3517 = vmatpush1.bf16.msra.mxu0 0
        %3518 = vmatprep.subr.bf16.mxu0 0
        %3519 = vmatpush1.bf16.msra.mxu0 0
        %3520 = vmatprep.subr.bf16.mxu0 0
        %3521 = vmatpush1.bf16.msra.mxu0 0
        %3522 = vmatprep.subr.bf16.mxu0 0
        %3523 = vmatpush1.bf16.msra.mxu0 0
        %3524 = vmatprep.subr.bf16.mxu0 0
        %3525 = vmatpush1.bf16.msra.mxu0 0
        %3526 = vmatprep.subr.bf16.mxu0 0
        %3527 = vmatpush1.bf16.msra.mxu0 0
        %3528 = vmatprep.subr.bf16.mxu0 0
        %3529 = vmatpush1.bf16.msra.mxu0 0
        %3530 = vmatprep.subr.bf16.mxu0 0
        %3531 = vmatpush1.bf16.msra.mxu0 0
        %3532 = vmatprep.subr.bf16.mxu0 0
        %3533 = vmatpush1.bf16.msra.mxu0 0
        %3534 = vmatprep.subr.bf16.mxu0 0
        %3535 = vmatpush1.bf16.msra.mxu0 0
        %3536 = vmatprep.subr.bf16.mxu0 0
        %3537 = vmatpush1.bf16.msra.mxu0 0
        %3538 = vmatprep.mubr.bf16.mxu0 0
        %3539 = vmatmul.mubr.bf16.gmra.mrb[0].mxu0 %v3504
        %v3540 = vpop.f32.mrb[0].mxu0
        %v3541 = vadd.f32 %v3489, %v3540
        %v3542 = vpop.f32.mrb[0].mxu0
        %v3543 = vpop.f32.mrb[0].mxu0
        %v3544 = vpop.f32.mrb[0].mxu0
        %3545 = vdwg.mxu0
        %v3546 = vmax.f32 %v3541, 0.0
        %v3547 = vpack.c.bf16 %v3546, %v3546
        %v3548 = vld [vmem:[%s20] sm:$0xf]
        %v3549 = vld [vmem:[%s20 + $0x4] sm:$0xf]
        %v3550 = vld [vmem:[%s20 + $0x8] sm:$0xf]
        %v3551 = vld [vmem:[%s20 + $0xc] sm:$0xf]
        %v3552 = vld [vmem:[%s20 + $0x10] sm:$0xf]
        %v3553 = vld [vmem:[%s20 + $0x14] sm:$0xf]
        %v3554 = vld [vmem:[%s20 + $0x18] sm:$0xf]
        %v3555 = vld [vmem:[%s20 + $0x1c] sm:$0xf]
        %v3564 = vunpack.c.l.b16 %v3548
        %v3565 = vunpack.c.l.b16 %v3549
        %v3566 = vunpack.c.l.b16 %v3550
        %v3567 = vunpack.c.l.b16 %v3551
        %v3568 = vunpack.c.l.b16 %v3552
        %v3569 = vunpack.c.l.b16 %v3553
        %v3570 = vunpack.c.l.b16 %v3554
        %v3571 = vunpack.c.l.b16 %v3555
        %v3572 = vpack.c.b16 %v3565, %v3564
        %v3573 = vpack.c.b16 %v3567, %v3566
        %v3574 = vpack.c.b16 %v3569, %v3568
        %v3575 = vpack.c.b16 %v3571, %v3570
        %vm3580 = vcmask 523264
        %v3582 = vsel %vm3580, %v3547, 0
        %3584 = vmatprep.subr.bf16.mxu0 0
        %3585 = vmatpush1.bf16.msra.mxu0 %v3572
        %3586 = vmatprep.subr.bf16.mxu0 0
        %3587 = vmatpush1.bf16.msra.mxu0 %v3573
        %3588 = vmatprep.subr.bf16.mxu0 0
        %3589 = vmatpush1.bf16.msra.mxu0 %v3574
        %3590 = vmatprep.subr.bf16.mxu0 0
        %3591 = vmatpush1.bf16.msra.mxu0 %v3575
        %3592 = vmatprep.subr.bf16.mxu0 0
        %3593 = vmatpush1.bf16.msra.mxu0 0
        %3594 = vmatprep.subr.bf16.mxu0 0
        %3595 = vmatpush1.bf16.msra.mxu0 0
        %3596 = vmatprep.subr.bf16.mxu0 0
        %3597 = vmatpush1.bf16.msra.mxu0 0
        %3598 = vmatprep.subr.bf16.mxu0 0
        %3599 = vmatpush1.bf16.msra.mxu0 0
        %3600 = vmatprep.subr.bf16.mxu0 0
        %3601 = vmatpush1.bf16.msra.mxu0 0
        %3602 = vmatprep.subr.bf16.mxu0 0
        %3603 = vmatpush1.bf16.msra.mxu0 0
        %3604 = vmatprep.subr.bf16.mxu0 0
        %3605 = vmatpush1.bf16.msra.mxu0 0
        %3606 = vmatprep.subr.bf16.mxu0 0
        %3607 = vmatpush1.bf16.msra.mxu0 0
        %3608 = vmatprep.subr.bf16.mxu0 0
        %3609 = vmatpush1.bf16.msra.mxu0 0
        %3610 = vmatprep.subr.bf16.mxu0 0
        %3611 = vmatpush1.bf16.msra.mxu0 0
        %3612 = vmatprep.subr.bf16.mxu0 0
        %3613 = vmatpush1.bf16.msra.mxu0 0
        %3614 = vmatprep.subr.bf16.mxu0 0
        %3615 = vmatpush1.bf16.msra.mxu0 0
        %3616 = vmatprep.mubr.bf16.mxu0 0
        %3617 = vmatmul.mubr.bf16.gmra.mrb[0].mxu0 %v3582
        %v3618 = vpop.f32.mrb[0].mxu0
        %v3619 = vadd.f32 0.0, %v3618
        %v3620 = vpop.f32.mrb[0].mxu0
        %v3621 = vpop.f32.mrb[0].mxu0
        %v3622 = vpop.f32.mrb[0].mxu0
        %3623 = vdwg.mxu0
        %v3624 = vadd.f32 %v3449, %v3619
        %v3625 = vld [vmem:[%s21] sm:$0x1]
        %v3627 = vlaneseq
        %v3628 = vshrl.u32 %v3627, 7
        %v3629 = vsub.s32 0, %v3628
        %v3630 = vrot.slane %v3625, %v3629
        %v3632 = vadd.f32 %v3624, %v3630
        %s3633 = scalar_lea.vmem %s2, 1
        %v3634 = vld [vmem:[%s3633] sm:$0x1]
        %s3635 = scalar_lea.vmem %s3, 1
        %v3636 = vld [vmem:[%s3635] sm:$0x1]
        %v3637 = vsel %vm796, %v3632, 0.0
        %3638 = vadd.xlane.f32.xlu0 %v3637
        %v3639 = vpop.xlane.xlu0 %3638
        %v3640 = vmul.f32 %v3639, %v800
        %v3641 = vsub.f32 %v3632, %v3640
        %v3642 = vmul.f32 %v3641, %v3641
        %v3643 = vsel %vm796, %v3642, 0.0
        %3644 = vadd.xlane.f32.xlu0 %v3643
        %v3645 = vpop.xlane.xlu0 %3644
        %v3646 = vmul.f32 %v3645, %v800
        %v3647 = vadd.f32 %v3646, 1e-05
        %v3648 = vrsqrt.pop %v3647
        %v3649 = vmul.f32 %v3641, %v3648
        %v3651 = vlaneseq
        %v3652 = vshrl.u32 %v3651, 7
        %v3653 = vsub.s32 0, %v3652
        %v3654 = vrot.slane %v3634, %v3653
        %v3656 = vmul.f32 %v3649, %v3654
        %v3658 = vlaneseq
        %v3659 = vshrl.u32 %v3658, 7
        %v3660 = vsub.s32 0, %v3659
        %v3661 = vrot.slane %v3636, %v3660
        %v3663 = vadd.f32 %v3656, %v3661
        %v3664 = vpack.c.bf16 %v3663, %v3663
        %s3665 = scalar_lea.vmem %s4, 192
        %v3666 = vld [vmem:[%s3665] sm:$0xff]
        %v3667 = vld [vmem:[%s3665 + $0x8] sm:$0xff]
        %v3668 = vld [vmem:[%s3665 + $0x10] sm:$0xff]
        %v3669 = vld [vmem:[%s3665 + $0x18] sm:$0xff]
        %v3670 = vld [vmem:[%s3665 + $0x20] sm:$0xff]
        %v3671 = vld [vmem:[%s3665 + $0x28] sm:$0xff]
        %v3672 = vld [vmem:[%s3665 + $0x30] sm:$0xff]
        %v3673 = vld [vmem:[%s3665 + $0x38] sm:$0xff]
        %v3674 = vld [vmem:[%s3665 + $0x40] sm:$0xff]
        %v3675 = vld [vmem:[%s3665 + $0x48] sm:$0xff]
        %v3676 = vld [vmem:[%s3665 + $0x50] sm:$0xff]
        %v3677 = vld [vmem:[%s3665 + $0x58] sm:$0xff]
        %v3678 = vld [vmem:[%s3665 + $0x60] sm:$0xff]
        %v3679 = vld [vmem:[%s3665 + $0x68] sm:$0xff]
        %v3680 = vld [vmem:[%s3665 + $0x70] sm:$0xff]
        %v3681 = vld [vmem:[%s3665 + $0x78] sm:$0xff]
        %v3682 = vld [vmem:[%s3665 + $0x80] sm:$0xff]
        %v3683 = vld [vmem:[%s3665 + $0x88] sm:$0xff]
        %v3684 = vld [vmem:[%s3665 + $0x90] sm:$0xff]
        %v3685 = vld [vmem:[%s3665 + $0x98] sm:$0xff]
        %v3686 = vld [vmem:[%s3665 + $0xa0] sm:$0xff]
        %v3687 = vld [vmem:[%s3665 + $0xa8] sm:$0xff]
        %v3688 = vld [vmem:[%s3665 + $0xb0] sm:$0xff]
        %v3689 = vld [vmem:[%s3665 + $0xb8] sm:$0xff]
        %s3690 = scalar_lea.vmem %s5, 12
        %v3691 = vld [vmem:[%s3690] sm:$0xff]
        %v3692 = vld [vmem:[%s3690 + $0x8] sm:$0xf]
        %v3695 = vlaneseq
        %v3696 = vshrl.u32 %v3695, 7
        %v3697 = vsub.s32 0, %v3696
        %v3698 = vrot.slane %v3691, %v3697
        %v3699 = vlaneseq
        %v3700 = vshrl.u32 %v3699, 7
        %v3701 = vsub.s32 1, %v3700
        %v3702 = vrot.slane %v3691, %v3701
        %v3703 = vlaneseq
        %v3704 = vshrl.u32 %v3703, 7
        %v3705 = vsub.s32 2, %v3704
        %v3706 = vrot.slane %v3691, %v3705
        %v3707 = vlaneseq
        %v3708 = vshrl.u32 %v3707, 7
        %v3709 = vsub.s32 3, %v3708
        %v3710 = vrot.slane %v3691, %v3709
        %v3711 = vlaneseq
        %v3712 = vshrl.u32 %v3711, 7
        %v3713 = vsub.s32 4, %v3712
        %v3714 = vrot.slane %v3691, %v3713
        %v3715 = vlaneseq
        %v3716 = vshrl.u32 %v3715, 7
        %v3717 = vsub.s32 5, %v3716
        %v3718 = vrot.slane %v3691, %v3717
        %v3719 = vlaneseq
        %v3720 = vshrl.u32 %v3719, 7
        %v3721 = vsub.s32 6, %v3720
        %v3722 = vrot.slane %v3691, %v3721
        %v3723 = vlaneseq
        %v3724 = vshrl.u32 %v3723, 7
        %v3725 = vsub.s32 7, %v3724
        %v3726 = vrot.slane %v3691, %v3725
        %v3727 = vlaneseq
        %v3728 = vshrl.u32 %v3727, 7
        %v3729 = vsub.s32 0, %v3728
        %v3730 = vrot.slane %v3692, %v3729
        %v3731 = vlaneseq
        %v3732 = vshrl.u32 %v3731, 7
        %v3733 = vsub.s32 1, %v3732
        %v3734 = vrot.slane %v3692, %v3733
        %v3735 = vlaneseq
        %v3736 = vshrl.u32 %v3735, 7
        %v3737 = vsub.s32 2, %v3736
        %v3738 = vrot.slane %v3692, %v3737
        %v3739 = vlaneseq
        %v3740 = vshrl.u32 %v3739, 7
        %v3741 = vsub.s32 3, %v3740
        %v3742 = vrot.slane %v3692, %v3741
        %v3779 = vunpack.c.l.b16 %v3666
        %v3780 = vunpack.c.h.b16 %v3666
        %v3781 = vunpack.c.l.b16 %v3667
        %v3782 = vunpack.c.h.b16 %v3667
        %v3783 = vunpack.c.l.b16 %v3668
        %v3784 = vunpack.c.h.b16 %v3668
        %v3785 = vunpack.c.l.b16 %v3669
        %v3786 = vunpack.c.h.b16 %v3669
        %v3787 = vunpack.c.l.b16 %v3670
        %v3788 = vunpack.c.h.b16 %v3670
        %v3789 = vunpack.c.l.b16 %v3671
        %v3790 = vunpack.c.h.b16 %v3671
        %v3791 = vunpack.c.l.b16 %v3672
        %v3792 = vunpack.c.h.b16 %v3672
        %v3793 = vunpack.c.l.b16 %v3673
        %v3794 = vunpack.c.h.b16 %v3673
        %v3795 = vunpack.c.l.b16 %v3674
        %v3796 = vunpack.c.h.b16 %v3674
        %v3797 = vunpack.c.l.b16 %v3675
        %v3798 = vunpack.c.h.b16 %v3675
        %v3799 = vunpack.c.l.b16 %v3676
        %v3800 = vunpack.c.h.b16 %v3676
        %v3801 = vunpack.c.l.b16 %v3677
        %v3802 = vunpack.c.h.b16 %v3677
        %v3803 = vunpack.c.l.b16 %v3678
        %v3804 = vunpack.c.h.b16 %v3678
        %v3805 = vunpack.c.l.b16 %v3679
        %v3806 = vunpack.c.h.b16 %v3679
        %v3807 = vunpack.c.l.b16 %v3680
        %v3808 = vunpack.c.h.b16 %v3680
        %v3809 = vunpack.c.l.b16 %v3681
        %v3810 = vunpack.c.h.b16 %v3681
        %v3811 = vunpack.c.l.b16 %v3682
        %v3812 = vunpack.c.h.b16 %v3682
        %v3813 = vunpack.c.l.b16 %v3683
        %v3814 = vunpack.c.h.b16 %v3683
        %v3815 = vunpack.c.l.b16 %v3684
        %v3816 = vunpack.c.h.b16 %v3684
        %v3817 = vunpack.c.l.b16 %v3685
        %v3818 = vunpack.c.h.b16 %v3685
        %v3819 = vunpack.c.l.b16 %v3686
        %v3820 = vunpack.c.h.b16 %v3686
        %v3821 = vunpack.c.l.b16 %v3687
        %v3822 = vunpack.c.h.b16 %v3687
        %v3823 = vunpack.c.l.b16 %v3688
        %v3824 = vunpack.c.h.b16 %v3688
        %v3825 = vunpack.c.l.b16 %v3689
        %v3826 = vunpack.c.h.b16 %v3689
        %v3827 = vpack.c.b16 %v3791, %v3779
        %v3828 = vpack.c.b16 %v3792, %v3780
        %v3829 = vpack.c.b16 %v3793, %v3781
        %v3830 = vpack.c.b16 %v3794, %v3782
        %v3831 = vpack.c.b16 %v3795, %v3783
        %v3832 = vpack.c.b16 %v3796, %v3784
        %v3833 = vpack.c.b16 %v3797, %v3785
        %v3834 = vpack.c.b16 %v3798, %v3786
        %v3835 = vpack.c.b16 %v3799, %v3787
        %v3836 = vpack.c.b16 %v3800, %v3788
        %v3837 = vpack.c.b16 %v3801, %v3789
        %v3838 = vpack.c.b16 %v3802, %v3790
        %v3839 = vpack.c.b16 %v3815, %v3803
        %v3840 = vpack.c.b16 %v3816, %v3804
        %v3841 = vpack.c.b16 %v3817, %v3805
        %v3842 = vpack.c.b16 %v3818, %v3806
        %v3843 = vpack.c.b16 %v3819, %v3807
        %v3844 = vpack.c.b16 %v3820, %v3808
        %v3845 = vpack.c.b16 %v3821, %v3809
        %v3846 = vpack.c.b16 %v3822, %v3810
        %v3847 = vpack.c.b16 %v3823, %v3811
        %v3848 = vpack.c.b16 %v3824, %v3812
        %v3849 = vpack.c.b16 %v3825, %v3813
        %v3850 = vpack.c.b16 %v3826, %v3814
        %v3876 = vsel %vm796, %v3664, 0
        %3878 = vmatprep.subr.bf16.mxu0 %v3828
        %3879 = vmatpush1.bf16.msra.mxu0 %v3827
        %3880 = vmatprep.subr.bf16.mxu0 %v3840
        %3881 = vmatpush1.bf16.msra.mxu0 %v3839
        %3882 = vmatprep.subr.bf16.mxu0 0
        %3883 = vmatpush1.bf16.msra.mxu0 0
        %3884 = vmatprep.subr.bf16.mxu0 0
        %3885 = vmatpush1.bf16.msra.mxu0 0
        %3886 = vmatprep.subr.bf16.mxu0 0
        %3887 = vmatpush1.bf16.msra.mxu0 0
        %3888 = vmatprep.subr.bf16.mxu0 0
        %3889 = vmatpush1.bf16.msra.mxu0 0
        %3890 = vmatprep.subr.bf16.mxu0 0
        %3891 = vmatpush1.bf16.msra.mxu0 0
        %3892 = vmatprep.subr.bf16.mxu0 0
        %3893 = vmatpush1.bf16.msra.mxu0 0
        %3894 = vmatprep.subr.bf16.mxu0 0
        %3895 = vmatpush1.bf16.msra.mxu0 0
        %3896 = vmatprep.subr.bf16.mxu0 0
        %3897 = vmatpush1.bf16.msra.mxu0 0
        %3898 = vmatprep.subr.bf16.mxu0 0
        %3899 = vmatpush1.bf16.msra.mxu0 0
        %3900 = vmatprep.subr.bf16.mxu0 0
        %3901 = vmatpush1.bf16.msra.mxu0 0
        %3902 = vmatprep.subr.bf16.mxu0 0
        %3903 = vmatpush1.bf16.msra.mxu0 0
        %3904 = vmatprep.subr.bf16.mxu0 0
        %3905 = vmatpush1.bf16.msra.mxu0 0
        %3906 = vmatprep.subr.bf16.mxu0 0
        %3907 = vmatpush1.bf16.msra.mxu0 0
        %3908 = vmatprep.subr.bf16.mxu0 0
        %3909 = vmatpush1.bf16.msra.mxu0 0
        %3910 = vmatprep.mubr.bf16.mxu0 0
        %3911 = vmatmul.mubr.bf16.gmra.mrb[0].mxu0 %v3876
        %v3912 = vpop.f32.mrb[0].mxu0
        %v3913 = vadd.f32 %v3698, %v3912
        %v3914 = vpop.f32.mrb[0].mxu0
        %v3915 = vadd.f32 %v3702, %v3914
        %v3916 = vpop.f32.mrb[0].mxu0
        %v3917 = vpop.f32.mrb[0].mxu0
        %3918 = vdwg.mxu0
        %3919 = vmatprep.subr.bf16.mxu0 %v3830
        %3920 = vmatpush1.bf16.msra.mxu0 %v3829
        %3921 = vmatprep.subr.bf16.mxu0 %v3842
        %3922 = vmatpush1.bf16.msra.mxu0 %v3841
        %3923 = vmatprep.subr.bf16.mxu0 0
        %3924 = vmatpush1.bf16.msra.mxu0 0
        %3925 = vmatprep.subr.bf16.mxu0 0
        %3926 = vmatpush1.bf16.msra.mxu0 0
        %3927 = vmatprep.subr.bf16.mxu0 0
        %3928 = vmatpush1.bf16.msra.mxu0 0
        %3929 = vmatprep.subr.bf16.mxu0 0
        %3930 = vmatpush1.bf16.msra.mxu0 0
        %3931 = vmatprep.subr.bf16.mxu0 0
        %3932 = vmatpush1.bf16.msra.mxu0 0
        %3933 = vmatprep.subr.bf16.mxu0 0
        %3934 = vmatpush1.bf16.msra.mxu0 0
        %3935 = vmatprep.subr.bf16.mxu0 0
        %3936 = vmatpush1.bf16.msra.mxu0 0
        %3937 = vmatprep.subr.bf16.mxu0 0
        %3938 = vmatpush1.bf16.msra.mxu0 0
        %3939 = vmatprep.subr.bf16.mxu0 0
        %3940 = vmatpush1.bf16.msra.mxu0 0
        %3941 = vmatprep.subr.bf16.mxu0 0
        %3942 = vmatpush1.bf16.msra.mxu0 0
        %3943 = vmatprep.subr.bf16.mxu0 0
        %3944 = vmatpush1.bf16.msra.mxu0 0
        %3945 = vmatprep.subr.bf16.mxu0 0
        %3946 = vmatpush1.bf16.msra.mxu0 0
        %3947 = vmatprep.subr.bf16.mxu0 0
        %3948 = vmatpush1.bf16.msra.mxu0 0
        %3949 = vmatprep.subr.bf16.mxu0 0
        %3950 = vmatpush1.bf16.msra.mxu0 0
        %3951 = vmatprep.mubr.bf16.mxu0 0
        %3952 = vmatmul.mubr.bf16.gmra.mrb[0].mxu0 %v3876
        %v3953 = vpop.f32.mrb[0].mxu0
        %v3954 = vadd.f32 %v3706, %v3953
        %v3955 = vpop.f32.mrb[0].mxu0
        %v3956 = vadd.f32 %v3710, %v3955
        %v3957 = vpop.f32.mrb[0].mxu0
        %v3958 = vpop.f32.mrb[0].mxu0
        %3959 = vdwg.mxu0
        %3960 = vmatprep.subr.bf16.mxu0 %v3832
        %3961 = vmatpush1.bf16.msra.mxu0 %v3831
        %3962 = vmatprep.subr.bf16.mxu0 %v3844
        %3963 = vmatpush1.bf16.msra.mxu0 %v3843
        %3964 = vmatprep.subr.bf16.mxu0 0
        %3965 = vmatpush1.bf16.msra.mxu0 0
        %3966 = vmatprep.subr.bf16.mxu0 0
        %3967 = vmatpush1.bf16.msra.mxu0 0
        %3968 = vmatprep.subr.bf16.mxu0 0
        %3969 = vmatpush1.bf16.msra.mxu0 0
        %3970 = vmatprep.subr.bf16.mxu0 0
        %3971 = vmatpush1.bf16.msra.mxu0 0
        %3972 = vmatprep.subr.bf16.mxu0 0
        %3973 = vmatpush1.bf16.msra.mxu0 0
        %3974 = vmatprep.subr.bf16.mxu0 0
        %3975 = vmatpush1.bf16.msra.mxu0 0
        %3976 = vmatprep.subr.bf16.mxu0 0
        %3977 = vmatpush1.bf16.msra.mxu0 0
        %3978 = vmatprep.subr.bf16.mxu0 0
        %3979 = vmatpush1.bf16.msra.mxu0 0
        %3980 = vmatprep.subr.bf16.mxu0 0
        %3981 = vmatpush1.bf16.msra.mxu0 0
        %3982 = vmatprep.subr.bf16.mxu0 0
        %3983 = vmatpush1.bf16.msra.mxu0 0
        %3984 = vmatprep.subr.bf16.mxu0 0
        %3985 = vmatpush1.bf16.msra.mxu0 0
        %3986 = vmatprep.subr.bf16.mxu0 0
        %3987 = vmatpush1.bf16.msra.mxu0 0
        %3988 = vmatprep.subr.bf16.mxu0 0
        %3989 = vmatpush1.bf16.msra.mxu0 0
        %3990 = vmatprep.subr.bf16.mxu0 0
        %3991 = vmatpush1.bf16.msra.mxu0 0
        %3992 = vmatprep.mubr.bf16.mxu0 0
        %3993 = vmatmul.mubr.bf16.gmra.mrb[0].mxu0 %v3876
        %v3994 = vpop.f32.mrb[0].mxu0
        %v3995 = vadd.f32 %v3714, %v3994
        %v3996 = vpop.f32.mrb[0].mxu0
        %v3997 = vadd.f32 %v3718, %v3996
        %v3998 = vpop.f32.mrb[0].mxu0
        %v3999 = vpop.f32.mrb[0].mxu0
        %4000 = vdwg.mxu0
        %4001 = vmatprep.subr.bf16.mxu0 %v3834
        %4002 = vmatpush1.bf16.msra.mxu0 %v3833
        %4003 = vmatprep.subr.bf16.mxu0 %v3846
        %4004 = vmatpush1.bf16.msra.mxu0 %v3845
        %4005 = vmatprep.subr.bf16.mxu0 0
        %4006 = vmatpush1.bf16.msra.mxu0 0
        %4007 = vmatprep.subr.bf16.mxu0 0
        %4008 = vmatpush1.bf16.msra.mxu0 0
        %4009 = vmatprep.subr.bf16.mxu0 0
        %4010 = vmatpush1.bf16.msra.mxu0 0
        %4011 = vmatprep.subr.bf16.mxu0 0
        %4012 = vmatpush1.bf16.msra.mxu0 0
        %4013 = vmatprep.subr.bf16.mxu0 0
        %4014 = vmatpush1.bf16.msra.mxu0 0
        %4015 = vmatprep.subr.bf16.mxu0 0
        %4016 = vmatpush1.bf16.msra.mxu0 0
        %4017 = vmatprep.subr.bf16.mxu0 0
        %4018 = vmatpush1.bf16.msra.mxu0 0
        %4019 = vmatprep.subr.bf16.mxu0 0
        %4020 = vmatpush1.bf16.msra.mxu0 0
        %4021 = vmatprep.subr.bf16.mxu0 0
        %4022 = vmatpush1.bf16.msra.mxu0 0
        %4023 = vmatprep.subr.bf16.mxu0 0
        %4024 = vmatpush1.bf16.msra.mxu0 0
        %4025 = vmatprep.subr.bf16.mxu0 0
        %4026 = vmatpush1.bf16.msra.mxu0 0
        %4027 = vmatprep.subr.bf16.mxu0 0
        %4028 = vmatpush1.bf16.msra.mxu0 0
        %4029 = vmatprep.subr.bf16.mxu0 0
        %4030 = vmatpush1.bf16.msra.mxu0 0
        %4031 = vmatprep.subr.bf16.mxu0 0
        %4032 = vmatpush1.bf16.msra.mxu0 0
        %4033 = vmatprep.mubr.bf16.mxu0 0
        %4034 = vmatmul.mubr.bf16.gmra.mrb[0].mxu0 %v3876
        %v4035 = vpop.f32.mrb[0].mxu0
        %v4036 = vadd.f32 %v3722, %v4035
        %v4037 = vpop.f32.mrb[0].mxu0
        %v4038 = vadd.f32 %v3726, %v4037
        %v4039 = vpop.f32.mrb[0].mxu0
        %v4040 = vpop.f32.mrb[0].mxu0
        %4041 = vdwg.mxu0
        %4042 = vmatprep.subr.bf16.mxu0 %v3836
        %4043 = vmatpush1.bf16.msra.mxu0 %v3835
        %4044 = vmatprep.subr.bf16.mxu0 %v3848
        %4045 = vmatpush1.bf16.msra.mxu0 %v3847
        %4046 = vmatprep.subr.bf16.mxu0 0
        %4047 = vmatpush1.bf16.msra.mxu0 0
        %4048 = vmatprep.subr.bf16.mxu0 0
        %4049 = vmatpush1.bf16.msra.mxu0 0
        %4050 = vmatprep.subr.bf16.mxu0 0
        %4051 = vmatpush1.bf16.msra.mxu0 0
        %4052 = vmatprep.subr.bf16.mxu0 0
        %4053 = vmatpush1.bf16.msra.mxu0 0
        %4054 = vmatprep.subr.bf16.mxu0 0
        %4055 = vmatpush1.bf16.msra.mxu0 0
        %4056 = vmatprep.subr.bf16.mxu0 0
        %4057 = vmatpush1.bf16.msra.mxu0 0
        %4058 = vmatprep.subr.bf16.mxu0 0
        %4059 = vmatpush1.bf16.msra.mxu0 0
        %4060 = vmatprep.subr.bf16.mxu0 0
        %4061 = vmatpush1.bf16.msra.mxu0 0
        %4062 = vmatprep.subr.bf16.mxu0 0
        %4063 = vmatpush1.bf16.msra.mxu0 0
        %4064 = vmatprep.subr.bf16.mxu0 0
        %4065 = vmatpush1.bf16.msra.mxu0 0
        %4066 = vmatprep.subr.bf16.mxu0 0
        %4067 = vmatpush1.bf16.msra.mxu0 0
        %4068 = vmatprep.subr.bf16.mxu0 0
        %4069 = vmatpush1.bf16.msra.mxu0 0
        %4070 = vmatprep.subr.bf16.mxu0 0
        %4071 = vmatpush1.bf16.msra.mxu0 0
        %4072 = vmatprep.subr.bf16.mxu0 0
        %4073 = vmatpush1.bf16.msra.mxu0 0
        %4074 = vmatprep.mubr.bf16.mxu0 0
        %4075 = vmatmul.mubr.bf16.gmra.mrb[0].mxu0 %v3876
        %v4076 = vpop.f32.mrb[0].mxu0
        %v4077 = vadd.f32 %v3730, %v4076
        %v4078 = vpop.f32.mrb[0].mxu0
        %v4079 = vadd.f32 %v3734, %v4078
        %v4080 = vpop.f32.mrb[0].mxu0
        %v4081 = vpop.f32.mrb[0].mxu0
        %4082 = vdwg.mxu0
        %4083 = vmatprep.subr.bf16.mxu0 %v3838
        %4084 = vmatpush1.bf16.msra.mxu0 %v3837
        %4085 = vmatprep.subr.bf16.mxu0 %v3850
        %4086 = vmatpush1.bf16.msra.mxu0 %v3849
        %4087 = vmatprep.subr.bf16.mxu0 0
        %4088 = vmatpush1.bf16.msra.mxu0 0
        %4089 = vmatprep.subr.bf16.mxu0 0
        %4090 = vmatpush1.bf16.msra.mxu0 0
        %4091 = vmatprep.subr.bf16.mxu0 0
        %4092 = vmatpush1.bf16.msra.mxu0 0
        %4093 = vmatprep.subr.bf16.mxu0 0
        %4094 = vmatpush1.bf16.msra.mxu0 0
        %4095 = vmatprep.subr.bf16.mxu0 0
        %4096 = vmatpush1.bf16.msra.mxu0 0
        %4097 = vmatprep.subr.bf16.mxu0 0
        %4098 = vmatpush1.bf16.msra.mxu0 0
        %4099 = vmatprep.subr.bf16.mxu0 0
        %4100 = vmatpush1.bf16.msra.mxu0 0
        %4101 = vmatprep.subr.bf16.mxu0 0
        %4102 = vmatpush1.bf16.msra.mxu0 0
        %4103 = vmatprep.subr.bf16.mxu0 0
        %4104 = vmatpush1.bf16.msra.mxu0 0
        %4105 = vmatprep.subr.bf16.mxu0 0
        %4106 = vmatpush1.bf16.msra.mxu0 0
        %4107 = vmatprep.subr.bf16.mxu0 0
        %4108 = vmatpush1.bf16.msra.mxu0 0
        %4109 = vmatprep.subr.bf16.mxu0 0
        %4110 = vmatpush1.bf16.msra.mxu0 0
        %4111 = vmatprep.subr.bf16.mxu0 0
        %4112 = vmatpush1.bf16.msra.mxu0 0
        %4113 = vmatprep.subr.bf16.mxu0 0
        %4114 = vmatpush1.bf16.msra.mxu0 0
        %4115 = vmatprep.mubr.bf16.mxu0 0
        %4116 = vmatmul.mubr.bf16.gmra.mrb[0].mxu0 %v3876
        %v4117 = vpop.f32.mrb[0].mxu0
        %v4118 = vadd.f32 %v3738, %v4117
        %v4119 = vpop.f32.mrb[0].mxu0
        %v4120 = vadd.f32 %v3742, %v4119
        %v4121 = vpop.f32.mrb[0].mxu0
        %v4122 = vpop.f32.mrb[0].mxu0
        %4123 = vdwg.mxu0
        %v4124 = vpack.c.bf16 %v3995, %v3995
        %v4125 = vpack.c.bf16 %v3997, %v3997
        %v4126 = vpack.c.bf16 %v4036, %v4036
        %v4127 = vpack.c.bf16 %v4038, %v4038
        %v4128 = vpack.c.bf16 %v4077, %v4077
        %v4129 = vpack.c.bf16 %v4079, %v4079
        %v4130 = vpack.c.bf16 %v4118, %v4118
        %v4131 = vpack.c.bf16 %v4120, %v4120
        %s4132 = scalar_lea.vmem %s6, 256
        %v4133 = vld [vmem:[%s4132] sm:$0xf]
        %v4134 = vld [vmem:[%s4132 + $0x4] sm:$0xf]
        %v4135 = vld [vmem:[%s4132 + $0x8] sm:$0xf]
        %v4136 = vld [vmem:[%s4132 + $0xc] sm:$0xf]
        %v4137 = vld [vmem:[%s4132 + $0x10] sm:$0xf]
        %v4138 = vld [vmem:[%s4132 + $0x14] sm:$0xf]
        %v4139 = vld [vmem:[%s4132 + $0x18] sm:$0xf]
        %v4140 = vld [vmem:[%s4132 + $0x1c] sm:$0xf]
        %v4141 = vld [vmem:[%s4132 + $0x20] sm:$0xf]
        %v4142 = vld [vmem:[%s4132 + $0x24] sm:$0xf]
        %v4143 = vld [vmem:[%s4132 + $0x28] sm:$0xf]
        %v4144 = vld [vmem:[%s4132 + $0x2c] sm:$0xf]
        %v4145 = vld [vmem:[%s4132 + $0x30] sm:$0xf]
        %v4146 = vld [vmem:[%s4132 + $0x34] sm:$0xf]
        %v4147 = vld [vmem:[%s4132 + $0x38] sm:$0xf]
        %v4148 = vld [vmem:[%s4132 + $0x3c] sm:$0xf]
        %v4149 = vld [vmem:[%s4132 + $0x40] sm:$0xf]
        %v4150 = vld [vmem:[%s4132 + $0x44] sm:$0xf]
        %v4151 = vld [vmem:[%s4132 + $0x48] sm:$0xf]
        %v4152 = vld [vmem:[%s4132 + $0x4c] sm:$0xf]
        %v4153 = vld [vmem:[%s4132 + $0x50] sm:$0xf]
        %v4154 = vld [vmem:[%s4132 + $0x54] sm:$0xf]
        %v4155 = vld [vmem:[%s4132 + $0x58] sm:$0xf]
        %v4156 = vld [vmem:[%s4132 + $0x5c] sm:$0xf]
        %v4157 = vld [vmem:[%s4132 + $0x60] sm:$0xf]
        %v4158 = vld [vmem:[%s4132 + $0x64] sm:$0xf]
        %v4159 = vld [vmem:[%s4132 + $0x68] sm:$0xf]
        %v4160 = vld [vmem:[%s4132 + $0x6c] sm:$0xf]
        %v4161 = vld [vmem:[%s4132 + $0x70] sm:$0xf]
        %v4162 = vld [vmem:[%s4132 + $0x74] sm:$0xf]
        %v4163 = vld [vmem:[%s4132 + $0x78] sm:$0xf]
        %v4164 = vld [vmem:[%s4132 + $0x7c] sm:$0xf]
        %v4165 = vld [vmem:[%s4132 + $0x80] sm:$0xf]
        %v4166 = vld [vmem:[%s4132 + $0x84] sm:$0xf]
        %v4167 = vld [vmem:[%s4132 + $0x88] sm:$0xf]
        %v4168 = vld [vmem:[%s4132 + $0x8c] sm:$0xf]
        %v4169 = vld [vmem:[%s4132 + $0x90] sm:$0xf]
        %v4170 = vld [vmem:[%s4132 + $0x94] sm:$0xf]
        %v4171 = vld [vmem:[%s4132 + $0x98] sm:$0xf]
        %v4172 = vld [vmem:[%s4132 + $0x9c] sm:$0xf]
        %v4173 = vld [vmem:[%s4132 + $0xa0] sm:$0xf]
        %v4174 = vld [vmem:[%s4132 + $0xa4] sm:$0xf]
        %v4175 = vld [vmem:[%s4132 + $0xa8] sm:$0xf]
        %v4176 = vld [vmem:[%s4132 + $0xac] sm:$0xf]
        %v4177 = vld [vmem:[%s4132 + $0xb0] sm:$0xf]
        %v4178 = vld [vmem:[%s4132 + $0xb4] sm:$0xf]
        %v4179 = vld [vmem:[%s4132 + $0xb8] sm:$0xf]
        %v4180 = vld [vmem:[%s4132 + $0xbc] sm:$0xf]
        %v4181 = vld [vmem:[%s4132 + $0xc0] sm:$0xf]
        %v4182 = vld [vmem:[%s4132 + $0xc4] sm:$0xf]
        %v4183 = vld [vmem:[%s4132 + $0xc8] sm:$0xf]
        %v4184 = vld [vmem:[%s4132 + $0xcc] sm:$0xf]
        %v4185 = vld [vmem:[%s4132 + $0xd0] sm:$0xf]
        %v4186 = vld [vmem:[%s4132 + $0xd4] sm:$0xf]
        %v4187 = vld [vmem:[%s4132 + $0xd8] sm:$0xf]
        %v4188 = vld [vmem:[%s4132 + $0xdc] sm:$0xf]
        %v4189 = vld [vmem:[%s4132 + $0xe0] sm:$0xf]
        %v4190 = vld [vmem:[%s4132 + $0xe4] sm:$0xf]
        %v4191 = vld [vmem:[%s4132 + $0xe8] sm:$0xf]
        %v4192 = vld [vmem:[%s4132 + $0xec] sm:$0xf]
        %v4193 = vld [vmem:[%s4132 + $0xf0] sm:$0xf]
        %v4194 = vld [vmem:[%s4132 + $0xf4] sm:$0xf]
        %v4195 = vld [vmem:[%s4132 + $0xf8] sm:$0xf]
        %v4196 = vld [vmem:[%s4132 + $0xfc] sm:$0xf]
        %s4197 = scalar_lea.vmem %s7, 1
        %v4198 = vld [vmem:[%s4197] sm:$0x1]
        %v4199 = vpack.c.bf16 %v3913, %v3913
        %v4200 = vpack.c.bf16 %v3915, %v3915
        %v4201 = vpack.c.bf16 %v3954, %v3954
        %v4202 = vpack.c.bf16 %v3956, %v3956
        %4203 = vmatprep.subr.bf16.mxu0 0
        %4204 = vmatpush1.bf16.xpose.msra.mxu0 %v4124
        %4205 = vmatprep.subr.bf16.mxu0 0
        %4206 = vmatpush1.bf16.xpose.msra.mxu0 0
        %4207 = vmatprep.subr.bf16.mxu0 0
        %4208 = vmatpush1.bf16.xpose.msra.mxu0 0
        %4209 = vmatprep.subr.bf16.mxu0 0
        %4210 = vmatpush1.bf16.xpose.msra.mxu0 0
        %4211 = vmatprep.subr.bf16.mxu0 0
        %4212 = vmatpush1.bf16.xpose.msra.mxu0 0
        %4213 = vmatprep.subr.bf16.mxu0 0
        %4214 = vmatpush1.bf16.xpose.msra.mxu0 0
        %4215 = vmatprep.subr.bf16.mxu0 0
        %4216 = vmatpush1.bf16.xpose.msra.mxu0 0
        %4217 = vmatprep.subr.bf16.mxu0 0
        %4218 = vmatpush1.bf16.xpose.msra.mxu0 0
        %4219 = vmatprep.subr.bf16.mxu0 0
        %4220 = vmatpush1.bf16.xpose.msra.mxu0 0
        %4221 = vmatprep.subr.bf16.mxu0 0
        %4222 = vmatpush1.bf16.xpose.msra.mxu0 0
        %4223 = vmatprep.subr.bf16.mxu0 0
        %4224 = vmatpush1.bf16.xpose.msra.mxu0 0
        %4225 = vmatprep.subr.bf16.mxu0 0
        %4226 = vmatpush1.bf16.xpose.msra.mxu0 0
        %4227 = vmatprep.subr.bf16.mxu0 0
        %4228 = vmatpush1.bf16.xpose.msra.mxu0 0
        %4229 = vmatprep.subr.bf16.mxu0 0
        %4230 = vmatpush1.bf16.xpose.msra.mxu0 0
        %4231 = vmatprep.subr.bf16.mxu0 0
        %4232 = vmatpush1.bf16.xpose.msra.mxu0 0
        %4233 = vmatprep.subr.bf16.mxu0 0
        %4234 = vmatpush1.bf16.xpose.msra.mxu0 0
        %4235 = vmatprep.mubr.bf16.mxu0 0
        %4236 = vmatmul.mubr.bf16.gmra.mrb[0].mxu0 %v4199
        %v4237 = vpop.f32.mrb[0].mxu0
        %v4238 = vadd.f32 0.0, %v4237
        %v4239 = vpop.f32.mrb[0].mxu0
        %v4240 = vpop.f32.mrb[0].mxu0
        %v4241 = vpop.f32.mrb[0].mxu0
        %4242 = vdwg.mxu0
        %v4243 = vmul.f32 %v4238, 0.35355338
        %v4244 = vsel %vm1401, %v4243, -inf
        %4245 = vmax.xlane.f32.xlu0 %v4244
        %v4246 = vpop.xlane.xlu0 %4245
        %v4247 = vsub.f32 %v4243, %v4246
        %v4248 = vmul.f32 %v4247, 1.442695
        %v4249 = vpow.pop %v4248
        %v4250 = vsel %vm1401, %v4249, 0.0
        %4251 = vadd.xlane.f32.xlu0 %v4250
        %v4252 = vpop.xlane.xlu0 %4251
        %v4253 = vrcp.pop %v4252
        %v4254 = vmul.f32 %v4249, %v4253
        %v4255 = vpack.c.bf16 %v4254, %v4254
        %v4257 = vsel %vm1401, %v4255, 0
        %v4260 = vsel %vm1417, %v4128, 0
        %4262 = vmatprep.subr.bf16.mxu0 0
        %4263 = vmatpush1.bf16.msra.mxu0 %v4260
        %4264 = vmatprep.subr.bf16.mxu0 0
        %4265 = vmatpush1.bf16.msra.mxu0 0
        %4266 = vmatprep.subr.bf16.mxu0 0
        %4267 = vmatpush1.bf16.msra.mxu0 0
        %4268 = vmatprep.subr.bf16.mxu0 0
        %4269 = vmatpush1.bf16.msra.mxu0 0
        %4270 = vmatprep.subr.bf16.mxu0 0
        %4271 = vmatpush1.bf16.msra.mxu0 0
        %4272 = vmatprep.subr.bf16.mxu0 0
        %4273 = vmatpush1.bf16.msra.mxu0 0
        %4274 = vmatprep.subr.bf16.mxu0 0
        %4275 = vmatpush1.bf16.msra.mxu0 0
        %4276 = vmatprep.subr.bf16.mxu0 0
        %4277 = vmatpush1.bf16.msra.mxu0 0
        %4278 = vmatprep.subr.bf16.mxu0 0
        %4279 = vmatpush1.bf16.msra.mxu0 0
        %4280 = vmatprep.subr.bf16.mxu0 0
        %4281 = vmatpush1.bf16.msra.mxu0 0
        %4282 = vmatprep.subr.bf16.mxu0 0
        %4283 = vmatpush1.bf16.msra.mxu0 0
        %4284 = vmatprep.subr.bf16.mxu0 0
        %4285 = vmatpush1.bf16.msra.mxu0 0
        %4286 = vmatprep.subr.bf16.mxu0 0
        %4287 = vmatpush1.bf16.msra.mxu0 0
        %4288 = vmatprep.subr.bf16.mxu0 0
        %4289 = vmatpush1.bf16.msra.mxu0 0
        %4290 = vmatprep.subr.bf16.mxu0 0
        %4291 = vmatpush1.bf16.msra.mxu0 0
        %4292 = vmatprep.subr.bf16.mxu0 0
        %4293 = vmatpush1.bf16.msra.mxu0 0
        %4294 = vmatprep.mubr.bf16.mxu0 0
        %4295 = vmatmul.mubr.bf16.gmra.mrb[0].mxu0 %v4257
        %v4296 = vpop.f32.mrb[0].mxu0
        %v4297 = vadd.f32 0.0, %v4296
        %v4298 = vpop.f32.mrb[0].mxu0
        %v4299 = vpop.f32.mrb[0].mxu0
        %v4300 = vpop.f32.mrb[0].mxu0
        %4301 = vdwg.mxu0
        %v4302 = vpack.c.bf16 %v4297, %v4297
        %4303 = vmatprep.subr.bf16.mxu0 0
        %4304 = vmatpush1.bf16.xpose.msra.mxu0 %v4125
        %4305 = vmatprep.subr.bf16.mxu0 0
        %4306 = vmatpush1.bf16.xpose.msra.mxu0 0
        %4307 = vmatprep.subr.bf16.mxu0 0
        %4308 = vmatpush1.bf16.xpose.msra.mxu0 0
        %4309 = vmatprep.subr.bf16.mxu0 0
        %4310 = vmatpush1.bf16.xpose.msra.mxu0 0
        %4311 = vmatprep.subr.bf16.mxu0 0
        %4312 = vmatpush1.bf16.xpose.msra.mxu0 0
        %4313 = vmatprep.subr.bf16.mxu0 0
        %4314 = vmatpush1.bf16.xpose.msra.mxu0 0
        %4315 = vmatprep.subr.bf16.mxu0 0
        %4316 = vmatpush1.bf16.xpose.msra.mxu0 0
        %4317 = vmatprep.subr.bf16.mxu0 0
        %4318 = vmatpush1.bf16.xpose.msra.mxu0 0
        %4319 = vmatprep.subr.bf16.mxu0 0
        %4320 = vmatpush1.bf16.xpose.msra.mxu0 0
        %4321 = vmatprep.subr.bf16.mxu0 0
        %4322 = vmatpush1.bf16.xpose.msra.mxu0 0
        %4323 = vmatprep.subr.bf16.mxu0 0
        %4324 = vmatpush1.bf16.xpose.msra.mxu0 0
        %4325 = vmatprep.subr.bf16.mxu0 0
        %4326 = vmatpush1.bf16.xpose.msra.mxu0 0
        %4327 = vmatprep.subr.bf16.mxu0 0
        %4328 = vmatpush1.bf16.xpose.msra.mxu0 0
        %4329 = vmatprep.subr.bf16.mxu0 0
        %4330 = vmatpush1.bf16.xpose.msra.mxu0 0
        %4331 = vmatprep.subr.bf16.mxu0 0
        %4332 = vmatpush1.bf16.xpose.msra.mxu0 0
        %4333 = vmatprep.subr.bf16.mxu0 0
        %4334 = vmatpush1.bf16.xpose.msra.mxu0 0
        %4335 = vmatprep.mubr.bf16.mxu0 0
        %4336 = vmatmul.mubr.bf16.gmra.mrb[0].mxu0 %v4200
        %v4337 = vpop.f32.mrb[0].mxu0
        %v4338 = vadd.f32 0.0, %v4337
        %v4339 = vpop.f32.mrb[0].mxu0
        %v4340 = vpop.f32.mrb[0].mxu0
        %v4341 = vpop.f32.mrb[0].mxu0
        %4342 = vdwg.mxu0
        %v4343 = vmul.f32 %v4338, 0.35355338
        %v4344 = vsel %vm1401, %v4343, -inf
        %4345 = vmax.xlane.f32.xlu0 %v4344
        %v4346 = vpop.xlane.xlu0 %4345
        %v4347 = vsub.f32 %v4343, %v4346
        %v4348 = vmul.f32 %v4347, 1.442695
        %v4349 = vpow.pop %v4348
        %v4350 = vsel %vm1401, %v4349, 0.0
        %4351 = vadd.xlane.f32.xlu0 %v4350
        %v4352 = vpop.xlane.xlu0 %4351
        %v4353 = vrcp.pop %v4352
        %v4354 = vmul.f32 %v4349, %v4353
        %v4355 = vpack.c.bf16 %v4354, %v4354
        %v4357 = vsel %vm1401, %v4355, 0
        %v4360 = vsel %vm1417, %v4129, 0
        %4362 = vmatprep.subr.bf16.mxu0 0
        %4363 = vmatpush1.bf16.msra.mxu0 %v4360
        %4364 = vmatprep.subr.bf16.mxu0 0
        %4365 = vmatpush1.bf16.msra.mxu0 0
        %4366 = vmatprep.subr.bf16.mxu0 0
        %4367 = vmatpush1.bf16.msra.mxu0 0
        %4368 = vmatprep.subr.bf16.mxu0 0
        %4369 = vmatpush1.bf16.msra.mxu0 0
        %4370 = vmatprep.subr.bf16.mxu0 0
        %4371 = vmatpush1.bf16.msra.mxu0 0
        %4372 = vmatprep.subr.bf16.mxu0 0
        %4373 = vmatpush1.bf16.msra.mxu0 0
        %4374 = vmatprep.subr.bf16.mxu0 0
        %4375 = vmatpush1.bf16.msra.mxu0 0
        %4376 = vmatprep.subr.bf16.mxu0 0
        %4377 = vmatpush1.bf16.msra.mxu0 0
        %4378 = vmatprep.subr.bf16.mxu0 0
        %4379 = vmatpush1.bf16.msra.mxu0 0
        %4380 = vmatprep.subr.bf16.mxu0 0
        %4381 = vmatpush1.bf16.msra.mxu0 0
        %4382 = vmatprep.subr.bf16.mxu0 0
        %4383 = vmatpush1.bf16.msra.mxu0 0
        %4384 = vmatprep.subr.bf16.mxu0 0
        %4385 = vmatpush1.bf16.msra.mxu0 0
        %4386 = vmatprep.subr.bf16.mxu0 0
        %4387 = vmatpush1.bf16.msra.mxu0 0
        %4388 = vmatprep.subr.bf16.mxu0 0
        %4389 = vmatpush1.bf16.msra.mxu0 0
        %4390 = vmatprep.subr.bf16.mxu0 0
        %4391 = vmatpush1.bf16.msra.mxu0 0
        %4392 = vmatprep.subr.bf16.mxu0 0
        %4393 = vmatpush1.bf16.msra.mxu0 0
        %4394 = vmatprep.mubr.bf16.mxu0 0
        %4395 = vmatmul.mubr.bf16.gmra.mrb[0].mxu0 %v4357
        %v4396 = vpop.f32.mrb[0].mxu0
        %v4397 = vadd.f32 0.0, %v4396
        %v4398 = vpop.f32.mrb[0].mxu0
        %v4399 = vpop.f32.mrb[0].mxu0
        %v4400 = vpop.f32.mrb[0].mxu0
        %4401 = vdwg.mxu0
        %v4402 = vpack.c.bf16 %v4397, %v4397
        %v4419 = vunpack.c.l.b16 %v4149
        %v4420 = vunpack.c.l.b16 %v4150
        %v4421 = vunpack.c.l.b16 %v4151
        %v4422 = vunpack.c.l.b16 %v4152
        %v4423 = vunpack.c.l.b16 %v4153
        %v4424 = vunpack.c.l.b16 %v4154
        %v4425 = vunpack.c.l.b16 %v4155
        %v4426 = vunpack.c.l.b16 %v4156
        %v4427 = vunpack.c.l.b16 %v4157
        %v4428 = vunpack.c.l.b16 %v4158
        %v4429 = vunpack.c.l.b16 %v4159
        %v4430 = vunpack.c.l.b16 %v4160
        %v4431 = vunpack.c.l.b16 %v4161
        %v4432 = vunpack.c.l.b16 %v4162
        %v4433 = vunpack.c.l.b16 %v4163
        %v4434 = vunpack.c.l.b16 %v4164
        %v4435 = vpack.c.b16 %v4420, %v4419
        %v4436 = vpack.c.b16 %v4422, %v4421
        %v4437 = vpack.c.b16 %v4424, %v4423
        %v4438 = vpack.c.b16 %v4426, %v4425
        %v4439 = vpack.c.b16 %v4428, %v4427
        %v4440 = vpack.c.b16 %v4430, %v4429
        %v4441 = vpack.c.b16 %v4432, %v4431
        %v4442 = vpack.c.b16 %v4434, %v4433
        %4451 = vmatprep.subr.bf16.mxu0 0
        %4452 = vmatpush1.bf16.msra.mxu0 %v4435
        %4453 = vmatprep.subr.bf16.mxu0 0
        %4454 = vmatpush1.bf16.msra.mxu0 %v4436
        %4455 = vmatprep.subr.bf16.mxu0 0
        %4456 = vmatpush1.bf16.msra.mxu0 %v4437
        %4457 = vmatprep.subr.bf16.mxu0 0
        %4458 = vmatpush1.bf16.msra.mxu0 %v4438
        %4459 = vmatprep.subr.bf16.mxu0 0
        %4460 = vmatpush1.bf16.msra.mxu0 %v4439
        %4461 = vmatprep.subr.bf16.mxu0 0
        %4462 = vmatpush1.bf16.msra.mxu0 %v4440
        %4463 = vmatprep.subr.bf16.mxu0 0
        %4464 = vmatpush1.bf16.msra.mxu0 %v4441
        %4465 = vmatprep.subr.bf16.mxu0 0
        %4466 = vmatpush1.bf16.msra.mxu0 %v4442
        %4467 = vmatprep.subr.bf16.mxu0 0
        %4468 = vmatpush1.bf16.msra.mxu0 0
        %4469 = vmatprep.subr.bf16.mxu0 0
        %4470 = vmatpush1.bf16.msra.mxu0 0
        %4471 = vmatprep.subr.bf16.mxu0 0
        %4472 = vmatpush1.bf16.msra.mxu0 0
        %4473 = vmatprep.subr.bf16.mxu0 0
        %4474 = vmatpush1.bf16.msra.mxu0 0
        %4475 = vmatprep.subr.bf16.mxu0 0
        %4476 = vmatpush1.bf16.msra.mxu0 0
        %4477 = vmatprep.subr.bf16.mxu0 0
        %4478 = vmatpush1.bf16.msra.mxu0 0
        %4479 = vmatprep.subr.bf16.mxu0 0
        %4480 = vmatpush1.bf16.msra.mxu0 0
        %4481 = vmatprep.subr.bf16.mxu0 0
        %4482 = vmatpush1.bf16.msra.mxu0 0
        %4483 = vmatprep.mubr.bf16.mxu0 0
        %4484 = vmatmul.mubr.bf16.gmra.mrb[0].mxu0 %v4402
        %v4485 = vpop.f32.mrb[0].mxu0
        %v4486 = vadd.f32 0.0, %v4485
        %v4487 = vpop.f32.mrb[0].mxu0
        %v4488 = vpop.f32.mrb[0].mxu0
        %v4489 = vpop.f32.mrb[0].mxu0
        %4490 = vdwg.mxu0
        %v4507 = vunpack.c.l.b16 %v4133
        %v4508 = vunpack.c.l.b16 %v4134
        %v4509 = vunpack.c.l.b16 %v4135
        %v4510 = vunpack.c.l.b16 %v4136
        %v4511 = vunpack.c.l.b16 %v4137
        %v4512 = vunpack.c.l.b16 %v4138
        %v4513 = vunpack.c.l.b16 %v4139
        %v4514 = vunpack.c.l.b16 %v4140
        %v4515 = vunpack.c.l.b16 %v4141
        %v4516 = vunpack.c.l.b16 %v4142
        %v4517 = vunpack.c.l.b16 %v4143
        %v4518 = vunpack.c.l.b16 %v4144
        %v4519 = vunpack.c.l.b16 %v4145
        %v4520 = vunpack.c.l.b16 %v4146
        %v4521 = vunpack.c.l.b16 %v4147
        %v4522 = vunpack.c.l.b16 %v4148
        %v4523 = vpack.c.b16 %v4508, %v4507
        %v4524 = vpack.c.b16 %v4510, %v4509
        %v4525 = vpack.c.b16 %v4512, %v4511
        %v4526 = vpack.c.b16 %v4514, %v4513
        %v4527 = vpack.c.b16 %v4516, %v4515
        %v4528 = vpack.c.b16 %v4518, %v4517
        %v4529 = vpack.c.b16 %v4520, %v4519
        %v4530 = vpack.c.b16 %v4522, %v4521
        %4539 = vmatprep.subr.bf16.mxu0 0
        %4540 = vmatpush1.bf16.msra.mxu0 %v4523
        %4541 = vmatprep.subr.bf16.mxu0 0
        %4542 = vmatpush1.bf16.msra.mxu0 %v4524
        %4543 = vmatprep.subr.bf16.mxu0 0
        %4544 = vmatpush1.bf16.msra.mxu0 %v4525
        %4545 = vmatprep.subr.bf16.mxu0 0
        %4546 = vmatpush1.bf16.msra.mxu0 %v4526
        %4547 = vmatprep.subr.bf16.mxu0 0
        %4548 = vmatpush1.bf16.msra.mxu0 %v4527
        %4549 = vmatprep.subr.bf16.mxu0 0
        %4550 = vmatpush1.bf16.msra.mxu0 %v4528
        %4551 = vmatprep.subr.bf16.mxu0 0
        %4552 = vmatpush1.bf16.msra.mxu0 %v4529
        %4553 = vmatprep.subr.bf16.mxu0 0
        %4554 = vmatpush1.bf16.msra.mxu0 %v4530
        %4555 = vmatprep.subr.bf16.mxu0 0
        %4556 = vmatpush1.bf16.msra.mxu0 0
        %4557 = vmatprep.subr.bf16.mxu0 0
        %4558 = vmatpush1.bf16.msra.mxu0 0
        %4559 = vmatprep.subr.bf16.mxu0 0
        %4560 = vmatpush1.bf16.msra.mxu0 0
        %4561 = vmatprep.subr.bf16.mxu0 0
        %4562 = vmatpush1.bf16.msra.mxu0 0
        %4563 = vmatprep.subr.bf16.mxu0 0
        %4564 = vmatpush1.bf16.msra.mxu0 0
        %4565 = vmatprep.subr.bf16.mxu0 0
        %4566 = vmatpush1.bf16.msra.mxu0 0
        %4567 = vmatprep.subr.bf16.mxu0 0
        %4568 = vmatpush1.bf16.msra.mxu0 0
        %4569 = vmatprep.subr.bf16.mxu0 0
        %4570 = vmatpush1.bf16.msra.mxu0 0
        %4571 = vmatprep.mubr.bf16.mxu0 0
        %4572 = vmatmul.mubr.bf16.gmra.mrb[0].mxu0 %v4302
        %v4573 = vpop.f32.mrb[0].mxu0
        %v4574 = vadd.f32 %v4486, %v4573
        %v4575 = vpop.f32.mrb[0].mxu0
        %v4576 = vpop.f32.mrb[0].mxu0
        %v4577 = vpop.f32.mrb[0].mxu0
        %4578 = vdwg.mxu0
        %4579 = vmatprep.subr.bf16.mxu0 0
        %4580 = vmatpush1.bf16.xpose.msra.mxu0 %v4126
        %4581 = vmatprep.subr.bf16.mxu0 0
        %4582 = vmatpush1.bf16.xpose.msra.mxu0 0
        %4583 = vmatprep.subr.bf16.mxu0 0
        %4584 = vmatpush1.bf16.xpose.msra.mxu0 0
        %4585 = vmatprep.subr.bf16.mxu0 0
        %4586 = vmatpush1.bf16.xpose.msra.mxu0 0
        %4587 = vmatprep.subr.bf16.mxu0 0
        %4588 = vmatpush1.bf16.xpose.msra.mxu0 0
        %4589 = vmatprep.subr.bf16.mxu0 0
        %4590 = vmatpush1.bf16.xpose.msra.mxu0 0
        %4591 = vmatprep.subr.bf16.mxu0 0
        %4592 = vmatpush1.bf16.xpose.msra.mxu0 0
        %4593 = vmatprep.subr.bf16.mxu0 0
        %4594 = vmatpush1.bf16.xpose.msra.mxu0 0
        %4595 = vmatprep.subr.bf16.mxu0 0
        %4596 = vmatpush1.bf16.xpose.msra.mxu0 0
        %4597 = vmatprep.subr.bf16.mxu0 0
        %4598 = vmatpush1.bf16.xpose.msra.mxu0 0
        %4599 = vmatprep.subr.bf16.mxu0 0
        %4600 = vmatpush1.bf16.xpose.msra.mxu0 0
        %4601 = vmatprep.subr.bf16.mxu0 0
        %4602 = vmatpush1.bf16.xpose.msra.mxu0 0
        %4603 = vmatprep.subr.bf16.mxu0 0
        %4604 = vmatpush1.bf16.xpose.msra.mxu0 0
        %4605 = vmatprep.subr.bf16.mxu0 0
        %4606 = vmatpush1.bf16.xpose.msra.mxu0 0
        %4607 = vmatprep.subr.bf16.mxu0 0
        %4608 = vmatpush1.bf16.xpose.msra.mxu0 0
        %4609 = vmatprep.subr.bf16.mxu0 0
        %4610 = vmatpush1.bf16.xpose.msra.mxu0 0
        %4611 = vmatprep.mubr.bf16.mxu0 0
        %4612 = vmatmul.mubr.bf16.gmra.mrb[0].mxu0 %v4201
        %v4613 = vpop.f32.mrb[0].mxu0
        %v4614 = vadd.f32 0.0, %v4613
        %v4615 = vpop.f32.mrb[0].mxu0
        %v4616 = vpop.f32.mrb[0].mxu0
        %v4617 = vpop.f32.mrb[0].mxu0
        %4618 = vdwg.mxu0
        %v4619 = vmul.f32 %v4614, 0.35355338
        %v4620 = vsel %vm1401, %v4619, -inf
        %4621 = vmax.xlane.f32.xlu0 %v4620
        %v4622 = vpop.xlane.xlu0 %4621
        %v4623 = vsub.f32 %v4619, %v4622
        %v4624 = vmul.f32 %v4623, 1.442695
        %v4625 = vpow.pop %v4624
        %v4626 = vsel %vm1401, %v4625, 0.0
        %4627 = vadd.xlane.f32.xlu0 %v4626
        %v4628 = vpop.xlane.xlu0 %4627
        %v4629 = vrcp.pop %v4628
        %v4630 = vmul.f32 %v4625, %v4629
        %v4631 = vpack.c.bf16 %v4630, %v4630
        %v4633 = vsel %vm1401, %v4631, 0
        %v4636 = vsel %vm1417, %v4130, 0
        %4638 = vmatprep.subr.bf16.mxu0 0
        %4639 = vmatpush1.bf16.msra.mxu0 %v4636
        %4640 = vmatprep.subr.bf16.mxu0 0
        %4641 = vmatpush1.bf16.msra.mxu0 0
        %4642 = vmatprep.subr.bf16.mxu0 0
        %4643 = vmatpush1.bf16.msra.mxu0 0
        %4644 = vmatprep.subr.bf16.mxu0 0
        %4645 = vmatpush1.bf16.msra.mxu0 0
        %4646 = vmatprep.subr.bf16.mxu0 0
        %4647 = vmatpush1.bf16.msra.mxu0 0
        %4648 = vmatprep.subr.bf16.mxu0 0
        %4649 = vmatpush1.bf16.msra.mxu0 0
        %4650 = vmatprep.subr.bf16.mxu0 0
        %4651 = vmatpush1.bf16.msra.mxu0 0
        %4652 = vmatprep.subr.bf16.mxu0 0
        %4653 = vmatpush1.bf16.msra.mxu0 0
        %4654 = vmatprep.subr.bf16.mxu0 0
        %4655 = vmatpush1.bf16.msra.mxu0 0
        %4656 = vmatprep.subr.bf16.mxu0 0
        %4657 = vmatpush1.bf16.msra.mxu0 0
        %4658 = vmatprep.subr.bf16.mxu0 0
        %4659 = vmatpush1.bf16.msra.mxu0 0
        %4660 = vmatprep.subr.bf16.mxu0 0
        %4661 = vmatpush1.bf16.msra.mxu0 0
        %4662 = vmatprep.subr.bf16.mxu0 0
        %4663 = vmatpush1.bf16.msra.mxu0 0
        %4664 = vmatprep.subr.bf16.mxu0 0
        %4665 = vmatpush1.bf16.msra.mxu0 0
        %4666 = vmatprep.subr.bf16.mxu0 0
        %4667 = vmatpush1.bf16.msra.mxu0 0
        %4668 = vmatprep.subr.bf16.mxu0 0
        %4669 = vmatpush1.bf16.msra.mxu0 0
        %4670 = vmatprep.mubr.bf16.mxu0 0
        %4671 = vmatmul.mubr.bf16.gmra.mrb[0].mxu0 %v4633
        %v4672 = vpop.f32.mrb[0].mxu0
        %v4673 = vadd.f32 0.0, %v4672
        %v4674 = vpop.f32.mrb[0].mxu0
        %v4675 = vpop.f32.mrb[0].mxu0
        %v4676 = vpop.f32.mrb[0].mxu0
        %4677 = vdwg.mxu0
        %v4678 = vpack.c.bf16 %v4673, %v4673
        %v4695 = vunpack.c.l.b16 %v4165
        %v4696 = vunpack.c.l.b16 %v4166
        %v4697 = vunpack.c.l.b16 %v4167
        %v4698 = vunpack.c.l.b16 %v4168
        %v4699 = vunpack.c.l.b16 %v4169
        %v4700 = vunpack.c.l.b16 %v4170
        %v4701 = vunpack.c.l.b16 %v4171
        %v4702 = vunpack.c.l.b16 %v4172
        %v4703 = vunpack.c.l.b16 %v4173
        %v4704 = vunpack.c.l.b16 %v4174
        %v4705 = vunpack.c.l.b16 %v4175
        %v4706 = vunpack.c.l.b16 %v4176
        %v4707 = vunpack.c.l.b16 %v4177
        %v4708 = vunpack.c.l.b16 %v4178
        %v4709 = vunpack.c.l.b16 %v4179
        %v4710 = vunpack.c.l.b16 %v4180
        %v4711 = vpack.c.b16 %v4696, %v4695
        %v4712 = vpack.c.b16 %v4698, %v4697
        %v4713 = vpack.c.b16 %v4700, %v4699
        %v4714 = vpack.c.b16 %v4702, %v4701
        %v4715 = vpack.c.b16 %v4704, %v4703
        %v4716 = vpack.c.b16 %v4706, %v4705
        %v4717 = vpack.c.b16 %v4708, %v4707
        %v4718 = vpack.c.b16 %v4710, %v4709
        %4727 = vmatprep.subr.bf16.mxu0 0
        %4728 = vmatpush1.bf16.msra.mxu0 %v4711
        %4729 = vmatprep.subr.bf16.mxu0 0
        %4730 = vmatpush1.bf16.msra.mxu0 %v4712
        %4731 = vmatprep.subr.bf16.mxu0 0
        %4732 = vmatpush1.bf16.msra.mxu0 %v4713
        %4733 = vmatprep.subr.bf16.mxu0 0
        %4734 = vmatpush1.bf16.msra.mxu0 %v4714
        %4735 = vmatprep.subr.bf16.mxu0 0
        %4736 = vmatpush1.bf16.msra.mxu0 %v4715
        %4737 = vmatprep.subr.bf16.mxu0 0
        %4738 = vmatpush1.bf16.msra.mxu0 %v4716
        %4739 = vmatprep.subr.bf16.mxu0 0
        %4740 = vmatpush1.bf16.msra.mxu0 %v4717
        %4741 = vmatprep.subr.bf16.mxu0 0
        %4742 = vmatpush1.bf16.msra.mxu0 %v4718
        %4743 = vmatprep.subr.bf16.mxu0 0
        %4744 = vmatpush1.bf16.msra.mxu0 0
        %4745 = vmatprep.subr.bf16.mxu0 0
        %4746 = vmatpush1.bf16.msra.mxu0 0
        %4747 = vmatprep.subr.bf16.mxu0 0
        %4748 = vmatpush1.bf16.msra.mxu0 0
        %4749 = vmatprep.subr.bf16.mxu0 0
        %4750 = vmatpush1.bf16.msra.mxu0 0
        %4751 = vmatprep.subr.bf16.mxu0 0
        %4752 = vmatpush1.bf16.msra.mxu0 0
        %4753 = vmatprep.subr.bf16.mxu0 0
        %4754 = vmatpush1.bf16.msra.mxu0 0
        %4755 = vmatprep.subr.bf16.mxu0 0
        %4756 = vmatpush1.bf16.msra.mxu0 0
        %4757 = vmatprep.subr.bf16.mxu0 0
        %4758 = vmatpush1.bf16.msra.mxu0 0
        %4759 = vmatprep.mubr.bf16.mxu0 0
        %4760 = vmatmul.mubr.bf16.gmra.mrb[0].mxu0 %v4678
        %v4761 = vpop.f32.mrb[0].mxu0
        %v4762 = vadd.f32 0.0, %v4761
        %v4763 = vpop.f32.mrb[0].mxu0
        %v4764 = vpop.f32.mrb[0].mxu0
        %v4765 = vpop.f32.mrb[0].mxu0
        %4766 = vdwg.mxu0
        %v4767 = vadd.f32 %v4574, %v4762
        %4768 = vmatprep.subr.bf16.mxu0 0
        %4769 = vmatpush1.bf16.xpose.msra.mxu0 %v4127
        %4770 = vmatprep.subr.bf16.mxu0 0
        %4771 = vmatpush1.bf16.xpose.msra.mxu0 0
        %4772 = vmatprep.subr.bf16.mxu0 0
        %4773 = vmatpush1.bf16.xpose.msra.mxu0 0
        %4774 = vmatprep.subr.bf16.mxu0 0
        %4775 = vmatpush1.bf16.xpose.msra.mxu0 0
        %4776 = vmatprep.subr.bf16.mxu0 0
        %4777 = vmatpush1.bf16.xpose.msra.mxu0 0
        %4778 = vmatprep.subr.bf16.mxu0 0
        %4779 = vmatpush1.bf16.xpose.msra.mxu0 0
        %4780 = vmatprep.subr.bf16.mxu0 0
        %4781 = vmatpush1.bf16.xpose.msra.mxu0 0
        %4782 = vmatprep.subr.bf16.mxu0 0
        %4783 = vmatpush1.bf16.xpose.msra.mxu0 0
        %4784 = vmatprep.subr.bf16.mxu0 0
        %4785 = vmatpush1.bf16.xpose.msra.mxu0 0
        %4786 = vmatprep.subr.bf16.mxu0 0
        %4787 = vmatpush1.bf16.xpose.msra.mxu0 0
        %4788 = vmatprep.subr.bf16.mxu0 0
        %4789 = vmatpush1.bf16.xpose.msra.mxu0 0
        %4790 = vmatprep.subr.bf16.mxu0 0
        %4791 = vmatpush1.bf16.xpose.msra.mxu0 0
        %4792 = vmatprep.subr.bf16.mxu0 0
        %4793 = vmatpush1.bf16.xpose.msra.mxu0 0
        %4794 = vmatprep.subr.bf16.mxu0 0
        %4795 = vmatpush1.bf16.xpose.msra.mxu0 0
        %4796 = vmatprep.subr.bf16.mxu0 0
        %4797 = vmatpush1.bf16.xpose.msra.mxu0 0
        %4798 = vmatprep.subr.bf16.mxu0 0
        %4799 = vmatpush1.bf16.xpose.msra.mxu0 0
        %4800 = vmatprep.mubr.bf16.mxu0 0
        %4801 = vmatmul.mubr.bf16.gmra.mrb[0].mxu0 %v4202
        %v4802 = vpop.f32.mrb[0].mxu0
        %v4803 = vadd.f32 0.0, %v4802
        %v4804 = vpop.f32.mrb[0].mxu0
        %v4805 = vpop.f32.mrb[0].mxu0
        %v4806 = vpop.f32.mrb[0].mxu0
        %4807 = vdwg.mxu0
        %v4808 = vmul.f32 %v4803, 0.35355338
        %v4809 = vsel %vm1401, %v4808, -inf
        %4810 = vmax.xlane.f32.xlu0 %v4809
        %v4811 = vpop.xlane.xlu0 %4810
        %v4812 = vsub.f32 %v4808, %v4811
        %v4813 = vmul.f32 %v4812, 1.442695
        %v4814 = vpow.pop %v4813
        %v4815 = vsel %vm1401, %v4814, 0.0
        %4816 = vadd.xlane.f32.xlu0 %v4815
        %v4817 = vpop.xlane.xlu0 %4816
        %v4818 = vrcp.pop %v4817
        %v4819 = vmul.f32 %v4814, %v4818
        %v4820 = vpack.c.bf16 %v4819, %v4819
        %v4822 = vsel %vm1401, %v4820, 0
        %v4825 = vsel %vm1417, %v4131, 0
        %4827 = vmatprep.subr.bf16.mxu0 0
        %4828 = vmatpush1.bf16.msra.mxu0 %v4825
        %4829 = vmatprep.subr.bf16.mxu0 0
        %4830 = vmatpush1.bf16.msra.mxu0 0
        %4831 = vmatprep.subr.bf16.mxu0 0
        %4832 = vmatpush1.bf16.msra.mxu0 0
        %4833 = vmatprep.subr.bf16.mxu0 0
        %4834 = vmatpush1.bf16.msra.mxu0 0
        %4835 = vmatprep.subr.bf16.mxu0 0
        %4836 = vmatpush1.bf16.msra.mxu0 0
        %4837 = vmatprep.subr.bf16.mxu0 0
        %4838 = vmatpush1.bf16.msra.mxu0 0
        %4839 = vmatprep.subr.bf16.mxu0 0
        %4840 = vmatpush1.bf16.msra.mxu0 0
        %4841 = vmatprep.subr.bf16.mxu0 0
        %4842 = vmatpush1.bf16.msra.mxu0 0
        %4843 = vmatprep.subr.bf16.mxu0 0
        %4844 = vmatpush1.bf16.msra.mxu0 0
        %4845 = vmatprep.subr.bf16.mxu0 0
        %4846 = vmatpush1.bf16.msra.mxu0 0
        %4847 = vmatprep.subr.bf16.mxu0 0
        %4848 = vmatpush1.bf16.msra.mxu0 0
        %4849 = vmatprep.subr.bf16.mxu0 0
        %4850 = vmatpush1.bf16.msra.mxu0 0
        %4851 = vmatprep.subr.bf16.mxu0 0
        %4852 = vmatpush1.bf16.msra.mxu0 0
        %4853 = vmatprep.subr.bf16.mxu0 0
        %4854 = vmatpush1.bf16.msra.mxu0 0
        %4855 = vmatprep.subr.bf16.mxu0 0
        %4856 = vmatpush1.bf16.msra.mxu0 0
        %4857 = vmatprep.subr.bf16.mxu0 0
        %4858 = vmatpush1.bf16.msra.mxu0 0
        %4859 = vmatprep.mubr.bf16.mxu0 0
        %4860 = vmatmul.mubr.bf16.gmra.mrb[0].mxu0 %v4822
        %v4861 = vpop.f32.mrb[0].mxu0
        %v4862 = vadd.f32 0.0, %v4861
        %v4863 = vpop.f32.mrb[0].mxu0
        %v4864 = vpop.f32.mrb[0].mxu0
        %v4865 = vpop.f32.mrb[0].mxu0
        %4866 = vdwg.mxu0
        %v4867 = vpack.c.bf16 %v4862, %v4862
        %v4884 = vunpack.c.l.b16 %v4181
        %v4885 = vunpack.c.l.b16 %v4182
        %v4886 = vunpack.c.l.b16 %v4183
        %v4887 = vunpack.c.l.b16 %v4184
        %v4888 = vunpack.c.l.b16 %v4185
        %v4889 = vunpack.c.l.b16 %v4186
        %v4890 = vunpack.c.l.b16 %v4187
        %v4891 = vunpack.c.l.b16 %v4188
        %v4892 = vunpack.c.l.b16 %v4189
        %v4893 = vunpack.c.l.b16 %v4190
        %v4894 = vunpack.c.l.b16 %v4191
        %v4895 = vunpack.c.l.b16 %v4192
        %v4896 = vunpack.c.l.b16 %v4193
        %v4897 = vunpack.c.l.b16 %v4194
        %v4898 = vunpack.c.l.b16 %v4195
        %v4899 = vunpack.c.l.b16 %v4196
        %v4900 = vpack.c.b16 %v4885, %v4884
        %v4901 = vpack.c.b16 %v4887, %v4886
        %v4902 = vpack.c.b16 %v4889, %v4888
        %v4903 = vpack.c.b16 %v4891, %v4890
        %v4904 = vpack.c.b16 %v4893, %v4892
        %v4905 = vpack.c.b16 %v4895, %v4894
        %v4906 = vpack.c.b16 %v4897, %v4896
        %v4907 = vpack.c.b16 %v4899, %v4898
        %4916 = vmatprep.subr.bf16.mxu0 0
        %4917 = vmatpush1.bf16.msra.mxu0 %v4900
        %4918 = vmatprep.subr.bf16.mxu0 0
        %4919 = vmatpush1.bf16.msra.mxu0 %v4901
        %4920 = vmatprep.subr.bf16.mxu0 0
        %4921 = vmatpush1.bf16.msra.mxu0 %v4902
        %4922 = vmatprep.subr.bf16.mxu0 0
        %4923 = vmatpush1.bf16.msra.mxu0 %v4903
        %4924 = vmatprep.subr.bf16.mxu0 0
        %4925 = vmatpush1.bf16.msra.mxu0 %v4904
        %4926 = vmatprep.subr.bf16.mxu0 0
        %4927 = vmatpush1.bf16.msra.mxu0 %v4905
        %4928 = vmatprep.subr.bf16.mxu0 0
        %4929 = vmatpush1.bf16.msra.mxu0 %v4906
        %4930 = vmatprep.subr.bf16.mxu0 0
        %4931 = vmatpush1.bf16.msra.mxu0 %v4907
        %4932 = vmatprep.subr.bf16.mxu0 0
        %4933 = vmatpush1.bf16.msra.mxu0 0
        %4934 = vmatprep.subr.bf16.mxu0 0
        %4935 = vmatpush1.bf16.msra.mxu0 0
        %4936 = vmatprep.subr.bf16.mxu0 0
        %4937 = vmatpush1.bf16.msra.mxu0 0
        %4938 = vmatprep.subr.bf16.mxu0 0
        %4939 = vmatpush1.bf16.msra.mxu0 0
        %4940 = vmatprep.subr.bf16.mxu0 0
        %4941 = vmatpush1.bf16.msra.mxu0 0
        %4942 = vmatprep.subr.bf16.mxu0 0
        %4943 = vmatpush1.bf16.msra.mxu0 0
        %4944 = vmatprep.subr.bf16.mxu0 0
        %4945 = vmatpush1.bf16.msra.mxu0 0
        %4946 = vmatprep.subr.bf16.mxu0 0
        %4947 = vmatpush1.bf16.msra.mxu0 0
        %4948 = vmatprep.mubr.bf16.mxu0 0
        %4949 = vmatmul.mubr.bf16.gmra.mrb[0].mxu0 %v4867
        %v4950 = vpop.f32.mrb[0].mxu0
        %v4951 = vadd.f32 0.0, %v4950
        %v4952 = vpop.f32.mrb[0].mxu0
        %v4953 = vpop.f32.mrb[0].mxu0
        %v4954 = vpop.f32.mrb[0].mxu0
        %4955 = vdwg.mxu0
        %v4956 = vadd.f32 %v4767, %v4951
        %v4958 = vlaneseq
        %v4959 = vshrl.u32 %v4958, 7
        %v4960 = vsub.s32 0, %v4959
        %v4961 = vrot.slane %v4198, %v4960
        %v4963 = vadd.f32 %v4956, %v4961
        %v4964 = vadd.f32 %v3632, %v4963
        %s4965 = scalar_lea.vmem %s8, 1
        %v4966 = vld [vmem:[%s4965] sm:$0x1]
        %s4967 = scalar_lea.vmem %s9, 1
        %v4968 = vld [vmem:[%s4967] sm:$0x1]
        %v4969 = vsel %vm796, %v4964, 0.0
        %4970 = vadd.xlane.f32.xlu0 %v4969
        %v4971 = vpop.xlane.xlu0 %4970
        %v4972 = vmul.f32 %v4971, %v800
        %v4973 = vsub.f32 %v4964, %v4972
        %v4974 = vmul.f32 %v4973, %v4973
        %v4975 = vsel %vm796, %v4974, 0.0
        %4976 = vadd.xlane.f32.xlu0 %v4975
        %v4977 = vpop.xlane.xlu0 %4976
        %v4978 = vmul.f32 %v4977, %v800
        %v4979 = vadd.f32 %v4978, 1e-05
        %v4980 = vrsqrt.pop %v4979
        %v4981 = vmul.f32 %v4973, %v4980
        %v4983 = vlaneseq
        %v4984 = vshrl.u32 %v4983, 7
        %v4985 = vsub.s32 0, %v4984
        %v4986 = vrot.slane %v4966, %v4985
        %v4988 = vmul.f32 %v4981, %v4986
        %v4990 = vlaneseq
        %v4991 = vshrl.u32 %v4990, 7
        %v4992 = vsub.s32 0, %v4991
        %v4993 = vrot.slane %v4968, %v4992
        %v4995 = vadd.f32 %v4988, %v4993
        %v4996 = vpack.c.bf16 %v4995, %v4995
        %s4997 = scalar_lea.vmem %s10, 64
        %v4998 = vld [vmem:[%s4997] sm:$0xff]
        %v4999 = vld [vmem:[%s4997 + $0x8] sm:$0xff]
        %v5000 = vld [vmem:[%s4997 + $0x10] sm:$0xff]
        %v5001 = vld [vmem:[%s4997 + $0x18] sm:$0xff]
        %v5002 = vld [vmem:[%s4997 + $0x20] sm:$0xff]
        %v5003 = vld [vmem:[%s4997 + $0x28] sm:$0xff]
        %v5004 = vld [vmem:[%s4997 + $0x30] sm:$0xff]
        %v5005 = vld [vmem:[%s4997 + $0x38] sm:$0xff]
        %s5006 = scalar_lea.vmem %s11, 4
        %v5007 = vld [vmem:[%s5006] sm:$0xf]
        %v5009 = vlaneseq
        %v5010 = vshrl.u32 %v5009, 7
        %v5011 = vsub.s32 0, %v5010
        %v5012 = vrot.slane %v5007, %v5011
        %v5013 = vlaneseq
        %v5014 = vshrl.u32 %v5013, 7
        %v5015 = vsub.s32 1, %v5014
        %v5016 = vrot.slane %v5007, %v5015
        %v5017 = vlaneseq
        %v5018 = vshrl.u32 %v5017, 7
        %v5019 = vsub.s32 2, %v5018
        %v5020 = vrot.slane %v5007, %v5019
        %v5021 = vlaneseq
        %v5022 = vshrl.u32 %v5021, 7
        %v5023 = vsub.s32 3, %v5022
        %v5024 = vrot.slane %v5007, %v5023
        %v5037 = vunpack.c.l.b16 %v4998
        %v5038 = vunpack.c.h.b16 %v4998
        %v5039 = vunpack.c.l.b16 %v4999
        %v5040 = vunpack.c.h.b16 %v4999
        %v5041 = vunpack.c.l.b16 %v5000
        %v5042 = vunpack.c.h.b16 %v5000
        %v5043 = vunpack.c.l.b16 %v5001
        %v5044 = vunpack.c.h.b16 %v5001
        %v5045 = vunpack.c.l.b16 %v5002
        %v5046 = vunpack.c.h.b16 %v5002
        %v5047 = vunpack.c.l.b16 %v5003
        %v5048 = vunpack.c.h.b16 %v5003
        %v5049 = vunpack.c.l.b16 %v5004
        %v5050 = vunpack.c.h.b16 %v5004
        %v5051 = vunpack.c.l.b16 %v5005
        %v5052 = vunpack.c.h.b16 %v5005
        %v5053 = vpack.c.b16 %v5041, %v5037
        %v5054 = vpack.c.b16 %v5042, %v5038
        %v5055 = vpack.c.b16 %v5043, %v5039
        %v5056 = vpack.c.b16 %v5044, %v5040
        %v5057 = vpack.c.b16 %v5049, %v5045
        %v5058 = vpack.c.b16 %v5050, %v5046
        %v5059 = vpack.c.b16 %v5051, %v5047
        %v5060 = vpack.c.b16 %v5052, %v5048
        %v5070 = vsel %vm796, %v4996, 0
        %5072 = vmatprep.subr.bf16.mxu0 %v5054
        %5073 = vmatpush1.bf16.msra.mxu0 %v5053
        %5074 = vmatprep.subr.bf16.mxu0 %v5058
        %5075 = vmatpush1.bf16.msra.mxu0 %v5057
        %5076 = vmatprep.subr.bf16.mxu0 0
        %5077 = vmatpush1.bf16.msra.mxu0 0
        %5078 = vmatprep.subr.bf16.mxu0 0
        %5079 = vmatpush1.bf16.msra.mxu0 0
        %5080 = vmatprep.subr.bf16.mxu0 0
        %5081 = vmatpush1.bf16.msra.mxu0 0
        %5082 = vmatprep.subr.bf16.mxu0 0
        %5083 = vmatpush1.bf16.msra.mxu0 0
        %5084 = vmatprep.subr.bf16.mxu0 0
        %5085 = vmatpush1.bf16.msra.mxu0 0
        %5086 = vmatprep.subr.bf16.mxu0 0
        %5087 = vmatpush1.bf16.msra.mxu0 0
        %5088 = vmatprep.subr.bf16.mxu0 0
        %5089 = vmatpush1.bf16.msra.mxu0 0
        %5090 = vmatprep.subr.bf16.mxu0 0
        %5091 = vmatpush1.bf16.msra.mxu0 0
        %5092 = vmatprep.subr.bf16.mxu0 0
        %5093 = vmatpush1.bf16.msra.mxu0 0
        %5094 = vmatprep.subr.bf16.mxu0 0
        %5095 = vmatpush1.bf16.msra.mxu0 0
        %5096 = vmatprep.subr.bf16.mxu0 0
        %5097 = vmatpush1.bf16.msra.mxu0 0
        %5098 = vmatprep.subr.bf16.mxu0 0
        %5099 = vmatpush1.bf16.msra.mxu0 0
        %5100 = vmatprep.subr.bf16.mxu0 0
        %5101 = vmatpush1.bf16.msra.mxu0 0
        %5102 = vmatprep.subr.bf16.mxu0 0
        %5103 = vmatpush1.bf16.msra.mxu0 0
        %5104 = vmatprep.mubr.bf16.mxu0 0
        %5105 = vmatmul.mubr.bf16.gmra.mrb[0].mxu0 %v5070
        %v5106 = vpop.f32.mrb[0].mxu0
        %v5107 = vadd.f32 %v5012, %v5106
        %v5108 = vpop.f32.mrb[0].mxu0
        %v5109 = vadd.f32 %v5016, %v5108
        %v5110 = vpop.f32.mrb[0].mxu0
        %v5111 = vpop.f32.mrb[0].mxu0
        %5112 = vdwg.mxu0
        %5113 = vmatprep.subr.bf16.mxu0 %v5056
        %5114 = vmatpush1.bf16.msra.mxu0 %v5055
        %5115 = vmatprep.subr.bf16.mxu0 %v5060
        %5116 = vmatpush1.bf16.msra.mxu0 %v5059
        %5117 = vmatprep.subr.bf16.mxu0 0
        %5118 = vmatpush1.bf16.msra.mxu0 0
        %5119 = vmatprep.subr.bf16.mxu0 0
        %5120 = vmatpush1.bf16.msra.mxu0 0
        %5121 = vmatprep.subr.bf16.mxu0 0
        %5122 = vmatpush1.bf16.msra.mxu0 0
        %5123 = vmatprep.subr.bf16.mxu0 0
        %5124 = vmatpush1.bf16.msra.mxu0 0
        %5125 = vmatprep.subr.bf16.mxu0 0
        %5126 = vmatpush1.bf16.msra.mxu0 0
        %5127 = vmatprep.subr.bf16.mxu0 0
        %5128 = vmatpush1.bf16.msra.mxu0 0
        %5129 = vmatprep.subr.bf16.mxu0 0
        %5130 = vmatpush1.bf16.msra.mxu0 0
        %5131 = vmatprep.subr.bf16.mxu0 0
        %5132 = vmatpush1.bf16.msra.mxu0 0
        %5133 = vmatprep.subr.bf16.mxu0 0
        %5134 = vmatpush1.bf16.msra.mxu0 0
        %5135 = vmatprep.subr.bf16.mxu0 0
        %5136 = vmatpush1.bf16.msra.mxu0 0
        %5137 = vmatprep.subr.bf16.mxu0 0
        %5138 = vmatpush1.bf16.msra.mxu0 0
        %5139 = vmatprep.subr.bf16.mxu0 0
        %5140 = vmatpush1.bf16.msra.mxu0 0
        %5141 = vmatprep.subr.bf16.mxu0 0
        %5142 = vmatpush1.bf16.msra.mxu0 0
        %5143 = vmatprep.subr.bf16.mxu0 0
        %5144 = vmatpush1.bf16.msra.mxu0 0
        %5145 = vmatprep.mubr.bf16.mxu0 0
        %5146 = vmatmul.mubr.bf16.gmra.mrb[0].mxu0 %v5070
        %v5147 = vpop.f32.mrb[0].mxu0
        %v5148 = vadd.f32 %v5020, %v5147
        %v5149 = vpop.f32.mrb[0].mxu0
        %v5150 = vadd.f32 %v5024, %v5149
        %v5151 = vpop.f32.mrb[0].mxu0
        %v5152 = vpop.f32.mrb[0].mxu0
        %5153 = vdwg.mxu0
        %s5154 = scalar_lea.vmem %s12, 128
        %v5155 = vld [vmem:[%s5154] sm:$0xff]
        %v5156 = vld [vmem:[%s5154 + $0x8] sm:$0xff]
        %v5157 = vld [vmem:[%s5154 + $0x10] sm:$0xff]
        %v5158 = vld [vmem:[%s5154 + $0x18] sm:$0xff]
        %v5159 = vld [vmem:[%s5154 + $0x20] sm:$0xff]
        %v5160 = vld [vmem:[%s5154 + $0x28] sm:$0xff]
        %v5161 = vld [vmem:[%s5154 + $0x30] sm:$0xff]
        %v5162 = vld [vmem:[%s5154 + $0x38] sm:$0xff]
        %v5163 = vld [vmem:[%s5154 + $0x40] sm:$0xff]
        %v5164 = vld [vmem:[%s5154 + $0x48] sm:$0xff]
        %v5165 = vld [vmem:[%s5154 + $0x50] sm:$0xff]
        %v5166 = vld [vmem:[%s5154 + $0x58] sm:$0xff]
        %v5167 = vld [vmem:[%s5154 + $0x60] sm:$0xff]
        %v5168 = vld [vmem:[%s5154 + $0x68] sm:$0xff]
        %v5169 = vld [vmem:[%s5154 + $0x70] sm:$0xff]
        %v5170 = vld [vmem:[%s5154 + $0x78] sm:$0xff]
        %s5171 = scalar_lea.vmem %s13, 8
        %v5172 = vld [vmem:[%s5171] sm:$0xff]
        %v5174 = vlaneseq
        %v5175 = vshrl.u32 %v5174, 7
        %v5176 = vsub.s32 0, %v5175
        %v5177 = vrot.slane %v5172, %v5176
        %v5178 = vlaneseq
        %v5179 = vshrl.u32 %v5178, 7
        %v5180 = vsub.s32 1, %v5179
        %v5181 = vrot.slane %v5172, %v5180
        %v5182 = vlaneseq
        %v5183 = vshrl.u32 %v5182, 7
        %v5184 = vsub.s32 2, %v5183
        %v5185 = vrot.slane %v5172, %v5184
        %v5186 = vlaneseq
        %v5187 = vshrl.u32 %v5186, 7
        %v5188 = vsub.s32 3, %v5187
        %v5189 = vrot.slane %v5172, %v5188
        %v5190 = vlaneseq
        %v5191 = vshrl.u32 %v5190, 7
        %v5192 = vsub.s32 4, %v5191
        %v5193 = vrot.slane %v5172, %v5192
        %v5194 = vlaneseq
        %v5195 = vshrl.u32 %v5194, 7
        %v5196 = vsub.s32 5, %v5195
        %v5197 = vrot.slane %v5172, %v5196
        %v5198 = vlaneseq
        %v5199 = vshrl.u32 %v5198, 7
        %v5200 = vsub.s32 6, %v5199
        %v5201 = vrot.slane %v5172, %v5200
        %v5202 = vlaneseq
        %v5203 = vshrl.u32 %v5202, 7
        %v5204 = vsub.s32 7, %v5203
        %v5205 = vrot.slane %v5172, %v5204
        %v5230 = vunpack.c.l.b16 %v5155
        %v5231 = vunpack.c.h.b16 %v5155
        %v5232 = vunpack.c.l.b16 %v5156
        %v5233 = vunpack.c.h.b16 %v5156
        %v5234 = vunpack.c.l.b16 %v5157
        %v5235 = vunpack.c.h.b16 %v5157
        %v5236 = vunpack.c.l.b16 %v5158
        %v5237 = vunpack.c.h.b16 %v5158
        %v5238 = vunpack.c.l.b16 %v5159
        %v5239 = vunpack.c.h.b16 %v5159
        %v5240 = vunpack.c.l.b16 %v5160
        %v5241 = vunpack.c.h.b16 %v5160
        %v5242 = vunpack.c.l.b16 %v5161
        %v5243 = vunpack.c.h.b16 %v5161
        %v5244 = vunpack.c.l.b16 %v5162
        %v5245 = vunpack.c.h.b16 %v5162
        %v5246 = vunpack.c.l.b16 %v5163
        %v5247 = vunpack.c.h.b16 %v5163
        %v5248 = vunpack.c.l.b16 %v5164
        %v5249 = vunpack.c.h.b16 %v5164
        %v5250 = vunpack.c.l.b16 %v5165
        %v5251 = vunpack.c.h.b16 %v5165
        %v5252 = vunpack.c.l.b16 %v5166
        %v5253 = vunpack.c.h.b16 %v5166
        %v5254 = vunpack.c.l.b16 %v5167
        %v5255 = vunpack.c.h.b16 %v5167
        %v5256 = vunpack.c.l.b16 %v5168
        %v5257 = vunpack.c.h.b16 %v5168
        %v5258 = vunpack.c.l.b16 %v5169
        %v5259 = vunpack.c.h.b16 %v5169
        %v5260 = vunpack.c.l.b16 %v5170
        %v5261 = vunpack.c.h.b16 %v5170
        %v5262 = vpack.c.b16 %v5238, %v5230
        %v5263 = vpack.c.b16 %v5239, %v5231
        %v5264 = vpack.c.b16 %v5240, %v5232
        %v5265 = vpack.c.b16 %v5241, %v5233
        %v5266 = vpack.c.b16 %v5242, %v5234
        %v5267 = vpack.c.b16 %v5243, %v5235
        %v5268 = vpack.c.b16 %v5244, %v5236
        %v5269 = vpack.c.b16 %v5245, %v5237
        %v5270 = vpack.c.b16 %v5254, %v5246
        %v5271 = vpack.c.b16 %v5255, %v5247
        %v5272 = vpack.c.b16 %v5256, %v5248
        %v5273 = vpack.c.b16 %v5257, %v5249
        %v5274 = vpack.c.b16 %v5258, %v5250
        %v5275 = vpack.c.b16 %v5259, %v5251
        %v5276 = vpack.c.b16 %v5260, %v5252
        %v5277 = vpack.c.b16 %v5261, %v5253
        %5294 = vmatprep.subr.bf16.mxu0 %v5263
        %5295 = vmatpush1.bf16.msra.mxu0 %v5262
        %5296 = vmatprep.subr.bf16.mxu0 %v5271
        %5297 = vmatpush1.bf16.msra.mxu0 %v5270
        %5298 = vmatprep.subr.bf16.mxu0 0
        %5299 = vmatpush1.bf16.msra.mxu0 0
        %5300 = vmatprep.subr.bf16.mxu0 0
        %5301 = vmatpush1.bf16.msra.mxu0 0
        %5302 = vmatprep.subr.bf16.mxu0 0
        %5303 = vmatpush1.bf16.msra.mxu0 0
        %5304 = vmatprep.subr.bf16.mxu0 0
        %5305 = vmatpush1.bf16.msra.mxu0 0
        %5306 = vmatprep.subr.bf16.mxu0 0
        %5307 = vmatpush1.bf16.msra.mxu0 0
        %5308 = vmatprep.subr.bf16.mxu0 0
        %5309 = vmatpush1.bf16.msra.mxu0 0
        %5310 = vmatprep.subr.bf16.mxu0 0
        %5311 = vmatpush1.bf16.msra.mxu0 0
        %5312 = vmatprep.subr.bf16.mxu0 0
        %5313 = vmatpush1.bf16.msra.mxu0 0
        %5314 = vmatprep.subr.bf16.mxu0 0
        %5315 = vmatpush1.bf16.msra.mxu0 0
        %5316 = vmatprep.subr.bf16.mxu0 0
        %5317 = vmatpush1.bf16.msra.mxu0 0
        %5318 = vmatprep.subr.bf16.mxu0 0
        %5319 = vmatpush1.bf16.msra.mxu0 0
        %5320 = vmatprep.subr.bf16.mxu0 0
        %5321 = vmatpush1.bf16.msra.mxu0 0
        %5322 = vmatprep.subr.bf16.mxu0 0
        %5323 = vmatpush1.bf16.msra.mxu0 0
        %5324 = vmatprep.subr.bf16.mxu0 0
        %5325 = vmatpush1.bf16.msra.mxu0 0
        %5326 = vmatprep.mubr.bf16.mxu0 0
        %5327 = vmatmul.mubr.bf16.gmra.mrb[0].mxu0 %v2448
        %v5328 = vpop.f32.mrb[0].mxu0
        %v5329 = vadd.f32 %v5177, %v5328
        %v5330 = vpop.f32.mrb[0].mxu0
        %v5331 = vadd.f32 %v5181, %v5330
        %v5332 = vpop.f32.mrb[0].mxu0
        %v5333 = vadd.f32 %v5177, %v5332
        %v5334 = vpop.f32.mrb[0].mxu0
        %v5335 = vadd.f32 %v5181, %v5334
        %5336 = vdwg.mxu0
        %5337 = vmatprep.subr.bf16.mxu0 %v5265
        %5338 = vmatpush1.bf16.msra.mxu0 %v5264
        %5339 = vmatprep.subr.bf16.mxu0 %v5273
        %5340 = vmatpush1.bf16.msra.mxu0 %v5272
        %5341 = vmatprep.subr.bf16.mxu0 0
        %5342 = vmatpush1.bf16.msra.mxu0 0
        %5343 = vmatprep.subr.bf16.mxu0 0
        %5344 = vmatpush1.bf16.msra.mxu0 0
        %5345 = vmatprep.subr.bf16.mxu0 0
        %5346 = vmatpush1.bf16.msra.mxu0 0
        %5347 = vmatprep.subr.bf16.mxu0 0
        %5348 = vmatpush1.bf16.msra.mxu0 0
        %5349 = vmatprep.subr.bf16.mxu0 0
        %5350 = vmatpush1.bf16.msra.mxu0 0
        %5351 = vmatprep.subr.bf16.mxu0 0
        %5352 = vmatpush1.bf16.msra.mxu0 0
        %5353 = vmatprep.subr.bf16.mxu0 0
        %5354 = vmatpush1.bf16.msra.mxu0 0
        %5355 = vmatprep.subr.bf16.mxu0 0
        %5356 = vmatpush1.bf16.msra.mxu0 0
        %5357 = vmatprep.subr.bf16.mxu0 0
        %5358 = vmatpush1.bf16.msra.mxu0 0
        %5359 = vmatprep.subr.bf16.mxu0 0
        %5360 = vmatpush1.bf16.msra.mxu0 0
        %5361 = vmatprep.subr.bf16.mxu0 0
        %5362 = vmatpush1.bf16.msra.mxu0 0
        %5363 = vmatprep.subr.bf16.mxu0 0
        %5364 = vmatpush1.bf16.msra.mxu0 0
        %5365 = vmatprep.subr.bf16.mxu0 0
        %5366 = vmatpush1.bf16.msra.mxu0 0
        %5367 = vmatprep.subr.bf16.mxu0 0
        %5368 = vmatpush1.bf16.msra.mxu0 0
        %5369 = vmatprep.mubr.bf16.mxu0 0
        %5370 = vmatmul.mubr.bf16.gmra.mrb[0].mxu0 %v2448
        %v5371 = vpop.f32.mrb[0].mxu0
        %v5372 = vadd.f32 %v5185, %v5371
        %v5373 = vpop.f32.mrb[0].mxu0
        %v5374 = vadd.f32 %v5189, %v5373
        %v5375 = vpop.f32.mrb[0].mxu0
        %v5376 = vadd.f32 %v5185, %v5375
        %v5377 = vpop.f32.mrb[0].mxu0
        %v5378 = vadd.f32 %v5189, %v5377
        %5379 = vdwg.mxu0
        %5380 = vmatprep.subr.bf16.mxu0 %v5267
        %5381 = vmatpush1.bf16.msra.mxu0 %v5266
        %5382 = vmatprep.subr.bf16.mxu0 %v5275
        %5383 = vmatpush1.bf16.msra.mxu0 %v5274
        %5384 = vmatprep.subr.bf16.mxu0 0
        %5385 = vmatpush1.bf16.msra.mxu0 0
        %5386 = vmatprep.subr.bf16.mxu0 0
        %5387 = vmatpush1.bf16.msra.mxu0 0
        %5388 = vmatprep.subr.bf16.mxu0 0
        %5389 = vmatpush1.bf16.msra.mxu0 0
        %5390 = vmatprep.subr.bf16.mxu0 0
        %5391 = vmatpush1.bf16.msra.mxu0 0
        %5392 = vmatprep.subr.bf16.mxu0 0
        %5393 = vmatpush1.bf16.msra.mxu0 0
        %5394 = vmatprep.subr.bf16.mxu0 0
        %5395 = vmatpush1.bf16.msra.mxu0 0
        %5396 = vmatprep.subr.bf16.mxu0 0
        %5397 = vmatpush1.bf16.msra.mxu0 0
        %5398 = vmatprep.subr.bf16.mxu0 0
        %5399 = vmatpush1.bf16.msra.mxu0 0
        %5400 = vmatprep.subr.bf16.mxu0 0
        %5401 = vmatpush1.bf16.msra.mxu0 0
        %5402 = vmatprep.subr.bf16.mxu0 0
        %5403 = vmatpush1.bf16.msra.mxu0 0
        %5404 = vmatprep.subr.bf16.mxu0 0
        %5405 = vmatpush1.bf16.msra.mxu0 0
        %5406 = vmatprep.subr.bf16.mxu0 0
        %5407 = vmatpush1.bf16.msra.mxu0 0
        %5408 = vmatprep.subr.bf16.mxu0 0
        %5409 = vmatpush1.bf16.msra.mxu0 0
        %5410 = vmatprep.subr.bf16.mxu0 0
        %5411 = vmatpush1.bf16.msra.mxu0 0
        %5412 = vmatprep.mubr.bf16.mxu0 0
        %5413 = vmatmul.mubr.bf16.gmra.mrb[0].mxu0 %v2448
        %v5414 = vpop.f32.mrb[0].mxu0
        %v5415 = vadd.f32 %v5193, %v5414
        %v5416 = vpop.f32.mrb[0].mxu0
        %v5417 = vadd.f32 %v5197, %v5416
        %v5418 = vpop.f32.mrb[0].mxu0
        %v5419 = vadd.f32 %v5193, %v5418
        %v5420 = vpop.f32.mrb[0].mxu0
        %v5421 = vadd.f32 %v5197, %v5420
        %5422 = vdwg.mxu0
        %5423 = vmatprep.subr.bf16.mxu0 %v5269
        %5424 = vmatpush1.bf16.msra.mxu0 %v5268
        %5425 = vmatprep.subr.bf16.mxu0 %v5277
        %5426 = vmatpush1.bf16.msra.mxu0 %v5276
        %5427 = vmatprep.subr.bf16.mxu0 0
        %5428 = vmatpush1.bf16.msra.mxu0 0
        %5429 = vmatprep.subr.bf16.mxu0 0
        %5430 = vmatpush1.bf16.msra.mxu0 0
        %5431 = vmatprep.subr.bf16.mxu0 0
        %5432 = vmatpush1.bf16.msra.mxu0 0
        %5433 = vmatprep.subr.bf16.mxu0 0
        %5434 = vmatpush1.bf16.msra.mxu0 0
        %5435 = vmatprep.subr.bf16.mxu0 0
        %5436 = vmatpush1.bf16.msra.mxu0 0
        %5437 = vmatprep.subr.bf16.mxu0 0
        %5438 = vmatpush1.bf16.msra.mxu0 0
        %5439 = vmatprep.subr.bf16.mxu0 0
        %5440 = vmatpush1.bf16.msra.mxu0 0
        %5441 = vmatprep.subr.bf16.mxu0 0
        %5442 = vmatpush1.bf16.msra.mxu0 0
        %5443 = vmatprep.subr.bf16.mxu0 0
        %5444 = vmatpush1.bf16.msra.mxu0 0
        %5445 = vmatprep.subr.bf16.mxu0 0
        %5446 = vmatpush1.bf16.msra.mxu0 0
        %5447 = vmatprep.subr.bf16.mxu0 0
        %5448 = vmatpush1.bf16.msra.mxu0 0
        %5449 = vmatprep.subr.bf16.mxu0 0
        %5450 = vmatpush1.bf16.msra.mxu0 0
        %5451 = vmatprep.subr.bf16.mxu0 0
        %5452 = vmatpush1.bf16.msra.mxu0 0
        %5453 = vmatprep.subr.bf16.mxu0 0
        %5454 = vmatpush1.bf16.msra.mxu0 0
        %5455 = vmatprep.mubr.bf16.mxu0 0
        %5456 = vmatmul.mubr.bf16.gmra.mrb[0].mxu0 %v2448
        %v5457 = vpop.f32.mrb[0].mxu0
        %v5458 = vadd.f32 %v5201, %v5457
        %v5459 = vpop.f32.mrb[0].mxu0
        %v5460 = vadd.f32 %v5205, %v5459
        %v5461 = vpop.f32.mrb[0].mxu0
        %v5462 = vadd.f32 %v5201, %v5461
        %v5463 = vpop.f32.mrb[0].mxu0
        %v5464 = vadd.f32 %v5205, %v5463
        %5465 = vdwg.mxu0
        %v5466 = vpack.c.bf16 %v5333, %v5329
        %v5467 = vpack.c.bf16 %v5335, %v5331
        %v5468 = vpack.c.bf16 %v5376, %v5372
        %v5469 = vpack.c.bf16 %v5378, %v5374
        %v5470 = vpack.c.bf16 %v5419, %v5415
        %v5471 = vpack.c.bf16 %v5421, %v5417
        %v5472 = vpack.c.bf16 %v5462, %v5458
        %v5473 = vpack.c.bf16 %v5464, %v5460
        %s5474 = scalar_lea.vmem %s14, 256
        %v5475 = vld [vmem:[%s5474] sm:$0xf]
        %v5476 = vld [vmem:[%s5474 + $0x4] sm:$0xf]
        %v5477 = vld [vmem:[%s5474 + $0x8] sm:$0xf]
        %v5478 = vld [vmem:[%s5474 + $0xc] sm:$0xf]
        %v5479 = vld [vmem:[%s5474 + $0x10] sm:$0xf]
        %v5480 = vld [vmem:[%s5474 + $0x14] sm:$0xf]
        %v5481 = vld [vmem:[%s5474 + $0x18] sm:$0xf]
        %v5482 = vld [vmem:[%s5474 + $0x1c] sm:$0xf]
        %v5483 = vld [vmem:[%s5474 + $0x20] sm:$0xf]
        %v5484 = vld [vmem:[%s5474 + $0x24] sm:$0xf]
        %v5485 = vld [vmem:[%s5474 + $0x28] sm:$0xf]
        %v5486 = vld [vmem:[%s5474 + $0x2c] sm:$0xf]
        %v5487 = vld [vmem:[%s5474 + $0x30] sm:$0xf]
        %v5488 = vld [vmem:[%s5474 + $0x34] sm:$0xf]
        %v5489 = vld [vmem:[%s5474 + $0x38] sm:$0xf]
        %v5490 = vld [vmem:[%s5474 + $0x3c] sm:$0xf]
        %v5491 = vld [vmem:[%s5474 + $0x40] sm:$0xf]
        %v5492 = vld [vmem:[%s5474 + $0x44] sm:$0xf]
        %v5493 = vld [vmem:[%s5474 + $0x48] sm:$0xf]
        %v5494 = vld [vmem:[%s5474 + $0x4c] sm:$0xf]
        %v5495 = vld [vmem:[%s5474 + $0x50] sm:$0xf]
        %v5496 = vld [vmem:[%s5474 + $0x54] sm:$0xf]
        %v5497 = vld [vmem:[%s5474 + $0x58] sm:$0xf]
        %v5498 = vld [vmem:[%s5474 + $0x5c] sm:$0xf]
        %v5499 = vld [vmem:[%s5474 + $0x60] sm:$0xf]
        %v5500 = vld [vmem:[%s5474 + $0x64] sm:$0xf]
        %v5501 = vld [vmem:[%s5474 + $0x68] sm:$0xf]
        %v5502 = vld [vmem:[%s5474 + $0x6c] sm:$0xf]
        %v5503 = vld [vmem:[%s5474 + $0x70] sm:$0xf]
        %v5504 = vld [vmem:[%s5474 + $0x74] sm:$0xf]
        %v5505 = vld [vmem:[%s5474 + $0x78] sm:$0xf]
        %v5506 = vld [vmem:[%s5474 + $0x7c] sm:$0xf]
        %v5507 = vld [vmem:[%s5474 + $0x80] sm:$0xf]
        %v5508 = vld [vmem:[%s5474 + $0x84] sm:$0xf]
        %v5509 = vld [vmem:[%s5474 + $0x88] sm:$0xf]
        %v5510 = vld [vmem:[%s5474 + $0x8c] sm:$0xf]
        %v5511 = vld [vmem:[%s5474 + $0x90] sm:$0xf]
        %v5512 = vld [vmem:[%s5474 + $0x94] sm:$0xf]
        %v5513 = vld [vmem:[%s5474 + $0x98] sm:$0xf]
        %v5514 = vld [vmem:[%s5474 + $0x9c] sm:$0xf]
        %v5515 = vld [vmem:[%s5474 + $0xa0] sm:$0xf]
        %v5516 = vld [vmem:[%s5474 + $0xa4] sm:$0xf]
        %v5517 = vld [vmem:[%s5474 + $0xa8] sm:$0xf]
        %v5518 = vld [vmem:[%s5474 + $0xac] sm:$0xf]
        %v5519 = vld [vmem:[%s5474 + $0xb0] sm:$0xf]
        %v5520 = vld [vmem:[%s5474 + $0xb4] sm:$0xf]
        %v5521 = vld [vmem:[%s5474 + $0xb8] sm:$0xf]
        %v5522 = vld [vmem:[%s5474 + $0xbc] sm:$0xf]
        %v5523 = vld [vmem:[%s5474 + $0xc0] sm:$0xf]
        %v5524 = vld [vmem:[%s5474 + $0xc4] sm:$0xf]
        %v5525 = vld [vmem:[%s5474 + $0xc8] sm:$0xf]
        %v5526 = vld [vmem:[%s5474 + $0xcc] sm:$0xf]
        %v5527 = vld [vmem:[%s5474 + $0xd0] sm:$0xf]
        %v5528 = vld [vmem:[%s5474 + $0xd4] sm:$0xf]
        %v5529 = vld [vmem:[%s5474 + $0xd8] sm:$0xf]
        %v5530 = vld [vmem:[%s5474 + $0xdc] sm:$0xf]
        %v5531 = vld [vmem:[%s5474 + $0xe0] sm:$0xf]
        %v5532 = vld [vmem:[%s5474 + $0xe4] sm:$0xf]
        %v5533 = vld [vmem:[%s5474 + $0xe8] sm:$0xf]
        %v5534 = vld [vmem:[%s5474 + $0xec] sm:$0xf]
        %v5535 = vld [vmem:[%s5474 + $0xf0] sm:$0xf]
        %v5536 = vld [vmem:[%s5474 + $0xf4] sm:$0xf]
        %v5537 = vld [vmem:[%s5474 + $0xf8] sm:$0xf]
        %v5538 = vld [vmem:[%s5474 + $0xfc] sm:$0xf]
        %s5539 = scalar_lea.vmem %s15, 1
        %v5540 = vld [vmem:[%s5539] sm:$0x1]
        %v5541 = vpack.c.bf16 %v5107, %v5107
        %v5542 = vpack.c.bf16 %v5109, %v5109
        %v5543 = vpack.c.bf16 %v5148, %v5148
        %v5544 = vpack.c.bf16 %v5150, %v5150
        %5545 = vmatprep.subr.bf16.mxu0 0
        %5546 = vmatpush1.bf16.xpose.msra.mxu0 %v5466
        %5547 = vmatprep.subr.bf16.mxu0 0
        %5548 = vmatpush1.bf16.xpose.msra.mxu0 0
        %5549 = vmatprep.subr.bf16.mxu0 0
        %5550 = vmatpush1.bf16.xpose.msra.mxu0 0
        %5551 = vmatprep.subr.bf16.mxu0 0
        %5552 = vmatpush1.bf16.xpose.msra.mxu0 0
        %5553 = vmatprep.subr.bf16.mxu0 0
        %5554 = vmatpush1.bf16.xpose.msra.mxu0 0
        %5555 = vmatprep.subr.bf16.mxu0 0
        %5556 = vmatpush1.bf16.xpose.msra.mxu0 0
        %5557 = vmatprep.subr.bf16.mxu0 0
        %5558 = vmatpush1.bf16.xpose.msra.mxu0 0
        %5559 = vmatprep.subr.bf16.mxu0 0
        %5560 = vmatpush1.bf16.xpose.msra.mxu0 0
        %5561 = vmatprep.subr.bf16.mxu0 0
        %5562 = vmatpush1.bf16.xpose.msra.mxu0 0
        %5563 = vmatprep.subr.bf16.mxu0 0
        %5564 = vmatpush1.bf16.xpose.msra.mxu0 0
        %5565 = vmatprep.subr.bf16.mxu0 0
        %5566 = vmatpush1.bf16.xpose.msra.mxu0 0
        %5567 = vmatprep.subr.bf16.mxu0 0
        %5568 = vmatpush1.bf16.xpose.msra.mxu0 0
        %5569 = vmatprep.subr.bf16.mxu0 0
        %5570 = vmatpush1.bf16.xpose.msra.mxu0 0
        %5571 = vmatprep.subr.bf16.mxu0 0
        %5572 = vmatpush1.bf16.xpose.msra.mxu0 0
        %5573 = vmatprep.subr.bf16.mxu0 0
        %5574 = vmatpush1.bf16.xpose.msra.mxu0 0
        %5575 = vmatprep.subr.bf16.mxu0 0
        %5576 = vmatpush1.bf16.xpose.msra.mxu0 0
        %5577 = vmatprep.mubr.bf16.mxu0 0
        %5578 = vmatmul.mubr.bf16.gmra.mrb[0].mxu0 %v5541
        %v5579 = vpop.f32.mrb[0].mxu0
        %v5580 = vadd.f32 0.0, %v5579
        %v5581 = vpop.f32.mrb[0].mxu0
        %v5582 = vpop.f32.mrb[0].mxu0
        %v5583 = vpop.f32.mrb[0].mxu0
        %5584 = vdwg.mxu0
        %v5585 = vmul.f32 %v5580, 0.35355338
        %v5586 = vsel %vm2740, %v5585, -inf
        %5587 = vmax.xlane.f32.xlu0 %v5586
        %v5588 = vpop.xlane.xlu0 %5587
        %v5589 = vsub.f32 %v5585, %v5588
        %v5590 = vmul.f32 %v5589, 1.442695
        %v5591 = vpow.pop %v5590
        %v5592 = vsel %vm2740, %v5591, 0.0
        %5593 = vadd.xlane.f32.xlu0 %v5592
        %v5594 = vpop.xlane.xlu0 %5593
        %v5595 = vrcp.pop %v5594
        %v5596 = vmul.f32 %v5591, %v5595
        %v5597 = vpack.c.bf16 %v5596, %v5596
        %v5599 = vsel %vm2740, %v5597, 0
        %5601 = vmatprep.subr.bf16.mxu0 0
        %5602 = vmatpush1.bf16.msra.mxu0 %v5470
        %5603 = vmatprep.subr.bf16.mxu0 0
        %5604 = vmatpush1.bf16.msra.mxu0 0
        %5605 = vmatprep.subr.bf16.mxu0 0
        %5606 = vmatpush1.bf16.msra.mxu0 0
        %5607 = vmatprep.subr.bf16.mxu0 0
        %5608 = vmatpush1.bf16.msra.mxu0 0
        %5609 = vmatprep.subr.bf16.mxu0 0
        %5610 = vmatpush1.bf16.msra.mxu0 0
        %5611 = vmatprep.subr.bf16.mxu0 0
        %5612 = vmatpush1.bf16.msra.mxu0 0
        %5613 = vmatprep.subr.bf16.mxu0 0
        %5614 = vmatpush1.bf16.msra.mxu0 0
        %5615 = vmatprep.subr.bf16.mxu0 0
        %5616 = vmatpush1.bf16.msra.mxu0 0
        %5617 = vmatprep.subr.bf16.mxu0 0
        %5618 = vmatpush1.bf16.msra.mxu0 0
        %5619 = vmatprep.subr.bf16.mxu0 0
        %5620 = vmatpush1.bf16.msra.mxu0 0
        %5621 = vmatprep.subr.bf16.mxu0 0
        %5622 = vmatpush1.bf16.msra.mxu0 0
        %5623 = vmatprep.subr.bf16.mxu0 0
        %5624 = vmatpush1.bf16.msra.mxu0 0
        %5625 = vmatprep.subr.bf16.mxu0 0
        %5626 = vmatpush1.bf16.msra.mxu0 0
        %5627 = vmatprep.subr.bf16.mxu0 0
        %5628 = vmatpush1.bf16.msra.mxu0 0
        %5629 = vmatprep.subr.bf16.mxu0 0
        %5630 = vmatpush1.bf16.msra.mxu0 0
        %5631 = vmatprep.subr.bf16.mxu0 0
        %5632 = vmatpush1.bf16.msra.mxu0 0
        %5633 = vmatprep.mubr.bf16.mxu0 0
        %5634 = vmatmul.mubr.bf16.gmra.mrb[0].mxu0 %v5599
        %v5635 = vpop.f32.mrb[0].mxu0
        %v5636 = vadd.f32 0.0, %v5635
        %v5637 = vpop.f32.mrb[0].mxu0
        %v5638 = vpop.f32.mrb[0].mxu0
        %v5639 = vpop.f32.mrb[0].mxu0
        %5640 = vdwg.mxu0
        %v5641 = vpack.c.bf16 %v5636, %v5636
        %5642 = vmatprep.subr.bf16.mxu0 0
        %5643 = vmatpush1.bf16.xpose.msra.mxu0 %v5467
        %5644 = vmatprep.subr.bf16.mxu0 0
        %5645 = vmatpush1.bf16.xpose.msra.mxu0 0
        %5646 = vmatprep.subr.bf16.mxu0 0
        %5647 = vmatpush1.bf16.xpose.msra.mxu0 0
        %5648 = vmatprep.subr.bf16.mxu0 0
        %5649 = vmatpush1.bf16.xpose.msra.mxu0 0
        %5650 = vmatprep.subr.bf16.mxu0 0
        %5651 = vmatpush1.bf16.xpose.msra.mxu0 0
        %5652 = vmatprep.subr.bf16.mxu0 0
        %5653 = vmatpush1.bf16.xpose.msra.mxu0 0
        %5654 = vmatprep.subr.bf16.mxu0 0
        %5655 = vmatpush1.bf16.xpose.msra.mxu0 0
        %5656 = vmatprep.subr.bf16.mxu0 0
        %5657 = vmatpush1.bf16.xpose.msra.mxu0 0
        %5658 = vmatprep.subr.bf16.mxu0 0
        %5659 = vmatpush1.bf16.xpose.msra.mxu0 0
        %5660 = vmatprep.subr.bf16.mxu0 0
        %5661 = vmatpush1.bf16.xpose.msra.mxu0 0
        %5662 = vmatprep.subr.bf16.mxu0 0
        %5663 = vmatpush1.bf16.xpose.msra.mxu0 0
        %5664 = vmatprep.subr.bf16.mxu0 0
        %5665 = vmatpush1.bf16.xpose.msra.mxu0 0
        %5666 = vmatprep.subr.bf16.mxu0 0
        %5667 = vmatpush1.bf16.xpose.msra.mxu0 0
        %5668 = vmatprep.subr.bf16.mxu0 0
        %5669 = vmatpush1.bf16.xpose.msra.mxu0 0
        %5670 = vmatprep.subr.bf16.mxu0 0
        %5671 = vmatpush1.bf16.xpose.msra.mxu0 0
        %5672 = vmatprep.subr.bf16.mxu0 0
        %5673 = vmatpush1.bf16.xpose.msra.mxu0 0
        %5674 = vmatprep.mubr.bf16.mxu0 0
        %5675 = vmatmul.mubr.bf16.gmra.mrb[0].mxu0 %v5542
        %v5676 = vpop.f32.mrb[0].mxu0
        %v5677 = vadd.f32 0.0, %v5676
        %v5678 = vpop.f32.mrb[0].mxu0
        %v5679 = vpop.f32.mrb[0].mxu0
        %v5680 = vpop.f32.mrb[0].mxu0
        %5681 = vdwg.mxu0
        %v5682 = vmul.f32 %v5677, 0.35355338
        %v5683 = vsel %vm2740, %v5682, -inf
        %5684 = vmax.xlane.f32.xlu0 %v5683
        %v5685 = vpop.xlane.xlu0 %5684
        %v5686 = vsub.f32 %v5682, %v5685
        %v5687 = vmul.f32 %v5686, 1.442695
        %v5688 = vpow.pop %v5687
        %v5689 = vsel %vm2740, %v5688, 0.0
        %5690 = vadd.xlane.f32.xlu0 %v5689
        %v5691 = vpop.xlane.xlu0 %5690
        %v5692 = vrcp.pop %v5691
        %v5693 = vmul.f32 %v5688, %v5692
        %v5694 = vpack.c.bf16 %v5693, %v5693
        %v5696 = vsel %vm2740, %v5694, 0
        %5698 = vmatprep.subr.bf16.mxu0 0
        %5699 = vmatpush1.bf16.msra.mxu0 %v5471
        %5700 = vmatprep.subr.bf16.mxu0 0
        %5701 = vmatpush1.bf16.msra.mxu0 0
        %5702 = vmatprep.subr.bf16.mxu0 0
        %5703 = vmatpush1.bf16.msra.mxu0 0
        %5704 = vmatprep.subr.bf16.mxu0 0
        %5705 = vmatpush1.bf16.msra.mxu0 0
        %5706 = vmatprep.subr.bf16.mxu0 0
        %5707 = vmatpush1.bf16.msra.mxu0 0
        %5708 = vmatprep.subr.bf16.mxu0 0
        %5709 = vmatpush1.bf16.msra.mxu0 0
        %5710 = vmatprep.subr.bf16.mxu0 0
        %5711 = vmatpush1.bf16.msra.mxu0 0
        %5712 = vmatprep.subr.bf16.mxu0 0
        %5713 = vmatpush1.bf16.msra.mxu0 0
        %5714 = vmatprep.subr.bf16.mxu0 0
        %5715 = vmatpush1.bf16.msra.mxu0 0
        %5716 = vmatprep.subr.bf16.mxu0 0
        %5717 = vmatpush1.bf16.msra.mxu0 0
        %5718 = vmatprep.subr.bf16.mxu0 0
        %5719 = vmatpush1.bf16.msra.mxu0 0
        %5720 = vmatprep.subr.bf16.mxu0 0
        %5721 = vmatpush1.bf16.msra.mxu0 0
        %5722 = vmatprep.subr.bf16.mxu0 0
        %5723 = vmatpush1.bf16.msra.mxu0 0
        %5724 = vmatprep.subr.bf16.mxu0 0
        %5725 = vmatpush1.bf16.msra.mxu0 0
        %5726 = vmatprep.subr.bf16.mxu0 0
        %5727 = vmatpush1.bf16.msra.mxu0 0
        %5728 = vmatprep.subr.bf16.mxu0 0
        %5729 = vmatpush1.bf16.msra.mxu0 0
        %5730 = vmatprep.mubr.bf16.mxu0 0
        %5731 = vmatmul.mubr.bf16.gmra.mrb[0].mxu0 %v5696
        %v5732 = vpop.f32.mrb[0].mxu0
        %v5733 = vadd.f32 0.0, %v5732
        %v5734 = vpop.f32.mrb[0].mxu0
        %v5735 = vpop.f32.mrb[0].mxu0
        %v5736 = vpop.f32.mrb[0].mxu0
        %5737 = vdwg.mxu0
        %v5738 = vpack.c.bf16 %v5733, %v5733
        %v5755 = vunpack.c.l.b16 %v5491
        %v5756 = vunpack.c.l.b16 %v5492
        %v5757 = vunpack.c.l.b16 %v5493
        %v5758 = vunpack.c.l.b16 %v5494
        %v5759 = vunpack.c.l.b16 %v5495
        %v5760 = vunpack.c.l.b16 %v5496
        %v5761 = vunpack.c.l.b16 %v5497
        %v5762 = vunpack.c.l.b16 %v5498
        %v5763 = vunpack.c.l.b16 %v5499
        %v5764 = vunpack.c.l.b16 %v5500
        %v5765 = vunpack.c.l.b16 %v5501
        %v5766 = vunpack.c.l.b16 %v5502
        %v5767 = vunpack.c.l.b16 %v5503
        %v5768 = vunpack.c.l.b16 %v5504
        %v5769 = vunpack.c.l.b16 %v5505
        %v5770 = vunpack.c.l.b16 %v5506
        %v5771 = vpack.c.b16 %v5756, %v5755
        %v5772 = vpack.c.b16 %v5758, %v5757
        %v5773 = vpack.c.b16 %v5760, %v5759
        %v5774 = vpack.c.b16 %v5762, %v5761
        %v5775 = vpack.c.b16 %v5764, %v5763
        %v5776 = vpack.c.b16 %v5766, %v5765
        %v5777 = vpack.c.b16 %v5768, %v5767
        %v5778 = vpack.c.b16 %v5770, %v5769
        %5787 = vmatprep.subr.bf16.mxu0 0
        %5788 = vmatpush1.bf16.msra.mxu0 %v5771
        %5789 = vmatprep.subr.bf16.mxu0 0
        %5790 = vmatpush1.bf16.msra.mxu0 %v5772
        %5791 = vmatprep.subr.bf16.mxu0 0
        %5792 = vmatpush1.bf16.msra.mxu0 %v5773
        %5793 = vmatprep.subr.bf16.mxu0 0
        %5794 = vmatpush1.bf16.msra.mxu0 %v5774
        %5795 = vmatprep.subr.bf16.mxu0 0
        %5796 = vmatpush1.bf16.msra.mxu0 %v5775
        %5797 = vmatprep.subr.bf16.mxu0 0
        %5798 = vmatpush1.bf16.msra.mxu0 %v5776
        %5799 = vmatprep.subr.bf16.mxu0 0
        %5800 = vmatpush1.bf16.msra.mxu0 %v5777
        %5801 = vmatprep.subr.bf16.mxu0 0
        %5802 = vmatpush1.bf16.msra.mxu0 %v5778
        %5803 = vmatprep.subr.bf16.mxu0 0
        %5804 = vmatpush1.bf16.msra.mxu0 0
        %5805 = vmatprep.subr.bf16.mxu0 0
        %5806 = vmatpush1.bf16.msra.mxu0 0
        %5807 = vmatprep.subr.bf16.mxu0 0
        %5808 = vmatpush1.bf16.msra.mxu0 0
        %5809 = vmatprep.subr.bf16.mxu0 0
        %5810 = vmatpush1.bf16.msra.mxu0 0
        %5811 = vmatprep.subr.bf16.mxu0 0
        %5812 = vmatpush1.bf16.msra.mxu0 0
        %5813 = vmatprep.subr.bf16.mxu0 0
        %5814 = vmatpush1.bf16.msra.mxu0 0
        %5815 = vmatprep.subr.bf16.mxu0 0
        %5816 = vmatpush1.bf16.msra.mxu0 0
        %5817 = vmatprep.subr.bf16.mxu0 0
        %5818 = vmatpush1.bf16.msra.mxu0 0
        %5819 = vmatprep.mubr.bf16.mxu0 0
        %5820 = vmatmul.mubr.bf16.gmra.mrb[0].mxu0 %v5738
        %v5821 = vpop.f32.mrb[0].mxu0
        %v5822 = vadd.f32 0.0, %v5821
        %v5823 = vpop.f32.mrb[0].mxu0
        %v5824 = vpop.f32.mrb[0].mxu0
        %v5825 = vpop.f32.mrb[0].mxu0
        %5826 = vdwg.mxu0
        %v5843 = vunpack.c.l.b16 %v5475
        %v5844 = vunpack.c.l.b16 %v5476
        %v5845 = vunpack.c.l.b16 %v5477
        %v5846 = vunpack.c.l.b16 %v5478
        %v5847 = vunpack.c.l.b16 %v5479
        %v5848 = vunpack.c.l.b16 %v5480
        %v5849 = vunpack.c.l.b16 %v5481
        %v5850 = vunpack.c.l.b16 %v5482
        %v5851 = vunpack.c.l.b16 %v5483
        %v5852 = vunpack.c.l.b16 %v5484
        %v5853 = vunpack.c.l.b16 %v5485
        %v5854 = vunpack.c.l.b16 %v5486
        %v5855 = vunpack.c.l.b16 %v5487
        %v5856 = vunpack.c.l.b16 %v5488
        %v5857 = vunpack.c.l.b16 %v5489
        %v5858 = vunpack.c.l.b16 %v5490
        %v5859 = vpack.c.b16 %v5844, %v5843
        %v5860 = vpack.c.b16 %v5846, %v5845
        %v5861 = vpack.c.b16 %v5848, %v5847
        %v5862 = vpack.c.b16 %v5850, %v5849
        %v5863 = vpack.c.b16 %v5852, %v5851
        %v5864 = vpack.c.b16 %v5854, %v5853
        %v5865 = vpack.c.b16 %v5856, %v5855
        %v5866 = vpack.c.b16 %v5858, %v5857
        %5875 = vmatprep.subr.bf16.mxu0 0
        %5876 = vmatpush1.bf16.msra.mxu0 %v5859
        %5877 = vmatprep.subr.bf16.mxu0 0
        %5878 = vmatpush1.bf16.msra.mxu0 %v5860
        %5879 = vmatprep.subr.bf16.mxu0 0
        %5880 = vmatpush1.bf16.msra.mxu0 %v5861
        %5881 = vmatprep.subr.bf16.mxu0 0
        %5882 = vmatpush1.bf16.msra.mxu0 %v5862
        %5883 = vmatprep.subr.bf16.mxu0 0
        %5884 = vmatpush1.bf16.msra.mxu0 %v5863
        %5885 = vmatprep.subr.bf16.mxu0 0
        %5886 = vmatpush1.bf16.msra.mxu0 %v5864
        %5887 = vmatprep.subr.bf16.mxu0 0
        %5888 = vmatpush1.bf16.msra.mxu0 %v5865
        %5889 = vmatprep.subr.bf16.mxu0 0
        %5890 = vmatpush1.bf16.msra.mxu0 %v5866
        %5891 = vmatprep.subr.bf16.mxu0 0
        %5892 = vmatpush1.bf16.msra.mxu0 0
        %5893 = vmatprep.subr.bf16.mxu0 0
        %5894 = vmatpush1.bf16.msra.mxu0 0
        %5895 = vmatprep.subr.bf16.mxu0 0
        %5896 = vmatpush1.bf16.msra.mxu0 0
        %5897 = vmatprep.subr.bf16.mxu0 0
        %5898 = vmatpush1.bf16.msra.mxu0 0
        %5899 = vmatprep.subr.bf16.mxu0 0
        %5900 = vmatpush1.bf16.msra.mxu0 0
        %5901 = vmatprep.subr.bf16.mxu0 0
        %5902 = vmatpush1.bf16.msra.mxu0 0
        %5903 = vmatprep.subr.bf16.mxu0 0
        %5904 = vmatpush1.bf16.msra.mxu0 0
        %5905 = vmatprep.subr.bf16.mxu0 0
        %5906 = vmatpush1.bf16.msra.mxu0 0
        %5907 = vmatprep.mubr.bf16.mxu0 0
        %5908 = vmatmul.mubr.bf16.gmra.mrb[0].mxu0 %v5641
        %v5909 = vpop.f32.mrb[0].mxu0
        %v5910 = vadd.f32 %v5822, %v5909
        %v5911 = vpop.f32.mrb[0].mxu0
        %v5912 = vpop.f32.mrb[0].mxu0
        %v5913 = vpop.f32.mrb[0].mxu0
        %5914 = vdwg.mxu0
        %5915 = vmatprep.subr.bf16.mxu0 0
        %5916 = vmatpush1.bf16.xpose.msra.mxu0 %v5468
        %5917 = vmatprep.subr.bf16.mxu0 0
        %5918 = vmatpush1.bf16.xpose.msra.mxu0 0
        %5919 = vmatprep.subr.bf16.mxu0 0
        %5920 = vmatpush1.bf16.xpose.msra.mxu0 0
        %5921 = vmatprep.subr.bf16.mxu0 0
        %5922 = vmatpush1.bf16.xpose.msra.mxu0 0
        %5923 = vmatprep.subr.bf16.mxu0 0
        %5924 = vmatpush1.bf16.xpose.msra.mxu0 0
        %5925 = vmatprep.subr.bf16.mxu0 0
        %5926 = vmatpush1.bf16.xpose.msra.mxu0 0
        %5927 = vmatprep.subr.bf16.mxu0 0
        %5928 = vmatpush1.bf16.xpose.msra.mxu0 0
        %5929 = vmatprep.subr.bf16.mxu0 0
        %5930 = vmatpush1.bf16.xpose.msra.mxu0 0
        %5931 = vmatprep.subr.bf16.mxu0 0
        %5932 = vmatpush1.bf16.xpose.msra.mxu0 0
        %5933 = vmatprep.subr.bf16.mxu0 0
        %5934 = vmatpush1.bf16.xpose.msra.mxu0 0
        %5935 = vmatprep.subr.bf16.mxu0 0
        %5936 = vmatpush1.bf16.xpose.msra.mxu0 0
        %5937 = vmatprep.subr.bf16.mxu0 0
        %5938 = vmatpush1.bf16.xpose.msra.mxu0 0
        %5939 = vmatprep.subr.bf16.mxu0 0
        %5940 = vmatpush1.bf16.xpose.msra.mxu0 0
        %5941 = vmatprep.subr.bf16.mxu0 0
        %5942 = vmatpush1.bf16.xpose.msra.mxu0 0
        %5943 = vmatprep.subr.bf16.mxu0 0
        %5944 = vmatpush1.bf16.xpose.msra.mxu0 0
        %5945 = vmatprep.subr.bf16.mxu0 0
        %5946 = vmatpush1.bf16.xpose.msra.mxu0 0
        %5947 = vmatprep.mubr.bf16.mxu0 0
        %5948 = vmatmul.mubr.bf16.gmra.mrb[0].mxu0 %v5543
        %v5949 = vpop.f32.mrb[0].mxu0
        %v5950 = vadd.f32 0.0, %v5949
        %v5951 = vpop.f32.mrb[0].mxu0
        %v5952 = vpop.f32.mrb[0].mxu0
        %v5953 = vpop.f32.mrb[0].mxu0
        %5954 = vdwg.mxu0
        %v5955 = vmul.f32 %v5950, 0.35355338
        %v5956 = vsel %vm2740, %v5955, -inf
        %5957 = vmax.xlane.f32.xlu0 %v5956
        %v5958 = vpop.xlane.xlu0 %5957
        %v5959 = vsub.f32 %v5955, %v5958
        %v5960 = vmul.f32 %v5959, 1.442695
        %v5961 = vpow.pop %v5960
        %v5962 = vsel %vm2740, %v5961, 0.0
        %5963 = vadd.xlane.f32.xlu0 %v5962
        %v5964 = vpop.xlane.xlu0 %5963
        %v5965 = vrcp.pop %v5964
        %v5966 = vmul.f32 %v5961, %v5965
        %v5967 = vpack.c.bf16 %v5966, %v5966
        %v5969 = vsel %vm2740, %v5967, 0
        %5971 = vmatprep.subr.bf16.mxu0 0
        %5972 = vmatpush1.bf16.msra.mxu0 %v5472
        %5973 = vmatprep.subr.bf16.mxu0 0
        %5974 = vmatpush1.bf16.msra.mxu0 0
        %5975 = vmatprep.subr.bf16.mxu0 0
        %5976 = vmatpush1.bf16.msra.mxu0 0
        %5977 = vmatprep.subr.bf16.mxu0 0
        %5978 = vmatpush1.bf16.msra.mxu0 0
        %5979 = vmatprep.subr.bf16.mxu0 0
        %5980 = vmatpush1.bf16.msra.mxu0 0
        %5981 = vmatprep.subr.bf16.mxu0 0
        %5982 = vmatpush1.bf16.msra.mxu0 0
        %5983 = vmatprep.subr.bf16.mxu0 0
        %5984 = vmatpush1.bf16.msra.mxu0 0
        %5985 = vmatprep.subr.bf16.mxu0 0
        %5986 = vmatpush1.bf16.msra.mxu0 0
        %5987 = vmatprep.subr.bf16.mxu0 0
        %5988 = vmatpush1.bf16.msra.mxu0 0
        %5989 = vmatprep.subr.bf16.mxu0 0
        %5990 = vmatpush1.bf16.msra.mxu0 0
        %5991 = vmatprep.subr.bf16.mxu0 0
        %5992 = vmatpush1.bf16.msra.mxu0 0
        %5993 = vmatprep.subr.bf16.mxu0 0
        %5994 = vmatpush1.bf16.msra.mxu0 0
        %5995 = vmatprep.subr.bf16.mxu0 0
        %5996 = vmatpush1.bf16.msra.mxu0 0
        %5997 = vmatprep.subr.bf16.mxu0 0
        %5998 = vmatpush1.bf16.msra.mxu0 0
        %5999 = vmatprep.subr.bf16.mxu0 0
        %6000 = vmatpush1.bf16.msra.mxu0 0
        %6001 = vmatprep.subr.bf16.mxu0 0
        %6002 = vmatpush1.bf16.msra.mxu0 0
        %6003 = vmatprep.mubr.bf16.mxu0 0
        %6004 = vmatmul.mubr.bf16.gmra.mrb[0].mxu0 %v5969
        %v6005 = vpop.f32.mrb[0].mxu0
        %v6006 = vadd.f32 0.0, %v6005
        %v6007 = vpop.f32.mrb[0].mxu0
        %v6008 = vpop.f32.mrb[0].mxu0
        %v6009 = vpop.f32.mrb[0].mxu0
        %6010 = vdwg.mxu0
        %v6011 = vpack.c.bf16 %v6006, %v6006
        %v6028 = vunpack.c.l.b16 %v5507
        %v6029 = vunpack.c.l.b16 %v5508
        %v6030 = vunpack.c.l.b16 %v5509
        %v6031 = vunpack.c.l.b16 %v5510
        %v6032 = vunpack.c.l.b16 %v5511
        %v6033 = vunpack.c.l.b16 %v5512
        %v6034 = vunpack.c.l.b16 %v5513
        %v6035 = vunpack.c.l.b16 %v5514
        %v6036 = vunpack.c.l.b16 %v5515
        %v6037 = vunpack.c.l.b16 %v5516
        %v6038 = vunpack.c.l.b16 %v5517
        %v6039 = vunpack.c.l.b16 %v5518
        %v6040 = vunpack.c.l.b16 %v5519
        %v6041 = vunpack.c.l.b16 %v5520
        %v6042 = vunpack.c.l.b16 %v5521
        %v6043 = vunpack.c.l.b16 %v5522
        %v6044 = vpack.c.b16 %v6029, %v6028
        %v6045 = vpack.c.b16 %v6031, %v6030
        %v6046 = vpack.c.b16 %v6033, %v6032
        %v6047 = vpack.c.b16 %v6035, %v6034
        %v6048 = vpack.c.b16 %v6037, %v6036
        %v6049 = vpack.c.b16 %v6039, %v6038
        %v6050 = vpack.c.b16 %v6041, %v6040
        %v6051 = vpack.c.b16 %v6043, %v6042
        %6060 = vmatprep.subr.bf16.mxu0 0
        %6061 = vmatpush1.bf16.msra.mxu0 %v6044
        %6062 = vmatprep.subr.bf16.mxu0 0
        %6063 = vmatpush1.bf16.msra.mxu0 %v6045
        %6064 = vmatprep.subr.bf16.mxu0 0
        %6065 = vmatpush1.bf16.msra.mxu0 %v6046
        %6066 = vmatprep.subr.bf16.mxu0 0
        %6067 = vmatpush1.bf16.msra.mxu0 %v6047
        %6068 = vmatprep.subr.bf16.mxu0 0
        %6069 = vmatpush1.bf16.msra.mxu0 %v6048
        %6070 = vmatprep.subr.bf16.mxu0 0
        %6071 = vmatpush1.bf16.msra.mxu0 %v6049
        %6072 = vmatprep.subr.bf16.mxu0 0
        %6073 = vmatpush1.bf16.msra.mxu0 %v6050
        %6074 = vmatprep.subr.bf16.mxu0 0
        %6075 = vmatpush1.bf16.msra.mxu0 %v6051
        %6076 = vmatprep.subr.bf16.mxu0 0
        %6077 = vmatpush1.bf16.msra.mxu0 0
        %6078 = vmatprep.subr.bf16.mxu0 0
        %6079 = vmatpush1.bf16.msra.mxu0 0
        %6080 = vmatprep.subr.bf16.mxu0 0
        %6081 = vmatpush1.bf16.msra.mxu0 0
        %6082 = vmatprep.subr.bf16.mxu0 0
        %6083 = vmatpush1.bf16.msra.mxu0 0
        %6084 = vmatprep.subr.bf16.mxu0 0
        %6085 = vmatpush1.bf16.msra.mxu0 0
        %6086 = vmatprep.subr.bf16.mxu0 0
        %6087 = vmatpush1.bf16.msra.mxu0 0
        %6088 = vmatprep.subr.bf16.mxu0 0
        %6089 = vmatpush1.bf16.msra.mxu0 0
        %6090 = vmatprep.subr.bf16.mxu0 0
        %6091 = vmatpush1.bf16.msra.mxu0 0
        %6092 = vmatprep.mubr.bf16.mxu0 0
        %6093 = vmatmul.mubr.bf16.gmra.mrb[0].mxu0 %v6011
        %v6094 = vpop.f32.mrb[0].mxu0
        %v6095 = vadd.f32 0.0, %v6094
        %v6096 = vpop.f32.mrb[0].mxu0
        %v6097 = vpop.f32.mrb[0].mxu0
        %v6098 = vpop.f32.mrb[0].mxu0
        %6099 = vdwg.mxu0
        %v6100 = vadd.f32 %v5910, %v6095
        %6101 = vmatprep.subr.bf16.mxu0 0
        %6102 = vmatpush1.bf16.xpose.msra.mxu0 %v5469
        %6103 = vmatprep.subr.bf16.mxu0 0
        %6104 = vmatpush1.bf16.xpose.msra.mxu0 0
        %6105 = vmatprep.subr.bf16.mxu0 0
        %6106 = vmatpush1.bf16.xpose.msra.mxu0 0
        %6107 = vmatprep.subr.bf16.mxu0 0
        %6108 = vmatpush1.bf16.xpose.msra.mxu0 0
        %6109 = vmatprep.subr.bf16.mxu0 0
        %6110 = vmatpush1.bf16.xpose.msra.mxu0 0
        %6111 = vmatprep.subr.bf16.mxu0 0
        %6112 = vmatpush1.bf16.xpose.msra.mxu0 0
        %6113 = vmatprep.subr.bf16.mxu0 0
        %6114 = vmatpush1.bf16.xpose.msra.mxu0 0
        %6115 = vmatprep.subr.bf16.mxu0 0
        %6116 = vmatpush1.bf16.xpose.msra.mxu0 0
        %6117 = vmatprep.subr.bf16.mxu0 0
        %6118 = vmatpush1.bf16.xpose.msra.mxu0 0
        %6119 = vmatprep.subr.bf16.mxu0 0
        %6120 = vmatpush1.bf16.xpose.msra.mxu0 0
        %6121 = vmatprep.subr.bf16.mxu0 0
        %6122 = vmatpush1.bf16.xpose.msra.mxu0 0
        %6123 = vmatprep.subr.bf16.mxu0 0
        %6124 = vmatpush1.bf16.xpose.msra.mxu0 0
        %6125 = vmatprep.subr.bf16.mxu0 0
        %6126 = vmatpush1.bf16.xpose.msra.mxu0 0
        %6127 = vmatprep.subr.bf16.mxu0 0
        %6128 = vmatpush1.bf16.xpose.msra.mxu0 0
        %6129 = vmatprep.subr.bf16.mxu0 0
        %6130 = vmatpush1.bf16.xpose.msra.mxu0 0
        %6131 = vmatprep.subr.bf16.mxu0 0
        %6132 = vmatpush1.bf16.xpose.msra.mxu0 0
        %6133 = vmatprep.mubr.bf16.mxu0 0
        %6134 = vmatmul.mubr.bf16.gmra.mrb[0].mxu0 %v5544
        %v6135 = vpop.f32.mrb[0].mxu0
        %v6136 = vadd.f32 0.0, %v6135
        %v6137 = vpop.f32.mrb[0].mxu0
        %v6138 = vpop.f32.mrb[0].mxu0
        %v6139 = vpop.f32.mrb[0].mxu0
        %6140 = vdwg.mxu0
        %v6141 = vmul.f32 %v6136, 0.35355338
        %v6142 = vsel %vm2740, %v6141, -inf
        %6143 = vmax.xlane.f32.xlu0 %v6142
        %v6144 = vpop.xlane.xlu0 %6143
        %v6145 = vsub.f32 %v6141, %v6144
        %v6146 = vmul.f32 %v6145, 1.442695
        %v6147 = vpow.pop %v6146
        %v6148 = vsel %vm2740, %v6147, 0.0
        %6149 = vadd.xlane.f32.xlu0 %v6148
        %v6150 = vpop.xlane.xlu0 %6149
        %v6151 = vrcp.pop %v6150
        %v6152 = vmul.f32 %v6147, %v6151
        %v6153 = vpack.c.bf16 %v6152, %v6152
        %v6155 = vsel %vm2740, %v6153, 0
        %6157 = vmatprep.subr.bf16.mxu0 0
        %6158 = vmatpush1.bf16.msra.mxu0 %v5473
        %6159 = vmatprep.subr.bf16.mxu0 0
        %6160 = vmatpush1.bf16.msra.mxu0 0
        %6161 = vmatprep.subr.bf16.mxu0 0
        %6162 = vmatpush1.bf16.msra.mxu0 0
        %6163 = vmatprep.subr.bf16.mxu0 0
        %6164 = vmatpush1.bf16.msra.mxu0 0
        %6165 = vmatprep.subr.bf16.mxu0 0
        %6166 = vmatpush1.bf16.msra.mxu0 0
        %6167 = vmatprep.subr.bf16.mxu0 0
        %6168 = vmatpush1.bf16.msra.mxu0 0
        %6169 = vmatprep.subr.bf16.mxu0 0
        %6170 = vmatpush1.bf16.msra.mxu0 0
        %6171 = vmatprep.subr.bf16.mxu0 0
        %6172 = vmatpush1.bf16.msra.mxu0 0
        %6173 = vmatprep.subr.bf16.mxu0 0
        %6174 = vmatpush1.bf16.msra.mxu0 0
        %6175 = vmatprep.subr.bf16.mxu0 0
        %6176 = vmatpush1.bf16.msra.mxu0 0
        %6177 = vmatprep.subr.bf16.mxu0 0
        %6178 = vmatpush1.bf16.msra.mxu0 0
        %6179 = vmatprep.subr.bf16.mxu0 0
        %6180 = vmatpush1.bf16.msra.mxu0 0
        %6181 = vmatprep.subr.bf16.mxu0 0
        %6182 = vmatpush1.bf16.msra.mxu0 0
        %6183 = vmatprep.subr.bf16.mxu0 0
        %6184 = vmatpush1.bf16.msra.mxu0 0
        %6185 = vmatprep.subr.bf16.mxu0 0
        %6186 = vmatpush1.bf16.msra.mxu0 0
        %6187 = vmatprep.subr.bf16.mxu0 0
        %6188 = vmatpush1.bf16.msra.mxu0 0
        %6189 = vmatprep.mubr.bf16.mxu0 0
        %6190 = vmatmul.mubr.bf16.gmra.mrb[0].mxu0 %v6155
        %v6191 = vpop.f32.mrb[0].mxu0
        %v6192 = vadd.f32 0.0, %v6191
        %v6193 = vpop.f32.mrb[0].mxu0
        %v6194 = vpop.f32.mrb[0].mxu0
        %v6195 = vpop.f32.mrb[0].mxu0
        %6196 = vdwg.mxu0
        %v6197 = vpack.c.bf16 %v6192, %v6192
        %v6214 = vunpack.c.l.b16 %v5523
        %v6215 = vunpack.c.l.b16 %v5524
        %v6216 = vunpack.c.l.b16 %v5525
        %v6217 = vunpack.c.l.b16 %v5526
        %v6218 = vunpack.c.l.b16 %v5527
        %v6219 = vunpack.c.l.b16 %v5528
        %v6220 = vunpack.c.l.b16 %v5529
        %v6221 = vunpack.c.l.b16 %v5530
        %v6222 = vunpack.c.l.b16 %v5531
        %v6223 = vunpack.c.l.b16 %v5532
        %v6224 = vunpack.c.l.b16 %v5533
        %v6225 = vunpack.c.l.b16 %v5534
        %v6226 = vunpack.c.l.b16 %v5535
        %v6227 = vunpack.c.l.b16 %v5536
        %v6228 = vunpack.c.l.b16 %v5537
        %v6229 = vunpack.c.l.b16 %v5538
        %v6230 = vpack.c.b16 %v6215, %v6214
        %v6231 = vpack.c.b16 %v6217, %v6216
        %v6232 = vpack.c.b16 %v6219, %v6218
        %v6233 = vpack.c.b16 %v6221, %v6220
        %v6234 = vpack.c.b16 %v6223, %v6222
        %v6235 = vpack.c.b16 %v6225, %v6224
        %v6236 = vpack.c.b16 %v6227, %v6226
        %v6237 = vpack.c.b16 %v6229, %v6228
        %6246 = vmatprep.subr.bf16.mxu0 0
        %6247 = vmatpush1.bf16.msra.mxu0 %v6230
        %6248 = vmatprep.subr.bf16.mxu0 0
        %6249 = vmatpush1.bf16.msra.mxu0 %v6231
        %6250 = vmatprep.subr.bf16.mxu0 0
        %6251 = vmatpush1.bf16.msra.mxu0 %v6232
        %6252 = vmatprep.subr.bf16.mxu0 0
        %6253 = vmatpush1.bf16.msra.mxu0 %v6233
        %6254 = vmatprep.subr.bf16.mxu0 0
        %6255 = vmatpush1.bf16.msra.mxu0 %v6234
        %6256 = vmatprep.subr.bf16.mxu0 0
        %6257 = vmatpush1.bf16.msra.mxu0 %v6235
        %6258 = vmatprep.subr.bf16.mxu0 0
        %6259 = vmatpush1.bf16.msra.mxu0 %v6236
        %6260 = vmatprep.subr.bf16.mxu0 0
        %6261 = vmatpush1.bf16.msra.mxu0 %v6237
        %6262 = vmatprep.subr.bf16.mxu0 0
        %6263 = vmatpush1.bf16.msra.mxu0 0
        %6264 = vmatprep.subr.bf16.mxu0 0
        %6265 = vmatpush1.bf16.msra.mxu0 0
        %6266 = vmatprep.subr.bf16.mxu0 0
        %6267 = vmatpush1.bf16.msra.mxu0 0
        %6268 = vmatprep.subr.bf16.mxu0 0
        %6269 = vmatpush1.bf16.msra.mxu0 0
        %6270 = vmatprep.subr.bf16.mxu0 0
        %6271 = vmatpush1.bf16.msra.mxu0 0
        %6272 = vmatprep.subr.bf16.mxu0 0
        %6273 = vmatpush1.bf16.msra.mxu0 0
        %6274 = vmatprep.subr.bf16.mxu0 0
        %6275 = vmatpush1.bf16.msra.mxu0 0
        %6276 = vmatprep.subr.bf16.mxu0 0
        %6277 = vmatpush1.bf16.msra.mxu0 0
        %6278 = vmatprep.mubr.bf16.mxu0 0
        %6279 = vmatmul.mubr.bf16.gmra.mrb[0].mxu0 %v6197
        %v6280 = vpop.f32.mrb[0].mxu0
        %v6281 = vadd.f32 0.0, %v6280
        %v6282 = vpop.f32.mrb[0].mxu0
        %v6283 = vpop.f32.mrb[0].mxu0
        %v6284 = vpop.f32.mrb[0].mxu0
        %6285 = vdwg.mxu0
        %v6286 = vadd.f32 %v6100, %v6281
        %v6288 = vlaneseq
        %v6289 = vshrl.u32 %v6288, 7
        %v6290 = vsub.s32 0, %v6289
        %v6291 = vrot.slane %v5540, %v6290
        %v6293 = vadd.f32 %v6286, %v6291
        %v6294 = vadd.f32 %v4964, %v6293
        %s6295 = scalar_lea.vmem %s16, 1
        %v6296 = vld [vmem:[%s6295] sm:$0x1]
        %s6297 = scalar_lea.vmem %s17, 1
        %v6298 = vld [vmem:[%s6297] sm:$0x1]
        %v6299 = vsel %vm796, %v6294, 0.0
        %6300 = vadd.xlane.f32.xlu0 %v6299
        %v6301 = vpop.xlane.xlu0 %6300
        %v6302 = vmul.f32 %v6301, %v800
        %v6303 = vsub.f32 %v6294, %v6302
        %v6304 = vmul.f32 %v6303, %v6303
        %v6305 = vsel %vm796, %v6304, 0.0
        %6306 = vadd.xlane.f32.xlu0 %v6305
        %v6307 = vpop.xlane.xlu0 %6306
        %v6308 = vmul.f32 %v6307, %v800
        %v6309 = vadd.f32 %v6308, 1e-05
        %v6310 = vrsqrt.pop %v6309
        %v6311 = vmul.f32 %v6303, %v6310
        %v6313 = vlaneseq
        %v6314 = vshrl.u32 %v6313, 7
        %v6315 = vsub.s32 0, %v6314
        %v6316 = vrot.slane %v6296, %v6315
        %v6318 = vmul.f32 %v6311, %v6316
        %v6320 = vlaneseq
        %v6321 = vshrl.u32 %v6320, 7
        %v6322 = vsub.s32 0, %v6321
        %v6323 = vrot.slane %v6298, %v6322
        %v6325 = vadd.f32 %v6318, %v6323
        %v6326 = vpack.c.bf16 %v6325, %v6325
        %s6327 = scalar_lea.vmem %s18, 16
        %v6328 = vld [vmem:[%s6327] sm:$0xf]
        %v6329 = vld [vmem:[%s6327 + $0x4] sm:$0xf]
        %v6330 = vld [vmem:[%s6327 + $0x8] sm:$0xf]
        %v6331 = vld [vmem:[%s6327 + $0xc] sm:$0xf]
        %s6332 = scalar_lea.vmem %s19, 1
        %v6333 = vld [vmem:[%s6332] sm:$0x1]
        %v6335 = vlaneseq
        %v6336 = vshrl.u32 %v6335, 7
        %v6337 = vsub.s32 0, %v6336
        %v6338 = vrot.slane %v6333, %v6337
        %v6344 = vunpack.c.l.b16 %v6328
        %v6345 = vunpack.c.l.b16 %v6329
        %v6346 = vunpack.c.l.b16 %v6330
        %v6347 = vunpack.c.l.b16 %v6331
        %v6348 = vpack.c.b16 %v6345, %v6344
        %v6349 = vpack.c.b16 %v6347, %v6346
        %v6353 = vsel %vm796, %v6326, 0
        %6355 = vmatprep.subr.bf16.mxu0 0
        %6356 = vmatpush1.bf16.msra.mxu0 %v6348
        %6357 = vmatprep.subr.bf16.mxu0 0
        %6358 = vmatpush1.bf16.msra.mxu0 %v6349
        %6359 = vmatprep.subr.bf16.mxu0 0
        %6360 = vmatpush1.bf16.msra.mxu0 0
        %6361 = vmatprep.subr.bf16.mxu0 0
        %6362 = vmatpush1.bf16.msra.mxu0 0
        %6363 = vmatprep.subr.bf16.mxu0 0
        %6364 = vmatpush1.bf16.msra.mxu0 0
        %6365 = vmatprep.subr.bf16.mxu0 0
        %6366 = vmatpush1.bf16.msra.mxu0 0
        %6367 = vmatprep.subr.bf16.mxu0 0
        %6368 = vmatpush1.bf16.msra.mxu0 0
        %6369 = vmatprep.subr.bf16.mxu0 0
        %6370 = vmatpush1.bf16.msra.mxu0 0
        %6371 = vmatprep.subr.bf16.mxu0 0
        %6372 = vmatpush1.bf16.msra.mxu0 0
        %6373 = vmatprep.subr.bf16.mxu0 0
        %6374 = vmatpush1.bf16.msra.mxu0 0
        %6375 = vmatprep.subr.bf16.mxu0 0
        %6376 = vmatpush1.bf16.msra.mxu0 0
        %6377 = vmatprep.subr.bf16.mxu0 0
        %6378 = vmatpush1.bf16.msra.mxu0 0
        %6379 = vmatprep.subr.bf16.mxu0 0
        %6380 = vmatpush1.bf16.msra.mxu0 0
        %6381 = vmatprep.subr.bf16.mxu0 0
        %6382 = vmatpush1.bf16.msra.mxu0 0
        %6383 = vmatprep.subr.bf16.mxu0 0
        %6384 = vmatpush1.bf16.msra.mxu0 0
        %6385 = vmatprep.subr.bf16.mxu0 0
        %6386 = vmatpush1.bf16.msra.mxu0 0
        %6387 = vmatprep.mubr.bf16.mxu0 0
        %6388 = vmatmul.mubr.bf16.gmra.mrb[0].mxu0 %v6353
        %v6389 = vpop.f32.mrb[0].mxu0
        %v6390 = vadd.f32 %v6338, %v6389
        %v6391 = vpop.f32.mrb[0].mxu0
        %v6392 = vpop.f32.mrb[0].mxu0
        %v6393 = vpop.f32.mrb[0].mxu0
        %6394 = vdwg.mxu0
        %v6395 = vmax.f32 %v6390, 0.0
        %v6396 = vpack.c.bf16 %v6395, %v6395
        %s6397 = scalar_lea.vmem %s20, 32
        %v6398 = vld [vmem:[%s6397] sm:$0xf]
        %v6399 = vld [vmem:[%s6397 + $0x4] sm:$0xf]
        %v6400 = vld [vmem:[%s6397 + $0x8] sm:$0xf]
        %v6401 = vld [vmem:[%s6397 + $0xc] sm:$0xf]
        %v6402 = vld [vmem:[%s6397 + $0x10] sm:$0xf]
        %v6403 = vld [vmem:[%s6397 + $0x14] sm:$0xf]
        %v6404 = vld [vmem:[%s6397 + $0x18] sm:$0xf]
        %v6405 = vld [vmem:[%s6397 + $0x1c] sm:$0xf]
        %v6414 = vunpack.c.l.b16 %v6398
        %v6415 = vunpack.c.l.b16 %v6399
        %v6416 = vunpack.c.l.b16 %v6400
        %v6417 = vunpack.c.l.b16 %v6401
        %v6418 = vunpack.c.l.b16 %v6402
        %v6419 = vunpack.c.l.b16 %v6403
        %v6420 = vunpack.c.l.b16 %v6404
        %v6421 = vunpack.c.l.b16 %v6405
        %v6422 = vpack.c.b16 %v6415, %v6414
        %v6423 = vpack.c.b16 %v6417, %v6416
        %v6424 = vpack.c.b16 %v6419, %v6418
        %v6425 = vpack.c.b16 %v6421, %v6420
        %v6431 = vsel %vm3580, %v6396, 0
        %6433 = vmatprep.subr.bf16.mxu0 0
        %6434 = vmatpush1.bf16.msra.mxu0 %v6422
        %6435 = vmatprep.subr.bf16.mxu0 0
        %6436 = vmatpush1.bf16.msra.mxu0 %v6423
        %6437 = vmatprep.subr.bf16.mxu0 0
        %6438 = vmatpush1.bf16.msra.mxu0 %v6424
        %6439 = vmatprep.subr.bf16.mxu0 0
        %6440 = vmatpush1.bf16.msra.mxu0 %v6425
        %6441 = vmatprep.subr.bf16.mxu0 0
        %6442 = vmatpush1.bf16.msra.mxu0 0
        %6443 = vmatprep.subr.bf16.mxu0 0
        %6444 = vmatpush1.bf16.msra.mxu0 0
        %6445 = vmatprep.subr.bf16.mxu0 0
        %6446 = vmatpush1.bf16.msra.mxu0 0
        %6447 = vmatprep.subr.bf16.mxu0 0
        %6448 = vmatpush1.bf16.msra.mxu0 0
        %6449 = vmatprep.subr.bf16.mxu0 0
        %6450 = vmatpush1.bf16.msra.mxu0 0
        %6451 = vmatprep.subr.bf16.mxu0 0
        %6452 = vmatpush1.bf16.msra.mxu0 0
        %6453 = vmatprep.subr.bf16.mxu0 0
        %6454 = vmatpush1.bf16.msra.mxu0 0
        %6455 = vmatprep.subr.bf16.mxu0 0
        %6456 = vmatpush1.bf16.msra.mxu0 0
        %6457 = vmatprep.subr.bf16.mxu0 0
        %6458 = vmatpush1.bf16.msra.mxu0 0
        %6459 = vmatprep.subr.bf16.mxu0 0
        %6460 = vmatpush1.bf16.msra.mxu0 0
        %6461 = vmatprep.subr.bf16.mxu0 0
        %6462 = vmatpush1.bf16.msra.mxu0 0
        %6463 = vmatprep.subr.bf16.mxu0 0
        %6464 = vmatpush1.bf16.msra.mxu0 0
        %6465 = vmatprep.mubr.bf16.mxu0 0
        %6466 = vmatmul.mubr.bf16.gmra.mrb[0].mxu0 %v6431
        %v6467 = vpop.f32.mrb[0].mxu0
        %v6468 = vadd.f32 0.0, %v6467
        %v6469 = vpop.f32.mrb[0].mxu0
        %v6470 = vpop.f32.mrb[0].mxu0
        %v6471 = vpop.f32.mrb[0].mxu0
        %6472 = vdwg.mxu0
        %v6473 = vadd.f32 %v6294, %v6468
        %s6474 = scalar_lea.vmem %s21, 1
        %v6475 = vld [vmem:[%s6474] sm:$0x1]
        %v6477 = vlaneseq
        %v6478 = vshrl.u32 %v6477, 7
        %v6479 = vsub.s32 0, %v6478
        %v6480 = vrot.slane %v6475, %v6479
        %v6482 = vadd.f32 %v6473, %v6480
        %v6483 = vld [vmem:[%s22] sm:$0x1]
        %v6484 = vld [vmem:[%s23] sm:$0x1]
        %v6485 = vsel %vm796, %v6482, 0.0
        %6486 = vadd.xlane.f32.xlu0 %v6485
        %v6487 = vpop.xlane.xlu0 %6486
        %v6488 = vmul.f32 %v6487, %v800
        %v6489 = vsub.f32 %v6482, %v6488
        %v6490 = vmul.f32 %v6489, %v6489
        %v6491 = vsel %vm796, %v6490, 0.0
        %6492 = vadd.xlane.f32.xlu0 %v6491
        %v6493 = vpop.xlane.xlu0 %6492
        %v6494 = vmul.f32 %v6493, %v800
        %v6495 = vadd.f32 %v6494, 1e-05
        %v6496 = vrsqrt.pop %v6495
        %v6497 = vmul.f32 %v6489, %v6496
        %v6499 = vlaneseq
        %v6500 = vshrl.u32 %v6499, 7
        %v6501 = vsub.s32 0, %v6500
        %v6502 = vrot.slane %v6483, %v6501
        %v6504 = vmul.f32 %v6497, %v6502
        %v6506 = vlaneseq
        %v6507 = vshrl.u32 %v6506, 7
        %v6508 = vsub.s32 0, %v6507
        %v6509 = vrot.slane %v6484, %v6508
        %v6511 = vadd.f32 %v6504, %v6509
        %v6512 = vpack.c.bf16 %v6511, %v6511
        %v6513 = vld [vmem:[%s24] sm:$0xf]
        %v6514 = vld [vmem:[%s24 + $0x4] sm:$0xf]
        %v6515 = vld [vmem:[%s24 + $0x8] sm:$0xf]
        %v6516 = vld [vmem:[%s24 + $0xc] sm:$0xf]
        %v6517 = vld [vmem:[%s25] sm:$0x1]
        %v6519 = vlaneseq
        %v6520 = vshrl.u32 %v6519, 7
        %v6521 = vsub.s32 0, %v6520
        %v6522 = vrot.slane %v6517, %v6521
        %v6528 = vunpack.c.l.b16 %v6513
        %v6529 = vunpack.c.l.b16 %v6514
        %v6530 = vunpack.c.l.b16 %v6515
        %v6531 = vunpack.c.l.b16 %v6516
        %v6532 = vpack.c.b16 %v6529, %v6528
        %v6533 = vpack.c.b16 %v6531, %v6530
        %v6537 = vsel %vm796, %v6512, 0
        %6539 = vmatprep.subr.bf16.mxu0 0
        %6540 = vmatpush1.bf16.msra.mxu0 %v6532
        %6541 = vmatprep.subr.bf16.mxu0 0
        %6542 = vmatpush1.bf16.msra.mxu0 %v6533
        %6543 = vmatprep.subr.bf16.mxu0 0
        %6544 = vmatpush1.bf16.msra.mxu0 0
        %6545 = vmatprep.subr.bf16.mxu0 0
        %6546 = vmatpush1.bf16.msra.mxu0 0
        %6547 = vmatprep.subr.bf16.mxu0 0
        %6548 = vmatpush1.bf16.msra.mxu0 0
        %6549 = vmatprep.subr.bf16.mxu0 0
        %6550 = vmatpush1.bf16.msra.mxu0 0
        %6551 = vmatprep.subr.bf16.mxu0 0
        %6552 = vmatpush1.bf16.msra.mxu0 0
        %6553 = vmatprep.subr.bf16.mxu0 0
        %6554 = vmatpush1.bf16.msra.mxu0 0
        %6555 = vmatprep.subr.bf16.mxu0 0
        %6556 = vmatpush1.bf16.msra.mxu0 0
        %6557 = vmatprep.subr.bf16.mxu0 0
        %6558 = vmatpush1.bf16.msra.mxu0 0
        %6559 = vmatprep.subr.bf16.mxu0 0
        %6560 = vmatpush1.bf16.msra.mxu0 0
        %6561 = vmatprep.subr.bf16.mxu0 0
        %6562 = vmatpush1.bf16.msra.mxu0 0
        %6563 = vmatprep.subr.bf16.mxu0 0
        %6564 = vmatpush1.bf16.msra.mxu0 0
        %6565 = vmatprep.subr.bf16.mxu0 0
        %6566 = vmatpush1.bf16.msra.mxu0 0
        %6567 = vmatprep.subr.bf16.mxu0 0
        %6568 = vmatpush1.bf16.msra.mxu0 0
        %6569 = vmatprep.subr.bf16.mxu0 0
        %6570 = vmatpush1.bf16.msra.mxu0 0
        %6571 = vmatprep.mubr.bf16.mxu0 0
        %6572 = vmatmul.mubr.bf16.gmra.mrb[0].mxu0 %v6537
        %v6573 = vpop.f32.mrb[0].mxu0
        %v6574 = vadd.f32 %v6522, %v6573
        %v6575 = vpop.f32.mrb[0].mxu0
        %v6576 = vpop.f32.mrb[0].mxu0
        %v6577 = vpop.f32.mrb[0].mxu0
        %6578 = vdwg.mxu0
        %v6579 = vrot.slane %v6574, 4
        %v6580 = vadd.f32 %v6574, %v6579
        %v6581 = vrot.slane %v6580, 2
        %v6582 = vadd.f32 %v6580, %v6581
        %v6583 = vrot.slane %v6582, 1
        %v6584 = vadd.f32 %v6582, %v6583
        %v6585 = vrcp.pop 8.0
        %v6586 = vmul.f32 %v6584, %v6585
        %6587 = vst [vmem:[%s783] sm:$0x1] %v6586
        %s6588 = sand.u32 %s599, 1
        %s6589 = scalar_lea.sflag [#allocation3], %s6588
        %s6590 = sand.u32 %s599, 1
        %s6591 = scalar_lea.vmem [#allocation2], %s6590
        // Predicated region
        $region125: #{medklip_forward.5} parent=123 // pred_check
          %p6592 = pneg %p609
        $region126: #{medklip_forward.5} parent=123 // pred_check_branch
          %6594 = sbr.rel (%p6592) target = $region128
        $region127: #{medklip_forward.5} parent=123 // pred_region
          %s6596 = ssub.s32 16, 16
          %6597 = vsyncadd %s6589, %s6596
          %s6598 = smul.addr %s40, 16
          %s6599 = scalar_lea.hbm %s26, %s6598
          %s6601 = sshll.u32 %s6591, 4
          %s6602 = int_to_ptr.vmem [resolvable:$true] %s6601
          %6604 = dma.vmem_to_hbm [thread:$0]  %s6602, 16, %s6599, %s6589
        $region128: #{medklip_forward.5} parent=123 // pred_fallthru
          _
      $region124: #{medklip_forward.5} parent=5 // pred_fallthru
        _
      %p6605 = scmp.le.s32.totalorder 2, %s35
      // Predicated region
      $region129: #{medklip_forward.5} parent=5 // pred_check
        %p6606 = pneg %p6605
      $region130: #{medklip_forward.5} parent=5 // pred_check_branch
        %6608 = sbr.rel (%p6606) target = $region132
      $region131: #{medklip_forward.5} parent=5 // pred_region
        %s6609 = ssub.s32 %s35, 2
        // Predicated region
        $region133: #{medklip_forward.5} parent=131 // pred_check
          %p6610 = pneg %p615
        $region134: #{medklip_forward.5} parent=131 // pred_check_branch
          %6612 = sbr.rel (%p6610) target = $region136
        $region135: #{medklip_forward.5} parent=131 // pred_region
          %s6613 = sand.u32 %s600, 1
          %s6614 = scalar_lea.sflag [#allocation3], %s6613
          %s6615 = sand.u32 %s600, 1
          %s6616 = scalar_lea.vmem [#allocation2], %s6615
          %6617 = dma.done %s6614, 16
        $region136: #{medklip_forward.5} parent=131 // pred_fallthru
          _
      $region132: #{medklip_forward.5} parent=5 // pred_fallthru
        _
    $region6: #{medklip_forward.5} parent=1 // loop_footer
      %s39 = sadd.s32 1, %s35
    $region7: #{medklip_forward.5} parent=1 // loop_footer_branch
      %34 = sbr.rel target = $region3
    $region8: #{medklip_forward.5} parent=1 // loop_exit
      _
    %6618 = vsyncpa [#allocation3], 1
    %s6619 = scalar_lea.sflag [#allocation3], 1
    %6620 = vsyncpa %s6619, 1

</llo_original>
